<compile_context>
chip_gen: v7x
topology: tpu7x:2x2x1
jax: 0.10.0
libtpu: 0.0.40
codegen_flags: <defaults>
</compile_context>

<pallas_src>
import functools
import math

import jax
import jax.numpy as jnp
from jax.experimental import pallas as pl
from jax.experimental.pallas import tpu as pltpu

_SQRT_HALF = 0.7071067811865476


# ----------------------------- chip-generation gating -------------------------

def _chip_config():
    """Generation-gated knobs: VMEM limit, megacore splitting, matmul dtype."""
    try:
        kind = jax.devices()[0].device_kind.lower()
    except Exception:
        kind = ""
    if "v7" in kind:        # 64 MiB VMEM, 2 TensorCores/chip
        return {"vmem": 48 * 2 ** 20, "min_steps": 2, "mm_dtype": jnp.float32}
    if "v5 lite" in kind or "v5e" in kind or "v5lite" in kind:
        # 128 MiB VMEM, 1 TC, f32 matmul is multi-pass -> cast operands to bf16
        return {"vmem": 96 * 2 ** 20, "min_steps": 1, "mm_dtype": jnp.bfloat16}
    if "v6" in kind:        # 128 MiB VMEM, 1 TC, MXU idle at these shapes
        return {"vmem": 96 * 2 ** 20, "min_steps": 1, "mm_dtype": jnp.float32}
    # unknown / other (v4, v5p, cpu-emulation): conservative defaults
    return {"vmem": 64 * 2 ** 20, "min_steps": 1, "mm_dtype": jnp.float32}


_CFG = _chip_config()


def _mosaic(semantics):
    return pltpu.CompilerParams(dimension_semantics=semantics,
                                vmem_limit_bytes=_CFG["vmem"])


def _pick_tile(M, *, cap=1024, min_steps=None):
    """Largest row tile t with M % t == 0, t % 8 == 0, t <= cap; when min_steps>1
    (v7x megacore) also try to leave >= min_steps grid steps."""
    if min_steps is None:
        min_steps = _CFG["min_steps"]
    limit = min(cap, M)
    if min_steps > 1 and M // min_steps >= 8:
        limit = min(limit, M // min_steps)
    t = (limit // 8) * 8
    while t >= 8:
        if M % t == 0:
            return t
        t -= 8
    return M   # block == full extent (always legal)


# ----------------------------- in-kernel helpers -----------------------------

def _erf(x):
    # Abramowitz & Stegun 7.1.26 polynomial (|err| < 1.5e-7 with exact divide);
    # the divide is replaced by an EUP approx reciprocal (frees VALU slots, adds
    # ~1e-4-level error at worst).
    # TODO(synk): not bit-identical to PyTorch's exact-erf GELU.
    a1, a2, a3, a4, a5 = (0.254829592, -0.284496736, 1.421413741,
                          -1.453152027, 1.061405429)
    p = 0.3275911
    s = jnp.where(x >= 0.0, 1.0, -1.0)
    ax = jnp.abs(x)
    t = pl.reciprocal(1.0 + p * ax, approx=True)
    poly = t * (a1 + t * (a2 + t * (a3 + t * (a4 + t * a5))))
    return s * (1.0 - poly * jnp.exp(-ax * ax))


def _gelu(x):
    return 0.5 * x * (1.0 + _erf(x * _SQRT_HALF))


# ----------------------------- generic matmul + bias --------------------------

def _matmul_bias_kernel(a_ref, w_ref, b_ref, o_ref, *, compute_dtype):
    a = a_ref[...].astype(compute_dtype)
    w = w_ref[...].astype(compute_dtype)
    acc = jnp.dot(a, w, preferred_element_type=jnp.float32) + b_ref[...]
    o_ref[...] = acc.astype(o_ref.dtype)


def matmul_bias(a, w, b, *, compute_dtype=jnp.float32):
    """(M, K) @ (K, N) + bias[N].  Grid over M tiles, weights resident."""
    M, K = a.shape
    Kw, N = w.shape
    assert K == Kw
    tm = _pick_tile(M)
    kern = functools.partial(_matmul_bias_kernel, compute_dtype=compute_dtype)
    return pl.pallas_call(
        kern,
        out_shape=jax.ShapeDtypeStruct((M, N), jnp.float32),
        grid_spec=pltpu.PrefetchScalarGridSpec(
            num_scalar_prefetch=0,
            grid=(M // tm,),
            in_specs=[pl.BlockSpec((tm, K), lambda i: (i, 0)),
                      pl.BlockSpec((K, N), lambda i: (0, 0)),
                      pl.BlockSpec((1, N), lambda i: (0, 0))],
            out_specs=pl.BlockSpec((tm, N), lambda i: (i, 0))),
        compiler_params=_mosaic(("parallel",)),
    )(a, w, b.reshape(1, N))


# ----------------------------- spectral mode mix -------------------------------

def _spectral_modes_kernel(a_ref, w_ref, o_ref):
    # batched real-valued representation of the per-mode complex channel mix
    o_ref[...] = jax.lax.dot_general(
        a_ref[...], w_ref[...],
        dimension_numbers=(((2,), (1,)), ((0,), (0,))),
        preferred_element_type=jnp.float32)


def spectral_modes_matmul(a, w):
    """a: (n, B, 2Ci) real, w: (n, 2Ci, 2Co) real -> (n, B, 2Co) real.

    This op is latency/issue-bound at small B (each per-mode matmul is tiny);
    only split the grid on v7x where it buys megacore sharding."""
    n, B, ci2 = a.shape
    _, _, co2 = w.shape
    steps = 2 if (_CFG["min_steps"] >= 2 and n % 2 == 0) else 1
    nb = n // steps
    return pl.pallas_call(
        _spectral_modes_kernel,
        out_shape=jax.ShapeDtypeStruct((n, B, co2), jnp.float32),
        grid_spec=pltpu.PrefetchScalarGridSpec(
            num_scalar_prefetch=0,
            grid=(steps,),
            in_specs=[pl.BlockSpec((nb, B, ci2), lambda m: (m, 0, 0)),
                      pl.BlockSpec((nb, ci2, co2), lambda m: (m, 0, 0))],
            out_specs=pl.BlockSpec((nb, B, co2), lambda m: (m, 0, 0))),
        compiler_params=_mosaic(("parallel",)),
    )(a, w)


# ----------------- fused 1x1 conv + add + BatchNorm + GELU (one kernel) --------

def _fused_layer_kernel(x1_ref, act_ref, w_ref, b_ref, g_ref, bb_ref, o_ref,
                        *, tm, eps, mm_dtype):
    i = pl.program_id(0)
    a = act_ref[...].astype(mm_dtype)
    w = w_ref[...].astype(mm_dtype)
    x2 = jnp.dot(a, w, preferred_element_type=jnp.float32) + b_ref[...]
    y = x1_ref[...] + x2
    # o_ref is the full (M, C) output block, resident in VMEM across all steps.
    o_ref[pl.ds(i * tm, tm), :] = y

    @pl.when(i == pl.num_programs(0) - 1)
    def _():
        yf = o_ref[...]                                     # full (M, C), resident
        mean = jnp.mean(yf, axis=0, keepdims=True)
        d = yf - mean
        var = jnp.mean(d * d, axis=0, keepdims=True)        # biased var (torch BN fwd)
        inv = jax.lax.rsqrt(var + eps)
        o_ref[...] = _gelu(d * inv * g_ref[...] + bb_ref[...])


def _conv_add_kernel(x1_ref, act_ref, w_ref, b_ref, o_ref, *, mm_dtype):
    a = act_ref[...].astype(mm_dtype)
    w = w_ref[...].astype(mm_dtype)
    o_ref[...] = (x1_ref[...]
                  + jnp.dot(a, w, preferred_element_type=jnp.float32)
                  + b_ref[...])


def _bn_gelu_kernel(y_ref, mean_ref, inv_ref, g_ref, b_ref, o_ref):
    y = y_ref[...]
    o_ref[...] = _gelu((y - mean_ref[...]) * inv_ref[...] * g_ref[...] + b_ref[...])


def _bn_gelu_apply(y, mean, inv, gamma, beta):
    """gelu((y - mean) * inv * gamma + beta), lane-dense when 128 % C == 0."""
    M, C = y.shape
    flat = (128 % C == 0) and ((M * C) % 128 == 0) and (M * C >= 128)
    if flat:
        rep = 128 // C
        R, L = (M * C) // 128, 128
        yv = y.reshape(R, L)
        prep = lambda p: jnp.tile(p.reshape(1, C), (1, rep))
    else:
        R, L = M, C
        yv = y
        prep = lambda p: p.reshape(1, C)
    params = [prep(mean), prep(inv), prep(gamma), prep(beta)]

    tr = _pick_tile(R)
    out = pl.pallas_call(
        _bn_gelu_kernel,
        out_shape=jax.ShapeDtypeStruct((R, L), jnp.float32),
        grid_spec=pltpu.PrefetchScalarGridSpec(
            num_scalar_prefetch=0,
            grid=(R // tr,),
            in_specs=[pl.BlockSpec((tr, L), lambda i: (i, 0))]
                     + [pl.BlockSpec((1, L), lambda i: (0, 0))] * 4,
            out_specs=pl.BlockSpec((tr, L), lambda i: (i, 0))),
        compiler_params=_mosaic(("parallel",)),
    )(yv, *params)
    return out.reshape(M, C)


def conv_bn_gelu(x1, act, conv_w, conv_b, gamma, beta, *, eps=1e-5):
    """gelu(batchnorm(x1 + act @ conv_w + conv_b)) with batch (training) statistics."""
    M, C = x1.shape

    if M * C * 4 <= _CFG["vmem"] // 3:
        # Fused path: layer activation stays resident in the VMEM output block;
        # BN stats + apply happen in-kernel at the last grid step.
        # TODO(synk): on v7x this pass runs on one TensorCore (the resident-output
        # fusion needs global stats before the apply); other kernels stay parallel.
        tm = _pick_tile(M, cap=2048, min_steps=1)
        kern = functools.partial(_fused_layer_kernel, tm=tm, eps=eps,
                                 mm_dtype=_CFG["mm_dtype"])
        ce = pl.CostEstimate(flops=2 * M * C * C + 12 * M * C,
                             transcendentals=2 * M * C,
                             bytes_accessed=4 * (3 * M * C + C * C + 4 * C))
        return pl.pallas_call(
            kern,
            out_shape=jax.ShapeDtypeStruct((M, C), jnp.float32),
            grid_spec=pltpu.PrefetchScalarGridSpec(
                num_scalar_prefetch=0,
                grid=(M // tm,),
                in_specs=[pl.BlockSpec((tm, C), lambda i: (i, 0)),
                          pl.BlockSpec((tm, C), lambda i: (i, 0)),
                          pl.BlockSpec((C, C), lambda i: (0, 0)),
                          pl.BlockSpec((1, C), lambda i: (0, 0)),
                          pl.BlockSpec((1, C), lambda i: (0, 0)),
                          pl.BlockSpec((1, C), lambda i: (0, 0))],
                out_specs=pl.BlockSpec((M, C), lambda i: (0, 0))),
            compiler_params=_mosaic(("arbitrary",)),   # resident output -> sequential
            cost_estimate=ce,
        )(x1, act, conv_w, conv_b.reshape(1, C),
          gamma.reshape(1, C), beta.reshape(1, C))

    # Fallback for very large M: conv+add to HBM (parallel), stats in XLA,
    # lane-dense BN+GELU apply kernel.
    tm = _pick_tile(M)
    kern = functools.partial(_conv_add_kernel, mm_dtype=_CFG["mm_dtype"])
    y = pl.pallas_call(
        kern,
        out_shape=jax.ShapeDtypeStruct((M, C), jnp.float32),
        grid_spec=pltpu.PrefetchScalarGridSpec(
            num_scalar_prefetch=0,
            grid=(M // tm,),
            in_specs=[pl.BlockSpec((tm, C), lambda i: (i, 0)),
                      pl.BlockSpec((tm, C), lambda i: (i, 0)),
                      pl.BlockSpec((C, C), lambda i: (0, 0)),
                      pl.BlockSpec((1, C), lambda i: (0, 0))],
            out_specs=pl.BlockSpec((tm, C), lambda i: (i, 0))),
        compiler_params=_mosaic(("parallel",)),
    )(x1, act, conv_w, conv_b.reshape(1, C))
    mean = jnp.mean(y, axis=0, keepdims=True)
    d = y - mean
    var = jnp.mean(d * d, axis=0, keepdims=True)
    inv = jax.lax.rsqrt(var + eps)
    return _bn_gelu_apply(y, mean, inv, gamma, beta)


# ----------------------------- fused MLP head ----------------------------------

def _mlp_head_kernel(a_ref, w1_ref, b1_ref, w2_ref, b2_ref, o_ref, *, mm_dtype):
    a = a_ref[...].astype(mm_dtype)
    h = jnp.dot(a, w1_ref[...].astype(mm_dtype),
                preferred_element_type=jnp.float32) + b1_ref[...]
    h = _gelu(h)
    o = jnp.dot(h.astype(mm_dtype), w2_ref[...].astype(mm_dtype),
                preferred_element_type=jnp.float32) + b2_ref[...]
    o_ref[...] = o


def mlp_head(a, w1, b1, w2, b2):
    """gelu(a @ w1 + b1) @ w2 + b2 without materializing the (M, mlp) intermediate."""
    M, K = a.shape
    _, P = w1.shape
    _, N = w2.shape
    tm = _pick_tile(M)
    kern = functools.partial(_mlp_head_kernel, mm_dtype=_CFG["mm_dtype"])
    return pl.pallas_call(
        kern,
        out_shape=jax.ShapeDtypeStruct((M, N), jnp.float32),
        grid_spec=pltpu.PrefetchScalarGridSpec(
            num_scalar_prefetch=0,
            grid=(M // tm,),
            in_specs=[pl.BlockSpec((tm, K), lambda i: (i, 0)),
                      pl.BlockSpec((K, P), lambda i: (0, 0)),
                      pl.BlockSpec((1, P), lambda i: (0, 0)),
                      pl.BlockSpec((P, N), lambda i: (0, 0)),
                      pl.BlockSpec((1, N), lambda i: (0, 0))],
            out_specs=pl.BlockSpec((tm, N), lambda i: (i, 0))),
        compiler_params=_mosaic(("parallel",)),
    )(a, w1, b1.reshape(1, P), w2, b2.reshape(1, N))


# ----------------------------- spectral conv glue ------------------------------

def pack_spectral_weights(w1, w2):
    """(Ci, Co, m1, m2) complex x2 -> (2*m1*m2, 2Ci, 2Co) real block matrix."""
    Ci, Co, m1, m2 = w1.shape

    def to_wmodes(w):
        return jnp.transpose(w, (2, 3, 0, 1)).reshape(m1 * m2, Ci, Co)

    wc = jnp.concatenate([to_wmodes(w1), to_wmodes(w2)], axis=0)
    wr, wi = jnp.real(wc), jnp.imag(wc)
    # [xr xi] @ [[wr, wi], [-wi, wr]] == [Re(x w), Im(x w)]
    return jnp.concatenate(
        [jnp.concatenate([wr, wi], axis=-1),
         jnp.concatenate([-wi, wr], axis=-1)], axis=-2).astype(jnp.float32)


def spectral_conv2d(x_bwhc, w_real, modes1, modes2):
    """SpectralConv2d.forward on a channels-last activation (no NCHW round trip)."""
    # TODO(synk): FFT itself has no Pallas primitive; rfft2/irfft2 stay in plain JAX.
    B, W, H, Ci = x_bwhc.shape
    Co = w_real.shape[-1] // 2
    x_ft = jnp.fft.rfft2(x_bwhc, axes=(1, 2))       # (B, W, H//2+1, Ci) complex64

    top = x_ft[:, :modes1, :modes2, :]
    bot = x_ft[:, W - modes1:, :modes2, :]

    def to_modes(blk):                              # (B, m1, m2, Ci) -> (m1*m2, B, Ci)
        return jnp.transpose(blk, (1, 2, 0, 3)).reshape(modes1 * modes2, B, Ci)

    a = jnp.concatenate([to_modes(top), to_modes(bot)], axis=0)     # (n, B, Ci)
    a_real = jnp.concatenate([jnp.real(a), jnp.imag(a)], axis=-1)   # (n, B, 2Ci)

    out = spectral_modes_matmul(a_real.astype(jnp.float32), w_real)  # (n, B, 2Co)
    out_c = out[..., :Co] + 1j * out[..., Co:]                       # complex64

    n_half = modes1 * modes2

    def from_modes(o):                              # (m1*m2, B, Co) -> (B, m1, m2, Co)
        return jnp.transpose(o.reshape(modes1, modes2, B, Co), (2, 0, 1, 3))

    out_ft = jnp.zeros((B, W, H // 2 + 1, Co), dtype=jnp.complex64)
    out_ft = out_ft.at[:, :modes1, :modes2, :].set(from_modes(out_c[:n_half]))
    out_ft = out_ft.at[:, W - modes1:, :modes2, :].set(from_modes(out_c[n_half:]))
    return jnp.fft.irfft2(out_ft, axes=(1, 2), s=(W, H))            # (B, W, H, Co)


# ----------------------------- model glue ---------------------------------------

def _l2_normalize(x, eps=1e-12):
    # matches torch.nn.functional.normalize(dim=-1)
    n = jnp.sqrt(jnp.sum(x * x, axis=-1, keepdims=True))
    return x / jnp.maximum(n, eps)


def get_grid(B, W, H):
    gx = jnp.linspace(0.0, 1.0, W, dtype=jnp.float32)
    gy = jnp.linspace(0.0, 1.0, H, dtype=jnp.float32)
    gx = jnp.broadcast_to(gx[None, :, None, None], (B, W, H, 1))
    gy = jnp.broadcast_to(gy[None, None, :, None], (B, W, H, 1))
    return jnp.concatenate([gx, gy], axis=-1)


def fno2d_forward(params, x, fvec, *, modes1, modes2):
    B, T, Cin, W, H = x.shape
    # 'b t c w h -> b w h (t c)'
    act = jnp.transpose(x, (0, 3, 4, 1, 2)).reshape(B, W, H, T * Cin)
    act = _l2_normalize(act)
    grid = get_grid(B, W, H)
    fd = fvec.shape[-1]
    fr = jnp.broadcast_to(fvec[:, None, None, :], (B, W, H, fd))
    fr = _l2_normalize(fr)
    act = jnp.concatenate([act, fr, grid], axis=-1)              # (B, W, H, in_feat)

    in_feat = act.shape[-1]
    M = B * W * H
    # projection (tiny K -> keep f32 compute)
    act = matmul_bias(act.reshape(M, in_feat).astype(jnp.float32),
                      params["proj_w"], params["proj_b"],
                      compute_dtype=jnp.float32)                 # (M, dim)
    dim = act.shape[-1]

    for layer in params["layers"]:
        x1 = spectral_conv2d(act.reshape(B, W, H, dim),
                             layer["sw_real"], modes1, modes2).reshape(M, dim)
        act = conv_bn_gelu(x1, act, layer["conv_w"], layer["conv_b"],
                           layer["bn_g"], layer["bn_b"])

    out = mlp_head(act, params["fc1_w"], params["fc1_b"],
                   params["fc2_w"], params["fc2_b"])             # (M, channels)
    out = out.reshape(B, W, H, -1)
    # 'b w h c -> b 1 c w h'
    return jnp.transpose(out, (0, 3, 1, 2))[:, None]


# ----------------------------- parameter init -----------------------------------

def _uniform(key, shape, bound):
    return jax.random.uniform(key, shape, jnp.float32, -bound, bound)


def init_params(key, *, in_feat, dim, depth, mlp, channels, modes1, modes2):
    keys = jax.random.split(key, depth + 3)
    params = {}

    b0 = 1.0 / math.sqrt(in_feat)
    k = jax.random.split(keys[0], 2)
    params["proj_w"] = _uniform(k[0], (in_feat, dim), b0)        # stored (K, N)
    params["proj_b"] = _uniform(k[1], (dim,), b0)

    scale = 1.0 / (dim * dim)
    bc = 1.0 / math.sqrt(dim)
    layers = []
    for d in range(depth):
        k = jax.random.split(keys[1 + d], 6)
        sw1 = scale * (jax.random.uniform(k[0], (dim, dim, modes1, modes2))
                       + 1j * jax.random.uniform(k[1], (dim, dim, modes1, modes2)))
        sw2 = scale * (jax.random.uniform(k[2], (dim, dim, modes1, modes2))
                       + 1j * jax.random.uniform(k[3], (dim, dim, modes1, modes2)))
        layers.append({
            # packed once here (static across forward calls) -> no per-step repacking
            "sw_real": pack_spectral_weights(sw1.astype(jnp.complex64),
                                             sw2.astype(jnp.complex64)),
            "conv_w": _uniform(k[4], (dim, dim), bc),            # (K, N) layout
            "conv_b": _uniform(k[5], (dim,), bc),
            "bn_g": jnp.ones((dim,), jnp.float32),
            "bn_b": jnp.zeros((dim,), jnp.float32),
        })
    params["layers"] = layers

    b1 = 1.0 / math.sqrt(dim)
    k = jax.random.split(keys[-2], 2)
    params["fc1_w"] = _uniform(k[0], (dim, mlp), b1)             # (K, N)
    params["fc1_b"] = _uniform(k[1], (mlp,), b1)
    b2 = 1.0 / math.sqrt(mlp)
    k = jax.random.split(keys[-1], 2)
    params["fc2_w"] = _uniform(k[0], (mlp, channels), b2)        # (K, N)
    params["fc2_b"] = _uniform(k[1], (channels,), b2)
    return params


# ----------------------------- main ----------------------------------------------

if __name__ == "__main__":
    key = jax.random.PRNGKey(0)
    B, T, C_IN, W, H = 2, 2, 3, 16, 16          # x: (b, t, c, w, h)
    F_DIM = 4                                   # f: (b, d)
    DIM, DEPTH, MLP, CH_OUT = 32, 3, 64, 3
    MODES1 = MODES2 = 4

    k_x, k_f, k_p = jax.random.split(key, 3)
    x = jax.random.normal(k_x, (B, T, C_IN, W, H), dtype=jnp.float32)
    fvec = jax.random.normal(k_f, (B, F_DIM), dtype=jnp.float32)

    in_feat = T * C_IN + F_DIM + 2
    params = init_params(k_p, in_feat=in_feat, dim=DIM, depth=DEPTH, mlp=MLP,
                         channels=CH_OUT, modes1=MODES1, modes2=MODES2)

    fwd = jax.jit(functools.partial(fno2d_forward, modes1=MODES1, modes2=MODES2))
    out = fwd(params, x, fvec)
    out = jax.block_until_ready(out)
    assert out.shape == (B, 1, CH_OUT, W, H), out.shape
    assert out.dtype == jnp.float32
    print("KERNEL_OK")
</pallas_src>

<mosaic_0001>
module attributes {stable_mosaic.version = 11 : i64} {
  func.func @_matmul_bias_kernel(%arg0: i32, %arg1: memref<512x12xf32, #tpu.memory_space<vmem>>, %arg2: memref<12x32xf32, #tpu.memory_space<vmem>>, %arg3: memref<1x32xf32, #tpu.memory_space<vmem>>, %arg4: memref<512x32xf32, #tpu.memory_space<vmem>>) attributes {dimension_semantics = [#tpu.dimension_semantics<parallel>], iteration_bounds = array<i64: 1>, scalar_prefetch = 0 : i64, scratch_operands = 0 : i64, tpu.core_type = #tpu.core_type<tc>, window_params = [{transform_indices = @transform_0, window_bounds = array<i64: 512, 12>}, {pipeline_mode = #tpu.pipeline_mode<synchronous>, transform_indices = @transform_1, window_bounds = array<i64: 12, 32>}, {pipeline_mode = #tpu.pipeline_mode<synchronous>, transform_indices = @transform_2, window_bounds = array<i64: 1, 32>}, {transform_indices = @transform_3, window_bounds = array<i64: 512, 32>}]} {
    %c0 = arith.constant 0 : index
    %c0_0 = arith.constant 0 : index
    %0 = vector.load %arg1[%c0, %c0_0] : memref<512x12xf32, #tpu.memory_space<vmem>>, vector<512x12xf32>
    %c0_1 = arith.constant 0 : index
    %c0_2 = arith.constant 0 : index
    %1 = vector.load %arg2[%c0_1, %c0_2] : memref<12x32xf32, #tpu.memory_space<vmem>>, vector<12x32xf32>
    %cst = arith.constant dense<0.000000e+00> : vector<512x32xf32>
    %2 = tpu.matmul %0, %1, %cst {dimension_numbers = #tpu.dot_dimension_numbers<[1], [0], [0], [1], [0, 0, 1, 1], [], []>} : vector<512x12xf32>, vector<12x32xf32>, vector<512x32xf32> -> vector<512x32xf32>
    %c0_3 = arith.constant 0 : index
    %c0_4 = arith.constant 0 : index
    %3 = vector.load %arg3[%c0_3, %c0_4] : memref<1x32xf32, #tpu.memory_space<vmem>>, vector<1x32xf32>
    %4 = vector.broadcast %3 : vector<1x32xf32> to vector<512x32xf32>
    %5 = arith.addf %2, %4 : vector<512x32xf32>
    %c0_5 = arith.constant 0 : index
    %c0_6 = arith.constant 0 : index
    %6 = vector.load %arg4[%c0_5, %c0_6] : memref<512x32xf32, #tpu.memory_space<vmem>>, vector<512x32xf32>
    tpu.vector_store %arg4[%c0_5, %c0_6], %5 {strides = array<i32>} : memref<512x32xf32, #tpu.memory_space<vmem>>, vector<512x32xf32>,
    return
  }
  func.func @transform_0(%arg0: i32) -> (i32, i32) {
    %c0_i32 = arith.constant 0 : i32
    %c0_i32_0 = arith.constant 0 : i32
    return %arg0, %c0_i32 : i32, i32
  }
  func.func @transform_1(%arg0: i32) -> (i32, i32) {
    %c0_i32 = arith.constant 0 : i32
    %c0_i32_0 = arith.constant 0 : i32
    %c0_i32_1 = arith.constant 0 : i32
    return %c0_i32, %c0_i32_0 : i32, i32
  }
  func.func @transform_2(%arg0: i32) -> (i32, i32) {
    %c0_i32 = arith.constant 0 : i32
    %c0_i32_0 = arith.constant 0 : i32
    %c0_i32_1 = arith.constant 0 : i32
    return %c0_i32, %c0_i32_0 : i32, i32
  }
  func.func @transform_3(%arg0: i32) -> (i32, i32) {
    %c0_i32 = arith.constant 0 : i32
    %c0_i32_0 = arith.constant 0 : i32
    return %arg0, %c0_i32 : i32, i32
  }
}

module attributes {stable_mosaic.version = 11 : i64} {
  func.func @_spectral_modes_kernel(%arg0: i32, %arg1: memref<32x2x64xf32, #tpu.memory_space<vmem>>, %arg2: memref<32x64x64xf32, #tpu.memory_space<vmem>>, %arg3: memref<32x2x64xf32, #tpu.memory_space<vmem>>) attributes {dimension_semantics = [#tpu.dimension_semantics<parallel>], iteration_bounds = array<i64: 1>, scalar_prefetch = 0 : i64, scratch_operands = 0 : i64, tpu.core_type = #tpu.core_type<tc>, window_params = [{transform_indices = @transform_0, window_bounds = array<i64: 32, 2, 64>}, {transform_indices = @transform_1, window_bounds = array<i64: 32, 64, 64>}, {transform_indices = @transform_2, window_bounds = array<i64: 32, 2, 64>}]} {
    %c0 = arith.constant 0 : index
    %c0_0 = arith.constant 0 : index
    %c0_1 = arith.constant 0 : index
    %0 = vector.load %arg1[%c0, %c0_0, %c0_1] : memref<32x2x64xf32, #tpu.memory_space<vmem>>, vector<32x2x64xf32>
    %c0_2 = arith.constant 0 : index
    %c0_3 = arith.constant 0 : index
    %c0_4 = arith.constant 0 : index
    %1 = vector.load %arg2[%c0_2, %c0_3, %c0_4] : memref<32x64x64xf32, #tpu.memory_space<vmem>>, vector<32x64x64xf32>
    %cst = arith.constant dense<0.000000e+00> : vector<32x2x64xf32>
    %2 = tpu.matmul %0, %1, %cst {dimension_numbers = #tpu.dot_dimension_numbers<[2], [1], [1], [2], [0, 0, 0, 1, 1, 2], [0], [0]>} : vector<32x2x64xf32>, vector<32x64x64xf32>, vector<32x2x64xf32> -> vector<32x2x64xf32>
    %c0_5 = arith.constant 0 : index
    %c0_6 = arith.constant 0 : index
    %c0_7 = arith.constant 0 : index
    %3 = vector.load %arg3[%c0_5, %c0_6, %c0_7] : memref<32x2x64xf32, #tpu.memory_space<vmem>>, vector<32x2x64xf32>
    tpu.vector_store %arg3[%c0_5, %c0_6, %c0_7], %2 {strides = array<i32>} : memref<32x2x64xf32, #tpu.memory_space<vmem>>, vector<32x2x64xf32>,
    return
  }
  func.func @transform_0(%arg0: i32) -> (i32, i32, i32) {
    %c0_i32 = arith.constant 0 : i32
    %c0_i32_0 = arith.constant 0 : i32
    %c0_i32_1 = arith.constant 0 : i32
    return %arg0, %c0_i32, %c0_i32_0 : i32, i32, i32
  }
  func.func @transform_1(%arg0: i32) -> (i32, i32, i32) {
    %c0_i32 = arith.constant 0 : i32
    %c0_i32_0 = arith.constant 0 : i32
    %c0_i32_1 = arith.constant 0 : i32
    return %arg0, %c0_i32, %c0_i32_0 : i32, i32, i32
  }
  func.func @transform_2(%arg0: i32) -> (i32, i32, i32) {
    %c0_i32 = arith.constant 0 : i32
    %c0_i32_0 = arith.constant 0 : i32
    %c0_i32_1 = arith.constant 0 : i32
    return %arg0, %c0_i32, %c0_i32_0 : i32, i32, i32
  }
}

module attributes {stable_mosaic.version = 11 : i64} {
  func.func @_fused_layer_kernel(%arg0: i32, %arg1: memref<512x32xf32, #tpu.memory_space<vmem>>, %arg2: memref<512x32xf32, #tpu.memory_space<vmem>>, %arg3: memref<32x32xf32, #tpu.memory_space<vmem>>, %arg4: memref<1x32xf32, #tpu.memory_space<vmem>>, %arg5: memref<1x32xf32, #tpu.memory_space<vmem>>, %arg6: memref<1x32xf32, #tpu.memory_space<vmem>>, %arg7: memref<512x32xf32, #tpu.memory_space<vmem>>) attributes {dimension_semantics = [#tpu.dimension_semantics<arbitrary>], iteration_bounds = array<i64: 1>, scalar_prefetch = 0 : i64, scratch_operands = 0 : i64, tpu.core_type = #tpu.core_type<tc>, window_params = [{transform_indices = @transform_0, window_bounds = array<i64: 512, 32>}, {transform_indices = @transform_1, window_bounds = array<i64: 512, 32>}, {pipeline_mode = #tpu.pipeline_mode<synchronous>, transform_indices = @transform_2, window_bounds = array<i64: 32, 32>}, {pipeline_mode = #tpu.pipeline_mode<synchronous>, transform_indices = @transform_3, window_bounds = array<i64: 1, 32>}, {pipeline_mode = #tpu.pipeline_mode<synchronous>, transform_indices = @transform_4, window_bounds = array<i64: 1, 32>}, {pipeline_mode = #tpu.pipeline_mode<synchronous>, transform_indices = @transform_5, window_bounds = array<i64: 1, 32>}, {pipeline_mode = #tpu.pipeline_mode<synchronous>, transform_indices = @transform_6, window_bounds = array<i64: 512, 32>}]} {
    %c0 = arith.constant 0 : index
    %c0_0 = arith.constant 0 : index
    %0 = vector.load %arg2[%c0, %c0_0] : memref<512x32xf32, #tpu.memory_space<vmem>>, vector<512x32xf32>
    %c0_1 = arith.constant 0 : index
    %c0_2 = arith.constant 0 : index
    %1 = vector.load %arg3[%c0_1, %c0_2] : memref<32x32xf32, #tpu.memory_space<vmem>>, vector<32x32xf32>
    %cst = arith.constant dense<0.000000e+00> : vector<512x32xf32>
    %2 = tpu.matmul %0, %1, %cst {dimension_numbers = #tpu.dot_dimension_numbers<[1], [0], [0], [1], [0, 0, 1, 1], [], []>} : vector<512x32xf32>, vector<32x32xf32>, vector<512x32xf32> -> vector<512x32xf32>
    %c0_3 = arith.constant 0 : index
    %c0_4 = arith.constant 0 : index
    %3 = vector.load %arg4[%c0_3, %c0_4] : memref<1x32xf32, #tpu.memory_space<vmem>>, vector<1x32xf32>
    %4 = vector.broadcast %3 : vector<1x32xf32> to vector<512x32xf32>
    %5 = arith.addf %2, %4 : vector<512x32xf32>
    %c0_5 = arith.constant 0 : index
    %c0_6 = arith.constant 0 : index
    %6 = vector.load %arg1[%c0_5, %c0_6] : memref<512x32xf32, #tpu.memory_space<vmem>>, vector<512x32xf32>
    %7 = arith.addf %6, %5 : vector<512x32xf32>
    %c512_i32 = arith.constant 512 : i32
    %8 = arith.muli %arg0, %c512_i32 : i32
    %9 = arith.index_cast %8 : i32 to index
    %c0_7 = arith.constant 0 : index
    %10 = vector.load %arg7[%9, %c0_7] : memref<512x32xf32, #tpu.memory_space<vmem>>, vector<512x32xf32>
    tpu.vector_store %arg7[%9, %c0_7], %7 {strides = array<i32>} : memref<512x32xf32, #tpu.memory_space<vmem>>, vector<512x32xf32>,
    %c0_i32 = arith.constant 0 : i32
    %11 = arith.cmpi eq, %arg0, %c0_i32 : i32
    %12 = arith.extui %11 : i1 to i32
    %c0_i32_8 = arith.constant 0 : i32
    %13 = arith.cmpi ne, %12, %c0_i32_8 : i32
    scf.if %13 {
      %c0_9 = arith.constant 0 : index
      %c0_10 = arith.constant 0 : index
      %14 = vector.load %arg7[%c0_9, %c0_10] : memref<512x32xf32, #tpu.memory_space<vmem>>, vector<512x32xf32>
      %cst_11 = arith.constant dense<0.000000e+00> : vector<32xf32>
      %15 = vector.multi_reduction <add>, %14, %cst_11 [0] : vector<512x32xf32> to vector<32xf32>
      %16 = vector.shape_cast %15 : vector<32xf32> to vector<1x32xf32>
      %cst_12 = arith.constant 5.120000e+02 : f32
      %17 = vector.broadcast %cst_12 : f32 to vector<1x32xf32>
      %18 = arith.divf %16, %17 : vector<1x32xf32>
      %19 = vector.broadcast %18 : vector<1x32xf32> to vector<512x32xf32>
      %20 = arith.subf %14, %19 : vector<512x32xf32>
      %21 = arith.mulf %20, %20 : vector<512x32xf32>
      %cst_13 = arith.constant dense<0.000000e+00> : vector<32xf32>
      %22 = vector.multi_reduction <add>, %21, %cst_13 [0] : vector<512x32xf32> to vector<32xf32>
      %23 = vector.shape_cast %22 : vector<32xf32> to vector<1x32xf32>
      %cst_14 = arith.constant 5.120000e+02 : f32
      %24 = vector.broadcast %cst_14 : f32 to vector<1x32xf32>
      %25 = arith.divf %23, %24 : vector<1x32xf32>
      %cst_15 = arith.constant 9.99999974E-6 : f32
      %26 = vector.broadcast %cst_15 : f32 to vector<1x32xf32>
      %27 = arith.addf %25, %26 : vector<1x32xf32>
      %28 = math.rsqrt %27 : vector<1x32xf32>
      %29 = vector.broadcast %28 : vector<1x32xf32> to vector<512x32xf32>
      %30 = arith.mulf %20, %29 : vector<512x32xf32>
      %c0_16 = arith.constant 0 : index
      %c0_17 = arith.constant 0 : index
      %31 = vector.load %arg5[%c0_16, %c0_17] : memref<1x32xf32, #tpu.memory_space<vmem>>, vector<1x32xf32>
      %32 = vector.broadcast %31 : vector<1x32xf32> to vector<512x32xf32>
      %33 = arith.mulf %30, %32 : vector<512x32xf32>
      %c0_18 = arith.constant 0 : index
      %c0_19 = arith.constant 0 : index
      %34 = vector.load %arg6[%c0_18, %c0_19] : memref<1x32xf32, #tpu.memory_space<vmem>>, vector<1x32xf32>
      %35 = vector.broadcast %34 : vector<1x32xf32> to vector<512x32xf32>
      %36 = arith.addf %33, %35 : vector<512x32xf32>
      %cst_20 = arith.constant 5.000000e-01 : f32
      %37 = vector.broadcast %cst_20 : f32 to vector<512x32xf32>
      %38 = arith.mulf %37, %36 : vector<512x32xf32>
      %cst_21 = arith.constant 0.707106769 : f32
      %39 = vector.broadcast %cst_21 : f32 to vector<512x32xf32>
      %40 = arith.mulf %36, %39 : vector<512x32xf32>
      %cst_22 = arith.constant 0.000000e+00 : f32
      %41 = vector.broadcast %cst_22 : f32 to vector<512x32xf32>
      %42 = arith.cmpf oge, %40, %41 : vector<512x32xf32>
      %cst_23 = arith.constant 1.000000e+00 : f32
      %cst_24 = arith.constant -1.000000e+00 : f32
      %43 = vector.broadcast %cst_23 : f32 to vector<512x32xf32>
      %44 = vector.broadcast %cst_24 : f32 to vector<512x32xf32>
      %45 = arith.select %42, %43, %44 : vector<512x32xi1>, vector<512x32xf32>
      %46 = math.absf %40 : vector<512x32xf32>
      %cst_25 = arith.constant 0.327591091 : f32
      %47 = vector.broadcast %cst_25 : f32 to vector<512x32xf32>
      %48 = arith.mulf %47, %46 : vector<512x32xf32>
      %cst_26 = arith.constant 1.000000e+00 : f32
      %49 = vector.broadcast %cst_26 : f32 to vector<512x32xf32>
      %50 = arith.addf %49, %48 : vector<512x32xf32>
      %51 = tpu.reciprocal %50 {approx = true} : vector<512x32xf32> -> vector<512x32xf32>
      %cst_27 = arith.constant 1.06140542 : f32
      %52 = vector.broadcast %cst_27 : f32 to vector<512x32xf32>
      %53 = arith.mulf %51, %52 : vector<512x32xf32>
      %cst_28 = arith.constant -1.45315206 : f32
      %54 = vector.broadcast %cst_28 : f32 to vector<512x32xf32>
      %55 = arith.addf %54, %53 : vector<512x32xf32>
      %56 = arith.mulf %51, %55 : vector<512x32xf32>
      %cst_29 = arith.constant 1.42141378 : f32
      %57 = vector.broadcast %cst_29 : f32 to vector<512x32xf32>
      %58 = arith.addf %57, %56 : vector<512x32xf32>
      %59 = arith.mulf %51, %58 : vector<512x32xf32>
      %cst_30 = arith.constant -0.284496725 : f32
      %60 = vector.broadcast %cst_30 : f32 to vector<512x32xf32>
      %61 = arith.addf %60, %59 : vector<512x32xf32>
      %62 = arith.mulf %51, %61 : vector<512x32xf32>
      %cst_31 = arith.constant 0.254829586 : f32
      %63 = vector.broadcast %cst_31 : f32 to vector<512x32xf32>
      %64 = arith.addf %63, %62 : vector<512x32xf32>
      %65 = arith.mulf %51, %64 : vector<512x32xf32>
      %cst_32 = arith.constant 0.000000e+00 : f32
      %66 = vector.broadcast %cst_32 : f32 to vector<512x32xf32>
      %67 = arith.subf %66, %46 : vector<512x32xf32>
      %68 = arith.mulf %67, %46 : vector<512x32xf32>
      %69 = math.exp %68 : vector<512x32xf32>
      %70 = arith.mulf %65, %69 : vector<512x32xf32>
      %cst_33 = arith.constant 1.000000e+00 : f32
      %71 = vector.broadcast %cst_33 : f32 to vector<512x32xf32>
      %72 = arith.subf %71, %70 : vector<512x32xf32>
      %73 = arith.mulf %45, %72 : vector<512x32xf32>
      %cst_34 = arith.constant 1.000000e+00 : f32
      %74 = vector.broadcast %cst_34 : f32 to vector<512x32xf32>
      %75 = arith.addf %74, %73 : vector<512x32xf32>
      %76 = arith.mulf %38, %75 : vector<512x32xf32>
      %c0_35 = arith.constant 0 : index
      %c0_36 = arith.constant 0 : index
      %77 = vector.load %arg7[%c0_35, %c0_36] : memref<512x32xf32, #tpu.memory_space<vmem>>, vector<512x32xf32>
      tpu.vector_store %arg7[%c0_35, %c0_36], %76 {strides = array<i32>} : memref<512x32xf32, #tpu.memory_space<vmem>>, vector<512x32xf32>,
    } else {
    }
    return
  }
  func.func @transform_0(%arg0: i32) -> (i32, i32) {
    %c0_i32 = arith.constant 0 : i32
    %c0_i32_0 = arith.constant 0 : i32
    return %arg0, %c0_i32 : i32, i32
  }
  func.func @transform_1(%arg0: i32) -> (i32, i32) {
    %c0_i32 = arith.constant 0 : i32
    %c0_i32_0 = arith.constant 0 : i32
    return %arg0, %c0_i32 : i32, i32
  }
  func.func @transform_2(%arg0: i32) -> (i32, i32) {
    %c0_i32 = arith.constant 0 : i32
    %c0_i32_0 = arith.constant 0 : i32
    %c0_i32_1 = arith.constant 0 : i32
    return %c0_i32, %c0_i32_0 : i32, i32
  }
  func.func @transform_3(%arg0: i32) -> (i32, i32) {
    %c0_i32 = arith.constant 0 : i32
    %c0_i32_0 = arith.constant 0 : i32
    %c0_i32_1 = arith.constant 0 : i32
    return %c0_i32, %c0_i32_0 : i32, i32
  }
  func.func @transform_4(%arg0: i32) -> (i32, i32) {
    %c0_i32 = arith.constant 0 : i32
    %c0_i32_0 = arith.constant 0 : i32
    %c0_i32_1 = arith.constant 0 : i32
    return %c0_i32, %c0_i32_0 : i32, i32
  }
  func.func @transform_5(%arg0: i32) -> (i32, i32) {
    %c0_i32 = arith.constant 0 : i32
    %c0_i32_0 = arith.constant 0 : i32
    %c0_i32_1 = arith.constant 0 : i32
    return %c0_i32, %c0_i32_0 : i32, i32
  }
  func.func @transform_6(%arg0: i32) -> (i32, i32) {
    %c0_i32 = arith.constant 0 : i32
    %c0_i32_0 = arith.constant 0 : i32
    %c0_i32_1 = arith.constant 0 : i32
    return %c0_i32, %c0_i32_0 : i32, i32
  }
}

module attributes {stable_mosaic.version = 11 : i64} {
  func.func @_mlp_head_kernel(%arg0: i32, %arg1: memref<512x32xf32, #tpu.memory_space<vmem>>, %arg2: memref<32x64xf32, #tpu.memory_space<vmem>>, %arg3: memref<1x64xf32, #tpu.memory_space<vmem>>, %arg4: memref<64x3xf32, #tpu.memory_space<vmem>>, %arg5: memref<1x3xf32, #tpu.memory_space<vmem>>, %arg6: memref<512x3xf32, #tpu.memory_space<vmem>>) attributes {dimension_semantics = [#tpu.dimension_semantics<parallel>], iteration_bounds = array<i64: 1>, scalar_prefetch = 0 : i64, scratch_operands = 0 : i64, tpu.core_type = #tpu.core_type<tc>, window_params = [{transform_indices = @transform_0, window_bounds = array<i64: 512, 32>}, {pipeline_mode = #tpu.pipeline_mode<synchronous>, transform_indices = @transform_1, window_bounds = array<i64: 32, 64>}, {pipeline_mode = #tpu.pipeline_mode<synchronous>, transform_indices = @transform_2, window_bounds = array<i64: 1, 64>}, {pipeline_mode = #tpu.pipeline_mode<synchronous>, transform_indices = @transform_3, window_bounds = array<i64: 64, 3>}, {pipeline_mode = #tpu.pipeline_mode<synchronous>, transform_indices = @transform_4, window_bounds = array<i64: 1, 3>}, {transform_indices = @transform_5, window_bounds = array<i64: 512, 3>}]} {
    %c0 = arith.constant 0 : index
    %c0_0 = arith.constant 0 : index
    %0 = vector.load %arg1[%c0, %c0_0] : memref<512x32xf32, #tpu.memory_space<vmem>>, vector<512x32xf32>
    %c0_1 = arith.constant 0 : index
    %c0_2 = arith.constant 0 : index
    %1 = vector.load %arg2[%c0_1, %c0_2] : memref<32x64xf32, #tpu.memory_space<vmem>>, vector<32x64xf32>
    %cst = arith.constant dense<0.000000e+00> : vector<512x64xf32>
    %2 = tpu.matmul %0, %1, %cst {dimension_numbers = #tpu.dot_dimension_numbers<[1], [0], [0], [1], [0, 0, 1, 1], [], []>} : vector<512x32xf32>, vector<32x64xf32>, vector<512x64xf32> -> vector<512x64xf32>
    %c0_3 = arith.constant 0 : index
    %c0_4 = arith.constant 0 : index
    %3 = vector.load %arg3[%c0_3, %c0_4] : memref<1x64xf32, #tpu.memory_space<vmem>>, vector<1x64xf32>
    %4 = vector.broadcast %3 : vector<1x64xf32> to vector<512x64xf32>
    %5 = arith.addf %2, %4 : vector<512x64xf32>
    %cst_5 = arith.constant 5.000000e-01 : f32
    %6 = vector.broadcast %cst_5 : f32 to vector<512x64xf32>
    %7 = arith.mulf %6, %5 : vector<512x64xf32>
    %cst_6 = arith.constant 0.707106769 : f32
    %8 = vector.broadcast %cst_6 : f32 to vector<512x64xf32>
    %9 = arith.mulf %5, %8 : vector<512x64xf32>
    %cst_7 = arith.constant 0.000000e+00 : f32
    %10 = vector.broadcast %cst_7 : f32 to vector<512x64xf32>
    %11 = arith.cmpf oge, %9, %10 : vector<512x64xf32>
    %cst_8 = arith.constant 1.000000e+00 : f32
    %cst_9 = arith.constant -1.000000e+00 : f32
    %12 = vector.broadcast %cst_8 : f32 to vector<512x64xf32>
    %13 = vector.broadcast %cst_9 : f32 to vector<512x64xf32>
    %14 = arith.select %11, %12, %13 : vector<512x64xi1>, vector<512x64xf32>
    %15 = math.absf %9 : vector<512x64xf32>
    %cst_10 = arith.constant 0.327591091 : f32
    %16 = vector.broadcast %cst_10 : f32 to vector<512x64xf32>
    %17 = arith.mulf %16, %15 : vector<512x64xf32>
    %cst_11 = arith.constant 1.000000e+00 : f32
    %18 = vector.broadcast %cst_11 : f32 to vector<512x64xf32>
    %19 = arith.addf %18, %17 : vector<512x64xf32>
    %20 = tpu.reciprocal %19 {approx = true} : vector<512x64xf32> -> vector<512x64xf32>
    %cst_12 = arith.constant 1.06140542 : f32
    %21 = vector.broadcast %cst_12 : f32 to vector<512x64xf32>
    %22 = arith.mulf %20, %21 : vector<512x64xf32>
    %cst_13 = arith.constant -1.45315206 : f32
    %23 = vector.broadcast %cst_13 : f32 to vector<512x64xf32>
    %24 = arith.addf %23, %22 : vector<512x64xf32>
    %25 = arith.mulf %20, %24 : vector<512x64xf32>
    %cst_14 = arith.constant 1.42141378 : f32
    %26 = vector.broadcast %cst_14 : f32 to vector<512x64xf32>
    %27 = arith.addf %26, %25 : vector<512x64xf32>
    %28 = arith.mulf %20, %27 : vector<512x64xf32>
    %cst_15 = arith.constant -0.284496725 : f32
    %29 = vector.broadcast %cst_15 : f32 to vector<512x64xf32>
    %30 = arith.addf %29, %28 : vector<512x64xf32>
    %31 = arith.mulf %20, %30 : vector<512x64xf32>
    %cst_16 = arith.constant 0.254829586 : f32
    %32 = vector.broadcast %cst_16 : f32 to vector<512x64xf32>
    %33 = arith.addf %32, %31 : vector<512x64xf32>
    %34 = arith.mulf %20, %33 : vector<512x64xf32>
    %cst_17 = arith.constant 0.000000e+00 : f32
    %35 = vector.broadcast %cst_17 : f32 to vector<512x64xf32>
    %36 = arith.subf %35, %15 : vector<512x64xf32>
    %37 = arith.mulf %36, %15 : vector<512x64xf32>
    %38 = math.exp %37 : vector<512x64xf32>
    %39 = arith.mulf %34, %38 : vector<512x64xf32>
    %cst_18 = arith.constant 1.000000e+00 : f32
    %40 = vector.broadcast %cst_18 : f32 to vector<512x64xf32>
    %41 = arith.subf %40, %39 : vector<512x64xf32>
    %42 = arith.mulf %14, %41 : vector<512x64xf32>
    %cst_19 = arith.constant 1.000000e+00 : f32
    %43 = vector.broadcast %cst_19 : f32 to vector<512x64xf32>
    %44 = arith.addf %43, %42 : vector<512x64xf32>
    %45 = arith.mulf %7, %44 : vector<512x64xf32>
    %c0_20 = arith.constant 0 : index
    %c0_21 = arith.constant 0 : index
    %46 = vector.load %arg4[%c0_20, %c0_21] : memref<64x3xf32, #tpu.memory_space<vmem>>, vector<64x3xf32>
    %cst_22 = arith.constant dense<0.000000e+00> : vector<512x3xf32>
    %47 = tpu.matmul %45, %46, %cst_22 {dimension_numbers = #tpu.dot_dimension_numbers<[1], [0], [0], [1], [0, 0, 1, 1], [], []>} : vector<512x64xf32>, vector<64x3xf32>, vector<512x3xf32> -> vector<512x3xf32>
    %c0_23 = arith.constant 0 : index
    %c0_24 = arith.constant 0 : index
    %48 = vector.load %arg5[%c0_23, %c0_24] : memref<1x3xf32, #tpu.memory_space<vmem>>, vector<1x3xf32>
    %49 = vector.broadcast %48 : vector<1x3xf32> to vector<512x3xf32>
    %50 = arith.addf %47, %49 : vector<512x3xf32>
    %c0_25 = arith.constant 0 : index
    %c0_26 = arith.constant 0 : index
    %51 = vector.load %arg6[%c0_25, %c0_26] : memref<512x3xf32, #tpu.memory_space<vmem>>, vector<512x3xf32>
    tpu.vector_store %arg6[%c0_25, %c0_26], %50 {strides = array<i32>} : memref<512x3xf32, #tpu.memory_space<vmem>>, vector<512x3xf32>,
    return
  }
  func.func @transform_0(%arg0: i32) -> (i32, i32) {
    %c0_i32 = arith.constant 0 : i32
    %c0_i32_0 = arith.constant 0 : i32
    return %arg0, %c0_i32 : i32, i32
  }
  func.func @transform_1(%arg0: i32) -> (i32, i32) {
    %c0_i32 = arith.constant 0 : i32
    %c0_i32_0 = arith.constant 0 : i32
    %c0_i32_1 = arith.constant 0 : i32
    return %c0_i32, %c0_i32_0 : i32, i32
  }
  func.func @transform_2(%arg0: i32) -> (i32, i32) {
    %c0_i32 = arith.constant 0 : i32
    %c0_i32_0 = arith.constant 0 : i32
    %c0_i32_1 = arith.constant 0 : i32
    return %c0_i32, %c0_i32_0 : i32, i32
  }
  func.func @transform_3(%arg0: i32) -> (i32, i32) {
    %c0_i32 = arith.constant 0 : i32
    %c0_i32_0 = arith.constant 0 : i32
    %c0_i32_1 = arith.constant 0 : i32
    return %c0_i32, %c0_i32_0 : i32, i32
  }
  func.func @transform_4(%arg0: i32) -> (i32, i32) {
    %c0_i32 = arith.constant 0 : i32
    %c0_i32_0 = arith.constant 0 : i32
    %c0_i32_1 = arith.constant 0 : i32
    return %c0_i32, %c0_i32_0 : i32, i32
  }
  func.func @transform_5(%arg0: i32) -> (i32, i32) {
    %c0_i32 = arith.constant 0 : i32
    %c0_i32_0 = arith.constant 0 : i32
    return %arg0, %c0_i32 : i32, i32
  }
}

</mosaic_0001>

<llo_original>
// kernel: mul.0
$region0: #{mul.0}
  #allocation0 [shape = 's32[1]{0}', space=sflag, size = 0x4, scoped, tag = 'scoped memory for mul.0']
  %s0 = inlined_call_operand.vmem [shape: f32[2,4], index: 0, kind: input, shape index: {}, may-alias: {0,1}]
  %s1 = inlined_call_operand.vmem [shape: f32[2,4], index: 1, kind: input, shape index: {}, may-alias: {0,1}]
  %s2 = inlined_call_operand.vmem [shape: f32[2,4], index: 2, kind: output, shape index: {}]
  %v3 = vld [vmem:[%s0] sm:$0x3]
  %v4 = vld [vmem:[%s1] sm:$0x3]
  %5 = xla_tuple %v3, %v4
  %6 = xla_tuple %5
  %v7 = vmul.f32 %v3, %v4
  %8 = xla_tuple %v7
  %9 = vst [vmem:[%s2] sm:$0x3] %v7

// kernel: fno2d_forward.8
$region0: #{fno2d_forward.8}
  #allocation0 [shape = 'u32[]', space=smem, size = 0x4, offset = 0x4, fixed_abs, tag = 'smem constant byte address 0x4 - core index']
  #allocation1 [shape = 'u32[144,128]{1,0:T(1,128)}', space=vmem, size = 0x12000, scoped, tag = 'internal scratch']
  %s0 = inlined_call_operand.hbm [shape: f32[512,12], index: 0, kind: input, shape index: {}]
  %s1 = inlined_call_operand.hbm [shape: f32[12,32], index: 1, kind: input, shape index: {}]
  %s2 = inlined_call_operand.hbm [shape: f32[1,32], index: 2, kind: input, shape index: {}]
  %s3 = inlined_call_operand.hbm [shape: f32[512,32], index: 3, kind: output, shape index: {}]
  %s4 = sld [smem:[#allocation0]]
  $region34: #{fno2d_forward.8} parent=0
    _
  %s6 = ssub.s32 1, %s4
  %s7 = scalar_select 0, %s6, %s4
  $region1: #{fno2d_forward.8} parent=0
    #allocation2 [shape = 'u8[262144]{0}', space=vmem, size = 0x40000, scoped, tag = 'input window, operand 0, single buffered']
    #allocation3 [shape = 's32[1]{0}', space=sflag, size = 0x4, scoped, tag = 'scoped memory for fno2d_forward.8']
    #allocation4 [shape = 's32[1]{0}', space=sflag, size = 0x4, scoped, tag = 'scoped memory for fno2d_forward.8']
    #allocation5 [shape = 'u8[8192]{0}', space=vmem, size = 0x2000, scoped, tag = 'input window, operand 1, single buffered']
    #allocation6 [shape = 's32[1]{0}', space=sflag, size = 0x4, scoped, tag = 'scoped memory for fno2d_forward.8']
    #allocation7 [shape = 'u8[512]{0}', space=vmem, size = 0x400, scoped, tag = 'input window, operand 2, single buffered']
    #allocation8 [shape = 'u8[262144]{0}', space=vmem, size = 0x40000, scoped, tag = 'output window, operand 0, single buffered']
    %8 = vsyncpa [#allocation3], 0
    %9 = vsyncpa [#allocation6], 0
    %10 = vsyncpa [#allocation4], 0
    // Predicated region
    $region2: #{fno2d_forward.8} parent=1 // pred_check
      _
    $region3: #{fno2d_forward.8} parent=1 // pred_check_branch
      %12 = sbr.rel (0) target = $region5
    $region4: #{fno2d_forward.8} parent=1 // pred_region
      %s14 = ssub.s32 8192, 8192
      %15 = vsyncadd [#allocation3], %s14
      %s16 = sshll.u32 [#allocation2], 4
      %s17 = int_to_ptr.vmem [resolvable:$true] %s16
      %22 = dma.hbm_to_vmem [thread:$0]  %s0, 8192, %s17, [#allocation3], 128, 128, 8
    $region5: #{fno2d_forward.8} parent=1 // pred_fallthru
      _
    // Predicated region
    $region6: #{fno2d_forward.8} parent=1 // pred_check
      _
    $region7: #{fno2d_forward.8} parent=1 // pred_check_branch
      %24 = sbr.rel (0) target = $region9
    $region8: #{fno2d_forward.8} parent=1 // pred_region
      %s26 = ssub.s32 256, 256
      %27 = vsyncadd [#allocation6], %s26
      %s28 = sshll.u32 [#allocation5], 4
      %s29 = int_to_ptr.vmem [resolvable:$true] %s28
      %34 = dma.hbm_to_vmem [thread:$0]  %s1, 256, %s29, [#allocation6], 128, 128, 8
    $region9: #{fno2d_forward.8} parent=1 // pred_fallthru
      _
    // Predicated region
    $region10: #{fno2d_forward.8} parent=1 // pred_check
      _
    $region11: #{fno2d_forward.8} parent=1 // pred_check_branch
      %36 = sbr.rel (0) target = $region13
    $region12: #{fno2d_forward.8} parent=1 // pred_region
      %s38 = ssub.s32 16, 16
      %39 = vsyncadd [#allocation6], %s38
      %s41 = sshll.u32 [#allocation7], 4
      %s42 = int_to_ptr.vmem [resolvable:$true] %s41
      %44 = dma.hbm_to_vmem [thread:$0]  %s2, 16, %s42, [#allocation6]
    $region13: #{fno2d_forward.8} parent=1 // pred_fallthru
      _
    // Predicated region
    $region14: #{fno2d_forward.8} parent=1 // pred_check
      _
    $region15: #{fno2d_forward.8} parent=1 // pred_check_branch
      %46 = sbr.rel (0) target = $region17
    $region16: #{fno2d_forward.8} parent=1 // pred_region
      %47 = dma.done [#allocation3], 8192
    $region17: #{fno2d_forward.8} parent=1 // pred_fallthru
      _
    // Predicated region
    $region18: #{fno2d_forward.8} parent=1 // pred_check
      _
    $region19: #{fno2d_forward.8} parent=1 // pred_check_branch
      %49 = sbr.rel (0) target = $region21
    $region20: #{fno2d_forward.8} parent=1 // pred_region
      %50 = dma.done [#allocation6], 256
    $region21: #{fno2d_forward.8} parent=1 // pred_fallthru
      _
    // Predicated region
    $region22: #{fno2d_forward.8} parent=1 // pred_check
      _
    $region23: #{fno2d_forward.8} parent=1 // pred_check_branch
      %52 = sbr.rel (0) target = $region25
    $region24: #{fno2d_forward.8} parent=1 // pred_region
      %53 = dma.done [#allocation6], 16
    $region25: #{fno2d_forward.8} parent=1 // pred_fallthru
      _
    %v54 = vld [vmem:[#allocation2] sm:$0xff]
    %v55 = vld [vmem:[#allocation2 + $0x8] sm:$0xff]
    %v56 = vld [vmem:[#allocation2 + $0x10] sm:$0xff]
    %v57 = vld [vmem:[#allocation2 + $0x18] sm:$0xff]
    %v58 = vld [vmem:[#allocation2 + $0x20] sm:$0xff]
    %v59 = vld [vmem:[#allocation2 + $0x28] sm:$0xff]
    %v60 = vld [vmem:[#allocation2 + $0x30] sm:$0xff]
    %v61 = vld [vmem:[#allocation2 + $0x38] sm:$0xff]
    %v62 = vld [vmem:[#allocation2 + $0x40] sm:$0xff]
    %v63 = vld [vmem:[#allocation2 + $0x48] sm:$0xff]
    %v64 = vld [vmem:[#allocation2 + $0x50] sm:$0xff]
    %v65 = vld [vmem:[#allocation2 + $0x58] sm:$0xff]
    %v66 = vld [vmem:[#allocation2 + $0x60] sm:$0xff]
    %v67 = vld [vmem:[#allocation2 + $0x68] sm:$0xff]
    %v68 = vld [vmem:[#allocation2 + $0x70] sm:$0xff]
    %v69 = vld [vmem:[#allocation2 + $0x78] sm:$0xff]
    %v70 = vld [vmem:[#allocation2 + $0x80] sm:$0xff]
    %v71 = vld [vmem:[#allocation2 + $0x88] sm:$0xff]
    %v72 = vld [vmem:[#allocation2 + $0x90] sm:$0xff]
    %v73 = vld [vmem:[#allocation2 + $0x98] sm:$0xff]
    %v74 = vld [vmem:[#allocation2 + $0xa0] sm:$0xff]
    %v75 = vld [vmem:[#allocation2 + $0xa8] sm:$0xff]
    %v76 = vld [vmem:[#allocation2 + $0xb0] sm:$0xff]
    %v77 = vld [vmem:[#allocation2 + $0xb8] sm:$0xff]
    %v78 = vld [vmem:[#allocation2 + $0xc0] sm:$0xff]
    %v79 = vld [vmem:[#allocation2 + $0xc8] sm:$0xff]
    %v80 = vld [vmem:[#allocation2 + $0xd0] sm:$0xff]
    %v81 = vld [vmem:[#allocation2 + $0xd8] sm:$0xff]
    %v82 = vld [vmem:[#allocation2 + $0xe0] sm:$0xff]
    %v83 = vld [vmem:[#allocation2 + $0xe8] sm:$0xff]
    %v84 = vld [vmem:[#allocation2 + $0xf0] sm:$0xff]
    %v85 = vld [vmem:[#allocation2 + $0xf8] sm:$0xff]
    %v86 = vld [vmem:[#allocation2 + $0x100] sm:$0xff]
    %v87 = vld [vmem:[#allocation2 + $0x108] sm:$0xff]
    %v88 = vld [vmem:[#allocation2 + $0x110] sm:$0xff]
    %v89 = vld [vmem:[#allocation2 + $0x118] sm:$0xff]
    %v90 = vld [vmem:[#allocation2 + $0x120] sm:$0xff]
    %v91 = vld [vmem:[#allocation2 + $0x128] sm:$0xff]
    %v92 = vld [vmem:[#allocation2 + $0x130] sm:$0xff]
    %v93 = vld [vmem:[#allocation2 + $0x138] sm:$0xff]
    %v94 = vld [vmem:[#allocation2 + $0x140] sm:$0xff]
    %v95 = vld [vmem:[#allocation2 + $0x148] sm:$0xff]
    %v96 = vld [vmem:[#allocation2 + $0x150] sm:$0xff]
    %v97 = vld [vmem:[#allocation2 + $0x158] sm:$0xff]
    %v98 = vld [vmem:[#allocation2 + $0x160] sm:$0xff]
    %v99 = vld [vmem:[#allocation2 + $0x168] sm:$0xff]
    %v100 = vld [vmem:[#allocation2 + $0x170] sm:$0xff]
    %v101 = vld [vmem:[#allocation2 + $0x178] sm:$0xff]
    %v102 = vld [vmem:[#allocation2 + $0x180] sm:$0xff]
    %v103 = vld [vmem:[#allocation2 + $0x188] sm:$0xff]
    %v104 = vld [vmem:[#allocation2 + $0x190] sm:$0xff]
    %v105 = vld [vmem:[#allocation2 + $0x198] sm:$0xff]
    %v106 = vld [vmem:[#allocation2 + $0x1a0] sm:$0xff]
    %v107 = vld [vmem:[#allocation2 + $0x1a8] sm:$0xff]
    %v108 = vld [vmem:[#allocation2 + $0x1b0] sm:$0xff]
    %v109 = vld [vmem:[#allocation2 + $0x1b8] sm:$0xff]
    %v110 = vld [vmem:[#allocation2 + $0x1c0] sm:$0xff]
    %v111 = vld [vmem:[#allocation2 + $0x1c8] sm:$0xff]
    %v112 = vld [vmem:[#allocation2 + $0x1d0] sm:$0xff]
    %v113 = vld [vmem:[#allocation2 + $0x1d8] sm:$0xff]
    %v114 = vld [vmem:[#allocation2 + $0x1e0] sm:$0xff]
    %v115 = vld [vmem:[#allocation2 + $0x1e8] sm:$0xff]
    %v116 = vld [vmem:[#allocation2 + $0x1f0] sm:$0xff]
    %v117 = vld [vmem:[#allocation2 + $0x1f8] sm:$0xff]
    %v118 = vld [vmem:[#allocation5] sm:$0xff]
    %v119 = vld [vmem:[#allocation5 + $0x8] sm:$0xf]
    %v120 = vld [vmem:[#allocation7] sm:$0x1]
    %v122 = vlaneseq
    %v123 = vshrl.u32 %v122, 7
    %v124 = vsub.s32 0, %v123
    %v125 = vrot.slane %v120, %v124
    %vm127 = vcmask 97280
    %v129 = vsel %vm127, %v54, 0
    %v132 = vsel %vm127, %v55, 0
    %v135 = vsel %vm127, %v56, 0
    %v138 = vsel %vm127, %v57, 0
    %v141 = vsel %vm127, %v58, 0
    %v144 = vsel %vm127, %v59, 0
    %v147 = vsel %vm127, %v60, 0
    %v150 = vsel %vm127, %v61, 0
    %v153 = vsel %vm127, %v62, 0
    %v156 = vsel %vm127, %v63, 0
    %v159 = vsel %vm127, %v64, 0
    %v162 = vsel %vm127, %v65, 0
    %v165 = vsel %vm127, %v66, 0
    %v168 = vsel %vm127, %v67, 0
    %v171 = vsel %vm127, %v68, 0
    %v174 = vsel %vm127, %v69, 0
    %v177 = vsel %vm127, %v70, 0
    %v180 = vsel %vm127, %v71, 0
    %v183 = vsel %vm127, %v72, 0
    %v186 = vsel %vm127, %v73, 0
    %v189 = vsel %vm127, %v74, 0
    %v192 = vsel %vm127, %v75, 0
    %v195 = vsel %vm127, %v76, 0
    %v198 = vsel %vm127, %v77, 0
    %v201 = vsel %vm127, %v78, 0
    %v204 = vsel %vm127, %v79, 0
    %v207 = vsel %vm127, %v80, 0
    %v210 = vsel %vm127, %v81, 0
    %v213 = vsel %vm127, %v82, 0
    %v216 = vsel %vm127, %v83, 0
    %v219 = vsel %vm127, %v84, 0
    %v222 = vsel %vm127, %v85, 0
    %v225 = vsel %vm127, %v86, 0
    %v228 = vsel %vm127, %v87, 0
    %v231 = vsel %vm127, %v88, 0
    %v234 = vsel %vm127, %v89, 0
    %v237 = vsel %vm127, %v90, 0
    %v240 = vsel %vm127, %v91, 0
    %v243 = vsel %vm127, %v92, 0
    %v246 = vsel %vm127, %v93, 0
    %v249 = vsel %vm127, %v94, 0
    %v252 = vsel %vm127, %v95, 0
    %v255 = vsel %vm127, %v96, 0
    %v258 = vsel %vm127, %v97, 0
    %v261 = vsel %vm127, %v98, 0
    %v264 = vsel %vm127, %v99, 0
    %v267 = vsel %vm127, %v100, 0
    %v270 = vsel %vm127, %v101, 0
    %v273 = vsel %vm127, %v102, 0
    %v276 = vsel %vm127, %v103, 0
    %v279 = vsel %vm127, %v104, 0
    %v282 = vsel %vm127, %v105, 0
    %v285 = vsel %vm127, %v106, 0
    %v288 = vsel %vm127, %v107, 0
    %v291 = vsel %vm127, %v108, 0
    %v294 = vsel %vm127, %v109, 0
    %v297 = vsel %vm127, %v110, 0
    %v300 = vsel %vm127, %v111, 0
    %v303 = vsel %vm127, %v112, 0
    %v306 = vsel %vm127, %v113, 0
    %v309 = vsel %vm127, %v114, 0
    %v312 = vsel %vm127, %v115, 0
    %v315 = vsel %vm127, %v116, 0
    %v318 = vsel %vm127, %v117, 0
    %vm320 = vcmask 1043456
    %v322 = vsel %vm320, %v119, 0
    %324 = vmatprep.subr.mxu0 0.0
    %325 = vmatpush1.msra.mxu0 %v118
    %326 = vmatprep.subr.mxu0 0.0
    %327 = vmatpush1.msra.mxu0 %v322
    %328 = vmatprep.subr.mxu0 0.0
    %329 = vmatpush1.msra.mxu0 0.0
    %330 = vmatprep.subr.mxu0 0.0
    %331 = vmatpush1.msra.mxu0 0.0
    %332 = vmatprep.subr.mxu0 0.0
    %333 = vmatpush1.msra.mxu0 0.0
    %334 = vmatprep.subr.mxu0 0.0
    %335 = vmatpush1.msra.mxu0 0.0
    %336 = vmatprep.subr.mxu0 0.0
    %337 = vmatpush1.msra.mxu0 0.0
    %338 = vmatprep.subr.mxu0 0.0
    %339 = vmatpush1.msra.mxu0 0.0
    %340 = vmatprep.subr.mxu0 0.0
    %341 = vmatpush1.msra.mxu0 0.0
    %342 = vmatprep.subr.mxu0 0.0
    %343 = vmatpush1.msra.mxu0 0.0
    %344 = vmatprep.subr.mxu0 0.0
    %345 = vmatpush1.msra.mxu0 0.0
    %346 = vmatprep.subr.mxu0 0.0
    %347 = vmatpush1.msra.mxu0 0.0
    %348 = vmatprep.subr.mxu0 0.0
    %349 = vmatpush1.msra.mxu0 0.0
    %350 = vmatprep.subr.mxu0 0.0
    %351 = vmatpush1.msra.mxu0 0.0
    %352 = vmatprep.subr.mxu0 0.0
    %353 = vmatpush1.msra.mxu0 0.0
    %354 = vmatprep.subr.mxu0 0.0
    %355 = vmatpush1.msra.mxu0 0.0
    %356 = vmatprep.subr.mxu0 0.0
    %357 = vmatpush1.msra.mxu0 0.0
    %358 = vmatprep.subr.mxu0 0.0
    %359 = vmatpush1.msra.mxu0 0.0
    %360 = vmatprep.subr.mxu0 0.0
    %361 = vmatpush1.msra.mxu0 0.0
    %362 = vmatprep.subr.mxu0 0.0
    %363 = vmatpush1.msra.mxu0 0.0
    %364 = vmatprep.subr.mxu0 0.0
    %365 = vmatpush1.msra.mxu0 0.0
    %366 = vmatprep.subr.mxu0 0.0
    %367 = vmatpush1.msra.mxu0 0.0
    %368 = vmatprep.subr.mxu0 0.0
    %369 = vmatpush1.msra.mxu0 0.0
    %370 = vmatprep.subr.mxu0 0.0
    %371 = vmatpush1.msra.mxu0 0.0
    %372 = vmatprep.subr.mxu0 0.0
    %373 = vmatpush1.msra.mxu0 0.0
    %374 = vmatprep.subr.mxu0 0.0
    %375 = vmatpush1.msra.mxu0 0.0
    %376 = vmatprep.subr.mxu0 0.0
    %377 = vmatpush1.msra.mxu0 0.0
    %378 = vmatprep.subr.mxu0 0.0
    %379 = vmatpush1.msra.mxu0 0.0
    %380 = vmatprep.subr.mxu0 0.0
    %381 = vmatpush1.msra.mxu0 0.0
    %382 = vmatprep.subr.mxu0 0.0
    %383 = vmatpush1.msra.mxu0 0.0
    %384 = vmatprep.subr.mxu0 0.0
    %385 = vmatpush1.msra.mxu0 0.0
    %386 = vmatprep.subr.mxu0 0.0
    %387 = vmatpush1.msra.mxu0 0.0
    %388 = vmatprep.mubr.f32.mxu0 0.0
    %389 = vmatmul.mubr.f32.gmra.mrb[0].mxu0 %v129
    %v390 = vpop.f32.mrb[0].mxu0
    %v391 = vadd.f32 %v125, %v390
    %v392 = vpop.f32.mrb[0].mxu0
    %393 = vmatprep.mubr.f32.mxu0 0.0
    %394 = vmatmul.mubr.f32.gmra.mrb[0].mxu0 %v132
    %v395 = vpop.f32.mrb[0].mxu0
    %v396 = vadd.f32 %v125, %v395
    %v397 = vpop.f32.mrb[0].mxu0
    %398 = vmatprep.mubr.f32.mxu0 0.0
    %399 = vmatmul.mubr.f32.gmra.mrb[0].mxu0 %v135
    %v400 = vpop.f32.mrb[0].mxu0
    %v401 = vadd.f32 %v125, %v400
    %v402 = vpop.f32.mrb[0].mxu0
    %403 = vmatprep.mubr.f32.mxu0 0.0
    %404 = vmatmul.mubr.f32.gmra.mrb[0].mxu0 %v138
    %v405 = vpop.f32.mrb[0].mxu0
    %v406 = vadd.f32 %v125, %v405
    %v407 = vpop.f32.mrb[0].mxu0
    %408 = vmatprep.mubr.f32.mxu0 0.0
    %409 = vmatmul.mubr.f32.gmra.mrb[0].mxu0 %v141
    %v410 = vpop.f32.mrb[0].mxu0
    %v411 = vadd.f32 %v125, %v410
    %v412 = vpop.f32.mrb[0].mxu0
    %413 = vmatprep.mubr.f32.mxu0 0.0
    %414 = vmatmul.mubr.f32.gmra.mrb[0].mxu0 %v144
    %v415 = vpop.f32.mrb[0].mxu0
    %v416 = vadd.f32 %v125, %v415
    %v417 = vpop.f32.mrb[0].mxu0
    %418 = vmatprep.mubr.f32.mxu0 0.0
    %419 = vmatmul.mubr.f32.gmra.mrb[0].mxu0 %v147
    %v420 = vpop.f32.mrb[0].mxu0
    %v421 = vadd.f32 %v125, %v420
    %v422 = vpop.f32.mrb[0].mxu0
    %423 = vmatprep.mubr.f32.mxu0 0.0
    %424 = vmatmul.mubr.f32.gmra.mrb[0].mxu0 %v150
    %v425 = vpop.f32.mrb[0].mxu0
    %v426 = vadd.f32 %v125, %v425
    %v427 = vpop.f32.mrb[0].mxu0
    %428 = vmatprep.mubr.f32.mxu0 0.0
    %429 = vmatmul.mubr.f32.gmra.mrb[0].mxu0 %v153
    %v430 = vpop.f32.mrb[0].mxu0
    %v431 = vadd.f32 %v125, %v430
    %v432 = vpop.f32.mrb[0].mxu0
    %433 = vmatprep.mubr.f32.mxu0 0.0
    %434 = vmatmul.mubr.f32.gmra.mrb[0].mxu0 %v156
    %v435 = vpop.f32.mrb[0].mxu0
    %v436 = vadd.f32 %v125, %v435
    %v437 = vpop.f32.mrb[0].mxu0
    %438 = vmatprep.mubr.f32.mxu0 0.0
    %439 = vmatmul.mubr.f32.gmra.mrb[0].mxu0 %v159
    %v440 = vpop.f32.mrb[0].mxu0
    %v441 = vadd.f32 %v125, %v440
    %v442 = vpop.f32.mrb[0].mxu0
    %443 = vmatprep.mubr.f32.mxu0 0.0
    %444 = vmatmul.mubr.f32.gmra.mrb[0].mxu0 %v162
    %v445 = vpop.f32.mrb[0].mxu0
    %v446 = vadd.f32 %v125, %v445
    %v447 = vpop.f32.mrb[0].mxu0
    %448 = vmatprep.mubr.f32.mxu0 0.0
    %449 = vmatmul.mubr.f32.gmra.mrb[0].mxu0 %v165
    %v450 = vpop.f32.mrb[0].mxu0
    %v451 = vadd.f32 %v125, %v450
    %v452 = vpop.f32.mrb[0].mxu0
    %453 = vmatprep.mubr.f32.mxu0 0.0
    %454 = vmatmul.mubr.f32.gmra.mrb[0].mxu0 %v168
    %v455 = vpop.f32.mrb[0].mxu0
    %v456 = vadd.f32 %v125, %v455
    %v457 = vpop.f32.mrb[0].mxu0
    %458 = vmatprep.mubr.f32.mxu0 0.0
    %459 = vmatmul.mubr.f32.gmra.mrb[0].mxu0 %v171
    %v460 = vpop.f32.mrb[0].mxu0
    %v461 = vadd.f32 %v125, %v460
    %v462 = vpop.f32.mrb[0].mxu0
    %463 = vmatprep.mubr.f32.mxu0 0.0
    %464 = vmatmul.mubr.f32.gmra.mrb[0].mxu0 %v174
    %v465 = vpop.f32.mrb[0].mxu0
    %v466 = vadd.f32 %v125, %v465
    %v467 = vpop.f32.mrb[0].mxu0
    %468 = vmatprep.mubr.f32.mxu0 0.0
    %469 = vmatmul.mubr.f32.gmra.mrb[0].mxu0 %v177
    %v470 = vpop.f32.mrb[0].mxu0
    %v471 = vadd.f32 %v125, %v470
    %v472 = vpop.f32.mrb[0].mxu0
    %473 = vmatprep.mubr.f32.mxu0 0.0
    %474 = vmatmul.mubr.f32.gmra.mrb[0].mxu0 %v180
    %v475 = vpop.f32.mrb[0].mxu0
    %v476 = vadd.f32 %v125, %v475
    %v477 = vpop.f32.mrb[0].mxu0
    %478 = vmatprep.mubr.f32.mxu0 0.0
    %479 = vmatmul.mubr.f32.gmra.mrb[0].mxu0 %v183
    %v480 = vpop.f32.mrb[0].mxu0
    %v481 = vadd.f32 %v125, %v480
    %v482 = vpop.f32.mrb[0].mxu0
    %483 = vmatprep.mubr.f32.mxu0 0.0
    %484 = vmatmul.mubr.f32.gmra.mrb[0].mxu0 %v186
    %v485 = vpop.f32.mrb[0].mxu0
    %v486 = vadd.f32 %v125, %v485
    %v487 = vpop.f32.mrb[0].mxu0
    %488 = vmatprep.mubr.f32.mxu0 0.0
    %489 = vmatmul.mubr.f32.gmra.mrb[0].mxu0 %v189
    %v490 = vpop.f32.mrb[0].mxu0
    %v491 = vadd.f32 %v125, %v490
    %v492 = vpop.f32.mrb[0].mxu0
    %493 = vmatprep.mubr.f32.mxu0 0.0
    %494 = vmatmul.mubr.f32.gmra.mrb[0].mxu0 %v192
    %v495 = vpop.f32.mrb[0].mxu0
    %v496 = vadd.f32 %v125, %v495
    %v497 = vpop.f32.mrb[0].mxu0
    %498 = vmatprep.mubr.f32.mxu0 0.0
    %499 = vmatmul.mubr.f32.gmra.mrb[0].mxu0 %v195
    %v500 = vpop.f32.mrb[0].mxu0
    %v501 = vadd.f32 %v125, %v500
    %v502 = vpop.f32.mrb[0].mxu0
    %503 = vmatprep.mubr.f32.mxu0 0.0
    %504 = vmatmul.mubr.f32.gmra.mrb[0].mxu0 %v198
    %v505 = vpop.f32.mrb[0].mxu0
    %v506 = vadd.f32 %v125, %v505
    %v507 = vpop.f32.mrb[0].mxu0
    %508 = vmatprep.mubr.f32.mxu0 0.0
    %509 = vmatmul.mubr.f32.gmra.mrb[0].mxu0 %v201
    %v510 = vpop.f32.mrb[0].mxu0
    %v511 = vadd.f32 %v125, %v510
    %v512 = vpop.f32.mrb[0].mxu0
    %513 = vmatprep.mubr.f32.mxu0 0.0
    %514 = vmatmul.mubr.f32.gmra.mrb[0].mxu0 %v204
    %v515 = vpop.f32.mrb[0].mxu0
    %v516 = vadd.f32 %v125, %v515
    %v517 = vpop.f32.mrb[0].mxu0
    %518 = vmatprep.mubr.f32.mxu0 0.0
    %519 = vmatmul.mubr.f32.gmra.mrb[0].mxu0 %v207
    %v520 = vpop.f32.mrb[0].mxu0
    %v521 = vadd.f32 %v125, %v520
    %v522 = vpop.f32.mrb[0].mxu0
    %523 = vmatprep.mubr.f32.mxu0 0.0
    %524 = vmatmul.mubr.f32.gmra.mrb[0].mxu0 %v210
    %v525 = vpop.f32.mrb[0].mxu0
    %v526 = vadd.f32 %v125, %v525
    %v527 = vpop.f32.mrb[0].mxu0
    %528 = vmatprep.mubr.f32.mxu0 0.0
    %529 = vmatmul.mubr.f32.gmra.mrb[0].mxu0 %v213
    %v530 = vpop.f32.mrb[0].mxu0
    %v531 = vadd.f32 %v125, %v530
    %v532 = vpop.f32.mrb[0].mxu0
    %533 = vmatprep.mubr.f32.mxu0 0.0
    %534 = vmatmul.mubr.f32.gmra.mrb[0].mxu0 %v216
    %v535 = vpop.f32.mrb[0].mxu0
    %v536 = vadd.f32 %v125, %v535
    %v537 = vpop.f32.mrb[0].mxu0
    %538 = vmatprep.mubr.f32.mxu0 0.0
    %539 = vmatmul.mubr.f32.gmra.mrb[0].mxu0 %v219
    %v540 = vpop.f32.mrb[0].mxu0
    %v541 = vadd.f32 %v125, %v540
    %v542 = vpop.f32.mrb[0].mxu0
    %543 = vmatprep.mubr.f32.mxu0 0.0
    %544 = vmatmul.mubr.f32.gmra.mrb[0].mxu0 %v222
    %v545 = vpop.f32.mrb[0].mxu0
    %v546 = vadd.f32 %v125, %v545
    %v547 = vpop.f32.mrb[0].mxu0
    %548 = vmatprep.mubr.f32.mxu0 0.0
    %549 = vmatmul.mubr.f32.gmra.mrb[0].mxu0 %v225
    %v550 = vpop.f32.mrb[0].mxu0
    %v551 = vadd.f32 %v125, %v550
    %v552 = vpop.f32.mrb[0].mxu0
    %553 = vmatprep.mubr.f32.mxu0 0.0
    %554 = vmatmul.mubr.f32.gmra.mrb[0].mxu0 %v228
    %v555 = vpop.f32.mrb[0].mxu0
    %v556 = vadd.f32 %v125, %v555
    %v557 = vpop.f32.mrb[0].mxu0
    %558 = vmatprep.mubr.f32.mxu0 0.0
    %559 = vmatmul.mubr.f32.gmra.mrb[0].mxu0 %v231
    %v560 = vpop.f32.mrb[0].mxu0
    %v561 = vadd.f32 %v125, %v560
    %v562 = vpop.f32.mrb[0].mxu0
    %563 = vmatprep.mubr.f32.mxu0 0.0
    %564 = vmatmul.mubr.f32.gmra.mrb[0].mxu0 %v234
    %v565 = vpop.f32.mrb[0].mxu0
    %v566 = vadd.f32 %v125, %v565
    %v567 = vpop.f32.mrb[0].mxu0
    %568 = vmatprep.mubr.f32.mxu0 0.0
    %569 = vmatmul.mubr.f32.gmra.mrb[0].mxu0 %v237
    %v570 = vpop.f32.mrb[0].mxu0
    %v571 = vadd.f32 %v125, %v570
    %v572 = vpop.f32.mrb[0].mxu0
    %573 = vmatprep.mubr.f32.mxu0 0.0
    %574 = vmatmul.mubr.f32.gmra.mrb[0].mxu0 %v240
    %v575 = vpop.f32.mrb[0].mxu0
    %v576 = vadd.f32 %v125, %v575
    %v577 = vpop.f32.mrb[0].mxu0
    %578 = vmatprep.mubr.f32.mxu0 0.0
    %579 = vmatmul.mubr.f32.gmra.mrb[0].mxu0 %v243
    %v580 = vpop.f32.mrb[0].mxu0
    %v581 = vadd.f32 %v125, %v580
    %v582 = vpop.f32.mrb[0].mxu0
    %583 = vmatprep.mubr.f32.mxu0 0.0
    %584 = vmatmul.mubr.f32.gmra.mrb[0].mxu0 %v246
    %v585 = vpop.f32.mrb[0].mxu0
    %v586 = vadd.f32 %v125, %v585
    %v587 = vpop.f32.mrb[0].mxu0
    %588 = vmatprep.mubr.f32.mxu0 0.0
    %589 = vmatmul.mubr.f32.gmra.mrb[0].mxu0 %v249
    %v590 = vpop.f32.mrb[0].mxu0
    %v591 = vadd.f32 %v125, %v590
    %v592 = vpop.f32.mrb[0].mxu0
    %593 = vmatprep.mubr.f32.mxu0 0.0
    %594 = vmatmul.mubr.f32.gmra.mrb[0].mxu0 %v252
    %v595 = vpop.f32.mrb[0].mxu0
    %v596 = vadd.f32 %v125, %v595
    %v597 = vpop.f32.mrb[0].mxu0
    %598 = vmatprep.mubr.f32.mxu0 0.0
    %599 = vmatmul.mubr.f32.gmra.mrb[0].mxu0 %v255
    %v600 = vpop.f32.mrb[0].mxu0
    %v601 = vadd.f32 %v125, %v600
    %v602 = vpop.f32.mrb[0].mxu0
    %603 = vmatprep.mubr.f32.mxu0 0.0
    %604 = vmatmul.mubr.f32.gmra.mrb[0].mxu0 %v258
    %v605 = vpop.f32.mrb[0].mxu0
    %v606 = vadd.f32 %v125, %v605
    %v607 = vpop.f32.mrb[0].mxu0
    %608 = vmatprep.mubr.f32.mxu0 0.0
    %609 = vmatmul.mubr.f32.gmra.mrb[0].mxu0 %v261
    %v610 = vpop.f32.mrb[0].mxu0
    %v611 = vadd.f32 %v125, %v610
    %v612 = vpop.f32.mrb[0].mxu0
    %613 = vmatprep.mubr.f32.mxu0 0.0
    %614 = vmatmul.mubr.f32.gmra.mrb[0].mxu0 %v264
    %v615 = vpop.f32.mrb[0].mxu0
    %v616 = vadd.f32 %v125, %v615
    %v617 = vpop.f32.mrb[0].mxu0
    %618 = vmatprep.mubr.f32.mxu0 0.0
    %619 = vmatmul.mubr.f32.gmra.mrb[0].mxu0 %v267
    %v620 = vpop.f32.mrb[0].mxu0
    %v621 = vadd.f32 %v125, %v620
    %v622 = vpop.f32.mrb[0].mxu0
    %623 = vmatprep.mubr.f32.mxu0 0.0
    %624 = vmatmul.mubr.f32.gmra.mrb[0].mxu0 %v270
    %v625 = vpop.f32.mrb[0].mxu0
    %v626 = vadd.f32 %v125, %v625
    %v627 = vpop.f32.mrb[0].mxu0
    %628 = vmatprep.mubr.f32.mxu0 0.0
    %629 = vmatmul.mubr.f32.gmra.mrb[0].mxu0 %v273
    %v630 = vpop.f32.mrb[0].mxu0
    %v631 = vadd.f32 %v125, %v630
    %v632 = vpop.f32.mrb[0].mxu0
    %633 = vmatprep.mubr.f32.mxu0 0.0
    %634 = vmatmul.mubr.f32.gmra.mrb[0].mxu0 %v276
    %v635 = vpop.f32.mrb[0].mxu0
    %v636 = vadd.f32 %v125, %v635
    %v637 = vpop.f32.mrb[0].mxu0
    %638 = vmatprep.mubr.f32.mxu0 0.0
    %639 = vmatmul.mubr.f32.gmra.mrb[0].mxu0 %v279
    %v640 = vpop.f32.mrb[0].mxu0
    %v641 = vadd.f32 %v125, %v640
    %v642 = vpop.f32.mrb[0].mxu0
    %643 = vmatprep.mubr.f32.mxu0 0.0
    %644 = vmatmul.mubr.f32.gmra.mrb[0].mxu0 %v282
    %v645 = vpop.f32.mrb[0].mxu0
    %v646 = vadd.f32 %v125, %v645
    %v647 = vpop.f32.mrb[0].mxu0
    %648 = vmatprep.mubr.f32.mxu0 0.0
    %649 = vmatmul.mubr.f32.gmra.mrb[0].mxu0 %v285
    %v650 = vpop.f32.mrb[0].mxu0
    %v651 = vadd.f32 %v125, %v650
    %v652 = vpop.f32.mrb[0].mxu0
    %653 = vmatprep.mubr.f32.mxu0 0.0
    %654 = vmatmul.mubr.f32.gmra.mrb[0].mxu0 %v288
    %v655 = vpop.f32.mrb[0].mxu0
    %v656 = vadd.f32 %v125, %v655
    %v657 = vpop.f32.mrb[0].mxu0
    %658 = vmatprep.mubr.f32.mxu0 0.0
    %659 = vmatmul.mubr.f32.gmra.mrb[0].mxu0 %v291
    %v660 = vpop.f32.mrb[0].mxu0
    %v661 = vadd.f32 %v125, %v660
    %v662 = vpop.f32.mrb[0].mxu0
    %663 = vmatprep.mubr.f32.mxu0 0.0
    %664 = vmatmul.mubr.f32.gmra.mrb[0].mxu0 %v294
    %v665 = vpop.f32.mrb[0].mxu0
    %v666 = vadd.f32 %v125, %v665
    %v667 = vpop.f32.mrb[0].mxu0
    %668 = vmatprep.mubr.f32.mxu0 0.0
    %669 = vmatmul.mubr.f32.gmra.mrb[0].mxu0 %v297
    %v670 = vpop.f32.mrb[0].mxu0
    %v671 = vadd.f32 %v125, %v670
    %v672 = vpop.f32.mrb[0].mxu0
    %673 = vmatprep.mubr.f32.mxu0 0.0
    %674 = vmatmul.mubr.f32.gmra.mrb[0].mxu0 %v300
    %v675 = vpop.f32.mrb[0].mxu0
    %v676 = vadd.f32 %v125, %v675
    %v677 = vpop.f32.mrb[0].mxu0
    %678 = vmatprep.mubr.f32.mxu0 0.0
    %679 = vmatmul.mubr.f32.gmra.mrb[0].mxu0 %v303
    %v680 = vpop.f32.mrb[0].mxu0
    %v681 = vadd.f32 %v125, %v680
    %v682 = vpop.f32.mrb[0].mxu0
    %683 = vmatprep.mubr.f32.mxu0 0.0
    %684 = vmatmul.mubr.f32.gmra.mrb[0].mxu0 %v306
    %v685 = vpop.f32.mrb[0].mxu0
    %v686 = vadd.f32 %v125, %v685
    %v687 = vpop.f32.mrb[0].mxu0
    %688 = vmatprep.mubr.f32.mxu0 0.0
    %689 = vmatmul.mubr.f32.gmra.mrb[0].mxu0 %v309
    %v690 = vpop.f32.mrb[0].mxu0
    %v691 = vadd.f32 %v125, %v690
    %v692 = vpop.f32.mrb[0].mxu0
    %693 = vmatprep.mubr.f32.mxu0 0.0
    %694 = vmatmul.mubr.f32.gmra.mrb[0].mxu0 %v312
    %v695 = vpop.f32.mrb[0].mxu0
    %v696 = vadd.f32 %v125, %v695
    %v697 = vpop.f32.mrb[0].mxu0
    %698 = vmatprep.mubr.f32.mxu0 0.0
    %699 = vmatmul.mubr.f32.gmra.mrb[0].mxu0 %v315
    %v700 = vpop.f32.mrb[0].mxu0
    %v701 = vadd.f32 %v125, %v700
    %v702 = vpop.f32.mrb[0].mxu0
    %703 = vmatprep.mubr.f32.mxu0 0.0
    %704 = vmatmul.mubr.f32.gmra.mrb[0].mxu0 %v318
    %v705 = vpop.f32.mrb[0].mxu0
    %v706 = vadd.f32 %v125, %v705
    %v707 = vpop.f32.mrb[0].mxu0
    %708 = vdwg.mxu0
    %vm709 = vcmask 261120
    %710 = vst.msk [vmem:[#allocation8] sm:$0xff] %vm709, %v391
    %711 = vst.msk [vmem:[#allocation8 + $0x8] sm:$0xff] %vm709, %v396
    %712 = vst.msk [vmem:[#allocation8 + $0x10] sm:$0xff] %vm709, %v401
    %713 = vst.msk [vmem:[#allocation8 + $0x18] sm:$0xff] %vm709, %v406
    %714 = vst.msk [vmem:[#allocation8 + $0x20] sm:$0xff] %vm709, %v411
    %715 = vst.msk [vmem:[#allocation8 + $0x28] sm:$0xff] %vm709, %v416
    %716 = vst.msk [vmem:[#allocation8 + $0x30] sm:$0xff] %vm709, %v421
    %717 = vst.msk [vmem:[#allocation8 + $0x38] sm:$0xff] %vm709, %v426
    %718 = vst.msk [vmem:[#allocation8 + $0x40] sm:$0xff] %vm709, %v431
    %719 = vst.msk [vmem:[#allocation8 + $0x48] sm:$0xff] %vm709, %v436
    %720 = vst.msk [vmem:[#allocation8 + $0x50] sm:$0xff] %vm709, %v441
    %721 = vst.msk [vmem:[#allocation8 + $0x58] sm:$0xff] %vm709, %v446
    %722 = vst.msk [vmem:[#allocation8 + $0x60] sm:$0xff] %vm709, %v451
    %723 = vst.msk [vmem:[#allocation8 + $0x68] sm:$0xff] %vm709, %v456
    %724 = vst.msk [vmem:[#allocation8 + $0x70] sm:$0xff] %vm709, %v461
    %725 = vst.msk [vmem:[#allocation8 + $0x78] sm:$0xff] %vm709, %v466
    %726 = vst.msk [vmem:[#allocation8 + $0x80] sm:$0xff] %vm709, %v471
    %727 = vst.msk [vmem:[#allocation8 + $0x88] sm:$0xff] %vm709, %v476
    %728 = vst.msk [vmem:[#allocation8 + $0x90] sm:$0xff] %vm709, %v481
    %729 = vst.msk [vmem:[#allocation8 + $0x98] sm:$0xff] %vm709, %v486
    %730 = vst.msk [vmem:[#allocation8 + $0xa0] sm:$0xff] %vm709, %v491
    %731 = vst.msk [vmem:[#allocation8 + $0xa8] sm:$0xff] %vm709, %v496
    %732 = vst.msk [vmem:[#allocation8 + $0xb0] sm:$0xff] %vm709, %v501
    %733 = vst.msk [vmem:[#allocation8 + $0xb8] sm:$0xff] %vm709, %v506
    %734 = vst.msk [vmem:[#allocation8 + $0xc0] sm:$0xff] %vm709, %v511
    %735 = vst.msk [vmem:[#allocation8 + $0xc8] sm:$0xff] %vm709, %v516
    %736 = vst.msk [vmem:[#allocation8 + $0xd0] sm:$0xff] %vm709, %v521
    %737 = vst.msk [vmem:[#allocation8 + $0xd8] sm:$0xff] %vm709, %v526
    %738 = vst.msk [vmem:[#allocation8 + $0xe0] sm:$0xff] %vm709, %v531
    %739 = vst.msk [vmem:[#allocation8 + $0xe8] sm:$0xff] %vm709, %v536
    %740 = vst.msk [vmem:[#allocation8 + $0xf0] sm:$0xff] %vm709, %v541
    %741 = vst.msk [vmem:[#allocation8 + $0xf8] sm:$0xff] %vm709, %v546
    %742 = vst.msk [vmem:[#allocation8 + $0x100] sm:$0xff] %vm709, %v551
    %743 = vst.msk [vmem:[#allocation8 + $0x108] sm:$0xff] %vm709, %v556
    %744 = vst.msk [vmem:[#allocation8 + $0x110] sm:$0xff] %vm709, %v561
    %745 = vst.msk [vmem:[#allocation8 + $0x118] sm:$0xff] %vm709, %v566
    %746 = vst.msk [vmem:[#allocation8 + $0x120] sm:$0xff] %vm709, %v571
    %747 = vst.msk [vmem:[#allocation8 + $0x128] sm:$0xff] %vm709, %v576
    %748 = vst.msk [vmem:[#allocation8 + $0x130] sm:$0xff] %vm709, %v581
    %749 = vst.msk [vmem:[#allocation8 + $0x138] sm:$0xff] %vm709, %v586
    %750 = vst.msk [vmem:[#allocation8 + $0x140] sm:$0xff] %vm709, %v591
    %751 = vst.msk [vmem:[#allocation8 + $0x148] sm:$0xff] %vm709, %v596
    %752 = vst.msk [vmem:[#allocation8 + $0x150] sm:$0xff] %vm709, %v601
    %753 = vst.msk [vmem:[#allocation8 + $0x158] sm:$0xff] %vm709, %v606
    %754 = vst.msk [vmem:[#allocation8 + $0x160] sm:$0xff] %vm709, %v611
    %755 = vst.msk [vmem:[#allocation8 + $0x168] sm:$0xff] %vm709, %v616
    %756 = vst.msk [vmem:[#allocation8 + $0x170] sm:$0xff] %vm709, %v621
    %757 = vst.msk [vmem:[#allocation8 + $0x178] sm:$0xff] %vm709, %v626
    %758 = vst.msk [vmem:[#allocation8 + $0x180] sm:$0xff] %vm709, %v631
    %759 = vst.msk [vmem:[#allocation8 + $0x188] sm:$0xff] %vm709, %v636
    %760 = vst.msk [vmem:[#allocation8 + $0x190] sm:$0xff] %vm709, %v641
    %761 = vst.msk [vmem:[#allocation8 + $0x198] sm:$0xff] %vm709, %v646
    %762 = vst.msk [vmem:[#allocation8 + $0x1a0] sm:$0xff] %vm709, %v651
    %763 = vst.msk [vmem:[#allocation8 + $0x1a8] sm:$0xff] %vm709, %v656
    %764 = vst.msk [vmem:[#allocation8 + $0x1b0] sm:$0xff] %vm709, %v661
    %765 = vst.msk [vmem:[#allocation8 + $0x1b8] sm:$0xff] %vm709, %v666
    %766 = vst.msk [vmem:[#allocation8 + $0x1c0] sm:$0xff] %vm709, %v671
    %767 = vst.msk [vmem:[#allocation8 + $0x1c8] sm:$0xff] %vm709, %v676
    %768 = vst.msk [vmem:[#allocation8 + $0x1d0] sm:$0xff] %vm709, %v681
    %769 = vst.msk [vmem:[#allocation8 + $0x1d8] sm:$0xff] %vm709, %v686
    %770 = vst.msk [vmem:[#allocation8 + $0x1e0] sm:$0xff] %vm709, %v691
    %771 = vst.msk [vmem:[#allocation8 + $0x1e8] sm:$0xff] %vm709, %v696
    %772 = vst.msk [vmem:[#allocation8 + $0x1f0] sm:$0xff] %vm709, %v701
    %773 = vst.msk [vmem:[#allocation8 + $0x1f8] sm:$0xff] %vm709, %v706
    // Predicated region
    $region26: #{fno2d_forward.8} parent=1 // pred_check
      _
    $region27: #{fno2d_forward.8} parent=1 // pred_check_branch
      %775 = sbr.rel (0) target = $region29
    $region28: #{fno2d_forward.8} parent=1 // pred_region
      %s777 = ssub.s32 8192, 8192
      %778 = vsyncadd [#allocation4], %s777
      %s779 = sshll.u32 [#allocation8], 4
      %s780 = int_to_ptr.vmem [resolvable:$true] %s779
      %785 = dma.vmem_to_hbm [thread:$0]  %s780, 8192, %s3, [#allocation4], 128, 128, 8
    $region29: #{fno2d_forward.8} parent=1 // pred_fallthru
      _
    // Predicated region
    $region30: #{fno2d_forward.8} parent=1 // pred_check
      _
    $region31: #{fno2d_forward.8} parent=1 // pred_check_branch
      %787 = sbr.rel (0) target = $region33
    $region32: #{fno2d_forward.8} parent=1 // pred_region
      %788 = dma.done [#allocation4], 8192
    $region33: #{fno2d_forward.8} parent=1 // pred_fallthru
      _
    %789 = vsyncpa [#allocation3], 1
    %790 = vsyncpa [#allocation6], 1
    %791 = vsyncpa [#allocation4], 1

// kernel: fno2d_forward.9
$region0: #{fno2d_forward.9}
  #allocation0 [shape = 'u32[]', space=smem, size = 0x4, offset = 0x4, fixed_abs, tag = 'smem constant byte address 0x4 - core index']
  #allocation1 [shape = 'u32[144,128]{1,0:T(1,128)}', space=vmem, size = 0x12000, scoped, tag = 'internal scratch']
  %s0 = inlined_call_operand.hbm [shape: f32[32,2,64], index: 0, kind: input, shape index: {}]
  %s1 = inlined_call_operand.hbm [shape: f32[32,64,64], index: 1, kind: input, shape index: {}]
  %s2 = inlined_call_operand.hbm [shape: f32[32,2,64], index: 2, kind: output, shape index: {}]
  %s3 = sld [smem:[#allocation0]]
  $region26: #{fno2d_forward.9} parent=0
    _
  %s5 = ssub.s32 1, %s3
  %s6 = scalar_select 0, %s5, %s3
  $region1: #{fno2d_forward.9} parent=0
    #allocation2 [shape = 'u8[32768]{0}', space=vmem, size = 0x8000, scoped, tag = 'input window, operand 0, single buffered']
    #allocation3 [shape = 's32[1]{0}', space=sflag, size = 0x4, scoped, tag = 'scoped memory for fno2d_forward.9']
    #allocation4 [shape = 's32[1]{0}', space=sflag, size = 0x4, scoped, tag = 'scoped memory for fno2d_forward.9']
    #allocation5 [shape = 'u8[1048576]{0}', space=vmem, size = 0x100000, scoped, tag = 'input window, operand 1, single buffered']
    #allocation6 [shape = 's32[1]{0}', space=sflag, size = 0x4, scoped, tag = 'scoped memory for fno2d_forward.9']
    #allocation7 [shape = 'u8[32768]{0}', space=vmem, size = 0x8000, scoped, tag = 'output window, operand 0, single buffered']
    %7 = vsyncpa [#allocation3], 0
    %8 = vsyncpa [#allocation6], 0
    %9 = vsyncpa [#allocation4], 0
    // Predicated region
    $region2: #{fno2d_forward.9} parent=1 // pred_check
      _
    $region3: #{fno2d_forward.9} parent=1 // pred_check_branch
      %11 = sbr.rel (0) target = $region5
    $region4: #{fno2d_forward.9} parent=1 // pred_region
      %s13 = ssub.s32 1024, 1024
      %14 = vsyncadd [#allocation3], %s13
      %s15 = sshll.u32 [#allocation2], 4
      %s16 = int_to_ptr.vmem [resolvable:$true] %s15
      %21 = dma.hbm_to_vmem [thread:$0]  %s0, 1024, %s16, [#allocation3], 32, 32, 2
    $region5: #{fno2d_forward.9} parent=1 // pred_fallthru
      _
    // Predicated region
    $region6: #{fno2d_forward.9} parent=1 // pred_check
      _
    $region7: #{fno2d_forward.9} parent=1 // pred_check_branch
      %23 = sbr.rel (0) target = $region9
    $region8: #{fno2d_forward.9} parent=1 // pred_region
      %s25 = ssub.s32 32768, 32768
      %26 = vsyncadd [#allocation6], %s25
      %s27 = sshll.u32 [#allocation5], 4
      %s28 = int_to_ptr.vmem [resolvable:$true] %s27
      %33 = dma.hbm_to_vmem [thread:$0]  %s1, 32768, %s28, [#allocation6], 128, 128, 8
    $region9: #{fno2d_forward.9} parent=1 // pred_fallthru
      _
    // Predicated region
    $region10: #{fno2d_forward.9} parent=1 // pred_check
      _
    $region11: #{fno2d_forward.9} parent=1 // pred_check_branch
      %35 = sbr.rel (0) target = $region13
    $region12: #{fno2d_forward.9} parent=1 // pred_region
      %36 = dma.done [#allocation3], 1024
    $region13: #{fno2d_forward.9} parent=1 // pred_fallthru
      _
    // Predicated region
    $region14: #{fno2d_forward.9} parent=1 // pred_check
      _
    $region15: #{fno2d_forward.9} parent=1 // pred_check_branch
      %38 = sbr.rel (0) target = $region17
    $region16: #{fno2d_forward.9} parent=1 // pred_region
      %39 = dma.done [#allocation6], 32768
    $region17: #{fno2d_forward.9} parent=1 // pred_fallthru
      _
    %v40 = vld [vmem:[#allocation2] sm:$0x3]
    %v41 = vld [vmem:[#allocation2 + $0x2] sm:$0x3]
    %v42 = vld [vmem:[#allocation2 + $0x4] sm:$0x3]
    %v43 = vld [vmem:[#allocation2 + $0x6] sm:$0x3]
    %v44 = vld [vmem:[#allocation2 + $0x8] sm:$0x3]
    %v45 = vld [vmem:[#allocation2 + $0xa] sm:$0x3]
    %v46 = vld [vmem:[#allocation2 + $0xc] sm:$0x3]
    %v47 = vld [vmem:[#allocation2 + $0xe] sm:$0x3]
    %v48 = vld [vmem:[#allocation2 + $0x10] sm:$0x3]
    %v49 = vld [vmem:[#allocation2 + $0x12] sm:$0x3]
    %v50 = vld [vmem:[#allocation2 + $0x14] sm:$0x3]
    %v51 = vld [vmem:[#allocation2 + $0x16] sm:$0x3]
    %v52 = vld [vmem:[#allocation2 + $0x18] sm:$0x3]
    %v53 = vld [vmem:[#allocation2 + $0x1a] sm:$0x3]
    %v54 = vld [vmem:[#allocation2 + $0x1c] sm:$0x3]
    %v55 = vld [vmem:[#allocation2 + $0x1e] sm:$0x3]
    %v56 = vld [vmem:[#allocation2 + $0x20] sm:$0x3]
    %v57 = vld [vmem:[#allocation2 + $0x22] sm:$0x3]
    %v58 = vld [vmem:[#allocation2 + $0x24] sm:$0x3]
    %v59 = vld [vmem:[#allocation2 + $0x26] sm:$0x3]
    %v60 = vld [vmem:[#allocation2 + $0x28] sm:$0x3]
    %v61 = vld [vmem:[#allocation2 + $0x2a] sm:$0x3]
    %v62 = vld [vmem:[#allocation2 + $0x2c] sm:$0x3]
    %v63 = vld [vmem:[#allocation2 + $0x2e] sm:$0x3]
    %v64 = vld [vmem:[#allocation2 + $0x30] sm:$0x3]
    %v65 = vld [vmem:[#allocation2 + $0x32] sm:$0x3]
    %v66 = vld [vmem:[#allocation2 + $0x34] sm:$0x3]
    %v67 = vld [vmem:[#allocation2 + $0x36] sm:$0x3]
    %v68 = vld [vmem:[#allocation2 + $0x38] sm:$0x3]
    %v69 = vld [vmem:[#allocation2 + $0x3a] sm:$0x3]
    %v70 = vld [vmem:[#allocation2 + $0x3c] sm:$0x3]
    %v71 = vld [vmem:[#allocation2 + $0x3e] sm:$0x3]
    %v72 = vld [vmem:[#allocation5] sm:$0xff]
    %v73 = vld [vmem:[#allocation5 + $0x8] sm:$0xff]
    %v74 = vld [vmem:[#allocation5 + $0x10] sm:$0xff]
    %v75 = vld [vmem:[#allocation5 + $0x18] sm:$0xff]
    %v76 = vld [vmem:[#allocation5 + $0x20] sm:$0xff]
    %v77 = vld [vmem:[#allocation5 + $0x28] sm:$0xff]
    %v78 = vld [vmem:[#allocation5 + $0x30] sm:$0xff]
    %v79 = vld [vmem:[#allocation5 + $0x38] sm:$0xff]
    %v80 = vld [vmem:[#allocation5 + $0x40] sm:$0xff]
    %v81 = vld [vmem:[#allocation5 + $0x48] sm:$0xff]
    %v82 = vld [vmem:[#allocation5 + $0x50] sm:$0xff]
    %v83 = vld [vmem:[#allocation5 + $0x58] sm:$0xff]
    %v84 = vld [vmem:[#allocation5 + $0x60] sm:$0xff]
    %v85 = vld [vmem:[#allocation5 + $0x68] sm:$0xff]
    %v86 = vld [vmem:[#allocation5 + $0x70] sm:$0xff]
    %v87 = vld [vmem:[#allocation5 + $0x78] sm:$0xff]
    %v88 = vld [vmem:[#allocation5 + $0x80] sm:$0xff]
    %v89 = vld [vmem:[#allocation5 + $0x88] sm:$0xff]
    %v90 = vld [vmem:[#allocation5 + $0x90] sm:$0xff]
    %v91 = vld [vmem:[#allocation5 + $0x98] sm:$0xff]
    %v92 = vld [vmem:[#allocation5 + $0xa0] sm:$0xff]
    %v93 = vld [vmem:[#allocation5 + $0xa8] sm:$0xff]
    %v94 = vld [vmem:[#allocation5 + $0xb0] sm:$0xff]
    %v95 = vld [vmem:[#allocation5 + $0xb8] sm:$0xff]
    %v96 = vld [vmem:[#allocation5 + $0xc0] sm:$0xff]
    %v97 = vld [vmem:[#allocation5 + $0xc8] sm:$0xff]
    %v98 = vld [vmem:[#allocation5 + $0xd0] sm:$0xff]
    %v99 = vld [vmem:[#allocation5 + $0xd8] sm:$0xff]
    %v100 = vld [vmem:[#allocation5 + $0xe0] sm:$0xff]
    %v101 = vld [vmem:[#allocation5 + $0xe8] sm:$0xff]
    %v102 = vld [vmem:[#allocation5 + $0xf0] sm:$0xff]
    %v103 = vld [vmem:[#allocation5 + $0xf8] sm:$0xff]
    %v104 = vld [vmem:[#allocation5 + $0x100] sm:$0xff]
    %v105 = vld [vmem:[#allocation5 + $0x108] sm:$0xff]
    %v106 = vld [vmem:[#allocation5 + $0x110] sm:$0xff]
    %v107 = vld [vmem:[#allocation5 + $0x118] sm:$0xff]
    %v108 = vld [vmem:[#allocation5 + $0x120] sm:$0xff]
    %v109 = vld [vmem:[#allocation5 + $0x128] sm:$0xff]
    %v110 = vld [vmem:[#allocation5 + $0x130] sm:$0xff]
    %v111 = vld [vmem:[#allocation5 + $0x138] sm:$0xff]
    %v112 = vld [vmem:[#allocation5 + $0x140] sm:$0xff]
    %v113 = vld [vmem:[#allocation5 + $0x148] sm:$0xff]
    %v114 = vld [vmem:[#allocation5 + $0x150] sm:$0xff]
    %v115 = vld [vmem:[#allocation5 + $0x158] sm:$0xff]
    %v116 = vld [vmem:[#allocation5 + $0x160] sm:$0xff]
    %v117 = vld [vmem:[#allocation5 + $0x168] sm:$0xff]
    %v118 = vld [vmem:[#allocation5 + $0x170] sm:$0xff]
    %v119 = vld [vmem:[#allocation5 + $0x178] sm:$0xff]
    %v120 = vld [vmem:[#allocation5 + $0x180] sm:$0xff]
    %v121 = vld [vmem:[#allocation5 + $0x188] sm:$0xff]
    %v122 = vld [vmem:[#allocation5 + $0x190] sm:$0xff]
    %v123 = vld [vmem:[#allocation5 + $0x198] sm:$0xff]
    %v124 = vld [vmem:[#allocation5 + $0x1a0] sm:$0xff]
    %v125 = vld [vmem:[#allocation5 + $0x1a8] sm:$0xff]
    %v126 = vld [vmem:[#allocation5 + $0x1b0] sm:$0xff]
    %v127 = vld [vmem:[#allocation5 + $0x1b8] sm:$0xff]
    %v128 = vld [vmem:[#allocation5 + $0x1c0] sm:$0xff]
    %v129 = vld [vmem:[#allocation5 + $0x1c8] sm:$0xff]
    %v130 = vld [vmem:[#allocation5 + $0x1d0] sm:$0xff]
    %v131 = vld [vmem:[#allocation5 + $0x1d8] sm:$0xff]
    %v132 = vld [vmem:[#allocation5 + $0x1e0] sm:$0xff]
    %v133 = vld [vmem:[#allocation5 + $0x1e8] sm:$0xff]
    %v134 = vld [vmem:[#allocation5 + $0x1f0] sm:$0xff]
    %v135 = vld [vmem:[#allocation5 + $0x1f8] sm:$0xff]
    %v136 = vld [vmem:[#allocation5 + $0x200] sm:$0xff]
    %v137 = vld [vmem:[#allocation5 + $0x208] sm:$0xff]
    %v138 = vld [vmem:[#allocation5 + $0x210] sm:$0xff]
    %v139 = vld [vmem:[#allocation5 + $0x218] sm:$0xff]
    %v140 = vld [vmem:[#allocation5 + $0x220] sm:$0xff]
    %v141 = vld [vmem:[#allocation5 + $0x228] sm:$0xff]
    %v142 = vld [vmem:[#allocation5 + $0x230] sm:$0xff]
    %v143 = vld [vmem:[#allocation5 + $0x238] sm:$0xff]
    %v144 = vld [vmem:[#allocation5 + $0x240] sm:$0xff]
    %v145 = vld [vmem:[#allocation5 + $0x248] sm:$0xff]
    %v146 = vld [vmem:[#allocation5 + $0x250] sm:$0xff]
    %v147 = vld [vmem:[#allocation5 + $0x258] sm:$0xff]
    %v148 = vld [vmem:[#allocation5 + $0x260] sm:$0xff]
    %v149 = vld [vmem:[#allocation5 + $0x268] sm:$0xff]
    %v150 = vld [vmem:[#allocation5 + $0x270] sm:$0xff]
    %v151 = vld [vmem:[#allocation5 + $0x278] sm:$0xff]
    %v152 = vld [vmem:[#allocation5 + $0x280] sm:$0xff]
    %v153 = vld [vmem:[#allocation5 + $0x288] sm:$0xff]
    %v154 = vld [vmem:[#allocation5 + $0x290] sm:$0xff]
    %v155 = vld [vmem:[#allocation5 + $0x298] sm:$0xff]
    %v156 = vld [vmem:[#allocation5 + $0x2a0] sm:$0xff]
    %v157 = vld [vmem:[#allocation5 + $0x2a8] sm:$0xff]
    %v158 = vld [vmem:[#allocation5 + $0x2b0] sm:$0xff]
    %v159 = vld [vmem:[#allocation5 + $0x2b8] sm:$0xff]
    %v160 = vld [vmem:[#allocation5 + $0x2c0] sm:$0xff]
    %v161 = vld [vmem:[#allocation5 + $0x2c8] sm:$0xff]
    %v162 = vld [vmem:[#allocation5 + $0x2d0] sm:$0xff]
    %v163 = vld [vmem:[#allocation5 + $0x2d8] sm:$0xff]
    %v164 = vld [vmem:[#allocation5 + $0x2e0] sm:$0xff]
    %v165 = vld [vmem:[#allocation5 + $0x2e8] sm:$0xff]
    %v166 = vld [vmem:[#allocation5 + $0x2f0] sm:$0xff]
    %v167 = vld [vmem:[#allocation5 + $0x2f8] sm:$0xff]
    %v168 = vld [vmem:[#allocation5 + $0x300] sm:$0xff]
    %v169 = vld [vmem:[#allocation5 + $0x308] sm:$0xff]
    %v170 = vld [vmem:[#allocation5 + $0x310] sm:$0xff]
    %v171 = vld [vmem:[#allocation5 + $0x318] sm:$0xff]
    %v172 = vld [vmem:[#allocation5 + $0x320] sm:$0xff]
    %v173 = vld [vmem:[#allocation5 + $0x328] sm:$0xff]
    %v174 = vld [vmem:[#allocation5 + $0x330] sm:$0xff]
    %v175 = vld [vmem:[#allocation5 + $0x338] sm:$0xff]
    %v176 = vld [vmem:[#allocation5 + $0x340] sm:$0xff]
    %v177 = vld [vmem:[#allocation5 + $0x348] sm:$0xff]
    %v178 = vld [vmem:[#allocation5 + $0x350] sm:$0xff]
    %v179 = vld [vmem:[#allocation5 + $0x358] sm:$0xff]
    %v180 = vld [vmem:[#allocation5 + $0x360] sm:$0xff]
    %v181 = vld [vmem:[#allocation5 + $0x368] sm:$0xff]
    %v182 = vld [vmem:[#allocation5 + $0x370] sm:$0xff]
    %v183 = vld [vmem:[#allocation5 + $0x378] sm:$0xff]
    %v184 = vld [vmem:[#allocation5 + $0x380] sm:$0xff]
    %v185 = vld [vmem:[#allocation5 + $0x388] sm:$0xff]
    %v186 = vld [vmem:[#allocation5 + $0x390] sm:$0xff]
    %v187 = vld [vmem:[#allocation5 + $0x398] sm:$0xff]
    %v188 = vld [vmem:[#allocation5 + $0x3a0] sm:$0xff]
    %v189 = vld [vmem:[#allocation5 + $0x3a8] sm:$0xff]
    %v190 = vld [vmem:[#allocation5 + $0x3b0] sm:$0xff]
    %v191 = vld [vmem:[#allocation5 + $0x3b8] sm:$0xff]
    %v192 = vld [vmem:[#allocation5 + $0x3c0] sm:$0xff]
    %v193 = vld [vmem:[#allocation5 + $0x3c8] sm:$0xff]
    %v194 = vld [vmem:[#allocation5 + $0x3d0] sm:$0xff]
    %v195 = vld [vmem:[#allocation5 + $0x3d8] sm:$0xff]
    %v196 = vld [vmem:[#allocation5 + $0x3e0] sm:$0xff]
    %v197 = vld [vmem:[#allocation5 + $0x3e8] sm:$0xff]
    %v198 = vld [vmem:[#allocation5 + $0x3f0] sm:$0xff]
    %v199 = vld [vmem:[#allocation5 + $0x3f8] sm:$0xff]
    %v200 = vld [vmem:[#allocation5 + $0x400] sm:$0xff]
    %v201 = vld [vmem:[#allocation5 + $0x408] sm:$0xff]
    %v202 = vld [vmem:[#allocation5 + $0x410] sm:$0xff]
    %v203 = vld [vmem:[#allocation5 + $0x418] sm:$0xff]
    %v204 = vld [vmem:[#allocation5 + $0x420] sm:$0xff]
    %v205 = vld [vmem:[#allocation5 + $0x428] sm:$0xff]
    %v206 = vld [vmem:[#allocation5 + $0x430] sm:$0xff]
    %v207 = vld [vmem:[#allocation5 + $0x438] sm:$0xff]
    %v208 = vld [vmem:[#allocation5 + $0x440] sm:$0xff]
    %v209 = vld [vmem:[#allocation5 + $0x448] sm:$0xff]
    %v210 = vld [vmem:[#allocation5 + $0x450] sm:$0xff]
    %v211 = vld [vmem:[#allocation5 + $0x458] sm:$0xff]
    %v212 = vld [vmem:[#allocation5 + $0x460] sm:$0xff]
    %v213 = vld [vmem:[#allocation5 + $0x468] sm:$0xff]
    %v214 = vld [vmem:[#allocation5 + $0x470] sm:$0xff]
    %v215 = vld [vmem:[#allocation5 + $0x478] sm:$0xff]
    %v216 = vld [vmem:[#allocation5 + $0x480] sm:$0xff]
    %v217 = vld [vmem:[#allocation5 + $0x488] sm:$0xff]
    %v218 = vld [vmem:[#allocation5 + $0x490] sm:$0xff]
    %v219 = vld [vmem:[#allocation5 + $0x498] sm:$0xff]
    %v220 = vld [vmem:[#allocation5 + $0x4a0] sm:$0xff]
    %v221 = vld [vmem:[#allocation5 + $0x4a8] sm:$0xff]
    %v222 = vld [vmem:[#allocation5 + $0x4b0] sm:$0xff]
    %v223 = vld [vmem:[#allocation5 + $0x4b8] sm:$0xff]
    %v224 = vld [vmem:[#allocation5 + $0x4c0] sm:$0xff]
    %v225 = vld [vmem:[#allocation5 + $0x4c8] sm:$0xff]
    %v226 = vld [vmem:[#allocation5 + $0x4d0] sm:$0xff]
    %v227 = vld [vmem:[#allocation5 + $0x4d8] sm:$0xff]
    %v228 = vld [vmem:[#allocation5 + $0x4e0] sm:$0xff]
    %v229 = vld [vmem:[#allocation5 + $0x4e8] sm:$0xff]
    %v230 = vld [vmem:[#allocation5 + $0x4f0] sm:$0xff]
    %v231 = vld [vmem:[#allocation5 + $0x4f8] sm:$0xff]
    %v232 = vld [vmem:[#allocation5 + $0x500] sm:$0xff]
    %v233 = vld [vmem:[#allocation5 + $0x508] sm:$0xff]
    %v234 = vld [vmem:[#allocation5 + $0x510] sm:$0xff]
    %v235 = vld [vmem:[#allocation5 + $0x518] sm:$0xff]
    %v236 = vld [vmem:[#allocation5 + $0x520] sm:$0xff]
    %v237 = vld [vmem:[#allocation5 + $0x528] sm:$0xff]
    %v238 = vld [vmem:[#allocation5 + $0x530] sm:$0xff]
    %v239 = vld [vmem:[#allocation5 + $0x538] sm:$0xff]
    %v240 = vld [vmem:[#allocation5 + $0x540] sm:$0xff]
    %v241 = vld [vmem:[#allocation5 + $0x548] sm:$0xff]
    %v242 = vld [vmem:[#allocation5 + $0x550] sm:$0xff]
    %v243 = vld [vmem:[#allocation5 + $0x558] sm:$0xff]
    %v244 = vld [vmem:[#allocation5 + $0x560] sm:$0xff]
    %v245 = vld [vmem:[#allocation5 + $0x568] sm:$0xff]
    %v246 = vld [vmem:[#allocation5 + $0x570] sm:$0xff]
    %v247 = vld [vmem:[#allocation5 + $0x578] sm:$0xff]
    %v248 = vld [vmem:[#allocation5 + $0x580] sm:$0xff]
    %v249 = vld [vmem:[#allocation5 + $0x588] sm:$0xff]
    %v250 = vld [vmem:[#allocation5 + $0x590] sm:$0xff]
    %v251 = vld [vmem:[#allocation5 + $0x598] sm:$0xff]
    %v252 = vld [vmem:[#allocation5 + $0x5a0] sm:$0xff]
    %v253 = vld [vmem:[#allocation5 + $0x5a8] sm:$0xff]
    %v254 = vld [vmem:[#allocation5 + $0x5b0] sm:$0xff]
    %v255 = vld [vmem:[#allocation5 + $0x5b8] sm:$0xff]
    %v256 = vld [vmem:[#allocation5 + $0x5c0] sm:$0xff]
    %v257 = vld [vmem:[#allocation5 + $0x5c8] sm:$0xff]
    %v258 = vld [vmem:[#allocation5 + $0x5d0] sm:$0xff]
    %v259 = vld [vmem:[#allocation5 + $0x5d8] sm:$0xff]
    %v260 = vld [vmem:[#allocation5 + $0x5e0] sm:$0xff]
    %v261 = vld [vmem:[#allocation5 + $0x5e8] sm:$0xff]
    %v262 = vld [vmem:[#allocation5 + $0x5f0] sm:$0xff]
    %v263 = vld [vmem:[#allocation5 + $0x5f8] sm:$0xff]
    %v264 = vld [vmem:[#allocation5 + $0x600] sm:$0xff]
    %v265 = vld [vmem:[#allocation5 + $0x608] sm:$0xff]
    %v266 = vld [vmem:[#allocation5 + $0x610] sm:$0xff]
    %v267 = vld [vmem:[#allocation5 + $0x618] sm:$0xff]
    %v268 = vld [vmem:[#allocation5 + $0x620] sm:$0xff]
    %v269 = vld [vmem:[#allocation5 + $0x628] sm:$0xff]
    %v270 = vld [vmem:[#allocation5 + $0x630] sm:$0xff]
    %v271 = vld [vmem:[#allocation5 + $0x638] sm:$0xff]
    %v272 = vld [vmem:[#allocation5 + $0x640] sm:$0xff]
    %v273 = vld [vmem:[#allocation5 + $0x648] sm:$0xff]
    %v274 = vld [vmem:[#allocation5 + $0x650] sm:$0xff]
    %v275 = vld [vmem:[#allocation5 + $0x658] sm:$0xff]
    %v276 = vld [vmem:[#allocation5 + $0x660] sm:$0xff]
    %v277 = vld [vmem:[#allocation5 + $0x668] sm:$0xff]
    %v278 = vld [vmem:[#allocation5 + $0x670] sm:$0xff]
    %v279 = vld [vmem:[#allocation5 + $0x678] sm:$0xff]
    %v280 = vld [vmem:[#allocation5 + $0x680] sm:$0xff]
    %v281 = vld [vmem:[#allocation5 + $0x688] sm:$0xff]
    %v282 = vld [vmem:[#allocation5 + $0x690] sm:$0xff]
    %v283 = vld [vmem:[#allocation5 + $0x698] sm:$0xff]
    %v284 = vld [vmem:[#allocation5 + $0x6a0] sm:$0xff]
    %v285 = vld [vmem:[#allocation5 + $0x6a8] sm:$0xff]
    %v286 = vld [vmem:[#allocation5 + $0x6b0] sm:$0xff]
    %v287 = vld [vmem:[#allocation5 + $0x6b8] sm:$0xff]
    %v288 = vld [vmem:[#allocation5 + $0x6c0] sm:$0xff]
    %v289 = vld [vmem:[#allocation5 + $0x6c8] sm:$0xff]
    %v290 = vld [vmem:[#allocation5 + $0x6d0] sm:$0xff]
    %v291 = vld [vmem:[#allocation5 + $0x6d8] sm:$0xff]
    %v292 = vld [vmem:[#allocation5 + $0x6e0] sm:$0xff]
    %v293 = vld [vmem:[#allocation5 + $0x6e8] sm:$0xff]
    %v294 = vld [vmem:[#allocation5 + $0x6f0] sm:$0xff]
    %v295 = vld [vmem:[#allocation5 + $0x6f8] sm:$0xff]
    %v296 = vld [vmem:[#allocation5 + $0x700] sm:$0xff]
    %v297 = vld [vmem:[#allocation5 + $0x708] sm:$0xff]
    %v298 = vld [vmem:[#allocation5 + $0x710] sm:$0xff]
    %v299 = vld [vmem:[#allocation5 + $0x718] sm:$0xff]
    %v300 = vld [vmem:[#allocation5 + $0x720] sm:$0xff]
    %v301 = vld [vmem:[#allocation5 + $0x728] sm:$0xff]
    %v302 = vld [vmem:[#allocation5 + $0x730] sm:$0xff]
    %v303 = vld [vmem:[#allocation5 + $0x738] sm:$0xff]
    %v304 = vld [vmem:[#allocation5 + $0x740] sm:$0xff]
    %v305 = vld [vmem:[#allocation5 + $0x748] sm:$0xff]
    %v306 = vld [vmem:[#allocation5 + $0x750] sm:$0xff]
    %v307 = vld [vmem:[#allocation5 + $0x758] sm:$0xff]
    %v308 = vld [vmem:[#allocation5 + $0x760] sm:$0xff]
    %v309 = vld [vmem:[#allocation5 + $0x768] sm:$0xff]
    %v310 = vld [vmem:[#allocation5 + $0x770] sm:$0xff]
    %v311 = vld [vmem:[#allocation5 + $0x778] sm:$0xff]
    %v312 = vld [vmem:[#allocation5 + $0x780] sm:$0xff]
    %v313 = vld [vmem:[#allocation5 + $0x788] sm:$0xff]
    %v314 = vld [vmem:[#allocation5 + $0x790] sm:$0xff]
    %v315 = vld [vmem:[#allocation5 + $0x798] sm:$0xff]
    %v316 = vld [vmem:[#allocation5 + $0x7a0] sm:$0xff]
    %v317 = vld [vmem:[#allocation5 + $0x7a8] sm:$0xff]
    %v318 = vld [vmem:[#allocation5 + $0x7b0] sm:$0xff]
    %v319 = vld [vmem:[#allocation5 + $0x7b8] sm:$0xff]
    %v320 = vld [vmem:[#allocation5 + $0x7c0] sm:$0xff]
    %v321 = vld [vmem:[#allocation5 + $0x7c8] sm:$0xff]
    %v322 = vld [vmem:[#allocation5 + $0x7d0] sm:$0xff]
    %v323 = vld [vmem:[#allocation5 + $0x7d8] sm:$0xff]
    %v324 = vld [vmem:[#allocation5 + $0x7e0] sm:$0xff]
    %v325 = vld [vmem:[#allocation5 + $0x7e8] sm:$0xff]
    %v326 = vld [vmem:[#allocation5 + $0x7f0] sm:$0xff]
    %v327 = vld [vmem:[#allocation5 + $0x7f8] sm:$0xff]
    %vm328 = vcmask 523264
    %v330 = vsel %vm328, %v40, 0
    %332 = vmatprep.subr.mxu0 0.0
    %333 = vmatpush1.msra.mxu0 %v72
    %334 = vmatprep.subr.mxu0 0.0
    %335 = vmatpush1.msra.mxu0 %v73
    %336 = vmatprep.subr.mxu0 0.0
    %337 = vmatpush1.msra.mxu0 %v74
    %338 = vmatprep.subr.mxu0 0.0
    %339 = vmatpush1.msra.mxu0 %v75
    %340 = vmatprep.subr.mxu0 0.0
    %341 = vmatpush1.msra.mxu0 %v76
    %342 = vmatprep.subr.mxu0 0.0
    %343 = vmatpush1.msra.mxu0 %v77
    %344 = vmatprep.subr.mxu0 0.0
    %345 = vmatpush1.msra.mxu0 %v78
    %346 = vmatprep.subr.mxu0 0.0
    %347 = vmatpush1.msra.mxu0 %v79
    %348 = vmatprep.subr.mxu0 0.0
    %349 = vmatpush1.msra.mxu0 0.0
    %350 = vmatprep.subr.mxu0 0.0
    %351 = vmatpush1.msra.mxu0 0.0
    %352 = vmatprep.subr.mxu0 0.0
    %353 = vmatpush1.msra.mxu0 0.0
    %354 = vmatprep.subr.mxu0 0.0
    %355 = vmatpush1.msra.mxu0 0.0
    %356 = vmatprep.subr.mxu0 0.0
    %357 = vmatpush1.msra.mxu0 0.0
    %358 = vmatprep.subr.mxu0 0.0
    %359 = vmatpush1.msra.mxu0 0.0
    %360 = vmatprep.subr.mxu0 0.0
    %361 = vmatpush1.msra.mxu0 0.0
    %362 = vmatprep.subr.mxu0 0.0
    %363 = vmatpush1.msra.mxu0 0.0
    %364 = vmatprep.subr.mxu0 0.0
    %365 = vmatpush1.msra.mxu0 0.0
    %366 = vmatprep.subr.mxu0 0.0
    %367 = vmatpush1.msra.mxu0 0.0
    %368 = vmatprep.subr.mxu0 0.0
    %369 = vmatpush1.msra.mxu0 0.0
    %370 = vmatprep.subr.mxu0 0.0
    %371 = vmatpush1.msra.mxu0 0.0
    %372 = vmatprep.subr.mxu0 0.0
    %373 = vmatpush1.msra.mxu0 0.0
    %374 = vmatprep.subr.mxu0 0.0
    %375 = vmatpush1.msra.mxu0 0.0
    %376 = vmatprep.subr.mxu0 0.0
    %377 = vmatpush1.msra.mxu0 0.0
    %378 = vmatprep.subr.mxu0 0.0
    %379 = vmatpush1.msra.mxu0 0.0
    %380 = vmatprep.subr.mxu0 0.0
    %381 = vmatpush1.msra.mxu0 0.0
    %382 = vmatprep.subr.mxu0 0.0
    %383 = vmatpush1.msra.mxu0 0.0
    %384 = vmatprep.subr.mxu0 0.0
    %385 = vmatpush1.msra.mxu0 0.0
    %386 = vmatprep.subr.mxu0 0.0
    %387 = vmatpush1.msra.mxu0 0.0
    %388 = vmatprep.subr.mxu0 0.0
    %389 = vmatpush1.msra.mxu0 0.0
    %390 = vmatprep.subr.mxu0 0.0
    %391 = vmatpush1.msra.mxu0 0.0
    %392 = vmatprep.subr.mxu0 0.0
    %393 = vmatpush1.msra.mxu0 0.0
    %394 = vmatprep.subr.mxu0 0.0
    %395 = vmatpush1.msra.mxu0 0.0
    %396 = vmatprep.mubr.f32.mxu0 0.0
    %397 = vmatmul.mubr.f32.gmra.mrb[0].mxu0 %v330
    %v398 = vpop.f32.mrb[0].mxu0
    %v399 = vadd.f32 0.0, %v398
    %v400 = vpop.f32.mrb[0].mxu0
    %401 = vdwg.mxu0
    %v403 = vsel %vm328, %v41, 0
    %405 = vmatprep.subr.mxu0 0.0
    %406 = vmatpush1.msra.mxu0 %v80
    %407 = vmatprep.subr.mxu0 0.0
    %408 = vmatpush1.msra.mxu0 %v81
    %409 = vmatprep.subr.mxu0 0.0
    %410 = vmatpush1.msra.mxu0 %v82
    %411 = vmatprep.subr.mxu0 0.0
    %412 = vmatpush1.msra.mxu0 %v83
    %413 = vmatprep.subr.mxu0 0.0
    %414 = vmatpush1.msra.mxu0 %v84
    %415 = vmatprep.subr.mxu0 0.0
    %416 = vmatpush1.msra.mxu0 %v85
    %417 = vmatprep.subr.mxu0 0.0
    %418 = vmatpush1.msra.mxu0 %v86
    %419 = vmatprep.subr.mxu0 0.0
    %420 = vmatpush1.msra.mxu0 %v87
    %421 = vmatprep.subr.mxu0 0.0
    %422 = vmatpush1.msra.mxu0 0.0
    %423 = vmatprep.subr.mxu0 0.0
    %424 = vmatpush1.msra.mxu0 0.0
    %425 = vmatprep.subr.mxu0 0.0
    %426 = vmatpush1.msra.mxu0 0.0
    %427 = vmatprep.subr.mxu0 0.0
    %428 = vmatpush1.msra.mxu0 0.0
    %429 = vmatprep.subr.mxu0 0.0
    %430 = vmatpush1.msra.mxu0 0.0
    %431 = vmatprep.subr.mxu0 0.0
    %432 = vmatpush1.msra.mxu0 0.0
    %433 = vmatprep.subr.mxu0 0.0
    %434 = vmatpush1.msra.mxu0 0.0
    %435 = vmatprep.subr.mxu0 0.0
    %436 = vmatpush1.msra.mxu0 0.0
    %437 = vmatprep.subr.mxu0 0.0
    %438 = vmatpush1.msra.mxu0 0.0
    %439 = vmatprep.subr.mxu0 0.0
    %440 = vmatpush1.msra.mxu0 0.0
    %441 = vmatprep.subr.mxu0 0.0
    %442 = vmatpush1.msra.mxu0 0.0
    %443 = vmatprep.subr.mxu0 0.0
    %444 = vmatpush1.msra.mxu0 0.0
    %445 = vmatprep.subr.mxu0 0.0
    %446 = vmatpush1.msra.mxu0 0.0
    %447 = vmatprep.subr.mxu0 0.0
    %448 = vmatpush1.msra.mxu0 0.0
    %449 = vmatprep.subr.mxu0 0.0
    %450 = vmatpush1.msra.mxu0 0.0
    %451 = vmatprep.subr.mxu0 0.0
    %452 = vmatpush1.msra.mxu0 0.0
    %453 = vmatprep.subr.mxu0 0.0
    %454 = vmatpush1.msra.mxu0 0.0
    %455 = vmatprep.subr.mxu0 0.0
    %456 = vmatpush1.msra.mxu0 0.0
    %457 = vmatprep.subr.mxu0 0.0
    %458 = vmatpush1.msra.mxu0 0.0
    %459 = vmatprep.subr.mxu0 0.0
    %460 = vmatpush1.msra.mxu0 0.0
    %461 = vmatprep.subr.mxu0 0.0
    %462 = vmatpush1.msra.mxu0 0.0
    %463 = vmatprep.subr.mxu0 0.0
    %464 = vmatpush1.msra.mxu0 0.0
    %465 = vmatprep.subr.mxu0 0.0
    %466 = vmatpush1.msra.mxu0 0.0
    %467 = vmatprep.subr.mxu0 0.0
    %468 = vmatpush1.msra.mxu0 0.0
    %469 = vmatprep.mubr.f32.mxu0 0.0
    %470 = vmatmul.mubr.f32.gmra.mrb[0].mxu0 %v403
    %v471 = vpop.f32.mrb[0].mxu0
    %v472 = vadd.f32 0.0, %v471
    %v473 = vpop.f32.mrb[0].mxu0
    %474 = vdwg.mxu0
    %v476 = vsel %vm328, %v42, 0
    %478 = vmatprep.subr.mxu0 0.0
    %479 = vmatpush1.msra.mxu0 %v88
    %480 = vmatprep.subr.mxu0 0.0
    %481 = vmatpush1.msra.mxu0 %v89
    %482 = vmatprep.subr.mxu0 0.0
    %483 = vmatpush1.msra.mxu0 %v90
    %484 = vmatprep.subr.mxu0 0.0
    %485 = vmatpush1.msra.mxu0 %v91
    %486 = vmatprep.subr.mxu0 0.0
    %487 = vmatpush1.msra.mxu0 %v92
    %488 = vmatprep.subr.mxu0 0.0
    %489 = vmatpush1.msra.mxu0 %v93
    %490 = vmatprep.subr.mxu0 0.0
    %491 = vmatpush1.msra.mxu0 %v94
    %492 = vmatprep.subr.mxu0 0.0
    %493 = vmatpush1.msra.mxu0 %v95
    %494 = vmatprep.subr.mxu0 0.0
    %495 = vmatpush1.msra.mxu0 0.0
    %496 = vmatprep.subr.mxu0 0.0
    %497 = vmatpush1.msra.mxu0 0.0
    %498 = vmatprep.subr.mxu0 0.0
    %499 = vmatpush1.msra.mxu0 0.0
    %500 = vmatprep.subr.mxu0 0.0
    %501 = vmatpush1.msra.mxu0 0.0
    %502 = vmatprep.subr.mxu0 0.0
    %503 = vmatpush1.msra.mxu0 0.0
    %504 = vmatprep.subr.mxu0 0.0
    %505 = vmatpush1.msra.mxu0 0.0
    %506 = vmatprep.subr.mxu0 0.0
    %507 = vmatpush1.msra.mxu0 0.0
    %508 = vmatprep.subr.mxu0 0.0
    %509 = vmatpush1.msra.mxu0 0.0
    %510 = vmatprep.subr.mxu0 0.0
    %511 = vmatpush1.msra.mxu0 0.0
    %512 = vmatprep.subr.mxu0 0.0
    %513 = vmatpush1.msra.mxu0 0.0
    %514 = vmatprep.subr.mxu0 0.0
    %515 = vmatpush1.msra.mxu0 0.0
    %516 = vmatprep.subr.mxu0 0.0
    %517 = vmatpush1.msra.mxu0 0.0
    %518 = vmatprep.subr.mxu0 0.0
    %519 = vmatpush1.msra.mxu0 0.0
    %520 = vmatprep.subr.mxu0 0.0
    %521 = vmatpush1.msra.mxu0 0.0
    %522 = vmatprep.subr.mxu0 0.0
    %523 = vmatpush1.msra.mxu0 0.0
    %524 = vmatprep.subr.mxu0 0.0
    %525 = vmatpush1.msra.mxu0 0.0
    %526 = vmatprep.subr.mxu0 0.0
    %527 = vmatpush1.msra.mxu0 0.0
    %528 = vmatprep.subr.mxu0 0.0
    %529 = vmatpush1.msra.mxu0 0.0
    %530 = vmatprep.subr.mxu0 0.0
    %531 = vmatpush1.msra.mxu0 0.0
    %532 = vmatprep.subr.mxu0 0.0
    %533 = vmatpush1.msra.mxu0 0.0
    %534 = vmatprep.subr.mxu0 0.0
    %535 = vmatpush1.msra.mxu0 0.0
    %536 = vmatprep.subr.mxu0 0.0
    %537 = vmatpush1.msra.mxu0 0.0
    %538 = vmatprep.subr.mxu0 0.0
    %539 = vmatpush1.msra.mxu0 0.0
    %540 = vmatprep.subr.mxu0 0.0
    %541 = vmatpush1.msra.mxu0 0.0
    %542 = vmatprep.mubr.f32.mxu0 0.0
    %543 = vmatmul.mubr.f32.gmra.mrb[0].mxu0 %v476
    %v544 = vpop.f32.mrb[0].mxu0
    %v545 = vadd.f32 0.0, %v544
    %v546 = vpop.f32.mrb[0].mxu0
    %547 = vdwg.mxu0
    %v549 = vsel %vm328, %v43, 0
    %551 = vmatprep.subr.mxu0 0.0
    %552 = vmatpush1.msra.mxu0 %v96
    %553 = vmatprep.subr.mxu0 0.0
    %554 = vmatpush1.msra.mxu0 %v97
    %555 = vmatprep.subr.mxu0 0.0
    %556 = vmatpush1.msra.mxu0 %v98
    %557 = vmatprep.subr.mxu0 0.0
    %558 = vmatpush1.msra.mxu0 %v99
    %559 = vmatprep.subr.mxu0 0.0
    %560 = vmatpush1.msra.mxu0 %v100
    %561 = vmatprep.subr.mxu0 0.0
    %562 = vmatpush1.msra.mxu0 %v101
    %563 = vmatprep.subr.mxu0 0.0
    %564 = vmatpush1.msra.mxu0 %v102
    %565 = vmatprep.subr.mxu0 0.0
    %566 = vmatpush1.msra.mxu0 %v103
    %567 = vmatprep.subr.mxu0 0.0
    %568 = vmatpush1.msra.mxu0 0.0
    %569 = vmatprep.subr.mxu0 0.0
    %570 = vmatpush1.msra.mxu0 0.0
    %571 = vmatprep.subr.mxu0 0.0
    %572 = vmatpush1.msra.mxu0 0.0
    %573 = vmatprep.subr.mxu0 0.0
    %574 = vmatpush1.msra.mxu0 0.0
    %575 = vmatprep.subr.mxu0 0.0
    %576 = vmatpush1.msra.mxu0 0.0
    %577 = vmatprep.subr.mxu0 0.0
    %578 = vmatpush1.msra.mxu0 0.0
    %579 = vmatprep.subr.mxu0 0.0
    %580 = vmatpush1.msra.mxu0 0.0
    %581 = vmatprep.subr.mxu0 0.0
    %582 = vmatpush1.msra.mxu0 0.0
    %583 = vmatprep.subr.mxu0 0.0
    %584 = vmatpush1.msra.mxu0 0.0
    %585 = vmatprep.subr.mxu0 0.0
    %586 = vmatpush1.msra.mxu0 0.0
    %587 = vmatprep.subr.mxu0 0.0
    %588 = vmatpush1.msra.mxu0 0.0
    %589 = vmatprep.subr.mxu0 0.0
    %590 = vmatpush1.msra.mxu0 0.0
    %591 = vmatprep.subr.mxu0 0.0
    %592 = vmatpush1.msra.mxu0 0.0
    %593 = vmatprep.subr.mxu0 0.0
    %594 = vmatpush1.msra.mxu0 0.0
    %595 = vmatprep.subr.mxu0 0.0
    %596 = vmatpush1.msra.mxu0 0.0
    %597 = vmatprep.subr.mxu0 0.0
    %598 = vmatpush1.msra.mxu0 0.0
    %599 = vmatprep.subr.mxu0 0.0
    %600 = vmatpush1.msra.mxu0 0.0
    %601 = vmatprep.subr.mxu0 0.0
    %602 = vmatpush1.msra.mxu0 0.0
    %603 = vmatprep.subr.mxu0 0.0
    %604 = vmatpush1.msra.mxu0 0.0
    %605 = vmatprep.subr.mxu0 0.0
    %606 = vmatpush1.msra.mxu0 0.0
    %607 = vmatprep.subr.mxu0 0.0
    %608 = vmatpush1.msra.mxu0 0.0
    %609 = vmatprep.subr.mxu0 0.0
    %610 = vmatpush1.msra.mxu0 0.0
    %611 = vmatprep.subr.mxu0 0.0
    %612 = vmatpush1.msra.mxu0 0.0
    %613 = vmatprep.subr.mxu0 0.0
    %614 = vmatpush1.msra.mxu0 0.0
    %615 = vmatprep.mubr.f32.mxu0 0.0
    %616 = vmatmul.mubr.f32.gmra.mrb[0].mxu0 %v549
    %v617 = vpop.f32.mrb[0].mxu0
    %v618 = vadd.f32 0.0, %v617
    %v619 = vpop.f32.mrb[0].mxu0
    %620 = vdwg.mxu0
    %v622 = vsel %vm328, %v44, 0
    %624 = vmatprep.subr.mxu0 0.0
    %625 = vmatpush1.msra.mxu0 %v104
    %626 = vmatprep.subr.mxu0 0.0
    %627 = vmatpush1.msra.mxu0 %v105
    %628 = vmatprep.subr.mxu0 0.0
    %629 = vmatpush1.msra.mxu0 %v106
    %630 = vmatprep.subr.mxu0 0.0
    %631 = vmatpush1.msra.mxu0 %v107
    %632 = vmatprep.subr.mxu0 0.0
    %633 = vmatpush1.msra.mxu0 %v108
    %634 = vmatprep.subr.mxu0 0.0
    %635 = vmatpush1.msra.mxu0 %v109
    %636 = vmatprep.subr.mxu0 0.0
    %637 = vmatpush1.msra.mxu0 %v110
    %638 = vmatprep.subr.mxu0 0.0
    %639 = vmatpush1.msra.mxu0 %v111
    %640 = vmatprep.subr.mxu0 0.0
    %641 = vmatpush1.msra.mxu0 0.0
    %642 = vmatprep.subr.mxu0 0.0
    %643 = vmatpush1.msra.mxu0 0.0
    %644 = vmatprep.subr.mxu0 0.0
    %645 = vmatpush1.msra.mxu0 0.0
    %646 = vmatprep.subr.mxu0 0.0
    %647 = vmatpush1.msra.mxu0 0.0
    %648 = vmatprep.subr.mxu0 0.0
    %649 = vmatpush1.msra.mxu0 0.0
    %650 = vmatprep.subr.mxu0 0.0
    %651 = vmatpush1.msra.mxu0 0.0
    %652 = vmatprep.subr.mxu0 0.0
    %653 = vmatpush1.msra.mxu0 0.0
    %654 = vmatprep.subr.mxu0 0.0
    %655 = vmatpush1.msra.mxu0 0.0
    %656 = vmatprep.subr.mxu0 0.0
    %657 = vmatpush1.msra.mxu0 0.0
    %658 = vmatprep.subr.mxu0 0.0
    %659 = vmatpush1.msra.mxu0 0.0
    %660 = vmatprep.subr.mxu0 0.0
    %661 = vmatpush1.msra.mxu0 0.0
    %662 = vmatprep.subr.mxu0 0.0
    %663 = vmatpush1.msra.mxu0 0.0
    %664 = vmatprep.subr.mxu0 0.0
    %665 = vmatpush1.msra.mxu0 0.0
    %666 = vmatprep.subr.mxu0 0.0
    %667 = vmatpush1.msra.mxu0 0.0
    %668 = vmatprep.subr.mxu0 0.0
    %669 = vmatpush1.msra.mxu0 0.0
    %670 = vmatprep.subr.mxu0 0.0
    %671 = vmatpush1.msra.mxu0 0.0
    %672 = vmatprep.subr.mxu0 0.0
    %673 = vmatpush1.msra.mxu0 0.0
    %674 = vmatprep.subr.mxu0 0.0
    %675 = vmatpush1.msra.mxu0 0.0
    %676 = vmatprep.subr.mxu0 0.0
    %677 = vmatpush1.msra.mxu0 0.0
    %678 = vmatprep.subr.mxu0 0.0
    %679 = vmatpush1.msra.mxu0 0.0
    %680 = vmatprep.subr.mxu0 0.0
    %681 = vmatpush1.msra.mxu0 0.0
    %682 = vmatprep.subr.mxu0 0.0
    %683 = vmatpush1.msra.mxu0 0.0
    %684 = vmatprep.subr.mxu0 0.0
    %685 = vmatpush1.msra.mxu0 0.0
    %686 = vmatprep.subr.mxu0 0.0
    %687 = vmatpush1.msra.mxu0 0.0
    %688 = vmatprep.mubr.f32.mxu0 0.0
    %689 = vmatmul.mubr.f32.gmra.mrb[0].mxu0 %v622
    %v690 = vpop.f32.mrb[0].mxu0
    %v691 = vadd.f32 0.0, %v690
    %v692 = vpop.f32.mrb[0].mxu0
    %693 = vdwg.mxu0
    %v695 = vsel %vm328, %v45, 0
    %697 = vmatprep.subr.mxu0 0.0
    %698 = vmatpush1.msra.mxu0 %v112
    %699 = vmatprep.subr.mxu0 0.0
    %700 = vmatpush1.msra.mxu0 %v113
    %701 = vmatprep.subr.mxu0 0.0
    %702 = vmatpush1.msra.mxu0 %v114
    %703 = vmatprep.subr.mxu0 0.0
    %704 = vmatpush1.msra.mxu0 %v115
    %705 = vmatprep.subr.mxu0 0.0
    %706 = vmatpush1.msra.mxu0 %v116
    %707 = vmatprep.subr.mxu0 0.0
    %708 = vmatpush1.msra.mxu0 %v117
    %709 = vmatprep.subr.mxu0 0.0
    %710 = vmatpush1.msra.mxu0 %v118
    %711 = vmatprep.subr.mxu0 0.0
    %712 = vmatpush1.msra.mxu0 %v119
    %713 = vmatprep.subr.mxu0 0.0
    %714 = vmatpush1.msra.mxu0 0.0
    %715 = vmatprep.subr.mxu0 0.0
    %716 = vmatpush1.msra.mxu0 0.0
    %717 = vmatprep.subr.mxu0 0.0
    %718 = vmatpush1.msra.mxu0 0.0
    %719 = vmatprep.subr.mxu0 0.0
    %720 = vmatpush1.msra.mxu0 0.0
    %721 = vmatprep.subr.mxu0 0.0
    %722 = vmatpush1.msra.mxu0 0.0
    %723 = vmatprep.subr.mxu0 0.0
    %724 = vmatpush1.msra.mxu0 0.0
    %725 = vmatprep.subr.mxu0 0.0
    %726 = vmatpush1.msra.mxu0 0.0
    %727 = vmatprep.subr.mxu0 0.0
    %728 = vmatpush1.msra.mxu0 0.0
    %729 = vmatprep.subr.mxu0 0.0
    %730 = vmatpush1.msra.mxu0 0.0
    %731 = vmatprep.subr.mxu0 0.0
    %732 = vmatpush1.msra.mxu0 0.0
    %733 = vmatprep.subr.mxu0 0.0
    %734 = vmatpush1.msra.mxu0 0.0
    %735 = vmatprep.subr.mxu0 0.0
    %736 = vmatpush1.msra.mxu0 0.0
    %737 = vmatprep.subr.mxu0 0.0
    %738 = vmatpush1.msra.mxu0 0.0
    %739 = vmatprep.subr.mxu0 0.0
    %740 = vmatpush1.msra.mxu0 0.0
    %741 = vmatprep.subr.mxu0 0.0
    %742 = vmatpush1.msra.mxu0 0.0
    %743 = vmatprep.subr.mxu0 0.0
    %744 = vmatpush1.msra.mxu0 0.0
    %745 = vmatprep.subr.mxu0 0.0
    %746 = vmatpush1.msra.mxu0 0.0
    %747 = vmatprep.subr.mxu0 0.0
    %748 = vmatpush1.msra.mxu0 0.0
    %749 = vmatprep.subr.mxu0 0.0
    %750 = vmatpush1.msra.mxu0 0.0
    %751 = vmatprep.subr.mxu0 0.0
    %752 = vmatpush1.msra.mxu0 0.0
    %753 = vmatprep.subr.mxu0 0.0
    %754 = vmatpush1.msra.mxu0 0.0
    %755 = vmatprep.subr.mxu0 0.0
    %756 = vmatpush1.msra.mxu0 0.0
    %757 = vmatprep.subr.mxu0 0.0
    %758 = vmatpush1.msra.mxu0 0.0
    %759 = vmatprep.subr.mxu0 0.0
    %760 = vmatpush1.msra.mxu0 0.0
    %761 = vmatprep.mubr.f32.mxu0 0.0
    %762 = vmatmul.mubr.f32.gmra.mrb[0].mxu0 %v695
    %v763 = vpop.f32.mrb[0].mxu0
    %v764 = vadd.f32 0.0, %v763
    %v765 = vpop.f32.mrb[0].mxu0
    %766 = vdwg.mxu0
    %v768 = vsel %vm328, %v46, 0
    %770 = vmatprep.subr.mxu0 0.0
    %771 = vmatpush1.msra.mxu0 %v120
    %772 = vmatprep.subr.mxu0 0.0
    %773 = vmatpush1.msra.mxu0 %v121
    %774 = vmatprep.subr.mxu0 0.0
    %775 = vmatpush1.msra.mxu0 %v122
    %776 = vmatprep.subr.mxu0 0.0
    %777 = vmatpush1.msra.mxu0 %v123
    %778 = vmatprep.subr.mxu0 0.0
    %779 = vmatpush1.msra.mxu0 %v124
    %780 = vmatprep.subr.mxu0 0.0
    %781 = vmatpush1.msra.mxu0 %v125
    %782 = vmatprep.subr.mxu0 0.0
    %783 = vmatpush1.msra.mxu0 %v126
    %784 = vmatprep.subr.mxu0 0.0
    %785 = vmatpush1.msra.mxu0 %v127
    %786 = vmatprep.subr.mxu0 0.0
    %787 = vmatpush1.msra.mxu0 0.0
    %788 = vmatprep.subr.mxu0 0.0
    %789 = vmatpush1.msra.mxu0 0.0
    %790 = vmatprep.subr.mxu0 0.0
    %791 = vmatpush1.msra.mxu0 0.0
    %792 = vmatprep.subr.mxu0 0.0
    %793 = vmatpush1.msra.mxu0 0.0
    %794 = vmatprep.subr.mxu0 0.0
    %795 = vmatpush1.msra.mxu0 0.0
    %796 = vmatprep.subr.mxu0 0.0
    %797 = vmatpush1.msra.mxu0 0.0
    %798 = vmatprep.subr.mxu0 0.0
    %799 = vmatpush1.msra.mxu0 0.0
    %800 = vmatprep.subr.mxu0 0.0
    %801 = vmatpush1.msra.mxu0 0.0
    %802 = vmatprep.subr.mxu0 0.0
    %803 = vmatpush1.msra.mxu0 0.0
    %804 = vmatprep.subr.mxu0 0.0
    %805 = vmatpush1.msra.mxu0 0.0
    %806 = vmatprep.subr.mxu0 0.0
    %807 = vmatpush1.msra.mxu0 0.0
    %808 = vmatprep.subr.mxu0 0.0
    %809 = vmatpush1.msra.mxu0 0.0
    %810 = vmatprep.subr.mxu0 0.0
    %811 = vmatpush1.msra.mxu0 0.0
    %812 = vmatprep.subr.mxu0 0.0
    %813 = vmatpush1.msra.mxu0 0.0
    %814 = vmatprep.subr.mxu0 0.0
    %815 = vmatpush1.msra.mxu0 0.0
    %816 = vmatprep.subr.mxu0 0.0
    %817 = vmatpush1.msra.mxu0 0.0
    %818 = vmatprep.subr.mxu0 0.0
    %819 = vmatpush1.msra.mxu0 0.0
    %820 = vmatprep.subr.mxu0 0.0
    %821 = vmatpush1.msra.mxu0 0.0
    %822 = vmatprep.subr.mxu0 0.0
    %823 = vmatpush1.msra.mxu0 0.0
    %824 = vmatprep.subr.mxu0 0.0
    %825 = vmatpush1.msra.mxu0 0.0
    %826 = vmatprep.subr.mxu0 0.0
    %827 = vmatpush1.msra.mxu0 0.0
    %828 = vmatprep.subr.mxu0 0.0
    %829 = vmatpush1.msra.mxu0 0.0
    %830 = vmatprep.subr.mxu0 0.0
    %831 = vmatpush1.msra.mxu0 0.0
    %832 = vmatprep.subr.mxu0 0.0
    %833 = vmatpush1.msra.mxu0 0.0
    %834 = vmatprep.mubr.f32.mxu0 0.0
    %835 = vmatmul.mubr.f32.gmra.mrb[0].mxu0 %v768
    %v836 = vpop.f32.mrb[0].mxu0
    %v837 = vadd.f32 0.0, %v836
    %v838 = vpop.f32.mrb[0].mxu0
    %839 = vdwg.mxu0
    %v841 = vsel %vm328, %v47, 0
    %843 = vmatprep.subr.mxu0 0.0
    %844 = vmatpush1.msra.mxu0 %v128
    %845 = vmatprep.subr.mxu0 0.0
    %846 = vmatpush1.msra.mxu0 %v129
    %847 = vmatprep.subr.mxu0 0.0
    %848 = vmatpush1.msra.mxu0 %v130
    %849 = vmatprep.subr.mxu0 0.0
    %850 = vmatpush1.msra.mxu0 %v131
    %851 = vmatprep.subr.mxu0 0.0
    %852 = vmatpush1.msra.mxu0 %v132
    %853 = vmatprep.subr.mxu0 0.0
    %854 = vmatpush1.msra.mxu0 %v133
    %855 = vmatprep.subr.mxu0 0.0
    %856 = vmatpush1.msra.mxu0 %v134
    %857 = vmatprep.subr.mxu0 0.0
    %858 = vmatpush1.msra.mxu0 %v135
    %859 = vmatprep.subr.mxu0 0.0
    %860 = vmatpush1.msra.mxu0 0.0
    %861 = vmatprep.subr.mxu0 0.0
    %862 = vmatpush1.msra.mxu0 0.0
    %863 = vmatprep.subr.mxu0 0.0
    %864 = vmatpush1.msra.mxu0 0.0
    %865 = vmatprep.subr.mxu0 0.0
    %866 = vmatpush1.msra.mxu0 0.0
    %867 = vmatprep.subr.mxu0 0.0
    %868 = vmatpush1.msra.mxu0 0.0
    %869 = vmatprep.subr.mxu0 0.0
    %870 = vmatpush1.msra.mxu0 0.0
    %871 = vmatprep.subr.mxu0 0.0
    %872 = vmatpush1.msra.mxu0 0.0
    %873 = vmatprep.subr.mxu0 0.0
    %874 = vmatpush1.msra.mxu0 0.0
    %875 = vmatprep.subr.mxu0 0.0
    %876 = vmatpush1.msra.mxu0 0.0
    %877 = vmatprep.subr.mxu0 0.0
    %878 = vmatpush1.msra.mxu0 0.0
    %879 = vmatprep.subr.mxu0 0.0
    %880 = vmatpush1.msra.mxu0 0.0
    %881 = vmatprep.subr.mxu0 0.0
    %882 = vmatpush1.msra.mxu0 0.0
    %883 = vmatprep.subr.mxu0 0.0
    %884 = vmatpush1.msra.mxu0 0.0
    %885 = vmatprep.subr.mxu0 0.0
    %886 = vmatpush1.msra.mxu0 0.0
    %887 = vmatprep.subr.mxu0 0.0
    %888 = vmatpush1.msra.mxu0 0.0
    %889 = vmatprep.subr.mxu0 0.0
    %890 = vmatpush1.msra.mxu0 0.0
    %891 = vmatprep.subr.mxu0 0.0
    %892 = vmatpush1.msra.mxu0 0.0
    %893 = vmatprep.subr.mxu0 0.0
    %894 = vmatpush1.msra.mxu0 0.0
    %895 = vmatprep.subr.mxu0 0.0
    %896 = vmatpush1.msra.mxu0 0.0
    %897 = vmatprep.subr.mxu0 0.0
    %898 = vmatpush1.msra.mxu0 0.0
    %899 = vmatprep.subr.mxu0 0.0
    %900 = vmatpush1.msra.mxu0 0.0
    %901 = vmatprep.subr.mxu0 0.0
    %902 = vmatpush1.msra.mxu0 0.0
    %903 = vmatprep.subr.mxu0 0.0
    %904 = vmatpush1.msra.mxu0 0.0
    %905 = vmatprep.subr.mxu0 0.0
    %906 = vmatpush1.msra.mxu0 0.0
    %907 = vmatprep.mubr.f32.mxu0 0.0
    %908 = vmatmul.mubr.f32.gmra.mrb[0].mxu0 %v841
    %v909 = vpop.f32.mrb[0].mxu0
    %v910 = vadd.f32 0.0, %v909
    %v911 = vpop.f32.mrb[0].mxu0
    %912 = vdwg.mxu0
    %v914 = vsel %vm328, %v48, 0
    %916 = vmatprep.subr.mxu0 0.0
    %917 = vmatpush1.msra.mxu0 %v136
    %918 = vmatprep.subr.mxu0 0.0
    %919 = vmatpush1.msra.mxu0 %v137
    %920 = vmatprep.subr.mxu0 0.0
    %921 = vmatpush1.msra.mxu0 %v138
    %922 = vmatprep.subr.mxu0 0.0
    %923 = vmatpush1.msra.mxu0 %v139
    %924 = vmatprep.subr.mxu0 0.0
    %925 = vmatpush1.msra.mxu0 %v140
    %926 = vmatprep.subr.mxu0 0.0
    %927 = vmatpush1.msra.mxu0 %v141
    %928 = vmatprep.subr.mxu0 0.0
    %929 = vmatpush1.msra.mxu0 %v142
    %930 = vmatprep.subr.mxu0 0.0
    %931 = vmatpush1.msra.mxu0 %v143
    %932 = vmatprep.subr.mxu0 0.0
    %933 = vmatpush1.msra.mxu0 0.0
    %934 = vmatprep.subr.mxu0 0.0
    %935 = vmatpush1.msra.mxu0 0.0
    %936 = vmatprep.subr.mxu0 0.0
    %937 = vmatpush1.msra.mxu0 0.0
    %938 = vmatprep.subr.mxu0 0.0
    %939 = vmatpush1.msra.mxu0 0.0
    %940 = vmatprep.subr.mxu0 0.0
    %941 = vmatpush1.msra.mxu0 0.0
    %942 = vmatprep.subr.mxu0 0.0
    %943 = vmatpush1.msra.mxu0 0.0
    %944 = vmatprep.subr.mxu0 0.0
    %945 = vmatpush1.msra.mxu0 0.0
    %946 = vmatprep.subr.mxu0 0.0
    %947 = vmatpush1.msra.mxu0 0.0
    %948 = vmatprep.subr.mxu0 0.0
    %949 = vmatpush1.msra.mxu0 0.0
    %950 = vmatprep.subr.mxu0 0.0
    %951 = vmatpush1.msra.mxu0 0.0
    %952 = vmatprep.subr.mxu0 0.0
    %953 = vmatpush1.msra.mxu0 0.0
    %954 = vmatprep.subr.mxu0 0.0
    %955 = vmatpush1.msra.mxu0 0.0
    %956 = vmatprep.subr.mxu0 0.0
    %957 = vmatpush1.msra.mxu0 0.0
    %958 = vmatprep.subr.mxu0 0.0
    %959 = vmatpush1.msra.mxu0 0.0
    %960 = vmatprep.subr.mxu0 0.0
    %961 = vmatpush1.msra.mxu0 0.0
    %962 = vmatprep.subr.mxu0 0.0
    %963 = vmatpush1.msra.mxu0 0.0
    %964 = vmatprep.subr.mxu0 0.0
    %965 = vmatpush1.msra.mxu0 0.0
    %966 = vmatprep.subr.mxu0 0.0
    %967 = vmatpush1.msra.mxu0 0.0
    %968 = vmatprep.subr.mxu0 0.0
    %969 = vmatpush1.msra.mxu0 0.0
    %970 = vmatprep.subr.mxu0 0.0
    %971 = vmatpush1.msra.mxu0 0.0
    %972 = vmatprep.subr.mxu0 0.0
    %973 = vmatpush1.msra.mxu0 0.0
    %974 = vmatprep.subr.mxu0 0.0
    %975 = vmatpush1.msra.mxu0 0.0
    %976 = vmatprep.subr.mxu0 0.0
    %977 = vmatpush1.msra.mxu0 0.0
    %978 = vmatprep.subr.mxu0 0.0
    %979 = vmatpush1.msra.mxu0 0.0
    %980 = vmatprep.mubr.f32.mxu0 0.0
    %981 = vmatmul.mubr.f32.gmra.mrb[0].mxu0 %v914
    %v982 = vpop.f32.mrb[0].mxu0
    %v983 = vadd.f32 0.0, %v982
    %v984 = vpop.f32.mrb[0].mxu0
    %985 = vdwg.mxu0
    %v987 = vsel %vm328, %v49, 0
    %989 = vmatprep.subr.mxu0 0.0
    %990 = vmatpush1.msra.mxu0 %v144
    %991 = vmatprep.subr.mxu0 0.0
    %992 = vmatpush1.msra.mxu0 %v145
    %993 = vmatprep.subr.mxu0 0.0
    %994 = vmatpush1.msra.mxu0 %v146
    %995 = vmatprep.subr.mxu0 0.0
    %996 = vmatpush1.msra.mxu0 %v147
    %997 = vmatprep.subr.mxu0 0.0
    %998 = vmatpush1.msra.mxu0 %v148
    %999 = vmatprep.subr.mxu0 0.0
    %1000 = vmatpush1.msra.mxu0 %v149
    %1001 = vmatprep.subr.mxu0 0.0
    %1002 = vmatpush1.msra.mxu0 %v150
    %1003 = vmatprep.subr.mxu0 0.0
    %1004 = vmatpush1.msra.mxu0 %v151
    %1005 = vmatprep.subr.mxu0 0.0
    %1006 = vmatpush1.msra.mxu0 0.0
    %1007 = vmatprep.subr.mxu0 0.0
    %1008 = vmatpush1.msra.mxu0 0.0
    %1009 = vmatprep.subr.mxu0 0.0
    %1010 = vmatpush1.msra.mxu0 0.0
    %1011 = vmatprep.subr.mxu0 0.0
    %1012 = vmatpush1.msra.mxu0 0.0
    %1013 = vmatprep.subr.mxu0 0.0
    %1014 = vmatpush1.msra.mxu0 0.0
    %1015 = vmatprep.subr.mxu0 0.0
    %1016 = vmatpush1.msra.mxu0 0.0
    %1017 = vmatprep.subr.mxu0 0.0
    %1018 = vmatpush1.msra.mxu0 0.0
    %1019 = vmatprep.subr.mxu0 0.0
    %1020 = vmatpush1.msra.mxu0 0.0
    %1021 = vmatprep.subr.mxu0 0.0
    %1022 = vmatpush1.msra.mxu0 0.0
    %1023 = vmatprep.subr.mxu0 0.0
    %1024 = vmatpush1.msra.mxu0 0.0
    %1025 = vmatprep.subr.mxu0 0.0
    %1026 = vmatpush1.msra.mxu0 0.0
    %1027 = vmatprep.subr.mxu0 0.0
    %1028 = vmatpush1.msra.mxu0 0.0
    %1029 = vmatprep.subr.mxu0 0.0
    %1030 = vmatpush1.msra.mxu0 0.0
    %1031 = vmatprep.subr.mxu0 0.0
    %1032 = vmatpush1.msra.mxu0 0.0
    %1033 = vmatprep.subr.mxu0 0.0
    %1034 = vmatpush1.msra.mxu0 0.0
    %1035 = vmatprep.subr.mxu0 0.0
    %1036 = vmatpush1.msra.mxu0 0.0
    %1037 = vmatprep.subr.mxu0 0.0
    %1038 = vmatpush1.msra.mxu0 0.0
    %1039 = vmatprep.subr.mxu0 0.0
    %1040 = vmatpush1.msra.mxu0 0.0
    %1041 = vmatprep.subr.mxu0 0.0
    %1042 = vmatpush1.msra.mxu0 0.0
    %1043 = vmatprep.subr.mxu0 0.0
    %1044 = vmatpush1.msra.mxu0 0.0
    %1045 = vmatprep.subr.mxu0 0.0
    %1046 = vmatpush1.msra.mxu0 0.0
    %1047 = vmatprep.subr.mxu0 0.0
    %1048 = vmatpush1.msra.mxu0 0.0
    %1049 = vmatprep.subr.mxu0 0.0
    %1050 = vmatpush1.msra.mxu0 0.0
    %1051 = vmatprep.subr.mxu0 0.0
    %1052 = vmatpush1.msra.mxu0 0.0
    %1053 = vmatprep.mubr.f32.mxu0 0.0
    %1054 = vmatmul.mubr.f32.gmra.mrb[0].mxu0 %v987
    %v1055 = vpop.f32.mrb[0].mxu0
    %v1056 = vadd.f32 0.0, %v1055
    %v1057 = vpop.f32.mrb[0].mxu0
    %1058 = vdwg.mxu0
    %v1060 = vsel %vm328, %v50, 0
    %1062 = vmatprep.subr.mxu0 0.0
    %1063 = vmatpush1.msra.mxu0 %v152
    %1064 = vmatprep.subr.mxu0 0.0
    %1065 = vmatpush1.msra.mxu0 %v153
    %1066 = vmatprep.subr.mxu0 0.0
    %1067 = vmatpush1.msra.mxu0 %v154
    %1068 = vmatprep.subr.mxu0 0.0
    %1069 = vmatpush1.msra.mxu0 %v155
    %1070 = vmatprep.subr.mxu0 0.0
    %1071 = vmatpush1.msra.mxu0 %v156
    %1072 = vmatprep.subr.mxu0 0.0
    %1073 = vmatpush1.msra.mxu0 %v157
    %1074 = vmatprep.subr.mxu0 0.0
    %1075 = vmatpush1.msra.mxu0 %v158
    %1076 = vmatprep.subr.mxu0 0.0
    %1077 = vmatpush1.msra.mxu0 %v159
    %1078 = vmatprep.subr.mxu0 0.0
    %1079 = vmatpush1.msra.mxu0 0.0
    %1080 = vmatprep.subr.mxu0 0.0
    %1081 = vmatpush1.msra.mxu0 0.0
    %1082 = vmatprep.subr.mxu0 0.0
    %1083 = vmatpush1.msra.mxu0 0.0
    %1084 = vmatprep.subr.mxu0 0.0
    %1085 = vmatpush1.msra.mxu0 0.0
    %1086 = vmatprep.subr.mxu0 0.0
    %1087 = vmatpush1.msra.mxu0 0.0
    %1088 = vmatprep.subr.mxu0 0.0
    %1089 = vmatpush1.msra.mxu0 0.0
    %1090 = vmatprep.subr.mxu0 0.0
    %1091 = vmatpush1.msra.mxu0 0.0
    %1092 = vmatprep.subr.mxu0 0.0
    %1093 = vmatpush1.msra.mxu0 0.0
    %1094 = vmatprep.subr.mxu0 0.0
    %1095 = vmatpush1.msra.mxu0 0.0
    %1096 = vmatprep.subr.mxu0 0.0
    %1097 = vmatpush1.msra.mxu0 0.0
    %1098 = vmatprep.subr.mxu0 0.0
    %1099 = vmatpush1.msra.mxu0 0.0
    %1100 = vmatprep.subr.mxu0 0.0
    %1101 = vmatpush1.msra.mxu0 0.0
    %1102 = vmatprep.subr.mxu0 0.0
    %1103 = vmatpush1.msra.mxu0 0.0
    %1104 = vmatprep.subr.mxu0 0.0
    %1105 = vmatpush1.msra.mxu0 0.0
    %1106 = vmatprep.subr.mxu0 0.0
    %1107 = vmatpush1.msra.mxu0 0.0
    %1108 = vmatprep.subr.mxu0 0.0
    %1109 = vmatpush1.msra.mxu0 0.0
    %1110 = vmatprep.subr.mxu0 0.0
    %1111 = vmatpush1.msra.mxu0 0.0
    %1112 = vmatprep.subr.mxu0 0.0
    %1113 = vmatpush1.msra.mxu0 0.0
    %1114 = vmatprep.subr.mxu0 0.0
    %1115 = vmatpush1.msra.mxu0 0.0
    %1116 = vmatprep.subr.mxu0 0.0
    %1117 = vmatpush1.msra.mxu0 0.0
    %1118 = vmatprep.subr.mxu0 0.0
    %1119 = vmatpush1.msra.mxu0 0.0
    %1120 = vmatprep.subr.mxu0 0.0
    %1121 = vmatpush1.msra.mxu0 0.0
    %1122 = vmatprep.subr.mxu0 0.0
    %1123 = vmatpush1.msra.mxu0 0.0
    %1124 = vmatprep.subr.mxu0 0.0
    %1125 = vmatpush1.msra.mxu0 0.0
    %1126 = vmatprep.mubr.f32.mxu0 0.0
    %1127 = vmatmul.mubr.f32.gmra.mrb[0].mxu0 %v1060
    %v1128 = vpop.f32.mrb[0].mxu0
    %v1129 = vadd.f32 0.0, %v1128
    %v1130 = vpop.f32.mrb[0].mxu0
    %1131 = vdwg.mxu0
    %v1133 = vsel %vm328, %v51, 0
    %1135 = vmatprep.subr.mxu0 0.0
    %1136 = vmatpush1.msra.mxu0 %v160
    %1137 = vmatprep.subr.mxu0 0.0
    %1138 = vmatpush1.msra.mxu0 %v161
    %1139 = vmatprep.subr.mxu0 0.0
    %1140 = vmatpush1.msra.mxu0 %v162
    %1141 = vmatprep.subr.mxu0 0.0
    %1142 = vmatpush1.msra.mxu0 %v163
    %1143 = vmatprep.subr.mxu0 0.0
    %1144 = vmatpush1.msra.mxu0 %v164
    %1145 = vmatprep.subr.mxu0 0.0
    %1146 = vmatpush1.msra.mxu0 %v165
    %1147 = vmatprep.subr.mxu0 0.0
    %1148 = vmatpush1.msra.mxu0 %v166
    %1149 = vmatprep.subr.mxu0 0.0
    %1150 = vmatpush1.msra.mxu0 %v167
    %1151 = vmatprep.subr.mxu0 0.0
    %1152 = vmatpush1.msra.mxu0 0.0
    %1153 = vmatprep.subr.mxu0 0.0
    %1154 = vmatpush1.msra.mxu0 0.0
    %1155 = vmatprep.subr.mxu0 0.0
    %1156 = vmatpush1.msra.mxu0 0.0
    %1157 = vmatprep.subr.mxu0 0.0
    %1158 = vmatpush1.msra.mxu0 0.0
    %1159 = vmatprep.subr.mxu0 0.0
    %1160 = vmatpush1.msra.mxu0 0.0
    %1161 = vmatprep.subr.mxu0 0.0
    %1162 = vmatpush1.msra.mxu0 0.0
    %1163 = vmatprep.subr.mxu0 0.0
    %1164 = vmatpush1.msra.mxu0 0.0
    %1165 = vmatprep.subr.mxu0 0.0
    %1166 = vmatpush1.msra.mxu0 0.0
    %1167 = vmatprep.subr.mxu0 0.0
    %1168 = vmatpush1.msra.mxu0 0.0
    %1169 = vmatprep.subr.mxu0 0.0
    %1170 = vmatpush1.msra.mxu0 0.0
    %1171 = vmatprep.subr.mxu0 0.0
    %1172 = vmatpush1.msra.mxu0 0.0
    %1173 = vmatprep.subr.mxu0 0.0
    %1174 = vmatpush1.msra.mxu0 0.0
    %1175 = vmatprep.subr.mxu0 0.0
    %1176 = vmatpush1.msra.mxu0 0.0
    %1177 = vmatprep.subr.mxu0 0.0
    %1178 = vmatpush1.msra.mxu0 0.0
    %1179 = vmatprep.subr.mxu0 0.0
    %1180 = vmatpush1.msra.mxu0 0.0
    %1181 = vmatprep.subr.mxu0 0.0
    %1182 = vmatpush1.msra.mxu0 0.0
    %1183 = vmatprep.subr.mxu0 0.0
    %1184 = vmatpush1.msra.mxu0 0.0
    %1185 = vmatprep.subr.mxu0 0.0
    %1186 = vmatpush1.msra.mxu0 0.0
    %1187 = vmatprep.subr.mxu0 0.0
    %1188 = vmatpush1.msra.mxu0 0.0
    %1189 = vmatprep.subr.mxu0 0.0
    %1190 = vmatpush1.msra.mxu0 0.0
    %1191 = vmatprep.subr.mxu0 0.0
    %1192 = vmatpush1.msra.mxu0 0.0
    %1193 = vmatprep.subr.mxu0 0.0
    %1194 = vmatpush1.msra.mxu0 0.0
    %1195 = vmatprep.subr.mxu0 0.0
    %1196 = vmatpush1.msra.mxu0 0.0
    %1197 = vmatprep.subr.mxu0 0.0
    %1198 = vmatpush1.msra.mxu0 0.0
    %1199 = vmatprep.mubr.f32.mxu0 0.0
    %1200 = vmatmul.mubr.f32.gmra.mrb[0].mxu0 %v1133
    %v1201 = vpop.f32.mrb[0].mxu0
    %v1202 = vadd.f32 0.0, %v1201
    %v1203 = vpop.f32.mrb[0].mxu0
    %1204 = vdwg.mxu0
    %v1206 = vsel %vm328, %v52, 0
    %1208 = vmatprep.subr.mxu0 0.0
    %1209 = vmatpush1.msra.mxu0 %v168
    %1210 = vmatprep.subr.mxu0 0.0
    %1211 = vmatpush1.msra.mxu0 %v169
    %1212 = vmatprep.subr.mxu0 0.0
    %1213 = vmatpush1.msra.mxu0 %v170
    %1214 = vmatprep.subr.mxu0 0.0
    %1215 = vmatpush1.msra.mxu0 %v171
    %1216 = vmatprep.subr.mxu0 0.0
    %1217 = vmatpush1.msra.mxu0 %v172
    %1218 = vmatprep.subr.mxu0 0.0
    %1219 = vmatpush1.msra.mxu0 %v173
    %1220 = vmatprep.subr.mxu0 0.0
    %1221 = vmatpush1.msra.mxu0 %v174
    %1222 = vmatprep.subr.mxu0 0.0
    %1223 = vmatpush1.msra.mxu0 %v175
    %1224 = vmatprep.subr.mxu0 0.0
    %1225 = vmatpush1.msra.mxu0 0.0
    %1226 = vmatprep.subr.mxu0 0.0
    %1227 = vmatpush1.msra.mxu0 0.0
    %1228 = vmatprep.subr.mxu0 0.0
    %1229 = vmatpush1.msra.mxu0 0.0
    %1230 = vmatprep.subr.mxu0 0.0
    %1231 = vmatpush1.msra.mxu0 0.0
    %1232 = vmatprep.subr.mxu0 0.0
    %1233 = vmatpush1.msra.mxu0 0.0
    %1234 = vmatprep.subr.mxu0 0.0
    %1235 = vmatpush1.msra.mxu0 0.0
    %1236 = vmatprep.subr.mxu0 0.0
    %1237 = vmatpush1.msra.mxu0 0.0
    %1238 = vmatprep.subr.mxu0 0.0
    %1239 = vmatpush1.msra.mxu0 0.0
    %1240 = vmatprep.subr.mxu0 0.0
    %1241 = vmatpush1.msra.mxu0 0.0
    %1242 = vmatprep.subr.mxu0 0.0
    %1243 = vmatpush1.msra.mxu0 0.0
    %1244 = vmatprep.subr.mxu0 0.0
    %1245 = vmatpush1.msra.mxu0 0.0
    %1246 = vmatprep.subr.mxu0 0.0
    %1247 = vmatpush1.msra.mxu0 0.0
    %1248 = vmatprep.subr.mxu0 0.0
    %1249 = vmatpush1.msra.mxu0 0.0
    %1250 = vmatprep.subr.mxu0 0.0
    %1251 = vmatpush1.msra.mxu0 0.0
    %1252 = vmatprep.subr.mxu0 0.0
    %1253 = vmatpush1.msra.mxu0 0.0
    %1254 = vmatprep.subr.mxu0 0.0
    %1255 = vmatpush1.msra.mxu0 0.0
    %1256 = vmatprep.subr.mxu0 0.0
    %1257 = vmatpush1.msra.mxu0 0.0
    %1258 = vmatprep.subr.mxu0 0.0
    %1259 = vmatpush1.msra.mxu0 0.0
    %1260 = vmatprep.subr.mxu0 0.0
    %1261 = vmatpush1.msra.mxu0 0.0
    %1262 = vmatprep.subr.mxu0 0.0
    %1263 = vmatpush1.msra.mxu0 0.0
    %1264 = vmatprep.subr.mxu0 0.0
    %1265 = vmatpush1.msra.mxu0 0.0
    %1266 = vmatprep.subr.mxu0 0.0
    %1267 = vmatpush1.msra.mxu0 0.0
    %1268 = vmatprep.subr.mxu0 0.0
    %1269 = vmatpush1.msra.mxu0 0.0
    %1270 = vmatprep.subr.mxu0 0.0
    %1271 = vmatpush1.msra.mxu0 0.0
    %1272 = vmatprep.mubr.f32.mxu0 0.0
    %1273 = vmatmul.mubr.f32.gmra.mrb[0].mxu0 %v1206
    %v1274 = vpop.f32.mrb[0].mxu0
    %v1275 = vadd.f32 0.0, %v1274
    %v1276 = vpop.f32.mrb[0].mxu0
    %1277 = vdwg.mxu0
    %v1279 = vsel %vm328, %v53, 0
    %1281 = vmatprep.subr.mxu0 0.0
    %1282 = vmatpush1.msra.mxu0 %v176
    %1283 = vmatprep.subr.mxu0 0.0
    %1284 = vmatpush1.msra.mxu0 %v177
    %1285 = vmatprep.subr.mxu0 0.0
    %1286 = vmatpush1.msra.mxu0 %v178
    %1287 = vmatprep.subr.mxu0 0.0
    %1288 = vmatpush1.msra.mxu0 %v179
    %1289 = vmatprep.subr.mxu0 0.0
    %1290 = vmatpush1.msra.mxu0 %v180
    %1291 = vmatprep.subr.mxu0 0.0
    %1292 = vmatpush1.msra.mxu0 %v181
    %1293 = vmatprep.subr.mxu0 0.0
    %1294 = vmatpush1.msra.mxu0 %v182
    %1295 = vmatprep.subr.mxu0 0.0
    %1296 = vmatpush1.msra.mxu0 %v183
    %1297 = vmatprep.subr.mxu0 0.0
    %1298 = vmatpush1.msra.mxu0 0.0
    %1299 = vmatprep.subr.mxu0 0.0
    %1300 = vmatpush1.msra.mxu0 0.0
    %1301 = vmatprep.subr.mxu0 0.0
    %1302 = vmatpush1.msra.mxu0 0.0
    %1303 = vmatprep.subr.mxu0 0.0
    %1304 = vmatpush1.msra.mxu0 0.0
    %1305 = vmatprep.subr.mxu0 0.0
    %1306 = vmatpush1.msra.mxu0 0.0
    %1307 = vmatprep.subr.mxu0 0.0
    %1308 = vmatpush1.msra.mxu0 0.0
    %1309 = vmatprep.subr.mxu0 0.0
    %1310 = vmatpush1.msra.mxu0 0.0
    %1311 = vmatprep.subr.mxu0 0.0
    %1312 = vmatpush1.msra.mxu0 0.0
    %1313 = vmatprep.subr.mxu0 0.0
    %1314 = vmatpush1.msra.mxu0 0.0
    %1315 = vmatprep.subr.mxu0 0.0
    %1316 = vmatpush1.msra.mxu0 0.0
    %1317 = vmatprep.subr.mxu0 0.0
    %1318 = vmatpush1.msra.mxu0 0.0
    %1319 = vmatprep.subr.mxu0 0.0
    %1320 = vmatpush1.msra.mxu0 0.0
    %1321 = vmatprep.subr.mxu0 0.0
    %1322 = vmatpush1.msra.mxu0 0.0
    %1323 = vmatprep.subr.mxu0 0.0
    %1324 = vmatpush1.msra.mxu0 0.0
    %1325 = vmatprep.subr.mxu0 0.0
    %1326 = vmatpush1.msra.mxu0 0.0
    %1327 = vmatprep.subr.mxu0 0.0
    %1328 = vmatpush1.msra.mxu0 0.0
    %1329 = vmatprep.subr.mxu0 0.0
    %1330 = vmatpush1.msra.mxu0 0.0
    %1331 = vmatprep.subr.mxu0 0.0
    %1332 = vmatpush1.msra.mxu0 0.0
    %1333 = vmatprep.subr.mxu0 0.0
    %1334 = vmatpush1.msra.mxu0 0.0
    %1335 = vmatprep.subr.mxu0 0.0
    %1336 = vmatpush1.msra.mxu0 0.0
    %1337 = vmatprep.subr.mxu0 0.0
    %1338 = vmatpush1.msra.mxu0 0.0
    %1339 = vmatprep.subr.mxu0 0.0
    %1340 = vmatpush1.msra.mxu0 0.0
    %1341 = vmatprep.subr.mxu0 0.0
    %1342 = vmatpush1.msra.mxu0 0.0
    %1343 = vmatprep.subr.mxu0 0.0
    %1344 = vmatpush1.msra.mxu0 0.0
    %1345 = vmatprep.mubr.f32.mxu0 0.0
    %1346 = vmatmul.mubr.f32.gmra.mrb[0].mxu0 %v1279
    %v1347 = vpop.f32.mrb[0].mxu0
    %v1348 = vadd.f32 0.0, %v1347
    %v1349 = vpop.f32.mrb[0].mxu0
    %1350 = vdwg.mxu0
    %v1352 = vsel %vm328, %v54, 0
    %1354 = vmatprep.subr.mxu0 0.0
    %1355 = vmatpush1.msra.mxu0 %v184
    %1356 = vmatprep.subr.mxu0 0.0
    %1357 = vmatpush1.msra.mxu0 %v185
    %1358 = vmatprep.subr.mxu0 0.0
    %1359 = vmatpush1.msra.mxu0 %v186
    %1360 = vmatprep.subr.mxu0 0.0
    %1361 = vmatpush1.msra.mxu0 %v187
    %1362 = vmatprep.subr.mxu0 0.0
    %1363 = vmatpush1.msra.mxu0 %v188
    %1364 = vmatprep.subr.mxu0 0.0
    %1365 = vmatpush1.msra.mxu0 %v189
    %1366 = vmatprep.subr.mxu0 0.0
    %1367 = vmatpush1.msra.mxu0 %v190
    %1368 = vmatprep.subr.mxu0 0.0
    %1369 = vmatpush1.msra.mxu0 %v191
    %1370 = vmatprep.subr.mxu0 0.0
    %1371 = vmatpush1.msra.mxu0 0.0
    %1372 = vmatprep.subr.mxu0 0.0
    %1373 = vmatpush1.msra.mxu0 0.0
    %1374 = vmatprep.subr.mxu0 0.0
    %1375 = vmatpush1.msra.mxu0 0.0
    %1376 = vmatprep.subr.mxu0 0.0
    %1377 = vmatpush1.msra.mxu0 0.0
    %1378 = vmatprep.subr.mxu0 0.0
    %1379 = vmatpush1.msra.mxu0 0.0
    %1380 = vmatprep.subr.mxu0 0.0
    %1381 = vmatpush1.msra.mxu0 0.0
    %1382 = vmatprep.subr.mxu0 0.0
    %1383 = vmatpush1.msra.mxu0 0.0
    %1384 = vmatprep.subr.mxu0 0.0
    %1385 = vmatpush1.msra.mxu0 0.0
    %1386 = vmatprep.subr.mxu0 0.0
    %1387 = vmatpush1.msra.mxu0 0.0
    %1388 = vmatprep.subr.mxu0 0.0
    %1389 = vmatpush1.msra.mxu0 0.0
    %1390 = vmatprep.subr.mxu0 0.0
    %1391 = vmatpush1.msra.mxu0 0.0
    %1392 = vmatprep.subr.mxu0 0.0
    %1393 = vmatpush1.msra.mxu0 0.0
    %1394 = vmatprep.subr.mxu0 0.0
    %1395 = vmatpush1.msra.mxu0 0.0
    %1396 = vmatprep.subr.mxu0 0.0
    %1397 = vmatpush1.msra.mxu0 0.0
    %1398 = vmatprep.subr.mxu0 0.0
    %1399 = vmatpush1.msra.mxu0 0.0
    %1400 = vmatprep.subr.mxu0 0.0
    %1401 = vmatpush1.msra.mxu0 0.0
    %1402 = vmatprep.subr.mxu0 0.0
    %1403 = vmatpush1.msra.mxu0 0.0
    %1404 = vmatprep.subr.mxu0 0.0
    %1405 = vmatpush1.msra.mxu0 0.0
    %1406 = vmatprep.subr.mxu0 0.0
    %1407 = vmatpush1.msra.mxu0 0.0
    %1408 = vmatprep.subr.mxu0 0.0
    %1409 = vmatpush1.msra.mxu0 0.0
    %1410 = vmatprep.subr.mxu0 0.0
    %1411 = vmatpush1.msra.mxu0 0.0
    %1412 = vmatprep.subr.mxu0 0.0
    %1413 = vmatpush1.msra.mxu0 0.0
    %1414 = vmatprep.subr.mxu0 0.0
    %1415 = vmatpush1.msra.mxu0 0.0
    %1416 = vmatprep.subr.mxu0 0.0
    %1417 = vmatpush1.msra.mxu0 0.0
    %1418 = vmatprep.mubr.f32.mxu0 0.0
    %1419 = vmatmul.mubr.f32.gmra.mrb[0].mxu0 %v1352
    %v1420 = vpop.f32.mrb[0].mxu0
    %v1421 = vadd.f32 0.0, %v1420
    %v1422 = vpop.f32.mrb[0].mxu0
    %1423 = vdwg.mxu0
    %v1425 = vsel %vm328, %v55, 0
    %1427 = vmatprep.subr.mxu0 0.0
    %1428 = vmatpush1.msra.mxu0 %v192
    %1429 = vmatprep.subr.mxu0 0.0
    %1430 = vmatpush1.msra.mxu0 %v193
    %1431 = vmatprep.subr.mxu0 0.0
    %1432 = vmatpush1.msra.mxu0 %v194
    %1433 = vmatprep.subr.mxu0 0.0
    %1434 = vmatpush1.msra.mxu0 %v195
    %1435 = vmatprep.subr.mxu0 0.0
    %1436 = vmatpush1.msra.mxu0 %v196
    %1437 = vmatprep.subr.mxu0 0.0
    %1438 = vmatpush1.msra.mxu0 %v197
    %1439 = vmatprep.subr.mxu0 0.0
    %1440 = vmatpush1.msra.mxu0 %v198
    %1441 = vmatprep.subr.mxu0 0.0
    %1442 = vmatpush1.msra.mxu0 %v199
    %1443 = vmatprep.subr.mxu0 0.0
    %1444 = vmatpush1.msra.mxu0 0.0
    %1445 = vmatprep.subr.mxu0 0.0
    %1446 = vmatpush1.msra.mxu0 0.0
    %1447 = vmatprep.subr.mxu0 0.0
    %1448 = vmatpush1.msra.mxu0 0.0
    %1449 = vmatprep.subr.mxu0 0.0
    %1450 = vmatpush1.msra.mxu0 0.0
    %1451 = vmatprep.subr.mxu0 0.0
    %1452 = vmatpush1.msra.mxu0 0.0
    %1453 = vmatprep.subr.mxu0 0.0
    %1454 = vmatpush1.msra.mxu0 0.0
    %1455 = vmatprep.subr.mxu0 0.0
    %1456 = vmatpush1.msra.mxu0 0.0
    %1457 = vmatprep.subr.mxu0 0.0
    %1458 = vmatpush1.msra.mxu0 0.0
    %1459 = vmatprep.subr.mxu0 0.0
    %1460 = vmatpush1.msra.mxu0 0.0
    %1461 = vmatprep.subr.mxu0 0.0
    %1462 = vmatpush1.msra.mxu0 0.0
    %1463 = vmatprep.subr.mxu0 0.0
    %1464 = vmatpush1.msra.mxu0 0.0
    %1465 = vmatprep.subr.mxu0 0.0
    %1466 = vmatpush1.msra.mxu0 0.0
    %1467 = vmatprep.subr.mxu0 0.0
    %1468 = vmatpush1.msra.mxu0 0.0
    %1469 = vmatprep.subr.mxu0 0.0
    %1470 = vmatpush1.msra.mxu0 0.0
    %1471 = vmatprep.subr.mxu0 0.0
    %1472 = vmatpush1.msra.mxu0 0.0
    %1473 = vmatprep.subr.mxu0 0.0
    %1474 = vmatpush1.msra.mxu0 0.0
    %1475 = vmatprep.subr.mxu0 0.0
    %1476 = vmatpush1.msra.mxu0 0.0
    %1477 = vmatprep.subr.mxu0 0.0
    %1478 = vmatpush1.msra.mxu0 0.0
    %1479 = vmatprep.subr.mxu0 0.0
    %1480 = vmatpush1.msra.mxu0 0.0
    %1481 = vmatprep.subr.mxu0 0.0
    %1482 = vmatpush1.msra.mxu0 0.0
    %1483 = vmatprep.subr.mxu0 0.0
    %1484 = vmatpush1.msra.mxu0 0.0
    %1485 = vmatprep.subr.mxu0 0.0
    %1486 = vmatpush1.msra.mxu0 0.0
    %1487 = vmatprep.subr.mxu0 0.0
    %1488 = vmatpush1.msra.mxu0 0.0
    %1489 = vmatprep.subr.mxu0 0.0
    %1490 = vmatpush1.msra.mxu0 0.0
    %1491 = vmatprep.mubr.f32.mxu0 0.0
    %1492 = vmatmul.mubr.f32.gmra.mrb[0].mxu0 %v1425
    %v1493 = vpop.f32.mrb[0].mxu0
    %v1494 = vadd.f32 0.0, %v1493
    %v1495 = vpop.f32.mrb[0].mxu0
    %1496 = vdwg.mxu0
    %v1498 = vsel %vm328, %v56, 0
    %1500 = vmatprep.subr.mxu0 0.0
    %1501 = vmatpush1.msra.mxu0 %v200
    %1502 = vmatprep.subr.mxu0 0.0
    %1503 = vmatpush1.msra.mxu0 %v201
    %1504 = vmatprep.subr.mxu0 0.0
    %1505 = vmatpush1.msra.mxu0 %v202
    %1506 = vmatprep.subr.mxu0 0.0
    %1507 = vmatpush1.msra.mxu0 %v203
    %1508 = vmatprep.subr.mxu0 0.0
    %1509 = vmatpush1.msra.mxu0 %v204
    %1510 = vmatprep.subr.mxu0 0.0
    %1511 = vmatpush1.msra.mxu0 %v205
    %1512 = vmatprep.subr.mxu0 0.0
    %1513 = vmatpush1.msra.mxu0 %v206
    %1514 = vmatprep.subr.mxu0 0.0
    %1515 = vmatpush1.msra.mxu0 %v207
    %1516 = vmatprep.subr.mxu0 0.0
    %1517 = vmatpush1.msra.mxu0 0.0
    %1518 = vmatprep.subr.mxu0 0.0
    %1519 = vmatpush1.msra.mxu0 0.0
    %1520 = vmatprep.subr.mxu0 0.0
    %1521 = vmatpush1.msra.mxu0 0.0
    %1522 = vmatprep.subr.mxu0 0.0
    %1523 = vmatpush1.msra.mxu0 0.0
    %1524 = vmatprep.subr.mxu0 0.0
    %1525 = vmatpush1.msra.mxu0 0.0
    %1526 = vmatprep.subr.mxu0 0.0
    %1527 = vmatpush1.msra.mxu0 0.0
    %1528 = vmatprep.subr.mxu0 0.0
    %1529 = vmatpush1.msra.mxu0 0.0
    %1530 = vmatprep.subr.mxu0 0.0
    %1531 = vmatpush1.msra.mxu0 0.0
    %1532 = vmatprep.subr.mxu0 0.0
    %1533 = vmatpush1.msra.mxu0 0.0
    %1534 = vmatprep.subr.mxu0 0.0
    %1535 = vmatpush1.msra.mxu0 0.0
    %1536 = vmatprep.subr.mxu0 0.0
    %1537 = vmatpush1.msra.mxu0 0.0
    %1538 = vmatprep.subr.mxu0 0.0
    %1539 = vmatpush1.msra.mxu0 0.0
    %1540 = vmatprep.subr.mxu0 0.0
    %1541 = vmatpush1.msra.mxu0 0.0
    %1542 = vmatprep.subr.mxu0 0.0
    %1543 = vmatpush1.msra.mxu0 0.0
    %1544 = vmatprep.subr.mxu0 0.0
    %1545 = vmatpush1.msra.mxu0 0.0
    %1546 = vmatprep.subr.mxu0 0.0
    %1547 = vmatpush1.msra.mxu0 0.0
    %1548 = vmatprep.subr.mxu0 0.0
    %1549 = vmatpush1.msra.mxu0 0.0
    %1550 = vmatprep.subr.mxu0 0.0
    %1551 = vmatpush1.msra.mxu0 0.0
    %1552 = vmatprep.subr.mxu0 0.0
    %1553 = vmatpush1.msra.mxu0 0.0
    %1554 = vmatprep.subr.mxu0 0.0
    %1555 = vmatpush1.msra.mxu0 0.0
    %1556 = vmatprep.subr.mxu0 0.0
    %1557 = vmatpush1.msra.mxu0 0.0
    %1558 = vmatprep.subr.mxu0 0.0
    %1559 = vmatpush1.msra.mxu0 0.0
    %1560 = vmatprep.subr.mxu0 0.0
    %1561 = vmatpush1.msra.mxu0 0.0
    %1562 = vmatprep.subr.mxu0 0.0
    %1563 = vmatpush1.msra.mxu0 0.0
    %1564 = vmatprep.mubr.f32.mxu0 0.0
    %1565 = vmatmul.mubr.f32.gmra.mrb[0].mxu0 %v1498
    %v1566 = vpop.f32.mrb[0].mxu0
    %v1567 = vadd.f32 0.0, %v1566
    %v1568 = vpop.f32.mrb[0].mxu0
    %1569 = vdwg.mxu0
    %v1571 = vsel %vm328, %v57, 0
    %1573 = vmatprep.subr.mxu0 0.0
    %1574 = vmatpush1.msra.mxu0 %v208
    %1575 = vmatprep.subr.mxu0 0.0
    %1576 = vmatpush1.msra.mxu0 %v209
    %1577 = vmatprep.subr.mxu0 0.0
    %1578 = vmatpush1.msra.mxu0 %v210
    %1579 = vmatprep.subr.mxu0 0.0
    %1580 = vmatpush1.msra.mxu0 %v211
    %1581 = vmatprep.subr.mxu0 0.0
    %1582 = vmatpush1.msra.mxu0 %v212
    %1583 = vmatprep.subr.mxu0 0.0
    %1584 = vmatpush1.msra.mxu0 %v213
    %1585 = vmatprep.subr.mxu0 0.0
    %1586 = vmatpush1.msra.mxu0 %v214
    %1587 = vmatprep.subr.mxu0 0.0
    %1588 = vmatpush1.msra.mxu0 %v215
    %1589 = vmatprep.subr.mxu0 0.0
    %1590 = vmatpush1.msra.mxu0 0.0
    %1591 = vmatprep.subr.mxu0 0.0
    %1592 = vmatpush1.msra.mxu0 0.0
    %1593 = vmatprep.subr.mxu0 0.0
    %1594 = vmatpush1.msra.mxu0 0.0
    %1595 = vmatprep.subr.mxu0 0.0
    %1596 = vmatpush1.msra.mxu0 0.0
    %1597 = vmatprep.subr.mxu0 0.0
    %1598 = vmatpush1.msra.mxu0 0.0
    %1599 = vmatprep.subr.mxu0 0.0
    %1600 = vmatpush1.msra.mxu0 0.0
    %1601 = vmatprep.subr.mxu0 0.0
    %1602 = vmatpush1.msra.mxu0 0.0
    %1603 = vmatprep.subr.mxu0 0.0
    %1604 = vmatpush1.msra.mxu0 0.0
    %1605 = vmatprep.subr.mxu0 0.0
    %1606 = vmatpush1.msra.mxu0 0.0
    %1607 = vmatprep.subr.mxu0 0.0
    %1608 = vmatpush1.msra.mxu0 0.0
    %1609 = vmatprep.subr.mxu0 0.0
    %1610 = vmatpush1.msra.mxu0 0.0
    %1611 = vmatprep.subr.mxu0 0.0
    %1612 = vmatpush1.msra.mxu0 0.0
    %1613 = vmatprep.subr.mxu0 0.0
    %1614 = vmatpush1.msra.mxu0 0.0
    %1615 = vmatprep.subr.mxu0 0.0
    %1616 = vmatpush1.msra.mxu0 0.0
    %1617 = vmatprep.subr.mxu0 0.0
    %1618 = vmatpush1.msra.mxu0 0.0
    %1619 = vmatprep.subr.mxu0 0.0
    %1620 = vmatpush1.msra.mxu0 0.0
    %1621 = vmatprep.subr.mxu0 0.0
    %1622 = vmatpush1.msra.mxu0 0.0
    %1623 = vmatprep.subr.mxu0 0.0
    %1624 = vmatpush1.msra.mxu0 0.0
    %1625 = vmatprep.subr.mxu0 0.0
    %1626 = vmatpush1.msra.mxu0 0.0
    %1627 = vmatprep.subr.mxu0 0.0
    %1628 = vmatpush1.msra.mxu0 0.0
    %1629 = vmatprep.subr.mxu0 0.0
    %1630 = vmatpush1.msra.mxu0 0.0
    %1631 = vmatprep.subr.mxu0 0.0
    %1632 = vmatpush1.msra.mxu0 0.0
    %1633 = vmatprep.subr.mxu0 0.0
    %1634 = vmatpush1.msra.mxu0 0.0
    %1635 = vmatprep.subr.mxu0 0.0
    %1636 = vmatpush1.msra.mxu0 0.0
    %1637 = vmatprep.mubr.f32.mxu0 0.0
    %1638 = vmatmul.mubr.f32.gmra.mrb[0].mxu0 %v1571
    %v1639 = vpop.f32.mrb[0].mxu0
    %v1640 = vadd.f32 0.0, %v1639
    %v1641 = vpop.f32.mrb[0].mxu0
    %1642 = vdwg.mxu0
    %v1644 = vsel %vm328, %v58, 0
    %1646 = vmatprep.subr.mxu0 0.0
    %1647 = vmatpush1.msra.mxu0 %v216
    %1648 = vmatprep.subr.mxu0 0.0
    %1649 = vmatpush1.msra.mxu0 %v217
    %1650 = vmatprep.subr.mxu0 0.0
    %1651 = vmatpush1.msra.mxu0 %v218
    %1652 = vmatprep.subr.mxu0 0.0
    %1653 = vmatpush1.msra.mxu0 %v219
    %1654 = vmatprep.subr.mxu0 0.0
    %1655 = vmatpush1.msra.mxu0 %v220
    %1656 = vmatprep.subr.mxu0 0.0
    %1657 = vmatpush1.msra.mxu0 %v221
    %1658 = vmatprep.subr.mxu0 0.0
    %1659 = vmatpush1.msra.mxu0 %v222
    %1660 = vmatprep.subr.mxu0 0.0
    %1661 = vmatpush1.msra.mxu0 %v223
    %1662 = vmatprep.subr.mxu0 0.0
    %1663 = vmatpush1.msra.mxu0 0.0
    %1664 = vmatprep.subr.mxu0 0.0
    %1665 = vmatpush1.msra.mxu0 0.0
    %1666 = vmatprep.subr.mxu0 0.0
    %1667 = vmatpush1.msra.mxu0 0.0
    %1668 = vmatprep.subr.mxu0 0.0
    %1669 = vmatpush1.msra.mxu0 0.0
    %1670 = vmatprep.subr.mxu0 0.0
    %1671 = vmatpush1.msra.mxu0 0.0
    %1672 = vmatprep.subr.mxu0 0.0
    %1673 = vmatpush1.msra.mxu0 0.0
    %1674 = vmatprep.subr.mxu0 0.0
    %1675 = vmatpush1.msra.mxu0 0.0
    %1676 = vmatprep.subr.mxu0 0.0
    %1677 = vmatpush1.msra.mxu0 0.0
    %1678 = vmatprep.subr.mxu0 0.0
    %1679 = vmatpush1.msra.mxu0 0.0
    %1680 = vmatprep.subr.mxu0 0.0
    %1681 = vmatpush1.msra.mxu0 0.0
    %1682 = vmatprep.subr.mxu0 0.0
    %1683 = vmatpush1.msra.mxu0 0.0
    %1684 = vmatprep.subr.mxu0 0.0
    %1685 = vmatpush1.msra.mxu0 0.0
    %1686 = vmatprep.subr.mxu0 0.0
    %1687 = vmatpush1.msra.mxu0 0.0
    %1688 = vmatprep.subr.mxu0 0.0
    %1689 = vmatpush1.msra.mxu0 0.0
    %1690 = vmatprep.subr.mxu0 0.0
    %1691 = vmatpush1.msra.mxu0 0.0
    %1692 = vmatprep.subr.mxu0 0.0
    %1693 = vmatpush1.msra.mxu0 0.0
    %1694 = vmatprep.subr.mxu0 0.0
    %1695 = vmatpush1.msra.mxu0 0.0
    %1696 = vmatprep.subr.mxu0 0.0
    %1697 = vmatpush1.msra.mxu0 0.0
    %1698 = vmatprep.subr.mxu0 0.0
    %1699 = vmatpush1.msra.mxu0 0.0
    %1700 = vmatprep.subr.mxu0 0.0
    %1701 = vmatpush1.msra.mxu0 0.0
    %1702 = vmatprep.subr.mxu0 0.0
    %1703 = vmatpush1.msra.mxu0 0.0
    %1704 = vmatprep.subr.mxu0 0.0
    %1705 = vmatpush1.msra.mxu0 0.0
    %1706 = vmatprep.subr.mxu0 0.0
    %1707 = vmatpush1.msra.mxu0 0.0
    %1708 = vmatprep.subr.mxu0 0.0
    %1709 = vmatpush1.msra.mxu0 0.0
    %1710 = vmatprep.mubr.f32.mxu0 0.0
    %1711 = vmatmul.mubr.f32.gmra.mrb[0].mxu0 %v1644
    %v1712 = vpop.f32.mrb[0].mxu0
    %v1713 = vadd.f32 0.0, %v1712
    %v1714 = vpop.f32.mrb[0].mxu0
    %1715 = vdwg.mxu0
    %v1717 = vsel %vm328, %v59, 0
    %1719 = vmatprep.subr.mxu0 0.0
    %1720 = vmatpush1.msra.mxu0 %v224
    %1721 = vmatprep.subr.mxu0 0.0
    %1722 = vmatpush1.msra.mxu0 %v225
    %1723 = vmatprep.subr.mxu0 0.0
    %1724 = vmatpush1.msra.mxu0 %v226
    %1725 = vmatprep.subr.mxu0 0.0
    %1726 = vmatpush1.msra.mxu0 %v227
    %1727 = vmatprep.subr.mxu0 0.0
    %1728 = vmatpush1.msra.mxu0 %v228
    %1729 = vmatprep.subr.mxu0 0.0
    %1730 = vmatpush1.msra.mxu0 %v229
    %1731 = vmatprep.subr.mxu0 0.0
    %1732 = vmatpush1.msra.mxu0 %v230
    %1733 = vmatprep.subr.mxu0 0.0
    %1734 = vmatpush1.msra.mxu0 %v231
    %1735 = vmatprep.subr.mxu0 0.0
    %1736 = vmatpush1.msra.mxu0 0.0
    %1737 = vmatprep.subr.mxu0 0.0
    %1738 = vmatpush1.msra.mxu0 0.0
    %1739 = vmatprep.subr.mxu0 0.0
    %1740 = vmatpush1.msra.mxu0 0.0
    %1741 = vmatprep.subr.mxu0 0.0
    %1742 = vmatpush1.msra.mxu0 0.0
    %1743 = vmatprep.subr.mxu0 0.0
    %1744 = vmatpush1.msra.mxu0 0.0
    %1745 = vmatprep.subr.mxu0 0.0
    %1746 = vmatpush1.msra.mxu0 0.0
    %1747 = vmatprep.subr.mxu0 0.0
    %1748 = vmatpush1.msra.mxu0 0.0
    %1749 = vmatprep.subr.mxu0 0.0
    %1750 = vmatpush1.msra.mxu0 0.0
    %1751 = vmatprep.subr.mxu0 0.0
    %1752 = vmatpush1.msra.mxu0 0.0
    %1753 = vmatprep.subr.mxu0 0.0
    %1754 = vmatpush1.msra.mxu0 0.0
    %1755 = vmatprep.subr.mxu0 0.0
    %1756 = vmatpush1.msra.mxu0 0.0
    %1757 = vmatprep.subr.mxu0 0.0
    %1758 = vmatpush1.msra.mxu0 0.0
    %1759 = vmatprep.subr.mxu0 0.0
    %1760 = vmatpush1.msra.mxu0 0.0
    %1761 = vmatprep.subr.mxu0 0.0
    %1762 = vmatpush1.msra.mxu0 0.0
    %1763 = vmatprep.subr.mxu0 0.0
    %1764 = vmatpush1.msra.mxu0 0.0
    %1765 = vmatprep.subr.mxu0 0.0
    %1766 = vmatpush1.msra.mxu0 0.0
    %1767 = vmatprep.subr.mxu0 0.0
    %1768 = vmatpush1.msra.mxu0 0.0
    %1769 = vmatprep.subr.mxu0 0.0
    %1770 = vmatpush1.msra.mxu0 0.0
    %1771 = vmatprep.subr.mxu0 0.0
    %1772 = vmatpush1.msra.mxu0 0.0
    %1773 = vmatprep.subr.mxu0 0.0
    %1774 = vmatpush1.msra.mxu0 0.0
    %1775 = vmatprep.subr.mxu0 0.0
    %1776 = vmatpush1.msra.mxu0 0.0
    %1777 = vmatprep.subr.mxu0 0.0
    %1778 = vmatpush1.msra.mxu0 0.0
    %1779 = vmatprep.subr.mxu0 0.0
    %1780 = vmatpush1.msra.mxu0 0.0
    %1781 = vmatprep.subr.mxu0 0.0
    %1782 = vmatpush1.msra.mxu0 0.0
    %1783 = vmatprep.mubr.f32.mxu0 0.0
    %1784 = vmatmul.mubr.f32.gmra.mrb[0].mxu0 %v1717
    %v1785 = vpop.f32.mrb[0].mxu0
    %v1786 = vadd.f32 0.0, %v1785
    %v1787 = vpop.f32.mrb[0].mxu0
    %1788 = vdwg.mxu0
    %v1790 = vsel %vm328, %v60, 0
    %1792 = vmatprep.subr.mxu0 0.0
    %1793 = vmatpush1.msra.mxu0 %v232
    %1794 = vmatprep.subr.mxu0 0.0
    %1795 = vmatpush1.msra.mxu0 %v233
    %1796 = vmatprep.subr.mxu0 0.0
    %1797 = vmatpush1.msra.mxu0 %v234
    %1798 = vmatprep.subr.mxu0 0.0
    %1799 = vmatpush1.msra.mxu0 %v235
    %1800 = vmatprep.subr.mxu0 0.0
    %1801 = vmatpush1.msra.mxu0 %v236
    %1802 = vmatprep.subr.mxu0 0.0
    %1803 = vmatpush1.msra.mxu0 %v237
    %1804 = vmatprep.subr.mxu0 0.0
    %1805 = vmatpush1.msra.mxu0 %v238
    %1806 = vmatprep.subr.mxu0 0.0
    %1807 = vmatpush1.msra.mxu0 %v239
    %1808 = vmatprep.subr.mxu0 0.0
    %1809 = vmatpush1.msra.mxu0 0.0
    %1810 = vmatprep.subr.mxu0 0.0
    %1811 = vmatpush1.msra.mxu0 0.0
    %1812 = vmatprep.subr.mxu0 0.0
    %1813 = vmatpush1.msra.mxu0 0.0
    %1814 = vmatprep.subr.mxu0 0.0
    %1815 = vmatpush1.msra.mxu0 0.0
    %1816 = vmatprep.subr.mxu0 0.0
    %1817 = vmatpush1.msra.mxu0 0.0
    %1818 = vmatprep.subr.mxu0 0.0
    %1819 = vmatpush1.msra.mxu0 0.0
    %1820 = vmatprep.subr.mxu0 0.0
    %1821 = vmatpush1.msra.mxu0 0.0
    %1822 = vmatprep.subr.mxu0 0.0
    %1823 = vmatpush1.msra.mxu0 0.0
    %1824 = vmatprep.subr.mxu0 0.0
    %1825 = vmatpush1.msra.mxu0 0.0
    %1826 = vmatprep.subr.mxu0 0.0
    %1827 = vmatpush1.msra.mxu0 0.0
    %1828 = vmatprep.subr.mxu0 0.0
    %1829 = vmatpush1.msra.mxu0 0.0
    %1830 = vmatprep.subr.mxu0 0.0
    %1831 = vmatpush1.msra.mxu0 0.0
    %1832 = vmatprep.subr.mxu0 0.0
    %1833 = vmatpush1.msra.mxu0 0.0
    %1834 = vmatprep.subr.mxu0 0.0
    %1835 = vmatpush1.msra.mxu0 0.0
    %1836 = vmatprep.subr.mxu0 0.0
    %1837 = vmatpush1.msra.mxu0 0.0
    %1838 = vmatprep.subr.mxu0 0.0
    %1839 = vmatpush1.msra.mxu0 0.0
    %1840 = vmatprep.subr.mxu0 0.0
    %1841 = vmatpush1.msra.mxu0 0.0
    %1842 = vmatprep.subr.mxu0 0.0
    %1843 = vmatpush1.msra.mxu0 0.0
    %1844 = vmatprep.subr.mxu0 0.0
    %1845 = vmatpush1.msra.mxu0 0.0
    %1846 = vmatprep.subr.mxu0 0.0
    %1847 = vmatpush1.msra.mxu0 0.0
    %1848 = vmatprep.subr.mxu0 0.0
    %1849 = vmatpush1.msra.mxu0 0.0
    %1850 = vmatprep.subr.mxu0 0.0
    %1851 = vmatpush1.msra.mxu0 0.0
    %1852 = vmatprep.subr.mxu0 0.0
    %1853 = vmatpush1.msra.mxu0 0.0
    %1854 = vmatprep.subr.mxu0 0.0
    %1855 = vmatpush1.msra.mxu0 0.0
    %1856 = vmatprep.mubr.f32.mxu0 0.0
    %1857 = vmatmul.mubr.f32.gmra.mrb[0].mxu0 %v1790
    %v1858 = vpop.f32.mrb[0].mxu0
    %v1859 = vadd.f32 0.0, %v1858
    %v1860 = vpop.f32.mrb[0].mxu0
    %1861 = vdwg.mxu0
    %v1863 = vsel %vm328, %v61, 0
    %1865 = vmatprep.subr.mxu0 0.0
    %1866 = vmatpush1.msra.mxu0 %v240
    %1867 = vmatprep.subr.mxu0 0.0
    %1868 = vmatpush1.msra.mxu0 %v241
    %1869 = vmatprep.subr.mxu0 0.0
    %1870 = vmatpush1.msra.mxu0 %v242
    %1871 = vmatprep.subr.mxu0 0.0
    %1872 = vmatpush1.msra.mxu0 %v243
    %1873 = vmatprep.subr.mxu0 0.0
    %1874 = vmatpush1.msra.mxu0 %v244
    %1875 = vmatprep.subr.mxu0 0.0
    %1876 = vmatpush1.msra.mxu0 %v245
    %1877 = vmatprep.subr.mxu0 0.0
    %1878 = vmatpush1.msra.mxu0 %v246
    %1879 = vmatprep.subr.mxu0 0.0
    %1880 = vmatpush1.msra.mxu0 %v247
    %1881 = vmatprep.subr.mxu0 0.0
    %1882 = vmatpush1.msra.mxu0 0.0
    %1883 = vmatprep.subr.mxu0 0.0
    %1884 = vmatpush1.msra.mxu0 0.0
    %1885 = vmatprep.subr.mxu0 0.0
    %1886 = vmatpush1.msra.mxu0 0.0
    %1887 = vmatprep.subr.mxu0 0.0
    %1888 = vmatpush1.msra.mxu0 0.0
    %1889 = vmatprep.subr.mxu0 0.0
    %1890 = vmatpush1.msra.mxu0 0.0
    %1891 = vmatprep.subr.mxu0 0.0
    %1892 = vmatpush1.msra.mxu0 0.0
    %1893 = vmatprep.subr.mxu0 0.0
    %1894 = vmatpush1.msra.mxu0 0.0
    %1895 = vmatprep.subr.mxu0 0.0
    %1896 = vmatpush1.msra.mxu0 0.0
    %1897 = vmatprep.subr.mxu0 0.0
    %1898 = vmatpush1.msra.mxu0 0.0
    %1899 = vmatprep.subr.mxu0 0.0
    %1900 = vmatpush1.msra.mxu0 0.0
    %1901 = vmatprep.subr.mxu0 0.0
    %1902 = vmatpush1.msra.mxu0 0.0
    %1903 = vmatprep.subr.mxu0 0.0
    %1904 = vmatpush1.msra.mxu0 0.0
    %1905 = vmatprep.subr.mxu0 0.0
    %1906 = vmatpush1.msra.mxu0 0.0
    %1907 = vmatprep.subr.mxu0 0.0
    %1908 = vmatpush1.msra.mxu0 0.0
    %1909 = vmatprep.subr.mxu0 0.0
    %1910 = vmatpush1.msra.mxu0 0.0
    %1911 = vmatprep.subr.mxu0 0.0
    %1912 = vmatpush1.msra.mxu0 0.0
    %1913 = vmatprep.subr.mxu0 0.0
    %1914 = vmatpush1.msra.mxu0 0.0
    %1915 = vmatprep.subr.mxu0 0.0
    %1916 = vmatpush1.msra.mxu0 0.0
    %1917 = vmatprep.subr.mxu0 0.0
    %1918 = vmatpush1.msra.mxu0 0.0
    %1919 = vmatprep.subr.mxu0 0.0
    %1920 = vmatpush1.msra.mxu0 0.0
    %1921 = vmatprep.subr.mxu0 0.0
    %1922 = vmatpush1.msra.mxu0 0.0
    %1923 = vmatprep.subr.mxu0 0.0
    %1924 = vmatpush1.msra.mxu0 0.0
    %1925 = vmatprep.subr.mxu0 0.0
    %1926 = vmatpush1.msra.mxu0 0.0
    %1927 = vmatprep.subr.mxu0 0.0
    %1928 = vmatpush1.msra.mxu0 0.0
    %1929 = vmatprep.mubr.f32.mxu0 0.0
    %1930 = vmatmul.mubr.f32.gmra.mrb[0].mxu0 %v1863
    %v1931 = vpop.f32.mrb[0].mxu0
    %v1932 = vadd.f32 0.0, %v1931
    %v1933 = vpop.f32.mrb[0].mxu0
    %1934 = vdwg.mxu0
    %v1936 = vsel %vm328, %v62, 0
    %1938 = vmatprep.subr.mxu0 0.0
    %1939 = vmatpush1.msra.mxu0 %v248
    %1940 = vmatprep.subr.mxu0 0.0
    %1941 = vmatpush1.msra.mxu0 %v249
    %1942 = vmatprep.subr.mxu0 0.0
    %1943 = vmatpush1.msra.mxu0 %v250
    %1944 = vmatprep.subr.mxu0 0.0
    %1945 = vmatpush1.msra.mxu0 %v251
    %1946 = vmatprep.subr.mxu0 0.0
    %1947 = vmatpush1.msra.mxu0 %v252
    %1948 = vmatprep.subr.mxu0 0.0
    %1949 = vmatpush1.msra.mxu0 %v253
    %1950 = vmatprep.subr.mxu0 0.0
    %1951 = vmatpush1.msra.mxu0 %v254
    %1952 = vmatprep.subr.mxu0 0.0
    %1953 = vmatpush1.msra.mxu0 %v255
    %1954 = vmatprep.subr.mxu0 0.0
    %1955 = vmatpush1.msra.mxu0 0.0
    %1956 = vmatprep.subr.mxu0 0.0
    %1957 = vmatpush1.msra.mxu0 0.0
    %1958 = vmatprep.subr.mxu0 0.0
    %1959 = vmatpush1.msra.mxu0 0.0
    %1960 = vmatprep.subr.mxu0 0.0
    %1961 = vmatpush1.msra.mxu0 0.0
    %1962 = vmatprep.subr.mxu0 0.0
    %1963 = vmatpush1.msra.mxu0 0.0
    %1964 = vmatprep.subr.mxu0 0.0
    %1965 = vmatpush1.msra.mxu0 0.0
    %1966 = vmatprep.subr.mxu0 0.0
    %1967 = vmatpush1.msra.mxu0 0.0
    %1968 = vmatprep.subr.mxu0 0.0
    %1969 = vmatpush1.msra.mxu0 0.0
    %1970 = vmatprep.subr.mxu0 0.0
    %1971 = vmatpush1.msra.mxu0 0.0
    %1972 = vmatprep.subr.mxu0 0.0
    %1973 = vmatpush1.msra.mxu0 0.0
    %1974 = vmatprep.subr.mxu0 0.0
    %1975 = vmatpush1.msra.mxu0 0.0
    %1976 = vmatprep.subr.mxu0 0.0
    %1977 = vmatpush1.msra.mxu0 0.0
    %1978 = vmatprep.subr.mxu0 0.0
    %1979 = vmatpush1.msra.mxu0 0.0
    %1980 = vmatprep.subr.mxu0 0.0
    %1981 = vmatpush1.msra.mxu0 0.0
    %1982 = vmatprep.subr.mxu0 0.0
    %1983 = vmatpush1.msra.mxu0 0.0
    %1984 = vmatprep.subr.mxu0 0.0
    %1985 = vmatpush1.msra.mxu0 0.0
    %1986 = vmatprep.subr.mxu0 0.0
    %1987 = vmatpush1.msra.mxu0 0.0
    %1988 = vmatprep.subr.mxu0 0.0
    %1989 = vmatpush1.msra.mxu0 0.0
    %1990 = vmatprep.subr.mxu0 0.0
    %1991 = vmatpush1.msra.mxu0 0.0
    %1992 = vmatprep.subr.mxu0 0.0
    %1993 = vmatpush1.msra.mxu0 0.0
    %1994 = vmatprep.subr.mxu0 0.0
    %1995 = vmatpush1.msra.mxu0 0.0
    %1996 = vmatprep.subr.mxu0 0.0
    %1997 = vmatpush1.msra.mxu0 0.0
    %1998 = vmatprep.subr.mxu0 0.0
    %1999 = vmatpush1.msra.mxu0 0.0
    %2000 = vmatprep.subr.mxu0 0.0
    %2001 = vmatpush1.msra.mxu0 0.0
    %2002 = vmatprep.mubr.f32.mxu0 0.0
    %2003 = vmatmul.mubr.f32.gmra.mrb[0].mxu0 %v1936
    %v2004 = vpop.f32.mrb[0].mxu0
    %v2005 = vadd.f32 0.0, %v2004
    %v2006 = vpop.f32.mrb[0].mxu0
    %2007 = vdwg.mxu0
    %v2009 = vsel %vm328, %v63, 0
    %2011 = vmatprep.subr.mxu0 0.0
    %2012 = vmatpush1.msra.mxu0 %v256
    %2013 = vmatprep.subr.mxu0 0.0
    %2014 = vmatpush1.msra.mxu0 %v257
    %2015 = vmatprep.subr.mxu0 0.0
    %2016 = vmatpush1.msra.mxu0 %v258
    %2017 = vmatprep.subr.mxu0 0.0
    %2018 = vmatpush1.msra.mxu0 %v259
    %2019 = vmatprep.subr.mxu0 0.0
    %2020 = vmatpush1.msra.mxu0 %v260
    %2021 = vmatprep.subr.mxu0 0.0
    %2022 = vmatpush1.msra.mxu0 %v261
    %2023 = vmatprep.subr.mxu0 0.0
    %2024 = vmatpush1.msra.mxu0 %v262
    %2025 = vmatprep.subr.mxu0 0.0
    %2026 = vmatpush1.msra.mxu0 %v263
    %2027 = vmatprep.subr.mxu0 0.0
    %2028 = vmatpush1.msra.mxu0 0.0
    %2029 = vmatprep.subr.mxu0 0.0
    %2030 = vmatpush1.msra.mxu0 0.0
    %2031 = vmatprep.subr.mxu0 0.0
    %2032 = vmatpush1.msra.mxu0 0.0
    %2033 = vmatprep.subr.mxu0 0.0
    %2034 = vmatpush1.msra.mxu0 0.0
    %2035 = vmatprep.subr.mxu0 0.0
    %2036 = vmatpush1.msra.mxu0 0.0
    %2037 = vmatprep.subr.mxu0 0.0
    %2038 = vmatpush1.msra.mxu0 0.0
    %2039 = vmatprep.subr.mxu0 0.0
    %2040 = vmatpush1.msra.mxu0 0.0
    %2041 = vmatprep.subr.mxu0 0.0
    %2042 = vmatpush1.msra.mxu0 0.0
    %2043 = vmatprep.subr.mxu0 0.0
    %2044 = vmatpush1.msra.mxu0 0.0
    %2045 = vmatprep.subr.mxu0 0.0
    %2046 = vmatpush1.msra.mxu0 0.0
    %2047 = vmatprep.subr.mxu0 0.0
    %2048 = vmatpush1.msra.mxu0 0.0
    %2049 = vmatprep.subr.mxu0 0.0
    %2050 = vmatpush1.msra.mxu0 0.0
    %2051 = vmatprep.subr.mxu0 0.0
    %2052 = vmatpush1.msra.mxu0 0.0
    %2053 = vmatprep.subr.mxu0 0.0
    %2054 = vmatpush1.msra.mxu0 0.0
    %2055 = vmatprep.subr.mxu0 0.0
    %2056 = vmatpush1.msra.mxu0 0.0
    %2057 = vmatprep.subr.mxu0 0.0
    %2058 = vmatpush1.msra.mxu0 0.0
    %2059 = vmatprep.subr.mxu0 0.0
    %2060 = vmatpush1.msra.mxu0 0.0
    %2061 = vmatprep.subr.mxu0 0.0
    %2062 = vmatpush1.msra.mxu0 0.0
    %2063 = vmatprep.subr.mxu0 0.0
    %2064 = vmatpush1.msra.mxu0 0.0
    %2065 = vmatprep.subr.mxu0 0.0
    %2066 = vmatpush1.msra.mxu0 0.0
    %2067 = vmatprep.subr.mxu0 0.0
    %2068 = vmatpush1.msra.mxu0 0.0
    %2069 = vmatprep.subr.mxu0 0.0
    %2070 = vmatpush1.msra.mxu0 0.0
    %2071 = vmatprep.subr.mxu0 0.0
    %2072 = vmatpush1.msra.mxu0 0.0
    %2073 = vmatprep.subr.mxu0 0.0
    %2074 = vmatpush1.msra.mxu0 0.0
    %2075 = vmatprep.mubr.f32.mxu0 0.0
    %2076 = vmatmul.mubr.f32.gmra.mrb[0].mxu0 %v2009
    %v2077 = vpop.f32.mrb[0].mxu0
    %v2078 = vadd.f32 0.0, %v2077
    %v2079 = vpop.f32.mrb[0].mxu0
    %2080 = vdwg.mxu0
    %v2082 = vsel %vm328, %v64, 0
    %2084 = vmatprep.subr.mxu0 0.0
    %2085 = vmatpush1.msra.mxu0 %v264
    %2086 = vmatprep.subr.mxu0 0.0
    %2087 = vmatpush1.msra.mxu0 %v265
    %2088 = vmatprep.subr.mxu0 0.0
    %2089 = vmatpush1.msra.mxu0 %v266
    %2090 = vmatprep.subr.mxu0 0.0
    %2091 = vmatpush1.msra.mxu0 %v267
    %2092 = vmatprep.subr.mxu0 0.0
    %2093 = vmatpush1.msra.mxu0 %v268
    %2094 = vmatprep.subr.mxu0 0.0
    %2095 = vmatpush1.msra.mxu0 %v269
    %2096 = vmatprep.subr.mxu0 0.0
    %2097 = vmatpush1.msra.mxu0 %v270
    %2098 = vmatprep.subr.mxu0 0.0
    %2099 = vmatpush1.msra.mxu0 %v271
    %2100 = vmatprep.subr.mxu0 0.0
    %2101 = vmatpush1.msra.mxu0 0.0
    %2102 = vmatprep.subr.mxu0 0.0
    %2103 = vmatpush1.msra.mxu0 0.0
    %2104 = vmatprep.subr.mxu0 0.0
    %2105 = vmatpush1.msra.mxu0 0.0
    %2106 = vmatprep.subr.mxu0 0.0
    %2107 = vmatpush1.msra.mxu0 0.0
    %2108 = vmatprep.subr.mxu0 0.0
    %2109 = vmatpush1.msra.mxu0 0.0
    %2110 = vmatprep.subr.mxu0 0.0
    %2111 = vmatpush1.msra.mxu0 0.0
    %2112 = vmatprep.subr.mxu0 0.0
    %2113 = vmatpush1.msra.mxu0 0.0
    %2114 = vmatprep.subr.mxu0 0.0
    %2115 = vmatpush1.msra.mxu0 0.0
    %2116 = vmatprep.subr.mxu0 0.0
    %2117 = vmatpush1.msra.mxu0 0.0
    %2118 = vmatprep.subr.mxu0 0.0
    %2119 = vmatpush1.msra.mxu0 0.0
    %2120 = vmatprep.subr.mxu0 0.0
    %2121 = vmatpush1.msra.mxu0 0.0
    %2122 = vmatprep.subr.mxu0 0.0
    %2123 = vmatpush1.msra.mxu0 0.0
    %2124 = vmatprep.subr.mxu0 0.0
    %2125 = vmatpush1.msra.mxu0 0.0
    %2126 = vmatprep.subr.mxu0 0.0
    %2127 = vmatpush1.msra.mxu0 0.0
    %2128 = vmatprep.subr.mxu0 0.0
    %2129 = vmatpush1.msra.mxu0 0.0
    %2130 = vmatprep.subr.mxu0 0.0
    %2131 = vmatpush1.msra.mxu0 0.0
    %2132 = vmatprep.subr.mxu0 0.0
    %2133 = vmatpush1.msra.mxu0 0.0
    %2134 = vmatprep.subr.mxu0 0.0
    %2135 = vmatpush1.msra.mxu0 0.0
    %2136 = vmatprep.subr.mxu0 0.0
    %2137 = vmatpush1.msra.mxu0 0.0
    %2138 = vmatprep.subr.mxu0 0.0
    %2139 = vmatpush1.msra.mxu0 0.0
    %2140 = vmatprep.subr.mxu0 0.0
    %2141 = vmatpush1.msra.mxu0 0.0
    %2142 = vmatprep.subr.mxu0 0.0
    %2143 = vmatpush1.msra.mxu0 0.0
    %2144 = vmatprep.subr.mxu0 0.0
    %2145 = vmatpush1.msra.mxu0 0.0
    %2146 = vmatprep.subr.mxu0 0.0
    %2147 = vmatpush1.msra.mxu0 0.0
    %2148 = vmatprep.mubr.f32.mxu0 0.0
    %2149 = vmatmul.mubr.f32.gmra.mrb[0].mxu0 %v2082
    %v2150 = vpop.f32.mrb[0].mxu0
    %v2151 = vadd.f32 0.0, %v2150
    %v2152 = vpop.f32.mrb[0].mxu0
    %2153 = vdwg.mxu0
    %v2155 = vsel %vm328, %v65, 0
    %2157 = vmatprep.subr.mxu0 0.0
    %2158 = vmatpush1.msra.mxu0 %v272
    %2159 = vmatprep.subr.mxu0 0.0
    %2160 = vmatpush1.msra.mxu0 %v273
    %2161 = vmatprep.subr.mxu0 0.0
    %2162 = vmatpush1.msra.mxu0 %v274
    %2163 = vmatprep.subr.mxu0 0.0
    %2164 = vmatpush1.msra.mxu0 %v275
    %2165 = vmatprep.subr.mxu0 0.0
    %2166 = vmatpush1.msra.mxu0 %v276
    %2167 = vmatprep.subr.mxu0 0.0
    %2168 = vmatpush1.msra.mxu0 %v277
    %2169 = vmatprep.subr.mxu0 0.0
    %2170 = vmatpush1.msra.mxu0 %v278
    %2171 = vmatprep.subr.mxu0 0.0
    %2172 = vmatpush1.msra.mxu0 %v279
    %2173 = vmatprep.subr.mxu0 0.0
    %2174 = vmatpush1.msra.mxu0 0.0
    %2175 = vmatprep.subr.mxu0 0.0
    %2176 = vmatpush1.msra.mxu0 0.0
    %2177 = vmatprep.subr.mxu0 0.0
    %2178 = vmatpush1.msra.mxu0 0.0
    %2179 = vmatprep.subr.mxu0 0.0
    %2180 = vmatpush1.msra.mxu0 0.0
    %2181 = vmatprep.subr.mxu0 0.0
    %2182 = vmatpush1.msra.mxu0 0.0
    %2183 = vmatprep.subr.mxu0 0.0
    %2184 = vmatpush1.msra.mxu0 0.0
    %2185 = vmatprep.subr.mxu0 0.0
    %2186 = vmatpush1.msra.mxu0 0.0
    %2187 = vmatprep.subr.mxu0 0.0
    %2188 = vmatpush1.msra.mxu0 0.0
    %2189 = vmatprep.subr.mxu0 0.0
    %2190 = vmatpush1.msra.mxu0 0.0
    %2191 = vmatprep.subr.mxu0 0.0
    %2192 = vmatpush1.msra.mxu0 0.0
    %2193 = vmatprep.subr.mxu0 0.0
    %2194 = vmatpush1.msra.mxu0 0.0
    %2195 = vmatprep.subr.mxu0 0.0
    %2196 = vmatpush1.msra.mxu0 0.0
    %2197 = vmatprep.subr.mxu0 0.0
    %2198 = vmatpush1.msra.mxu0 0.0
    %2199 = vmatprep.subr.mxu0 0.0
    %2200 = vmatpush1.msra.mxu0 0.0
    %2201 = vmatprep.subr.mxu0 0.0
    %2202 = vmatpush1.msra.mxu0 0.0
    %2203 = vmatprep.subr.mxu0 0.0
    %2204 = vmatpush1.msra.mxu0 0.0
    %2205 = vmatprep.subr.mxu0 0.0
    %2206 = vmatpush1.msra.mxu0 0.0
    %2207 = vmatprep.subr.mxu0 0.0
    %2208 = vmatpush1.msra.mxu0 0.0
    %2209 = vmatprep.subr.mxu0 0.0
    %2210 = vmatpush1.msra.mxu0 0.0
    %2211 = vmatprep.subr.mxu0 0.0
    %2212 = vmatpush1.msra.mxu0 0.0
    %2213 = vmatprep.subr.mxu0 0.0
    %2214 = vmatpush1.msra.mxu0 0.0
    %2215 = vmatprep.subr.mxu0 0.0
    %2216 = vmatpush1.msra.mxu0 0.0
    %2217 = vmatprep.subr.mxu0 0.0
    %2218 = vmatpush1.msra.mxu0 0.0
    %2219 = vmatprep.subr.mxu0 0.0
    %2220 = vmatpush1.msra.mxu0 0.0
    %2221 = vmatprep.mubr.f32.mxu0 0.0
    %2222 = vmatmul.mubr.f32.gmra.mrb[0].mxu0 %v2155
    %v2223 = vpop.f32.mrb[0].mxu0
    %v2224 = vadd.f32 0.0, %v2223
    %v2225 = vpop.f32.mrb[0].mxu0
    %2226 = vdwg.mxu0
    %v2228 = vsel %vm328, %v66, 0
    %2230 = vmatprep.subr.mxu0 0.0
    %2231 = vmatpush1.msra.mxu0 %v280
    %2232 = vmatprep.subr.mxu0 0.0
    %2233 = vmatpush1.msra.mxu0 %v281
    %2234 = vmatprep.subr.mxu0 0.0
    %2235 = vmatpush1.msra.mxu0 %v282
    %2236 = vmatprep.subr.mxu0 0.0
    %2237 = vmatpush1.msra.mxu0 %v283
    %2238 = vmatprep.subr.mxu0 0.0
    %2239 = vmatpush1.msra.mxu0 %v284
    %2240 = vmatprep.subr.mxu0 0.0
    %2241 = vmatpush1.msra.mxu0 %v285
    %2242 = vmatprep.subr.mxu0 0.0
    %2243 = vmatpush1.msra.mxu0 %v286
    %2244 = vmatprep.subr.mxu0 0.0
    %2245 = vmatpush1.msra.mxu0 %v287
    %2246 = vmatprep.subr.mxu0 0.0
    %2247 = vmatpush1.msra.mxu0 0.0
    %2248 = vmatprep.subr.mxu0 0.0
    %2249 = vmatpush1.msra.mxu0 0.0
    %2250 = vmatprep.subr.mxu0 0.0
    %2251 = vmatpush1.msra.mxu0 0.0
    %2252 = vmatprep.subr.mxu0 0.0
    %2253 = vmatpush1.msra.mxu0 0.0
    %2254 = vmatprep.subr.mxu0 0.0
    %2255 = vmatpush1.msra.mxu0 0.0
    %2256 = vmatprep.subr.mxu0 0.0
    %2257 = vmatpush1.msra.mxu0 0.0
    %2258 = vmatprep.subr.mxu0 0.0
    %2259 = vmatpush1.msra.mxu0 0.0
    %2260 = vmatprep.subr.mxu0 0.0
    %2261 = vmatpush1.msra.mxu0 0.0
    %2262 = vmatprep.subr.mxu0 0.0
    %2263 = vmatpush1.msra.mxu0 0.0
    %2264 = vmatprep.subr.mxu0 0.0
    %2265 = vmatpush1.msra.mxu0 0.0
    %2266 = vmatprep.subr.mxu0 0.0
    %2267 = vmatpush1.msra.mxu0 0.0
    %2268 = vmatprep.subr.mxu0 0.0
    %2269 = vmatpush1.msra.mxu0 0.0
    %2270 = vmatprep.subr.mxu0 0.0
    %2271 = vmatpush1.msra.mxu0 0.0
    %2272 = vmatprep.subr.mxu0 0.0
    %2273 = vmatpush1.msra.mxu0 0.0
    %2274 = vmatprep.subr.mxu0 0.0
    %2275 = vmatpush1.msra.mxu0 0.0
    %2276 = vmatprep.subr.mxu0 0.0
    %2277 = vmatpush1.msra.mxu0 0.0
    %2278 = vmatprep.subr.mxu0 0.0
    %2279 = vmatpush1.msra.mxu0 0.0
    %2280 = vmatprep.subr.mxu0 0.0
    %2281 = vmatpush1.msra.mxu0 0.0
    %2282 = vmatprep.subr.mxu0 0.0
    %2283 = vmatpush1.msra.mxu0 0.0
    %2284 = vmatprep.subr.mxu0 0.0
    %2285 = vmatpush1.msra.mxu0 0.0
    %2286 = vmatprep.subr.mxu0 0.0
    %2287 = vmatpush1.msra.mxu0 0.0
    %2288 = vmatprep.subr.mxu0 0.0
    %2289 = vmatpush1.msra.mxu0 0.0
    %2290 = vmatprep.subr.mxu0 0.0
    %2291 = vmatpush1.msra.mxu0 0.0
    %2292 = vmatprep.subr.mxu0 0.0
    %2293 = vmatpush1.msra.mxu0 0.0
    %2294 = vmatprep.mubr.f32.mxu0 0.0
    %2295 = vmatmul.mubr.f32.gmra.mrb[0].mxu0 %v2228
    %v2296 = vpop.f32.mrb[0].mxu0
    %v2297 = vadd.f32 0.0, %v2296
    %v2298 = vpop.f32.mrb[0].mxu0
    %2299 = vdwg.mxu0
    %v2301 = vsel %vm328, %v67, 0
    %2303 = vmatprep.subr.mxu0 0.0
    %2304 = vmatpush1.msra.mxu0 %v288
    %2305 = vmatprep.subr.mxu0 0.0
    %2306 = vmatpush1.msra.mxu0 %v289
    %2307 = vmatprep.subr.mxu0 0.0
    %2308 = vmatpush1.msra.mxu0 %v290
    %2309 = vmatprep.subr.mxu0 0.0
    %2310 = vmatpush1.msra.mxu0 %v291
    %2311 = vmatprep.subr.mxu0 0.0
    %2312 = vmatpush1.msra.mxu0 %v292
    %2313 = vmatprep.subr.mxu0 0.0
    %2314 = vmatpush1.msra.mxu0 %v293
    %2315 = vmatprep.subr.mxu0 0.0
    %2316 = vmatpush1.msra.mxu0 %v294
    %2317 = vmatprep.subr.mxu0 0.0
    %2318 = vmatpush1.msra.mxu0 %v295
    %2319 = vmatprep.subr.mxu0 0.0
    %2320 = vmatpush1.msra.mxu0 0.0
    %2321 = vmatprep.subr.mxu0 0.0
    %2322 = vmatpush1.msra.mxu0 0.0
    %2323 = vmatprep.subr.mxu0 0.0
    %2324 = vmatpush1.msra.mxu0 0.0
    %2325 = vmatprep.subr.mxu0 0.0
    %2326 = vmatpush1.msra.mxu0 0.0
    %2327 = vmatprep.subr.mxu0 0.0
    %2328 = vmatpush1.msra.mxu0 0.0
    %2329 = vmatprep.subr.mxu0 0.0
    %2330 = vmatpush1.msra.mxu0 0.0
    %2331 = vmatprep.subr.mxu0 0.0
    %2332 = vmatpush1.msra.mxu0 0.0
    %2333 = vmatprep.subr.mxu0 0.0
    %2334 = vmatpush1.msra.mxu0 0.0
    %2335 = vmatprep.subr.mxu0 0.0
    %2336 = vmatpush1.msra.mxu0 0.0
    %2337 = vmatprep.subr.mxu0 0.0
    %2338 = vmatpush1.msra.mxu0 0.0
    %2339 = vmatprep.subr.mxu0 0.0
    %2340 = vmatpush1.msra.mxu0 0.0
    %2341 = vmatprep.subr.mxu0 0.0
    %2342 = vmatpush1.msra.mxu0 0.0
    %2343 = vmatprep.subr.mxu0 0.0
    %2344 = vmatpush1.msra.mxu0 0.0
    %2345 = vmatprep.subr.mxu0 0.0
    %2346 = vmatpush1.msra.mxu0 0.0
    %2347 = vmatprep.subr.mxu0 0.0
    %2348 = vmatpush1.msra.mxu0 0.0
    %2349 = vmatprep.subr.mxu0 0.0
    %2350 = vmatpush1.msra.mxu0 0.0
    %2351 = vmatprep.subr.mxu0 0.0
    %2352 = vmatpush1.msra.mxu0 0.0
    %2353 = vmatprep.subr.mxu0 0.0
    %2354 = vmatpush1.msra.mxu0 0.0
    %2355 = vmatprep.subr.mxu0 0.0
    %2356 = vmatpush1.msra.mxu0 0.0
    %2357 = vmatprep.subr.mxu0 0.0
    %2358 = vmatpush1.msra.mxu0 0.0
    %2359 = vmatprep.subr.mxu0 0.0
    %2360 = vmatpush1.msra.mxu0 0.0
    %2361 = vmatprep.subr.mxu0 0.0
    %2362 = vmatpush1.msra.mxu0 0.0
    %2363 = vmatprep.subr.mxu0 0.0
    %2364 = vmatpush1.msra.mxu0 0.0
    %2365 = vmatprep.subr.mxu0 0.0
    %2366 = vmatpush1.msra.mxu0 0.0
    %2367 = vmatprep.mubr.f32.mxu0 0.0
    %2368 = vmatmul.mubr.f32.gmra.mrb[0].mxu0 %v2301
    %v2369 = vpop.f32.mrb[0].mxu0
    %v2370 = vadd.f32 0.0, %v2369
    %v2371 = vpop.f32.mrb[0].mxu0
    %2372 = vdwg.mxu0
    %v2374 = vsel %vm328, %v68, 0
    %2376 = vmatprep.subr.mxu0 0.0
    %2377 = vmatpush1.msra.mxu0 %v296
    %2378 = vmatprep.subr.mxu0 0.0
    %2379 = vmatpush1.msra.mxu0 %v297
    %2380 = vmatprep.subr.mxu0 0.0
    %2381 = vmatpush1.msra.mxu0 %v298
    %2382 = vmatprep.subr.mxu0 0.0
    %2383 = vmatpush1.msra.mxu0 %v299
    %2384 = vmatprep.subr.mxu0 0.0
    %2385 = vmatpush1.msra.mxu0 %v300
    %2386 = vmatprep.subr.mxu0 0.0
    %2387 = vmatpush1.msra.mxu0 %v301
    %2388 = vmatprep.subr.mxu0 0.0
    %2389 = vmatpush1.msra.mxu0 %v302
    %2390 = vmatprep.subr.mxu0 0.0
    %2391 = vmatpush1.msra.mxu0 %v303
    %2392 = vmatprep.subr.mxu0 0.0
    %2393 = vmatpush1.msra.mxu0 0.0
    %2394 = vmatprep.subr.mxu0 0.0
    %2395 = vmatpush1.msra.mxu0 0.0
    %2396 = vmatprep.subr.mxu0 0.0
    %2397 = vmatpush1.msra.mxu0 0.0
    %2398 = vmatprep.subr.mxu0 0.0
    %2399 = vmatpush1.msra.mxu0 0.0
    %2400 = vmatprep.subr.mxu0 0.0
    %2401 = vmatpush1.msra.mxu0 0.0
    %2402 = vmatprep.subr.mxu0 0.0
    %2403 = vmatpush1.msra.mxu0 0.0
    %2404 = vmatprep.subr.mxu0 0.0
    %2405 = vmatpush1.msra.mxu0 0.0
    %2406 = vmatprep.subr.mxu0 0.0
    %2407 = vmatpush1.msra.mxu0 0.0
    %2408 = vmatprep.subr.mxu0 0.0
    %2409 = vmatpush1.msra.mxu0 0.0
    %2410 = vmatprep.subr.mxu0 0.0
    %2411 = vmatpush1.msra.mxu0 0.0
    %2412 = vmatprep.subr.mxu0 0.0
    %2413 = vmatpush1.msra.mxu0 0.0
    %2414 = vmatprep.subr.mxu0 0.0
    %2415 = vmatpush1.msra.mxu0 0.0
    %2416 = vmatprep.subr.mxu0 0.0
    %2417 = vmatpush1.msra.mxu0 0.0
    %2418 = vmatprep.subr.mxu0 0.0
    %2419 = vmatpush1.msra.mxu0 0.0
    %2420 = vmatprep.subr.mxu0 0.0
    %2421 = vmatpush1.msra.mxu0 0.0
    %2422 = vmatprep.subr.mxu0 0.0
    %2423 = vmatpush1.msra.mxu0 0.0
    %2424 = vmatprep.subr.mxu0 0.0
    %2425 = vmatpush1.msra.mxu0 0.0
    %2426 = vmatprep.subr.mxu0 0.0
    %2427 = vmatpush1.msra.mxu0 0.0
    %2428 = vmatprep.subr.mxu0 0.0
    %2429 = vmatpush1.msra.mxu0 0.0
    %2430 = vmatprep.subr.mxu0 0.0
    %2431 = vmatpush1.msra.mxu0 0.0
    %2432 = vmatprep.subr.mxu0 0.0
    %2433 = vmatpush1.msra.mxu0 0.0
    %2434 = vmatprep.subr.mxu0 0.0
    %2435 = vmatpush1.msra.mxu0 0.0
    %2436 = vmatprep.subr.mxu0 0.0
    %2437 = vmatpush1.msra.mxu0 0.0
    %2438 = vmatprep.subr.mxu0 0.0
    %2439 = vmatpush1.msra.mxu0 0.0
    %2440 = vmatprep.mubr.f32.mxu0 0.0
    %2441 = vmatmul.mubr.f32.gmra.mrb[0].mxu0 %v2374
    %v2442 = vpop.f32.mrb[0].mxu0
    %v2443 = vadd.f32 0.0, %v2442
    %v2444 = vpop.f32.mrb[0].mxu0
    %2445 = vdwg.mxu0
    %v2447 = vsel %vm328, %v69, 0
    %2449 = vmatprep.subr.mxu0 0.0
    %2450 = vmatpush1.msra.mxu0 %v304
    %2451 = vmatprep.subr.mxu0 0.0
    %2452 = vmatpush1.msra.mxu0 %v305
    %2453 = vmatprep.subr.mxu0 0.0
    %2454 = vmatpush1.msra.mxu0 %v306
    %2455 = vmatprep.subr.mxu0 0.0
    %2456 = vmatpush1.msra.mxu0 %v307
    %2457 = vmatprep.subr.mxu0 0.0
    %2458 = vmatpush1.msra.mxu0 %v308
    %2459 = vmatprep.subr.mxu0 0.0
    %2460 = vmatpush1.msra.mxu0 %v309
    %2461 = vmatprep.subr.mxu0 0.0
    %2462 = vmatpush1.msra.mxu0 %v310
    %2463 = vmatprep.subr.mxu0 0.0
    %2464 = vmatpush1.msra.mxu0 %v311
    %2465 = vmatprep.subr.mxu0 0.0
    %2466 = vmatpush1.msra.mxu0 0.0
    %2467 = vmatprep.subr.mxu0 0.0
    %2468 = vmatpush1.msra.mxu0 0.0
    %2469 = vmatprep.subr.mxu0 0.0
    %2470 = vmatpush1.msra.mxu0 0.0
    %2471 = vmatprep.subr.mxu0 0.0
    %2472 = vmatpush1.msra.mxu0 0.0
    %2473 = vmatprep.subr.mxu0 0.0
    %2474 = vmatpush1.msra.mxu0 0.0
    %2475 = vmatprep.subr.mxu0 0.0
    %2476 = vmatpush1.msra.mxu0 0.0
    %2477 = vmatprep.subr.mxu0 0.0
    %2478 = vmatpush1.msra.mxu0 0.0
    %2479 = vmatprep.subr.mxu0 0.0
    %2480 = vmatpush1.msra.mxu0 0.0
    %2481 = vmatprep.subr.mxu0 0.0
    %2482 = vmatpush1.msra.mxu0 0.0
    %2483 = vmatprep.subr.mxu0 0.0
    %2484 = vmatpush1.msra.mxu0 0.0
    %2485 = vmatprep.subr.mxu0 0.0
    %2486 = vmatpush1.msra.mxu0 0.0
    %2487 = vmatprep.subr.mxu0 0.0
    %2488 = vmatpush1.msra.mxu0 0.0
    %2489 = vmatprep.subr.mxu0 0.0
    %2490 = vmatpush1.msra.mxu0 0.0
    %2491 = vmatprep.subr.mxu0 0.0
    %2492 = vmatpush1.msra.mxu0 0.0
    %2493 = vmatprep.subr.mxu0 0.0
    %2494 = vmatpush1.msra.mxu0 0.0
    %2495 = vmatprep.subr.mxu0 0.0
    %2496 = vmatpush1.msra.mxu0 0.0
    %2497 = vmatprep.subr.mxu0 0.0
    %2498 = vmatpush1.msra.mxu0 0.0
    %2499 = vmatprep.subr.mxu0 0.0
    %2500 = vmatpush1.msra.mxu0 0.0
    %2501 = vmatprep.subr.mxu0 0.0
    %2502 = vmatpush1.msra.mxu0 0.0
    %2503 = vmatprep.subr.mxu0 0.0
    %2504 = vmatpush1.msra.mxu0 0.0
    %2505 = vmatprep.subr.mxu0 0.0
    %2506 = vmatpush1.msra.mxu0 0.0
    %2507 = vmatprep.subr.mxu0 0.0
    %2508 = vmatpush1.msra.mxu0 0.0
    %2509 = vmatprep.subr.mxu0 0.0
    %2510 = vmatpush1.msra.mxu0 0.0
    %2511 = vmatprep.subr.mxu0 0.0
    %2512 = vmatpush1.msra.mxu0 0.0
    %2513 = vmatprep.mubr.f32.mxu0 0.0
    %2514 = vmatmul.mubr.f32.gmra.mrb[0].mxu0 %v2447
    %v2515 = vpop.f32.mrb[0].mxu0
    %v2516 = vadd.f32 0.0, %v2515
    %v2517 = vpop.f32.mrb[0].mxu0
    %2518 = vdwg.mxu0
    %v2520 = vsel %vm328, %v70, 0
    %2522 = vmatprep.subr.mxu0 0.0
    %2523 = vmatpush1.msra.mxu0 %v312
    %2524 = vmatprep.subr.mxu0 0.0
    %2525 = vmatpush1.msra.mxu0 %v313
    %2526 = vmatprep.subr.mxu0 0.0
    %2527 = vmatpush1.msra.mxu0 %v314
    %2528 = vmatprep.subr.mxu0 0.0
    %2529 = vmatpush1.msra.mxu0 %v315
    %2530 = vmatprep.subr.mxu0 0.0
    %2531 = vmatpush1.msra.mxu0 %v316
    %2532 = vmatprep.subr.mxu0 0.0
    %2533 = vmatpush1.msra.mxu0 %v317
    %2534 = vmatprep.subr.mxu0 0.0
    %2535 = vmatpush1.msra.mxu0 %v318
    %2536 = vmatprep.subr.mxu0 0.0
    %2537 = vmatpush1.msra.mxu0 %v319
    %2538 = vmatprep.subr.mxu0 0.0
    %2539 = vmatpush1.msra.mxu0 0.0
    %2540 = vmatprep.subr.mxu0 0.0
    %2541 = vmatpush1.msra.mxu0 0.0
    %2542 = vmatprep.subr.mxu0 0.0
    %2543 = vmatpush1.msra.mxu0 0.0
    %2544 = vmatprep.subr.mxu0 0.0
    %2545 = vmatpush1.msra.mxu0 0.0
    %2546 = vmatprep.subr.mxu0 0.0
    %2547 = vmatpush1.msra.mxu0 0.0
    %2548 = vmatprep.subr.mxu0 0.0
    %2549 = vmatpush1.msra.mxu0 0.0
    %2550 = vmatprep.subr.mxu0 0.0
    %2551 = vmatpush1.msra.mxu0 0.0
    %2552 = vmatprep.subr.mxu0 0.0
    %2553 = vmatpush1.msra.mxu0 0.0
    %2554 = vmatprep.subr.mxu0 0.0
    %2555 = vmatpush1.msra.mxu0 0.0
    %2556 = vmatprep.subr.mxu0 0.0
    %2557 = vmatpush1.msra.mxu0 0.0
    %2558 = vmatprep.subr.mxu0 0.0
    %2559 = vmatpush1.msra.mxu0 0.0
    %2560 = vmatprep.subr.mxu0 0.0
    %2561 = vmatpush1.msra.mxu0 0.0
    %2562 = vmatprep.subr.mxu0 0.0
    %2563 = vmatpush1.msra.mxu0 0.0
    %2564 = vmatprep.subr.mxu0 0.0
    %2565 = vmatpush1.msra.mxu0 0.0
    %2566 = vmatprep.subr.mxu0 0.0
    %2567 = vmatpush1.msra.mxu0 0.0
    %2568 = vmatprep.subr.mxu0 0.0
    %2569 = vmatpush1.msra.mxu0 0.0
    %2570 = vmatprep.subr.mxu0 0.0
    %2571 = vmatpush1.msra.mxu0 0.0
    %2572 = vmatprep.subr.mxu0 0.0
    %2573 = vmatpush1.msra.mxu0 0.0
    %2574 = vmatprep.subr.mxu0 0.0
    %2575 = vmatpush1.msra.mxu0 0.0
    %2576 = vmatprep.subr.mxu0 0.0
    %2577 = vmatpush1.msra.mxu0 0.0
    %2578 = vmatprep.subr.mxu0 0.0
    %2579 = vmatpush1.msra.mxu0 0.0
    %2580 = vmatprep.subr.mxu0 0.0
    %2581 = vmatpush1.msra.mxu0 0.0
    %2582 = vmatprep.subr.mxu0 0.0
    %2583 = vmatpush1.msra.mxu0 0.0
    %2584 = vmatprep.subr.mxu0 0.0
    %2585 = vmatpush1.msra.mxu0 0.0
    %2586 = vmatprep.mubr.f32.mxu0 0.0
    %2587 = vmatmul.mubr.f32.gmra.mrb[0].mxu0 %v2520
    %v2588 = vpop.f32.mrb[0].mxu0
    %v2589 = vadd.f32 0.0, %v2588
    %v2590 = vpop.f32.mrb[0].mxu0
    %2591 = vdwg.mxu0
    %v2593 = vsel %vm328, %v71, 0
    %2595 = vmatprep.subr.mxu0 0.0
    %2596 = vmatpush1.msra.mxu0 %v320
    %2597 = vmatprep.subr.mxu0 0.0
    %2598 = vmatpush1.msra.mxu0 %v321
    %2599 = vmatprep.subr.mxu0 0.0
    %2600 = vmatpush1.msra.mxu0 %v322
    %2601 = vmatprep.subr.mxu0 0.0
    %2602 = vmatpush1.msra.mxu0 %v323
    %2603 = vmatprep.subr.mxu0 0.0
    %2604 = vmatpush1.msra.mxu0 %v324
    %2605 = vmatprep.subr.mxu0 0.0
    %2606 = vmatpush1.msra.mxu0 %v325
    %2607 = vmatprep.subr.mxu0 0.0
    %2608 = vmatpush1.msra.mxu0 %v326
    %2609 = vmatprep.subr.mxu0 0.0
    %2610 = vmatpush1.msra.mxu0 %v327
    %2611 = vmatprep.subr.mxu0 0.0
    %2612 = vmatpush1.msra.mxu0 0.0
    %2613 = vmatprep.subr.mxu0 0.0
    %2614 = vmatpush1.msra.mxu0 0.0
    %2615 = vmatprep.subr.mxu0 0.0
    %2616 = vmatpush1.msra.mxu0 0.0
    %2617 = vmatprep.subr.mxu0 0.0
    %2618 = vmatpush1.msra.mxu0 0.0
    %2619 = vmatprep.subr.mxu0 0.0
    %2620 = vmatpush1.msra.mxu0 0.0
    %2621 = vmatprep.subr.mxu0 0.0
    %2622 = vmatpush1.msra.mxu0 0.0
    %2623 = vmatprep.subr.mxu0 0.0
    %2624 = vmatpush1.msra.mxu0 0.0
    %2625 = vmatprep.subr.mxu0 0.0
    %2626 = vmatpush1.msra.mxu0 0.0
    %2627 = vmatprep.subr.mxu0 0.0
    %2628 = vmatpush1.msra.mxu0 0.0
    %2629 = vmatprep.subr.mxu0 0.0
    %2630 = vmatpush1.msra.mxu0 0.0
    %2631 = vmatprep.subr.mxu0 0.0
    %2632 = vmatpush1.msra.mxu0 0.0
    %2633 = vmatprep.subr.mxu0 0.0
    %2634 = vmatpush1.msra.mxu0 0.0
    %2635 = vmatprep.subr.mxu0 0.0
    %2636 = vmatpush1.msra.mxu0 0.0
    %2637 = vmatprep.subr.mxu0 0.0
    %2638 = vmatpush1.msra.mxu0 0.0
    %2639 = vmatprep.subr.mxu0 0.0
    %2640 = vmatpush1.msra.mxu0 0.0
    %2641 = vmatprep.subr.mxu0 0.0
    %2642 = vmatpush1.msra.mxu0 0.0
    %2643 = vmatprep.subr.mxu0 0.0
    %2644 = vmatpush1.msra.mxu0 0.0
    %2645 = vmatprep.subr.mxu0 0.0
    %2646 = vmatpush1.msra.mxu0 0.0
    %2647 = vmatprep.subr.mxu0 0.0
    %2648 = vmatpush1.msra.mxu0 0.0
    %2649 = vmatprep.subr.mxu0 0.0
    %2650 = vmatpush1.msra.mxu0 0.0
    %2651 = vmatprep.subr.mxu0 0.0
    %2652 = vmatpush1.msra.mxu0 0.0
    %2653 = vmatprep.subr.mxu0 0.0
    %2654 = vmatpush1.msra.mxu0 0.0
    %2655 = vmatprep.subr.mxu0 0.0
    %2656 = vmatpush1.msra.mxu0 0.0
    %2657 = vmatprep.subr.mxu0 0.0
    %2658 = vmatpush1.msra.mxu0 0.0
    %2659 = vmatprep.mubr.f32.mxu0 0.0
    %2660 = vmatmul.mubr.f32.gmra.mrb[0].mxu0 %v2593
    %v2661 = vpop.f32.mrb[0].mxu0
    %v2662 = vadd.f32 0.0, %v2661
    %v2663 = vpop.f32.mrb[0].mxu0
    %2664 = vdwg.mxu0
    %vm2665 = vcmask 517120
    %2666 = vst.msk [vmem:[#allocation7] sm:$0x3] %vm2665, %v399
    %2667 = vst.msk [vmem:[#allocation7 + $0x2] sm:$0x3] %vm2665, %v472
    %2668 = vst.msk [vmem:[#allocation7 + $0x4] sm:$0x3] %vm2665, %v545
    %2669 = vst.msk [vmem:[#allocation7 + $0x6] sm:$0x3] %vm2665, %v618
    %2670 = vst.msk [vmem:[#allocation7 + $0x8] sm:$0x3] %vm2665, %v691
    %2671 = vst.msk [vmem:[#allocation7 + $0xa] sm:$0x3] %vm2665, %v764
    %2672 = vst.msk [vmem:[#allocation7 + $0xc] sm:$0x3] %vm2665, %v837
    %2673 = vst.msk [vmem:[#allocation7 + $0xe] sm:$0x3] %vm2665, %v910
    %2674 = vst.msk [vmem:[#allocation7 + $0x10] sm:$0x3] %vm2665, %v983
    %2675 = vst.msk [vmem:[#allocation7 + $0x12] sm:$0x3] %vm2665, %v1056
    %2676 = vst.msk [vmem:[#allocation7 + $0x14] sm:$0x3] %vm2665, %v1129
    %2677 = vst.msk [vmem:[#allocation7 + $0x16] sm:$0x3] %vm2665, %v1202
    %2678 = vst.msk [vmem:[#allocation7 + $0x18] sm:$0x3] %vm2665, %v1275
    %2679 = vst.msk [vmem:[#allocation7 + $0x1a] sm:$0x3] %vm2665, %v1348
    %2680 = vst.msk [vmem:[#allocation7 + $0x1c] sm:$0x3] %vm2665, %v1421
    %2681 = vst.msk [vmem:[#allocation7 + $0x1e] sm:$0x3] %vm2665, %v1494
    %2682 = vst.msk [vmem:[#allocation7 + $0x20] sm:$0x3] %vm2665, %v1567
    %2683 = vst.msk [vmem:[#allocation7 + $0x22] sm:$0x3] %vm2665, %v1640
    %2684 = vst.msk [vmem:[#allocation7 + $0x24] sm:$0x3] %vm2665, %v1713
    %2685 = vst.msk [vmem:[#allocation7 + $0x26] sm:$0x3] %vm2665, %v1786
    %2686 = vst.msk [vmem:[#allocation7 + $0x28] sm:$0x3] %vm2665, %v1859
    %2687 = vst.msk [vmem:[#allocation7 + $0x2a] sm:$0x3] %vm2665, %v1932
    %2688 = vst.msk [vmem:[#allocation7 + $0x2c] sm:$0x3] %vm2665, %v2005
    %2689 = vst.msk [vmem:[#allocation7 + $0x2e] sm:$0x3] %vm2665, %v2078
    %2690 = vst.msk [vmem:[#allocation7 + $0x30] sm:$0x3] %vm2665, %v2151
    %2691 = vst.msk [vmem:[#allocation7 + $0x32] sm:$0x3] %vm2665, %v2224
    %2692 = vst.msk [vmem:[#allocation7 + $0x34] sm:$0x3] %vm2665, %v2297
    %2693 = vst.msk [vmem:[#allocation7 + $0x36] sm:$0x3] %vm2665, %v2370
    %2694 = vst.msk [vmem:[#allocation7 + $0x38] sm:$0x3] %vm2665, %v2443
    %2695 = vst.msk [vmem:[#allocation7 + $0x3a] sm:$0x3] %vm2665, %v2516
    %2696 = vst.msk [vmem:[#allocation7 + $0x3c] sm:$0x3] %vm2665, %v2589
    %2697 = vst.msk [vmem:[#allocation7 + $0x3e] sm:$0x3] %vm2665, %v2662
    // Predicated region
    $region18: #{fno2d_forward.9} parent=1 // pred_check
      _
    $region19: #{fno2d_forward.9} parent=1 // pred_check_branch
      %2699 = sbr.rel (0) target = $region21
    $region20: #{fno2d_forward.9} parent=1 // pred_region
      %s2701 = ssub.s32 1024, 1024
      %2702 = vsyncadd [#allocation4], %s2701
      %s2703 = sshll.u32 [#allocation7], 4
      %s2704 = int_to_ptr.vmem [resolvable:$true] %s2703
      %2709 = dma.vmem_to_hbm [thread:$0]  %s2704, 1024, %s2, [#allocation4], 32, 32, 2
    $region21: #{fno2d_forward.9} parent=1 // pred_fallthru
      _
    // Predicated region
    $region22: #{fno2d_forward.9} parent=1 // pred_check
      _
    $region23: #{fno2d_forward.9} parent=1 // pred_check_branch
      %2711 = sbr.rel (0) target = $region25
    $region24: #{fno2d_forward.9} parent=1 // pred_region
      %2712 = dma.done [#allocation4], 1024
    $region25: #{fno2d_forward.9} parent=1 // pred_fallthru
      _
    %2713 = vsyncpa [#allocation3], 1
    %2714 = vsyncpa [#allocation6], 1
    %2715 = vsyncpa [#allocation4], 1

// kernel: reverse.6
$region0: #{reverse.6}
  #allocation0 [shape = 's32[1]{0}', space=sflag, size = 0x4, scoped, tag = 'scoped memory for reverse.6']
  %s0 = inlined_call_operand.vmem [shape: f32[2,32,16,7], index: 0, kind: input, shape index: {}]
  %s1 = inlined_call_operand.vmem [shape: f32[2,32,16,7], index: 1, kind: output, shape index: {}]
  %s2 = scalar_lea.vmem %s0, 96
  %v3 = vld [vmem:[%s2] sm:$0xff]
  %4 = vst [vmem:[%s1] sm:$0xff] %v3
  %s5 = scalar_lea.vmem %s0, 208
  %v6 = vld [vmem:[%s5] sm:$0xff]
  %s7 = scalar_lea.vmem %s1, 112
  %8 = vst [vmem:[%s7] sm:$0xff] %v6
  %s9 = scalar_lea.vmem %s0, 80
  %v10 = vld [vmem:[%s9] sm:$0xff]
  %s11 = scalar_lea.vmem %s1, 16
  %12 = vst [vmem:[%s11] sm:$0xff] %v10
  %s13 = scalar_lea.vmem %s0, 192
  %v14 = vld [vmem:[%s13] sm:$0xff]
  %s15 = scalar_lea.vmem %s1, 128
  %16 = vst [vmem:[%s15] sm:$0xff] %v14
  %s17 = scalar_lea.vmem %s0, 64
  %v18 = vld [vmem:[%s17] sm:$0xff]
  %s19 = scalar_lea.vmem %s1, 32
  %20 = vst [vmem:[%s19] sm:$0xff] %v18
  %s21 = scalar_lea.vmem %s0, 176
  %v22 = vld [vmem:[%s21] sm:$0xff]
  %s23 = scalar_lea.vmem %s1, 144
  %24 = vst [vmem:[%s23] sm:$0xff] %v22
  %s25 = scalar_lea.vmem %s0, 48
  %v26 = vld [vmem:[%s25] sm:$0xff]
  %s27 = scalar_lea.vmem %s1, 48
  %28 = vst [vmem:[%s27] sm:$0xff] %v26
  %s29 = scalar_lea.vmem %s0, 160
  %v30 = vld [vmem:[%s29] sm:$0xff]
  %s31 = scalar_lea.vmem %s1, 160
  %32 = vst [vmem:[%s31] sm:$0xff] %v30
  %s33 = scalar_lea.vmem %s0, 32
  %v34 = vld [vmem:[%s33] sm:$0xff]
  %s35 = scalar_lea.vmem %s1, 64
  %36 = vst [vmem:[%s35] sm:$0xff] %v34
  %s37 = scalar_lea.vmem %s0, 144
  %v38 = vld [vmem:[%s37] sm:$0xff]
  %s39 = scalar_lea.vmem %s1, 176
  %40 = vst [vmem:[%s39] sm:$0xff] %v38
  %s41 = scalar_lea.vmem %s0, 16
  %v42 = vld [vmem:[%s41] sm:$0xff]
  %s43 = scalar_lea.vmem %s1, 80
  %44 = vst [vmem:[%s43] sm:$0xff] %v42
  %s45 = scalar_lea.vmem %s0, 128
  %v46 = vld [vmem:[%s45] sm:$0xff]
  %s47 = scalar_lea.vmem %s1, 192
  %48 = vst [vmem:[%s47] sm:$0xff] %v46
  %v49 = vld [vmem:[%s0] sm:$0xff]
  %s50 = scalar_lea.vmem %s1, 96
  %51 = vst [vmem:[%s50] sm:$0xff] %v49
  %s52 = scalar_lea.vmem %s0, 112
  %v53 = vld [vmem:[%s52] sm:$0xff]
  %s54 = scalar_lea.vmem %s1, 208
  %55 = vst [vmem:[%s54] sm:$0xff] %v53
  %s56 = scalar_lea.vmem %s0, 104
  %v57 = vld [vmem:[%s56] sm:$0xff]
  %s58 = scalar_lea.vmem %s1, 8
  %59 = vst [vmem:[%s58] sm:$0xff] %v57
  %s60 = scalar_lea.vmem %s0, 216
  %v61 = vld [vmem:[%s60] sm:$0xff]
  %s62 = scalar_lea.vmem %s1, 120
  %63 = vst [vmem:[%s62] sm:$0xff] %v61
  %s64 = scalar_lea.vmem %s0, 88
  %v65 = vld [vmem:[%s64] sm:$0xff]
  %s66 = scalar_lea.vmem %s1, 24
  %67 = vst [vmem:[%s66] sm:$0xff] %v65
  %s68 = scalar_lea.vmem %s0, 200
  %v69 = vld [vmem:[%s68] sm:$0xff]
  %s70 = scalar_lea.vmem %s1, 136
  %71 = vst [vmem:[%s70] sm:$0xff] %v69
  %s72 = scalar_lea.vmem %s0, 72
  %v73 = vld [vmem:[%s72] sm:$0xff]
  %s74 = scalar_lea.vmem %s1, 40
  %75 = vst [vmem:[%s74] sm:$0xff] %v73
  %s76 = scalar_lea.vmem %s0, 184
  %v77 = vld [vmem:[%s76] sm:$0xff]
  %s78 = scalar_lea.vmem %s1, 152
  %79 = vst [vmem:[%s78] sm:$0xff] %v77
  %s80 = scalar_lea.vmem %s0, 56
  %v81 = vld [vmem:[%s80] sm:$0xff]
  %s82 = scalar_lea.vmem %s1, 56
  %83 = vst [vmem:[%s82] sm:$0xff] %v81
  %s84 = scalar_lea.vmem %s0, 168
  %v85 = vld [vmem:[%s84] sm:$0xff]
  %s86 = scalar_lea.vmem %s1, 168
  %87 = vst [vmem:[%s86] sm:$0xff] %v85
  %s88 = scalar_lea.vmem %s0, 40
  %v89 = vld [vmem:[%s88] sm:$0xff]
  %s90 = scalar_lea.vmem %s1, 72
  %91 = vst [vmem:[%s90] sm:$0xff] %v89
  %s92 = scalar_lea.vmem %s0, 152
  %v93 = vld [vmem:[%s92] sm:$0xff]
  %s94 = scalar_lea.vmem %s1, 184
  %95 = vst [vmem:[%s94] sm:$0xff] %v93
  %s96 = scalar_lea.vmem %s0, 24
  %v97 = vld [vmem:[%s96] sm:$0xff]
  %s98 = scalar_lea.vmem %s1, 88
  %99 = vst [vmem:[%s98] sm:$0xff] %v97
  %s100 = scalar_lea.vmem %s0, 136
  %v101 = vld [vmem:[%s100] sm:$0xff]
  %s102 = scalar_lea.vmem %s1, 200
  %103 = vst [vmem:[%s102] sm:$0xff] %v101
  %s104 = scalar_lea.vmem %s0, 8
  %v105 = vld [vmem:[%s104] sm:$0xff]
  %s106 = scalar_lea.vmem %s1, 104
  %107 = vst [vmem:[%s106] sm:$0xff] %v105
  %s108 = scalar_lea.vmem %s0, 120
  %v109 = vld [vmem:[%s108] sm:$0xff]
  %s110 = scalar_lea.vmem %s1, 216
  %111 = vst [vmem:[%s110] sm:$0xff] %v109

// kernel: fno2d_forward.15
$region0: #{fno2d_forward.15}
  #allocation0 [shape = 'u32[]', space=smem, size = 0x4, offset = 0x4, fixed_abs, tag = 'smem constant byte address 0x4 - core index']
  #allocation1 [shape = 'u32[144,128]{1,0:T(1,128)}', space=vmem, size = 0x12000, scoped, tag = 'internal scratch']
  %s0 = inlined_call_operand.hbm [shape: f32[512,32], index: 0, kind: input, shape index: {}]
  %s1 = inlined_call_operand.hbm [shape: f32[32,64], index: 1, kind: input, shape index: {}]
  %s2 = inlined_call_operand.hbm [shape: f32[1,64], index: 2, kind: input, shape index: {}]
  %s3 = inlined_call_operand.hbm [shape: f32[64,3], index: 3, kind: input, shape index: {}]
  %s4 = inlined_call_operand.hbm [shape: f32[1,3], index: 4, kind: input, shape index: {}]
  %s5 = inlined_call_operand.hbm [shape: f32[512,3], index: 5, kind: output, shape index: {}]
  %s6 = sld [smem:[#allocation0]]
  $region50: #{fno2d_forward.15} parent=0
    _
  %s8 = ssub.s32 1, %s6
  %s9 = scalar_select 0, %s8, %s6
  $region1: #{fno2d_forward.15} parent=0
    #allocation2 [shape = 'u8[262144]{0}', space=vmem, size = 0x40000, scoped, tag = 'input window, operand 0, single buffered']
    #allocation3 [shape = 's32[1]{0}', space=sflag, size = 0x4, scoped, tag = 'scoped memory for fno2d_forward.15']
    #allocation4 [shape = 's32[1]{0}', space=sflag, size = 0x4, scoped, tag = 'scoped memory for fno2d_forward.15']
    #allocation5 [shape = 'u8[16384]{0}', space=vmem, size = 0x4000, scoped, tag = 'input window, operand 1, single buffered']
    #allocation6 [shape = 's32[1]{0}', space=sflag, size = 0x4, scoped, tag = 'scoped memory for fno2d_forward.15']
    #allocation7 [shape = 'u8[512]{0}', space=vmem, size = 0x400, scoped, tag = 'input window, operand 2, single buffered']
    #allocation8 [shape = 'u8[32768]{0}', space=vmem, size = 0x8000, scoped, tag = 'input window, operand 3, single buffered']
    #allocation9 [shape = 's32[1]{0}', space=sflag, size = 0x4, scoped, tag = 'scoped memory for fno2d_forward.15']
    #allocation10 [shape = 'u8[512]{0}', space=vmem, size = 0x400, scoped, tag = 'input window, operand 4, single buffered']
    #allocation11 [shape = 'u8[262144]{0}', space=vmem, size = 0x40000, scoped, tag = 'output window, operand 0, single buffered']
    %10 = vsyncpa [#allocation3], 0
    %11 = vsyncpa [#allocation6], 0
    %12 = vsyncpa [#allocation9], 0
    %13 = vsyncpa [#allocation4], 0
    // Predicated region
    $region2: #{fno2d_forward.15} parent=1 // pred_check
      _
    $region3: #{fno2d_forward.15} parent=1 // pred_check_branch
      %15 = sbr.rel (0) target = $region5
    $region4: #{fno2d_forward.15} parent=1 // pred_region
      %s17 = ssub.s32 8192, 8192
      %18 = vsyncadd [#allocation3], %s17
      %s19 = sshll.u32 [#allocation2], 4
      %s20 = int_to_ptr.vmem [resolvable:$true] %s19
      %25 = dma.hbm_to_vmem [thread:$0]  %s0, 8192, %s20, [#allocation3], 128, 128, 8
    $region5: #{fno2d_forward.15} parent=1 // pred_fallthru
      _
    // Predicated region
    $region6: #{fno2d_forward.15} parent=1 // pred_check
      _
    $region7: #{fno2d_forward.15} parent=1 // pred_check_branch
      %27 = sbr.rel (0) target = $region9
    $region8: #{fno2d_forward.15} parent=1 // pred_region
      %s29 = ssub.s32 512, 512
      %30 = vsyncadd [#allocation6], %s29
      %s31 = sshll.u32 [#allocation5], 4
      %s32 = int_to_ptr.vmem [resolvable:$true] %s31
      %37 = dma.hbm_to_vmem [thread:$0]  %s1, 512, %s32, [#allocation6], 128, 128, 8
    $region9: #{fno2d_forward.15} parent=1 // pred_fallthru
      _
    // Predicated region
    $region10: #{fno2d_forward.15} parent=1 // pred_check
      _
    $region11: #{fno2d_forward.15} parent=1 // pred_check_branch
      %39 = sbr.rel (0) target = $region13
    $region12: #{fno2d_forward.15} parent=1 // pred_region
      %s41 = ssub.s32 16, 16
      %42 = vsyncadd [#allocation6], %s41
      %s44 = sshll.u32 [#allocation7], 4
      %s45 = int_to_ptr.vmem [resolvable:$true] %s44
      %47 = dma.hbm_to_vmem [thread:$0]  %s2, 16, %s45, [#allocation6]
    $region13: #{fno2d_forward.15} parent=1 // pred_fallthru
      _
    // Predicated region
    $region14: #{fno2d_forward.15} parent=1 // pred_check
      _
    $region15: #{fno2d_forward.15} parent=1 // pred_check_branch
      %49 = sbr.rel (0) target = $region17
    $region16: #{fno2d_forward.15} parent=1 // pred_region
      %s51 = ssub.s32 1024, 1024
      %52 = vsyncadd [#allocation9], %s51
      %s53 = sshll.u32 [#allocation8], 4
      %s54 = int_to_ptr.vmem [resolvable:$true] %s53
      %59 = dma.hbm_to_vmem [thread:$0]  %s3, 1024, %s54, [#allocation9], 128, 128, 8
    $region17: #{fno2d_forward.15} parent=1 // pred_fallthru
      _
    // Predicated region
    $region18: #{fno2d_forward.15} parent=1 // pred_check
      _
    $region19: #{fno2d_forward.15} parent=1 // pred_check_branch
      %61 = sbr.rel (0) target = $region21
    $region20: #{fno2d_forward.15} parent=1 // pred_region
      %s63 = ssub.s32 16, 16
      %64 = vsyncadd [#allocation9], %s63
      %s66 = sshll.u32 [#allocation10], 4
      %s67 = int_to_ptr.vmem [resolvable:$true] %s66
      %69 = dma.hbm_to_vmem [thread:$0]  %s4, 16, %s67, [#allocation9]
    $region21: #{fno2d_forward.15} parent=1 // pred_fallthru
      _
    // Predicated region
    $region22: #{fno2d_forward.15} parent=1 // pred_check
      _
    $region23: #{fno2d_forward.15} parent=1 // pred_check_branch
      %71 = sbr.rel (0) target = $region25
    $region24: #{fno2d_forward.15} parent=1 // pred_region
      %72 = dma.done [#allocation3], 8192
    $region25: #{fno2d_forward.15} parent=1 // pred_fallthru
      _
    // Predicated region
    $region26: #{fno2d_forward.15} parent=1 // pred_check
      _
    $region27: #{fno2d_forward.15} parent=1 // pred_check_branch
      %74 = sbr.rel (0) target = $region29
    $region28: #{fno2d_forward.15} parent=1 // pred_region
      %75 = dma.done [#allocation6], 512
    $region29: #{fno2d_forward.15} parent=1 // pred_fallthru
      _
    // Predicated region
    $region30: #{fno2d_forward.15} parent=1 // pred_check
      _
    $region31: #{fno2d_forward.15} parent=1 // pred_check_branch
      %77 = sbr.rel (0) target = $region33
    $region32: #{fno2d_forward.15} parent=1 // pred_region
      %78 = dma.done [#allocation6], 16
    $region33: #{fno2d_forward.15} parent=1 // pred_fallthru
      _
    // Predicated region
    $region34: #{fno2d_forward.15} parent=1 // pred_check
      _
    $region35: #{fno2d_forward.15} parent=1 // pred_check_branch
      %80 = sbr.rel (0) target = $region37
    $region36: #{fno2d_forward.15} parent=1 // pred_region
      %81 = dma.done [#allocation9], 1024
    $region37: #{fno2d_forward.15} parent=1 // pred_fallthru
      _
    // Predicated region
    $region38: #{fno2d_forward.15} parent=1 // pred_check
      _
    $region39: #{fno2d_forward.15} parent=1 // pred_check_branch
      %83 = sbr.rel (0) target = $region41
    $region40: #{fno2d_forward.15} parent=1 // pred_region
      %84 = dma.done [#allocation9], 16
    $region41: #{fno2d_forward.15} parent=1 // pred_fallthru
      _
    %v85 = vld [vmem:[#allocation2] sm:$0xff]
    %v86 = vld [vmem:[#allocation2 + $0x8] sm:$0xff]
    %v87 = vld [vmem:[#allocation2 + $0x10] sm:$0xff]
    %v88 = vld [vmem:[#allocation2 + $0x18] sm:$0xff]
    %v89 = vld [vmem:[#allocation2 + $0x20] sm:$0xff]
    %v90 = vld [vmem:[#allocation2 + $0x28] sm:$0xff]
    %v91 = vld [vmem:[#allocation2 + $0x30] sm:$0xff]
    %v92 = vld [vmem:[#allocation2 + $0x38] sm:$0xff]
    %v93 = vld [vmem:[#allocation2 + $0x40] sm:$0xff]
    %v94 = vld [vmem:[#allocation2 + $0x48] sm:$0xff]
    %v95 = vld [vmem:[#allocation2 + $0x50] sm:$0xff]
    %v96 = vld [vmem:[#allocation2 + $0x58] sm:$0xff]
    %v97 = vld [vmem:[#allocation2 + $0x60] sm:$0xff]
    %v98 = vld [vmem:[#allocation2 + $0x68] sm:$0xff]
    %v99 = vld [vmem:[#allocation2 + $0x70] sm:$0xff]
    %v100 = vld [vmem:[#allocation2 + $0x78] sm:$0xff]
    %v101 = vld [vmem:[#allocation2 + $0x80] sm:$0xff]
    %v102 = vld [vmem:[#allocation2 + $0x88] sm:$0xff]
    %v103 = vld [vmem:[#allocation2 + $0x90] sm:$0xff]
    %v104 = vld [vmem:[#allocation2 + $0x98] sm:$0xff]
    %v105 = vld [vmem:[#allocation2 + $0xa0] sm:$0xff]
    %v106 = vld [vmem:[#allocation2 + $0xa8] sm:$0xff]
    %v107 = vld [vmem:[#allocation2 + $0xb0] sm:$0xff]
    %v108 = vld [vmem:[#allocation2 + $0xb8] sm:$0xff]
    %v109 = vld [vmem:[#allocation2 + $0xc0] sm:$0xff]
    %v110 = vld [vmem:[#allocation2 + $0xc8] sm:$0xff]
    %v111 = vld [vmem:[#allocation2 + $0xd0] sm:$0xff]
    %v112 = vld [vmem:[#allocation2 + $0xd8] sm:$0xff]
    %v113 = vld [vmem:[#allocation2 + $0xe0] sm:$0xff]
    %v114 = vld [vmem:[#allocation2 + $0xe8] sm:$0xff]
    %v115 = vld [vmem:[#allocation2 + $0xf0] sm:$0xff]
    %v116 = vld [vmem:[#allocation2 + $0xf8] sm:$0xff]
    %v117 = vld [vmem:[#allocation2 + $0x100] sm:$0xff]
    %v118 = vld [vmem:[#allocation2 + $0x108] sm:$0xff]
    %v119 = vld [vmem:[#allocation2 + $0x110] sm:$0xff]
    %v120 = vld [vmem:[#allocation2 + $0x118] sm:$0xff]
    %v121 = vld [vmem:[#allocation2 + $0x120] sm:$0xff]
    %v122 = vld [vmem:[#allocation2 + $0x128] sm:$0xff]
    %v123 = vld [vmem:[#allocation2 + $0x130] sm:$0xff]
    %v124 = vld [vmem:[#allocation2 + $0x138] sm:$0xff]
    %v125 = vld [vmem:[#allocation2 + $0x140] sm:$0xff]
    %v126 = vld [vmem:[#allocation2 + $0x148] sm:$0xff]
    %v127 = vld [vmem:[#allocation2 + $0x150] sm:$0xff]
    %v128 = vld [vmem:[#allocation2 + $0x158] sm:$0xff]
    %v129 = vld [vmem:[#allocation2 + $0x160] sm:$0xff]
    %v130 = vld [vmem:[#allocation2 + $0x168] sm:$0xff]
    %v131 = vld [vmem:[#allocation2 + $0x170] sm:$0xff]
    %v132 = vld [vmem:[#allocation2 + $0x178] sm:$0xff]
    %v133 = vld [vmem:[#allocation2 + $0x180] sm:$0xff]
    %v134 = vld [vmem:[#allocation2 + $0x188] sm:$0xff]
    %v135 = vld [vmem:[#allocation2 + $0x190] sm:$0xff]
    %v136 = vld [vmem:[#allocation2 + $0x198] sm:$0xff]
    %v137 = vld [vmem:[#allocation2 + $0x1a0] sm:$0xff]
    %v138 = vld [vmem:[#allocation2 + $0x1a8] sm:$0xff]
    %v139 = vld [vmem:[#allocation2 + $0x1b0] sm:$0xff]
    %v140 = vld [vmem:[#allocation2 + $0x1b8] sm:$0xff]
    %v141 = vld [vmem:[#allocation2 + $0x1c0] sm:$0xff]
    %v142 = vld [vmem:[#allocation2 + $0x1c8] sm:$0xff]
    %v143 = vld [vmem:[#allocation2 + $0x1d0] sm:$0xff]
    %v144 = vld [vmem:[#allocation2 + $0x1d8] sm:$0xff]
    %v145 = vld [vmem:[#allocation2 + $0x1e0] sm:$0xff]
    %v146 = vld [vmem:[#allocation2 + $0x1e8] sm:$0xff]
    %v147 = vld [vmem:[#allocation2 + $0x1f0] sm:$0xff]
    %v148 = vld [vmem:[#allocation2 + $0x1f8] sm:$0xff]
    %v149 = vld [vmem:[#allocation5] sm:$0xff]
    %v150 = vld [vmem:[#allocation5 + $0x8] sm:$0xff]
    %v151 = vld [vmem:[#allocation5 + $0x10] sm:$0xff]
    %v152 = vld [vmem:[#allocation5 + $0x18] sm:$0xff]
    %v153 = vld [vmem:[#allocation7] sm:$0x1]
    %v155 = vlaneseq
    %v156 = vshrl.u32 %v155, 7
    %v157 = vsub.s32 0, %v156
    %v158 = vrot.slane %v153, %v157
    %vm160 = vcmask 261120
    %v162 = vsel %vm160, %v85, 0
    %v165 = vsel %vm160, %v86, 0
    %v168 = vsel %vm160, %v87, 0
    %v171 = vsel %vm160, %v88, 0
    %v174 = vsel %vm160, %v89, 0
    %v177 = vsel %vm160, %v90, 0
    %v180 = vsel %vm160, %v91, 0
    %v183 = vsel %vm160, %v92, 0
    %v186 = vsel %vm160, %v93, 0
    %v189 = vsel %vm160, %v94, 0
    %v192 = vsel %vm160, %v95, 0
    %v195 = vsel %vm160, %v96, 0
    %v198 = vsel %vm160, %v97, 0
    %v201 = vsel %vm160, %v98, 0
    %v204 = vsel %vm160, %v99, 0
    %v207 = vsel %vm160, %v100, 0
    %v210 = vsel %vm160, %v101, 0
    %v213 = vsel %vm160, %v102, 0
    %v216 = vsel %vm160, %v103, 0
    %v219 = vsel %vm160, %v104, 0
    %v222 = vsel %vm160, %v105, 0
    %v225 = vsel %vm160, %v106, 0
    %v228 = vsel %vm160, %v107, 0
    %v231 = vsel %vm160, %v108, 0
    %v234 = vsel %vm160, %v109, 0
    %v237 = vsel %vm160, %v110, 0
    %v240 = vsel %vm160, %v111, 0
    %v243 = vsel %vm160, %v112, 0
    %v246 = vsel %vm160, %v113, 0
    %v249 = vsel %vm160, %v114, 0
    %v252 = vsel %vm160, %v115, 0
    %v255 = vsel %vm160, %v116, 0
    %v258 = vsel %vm160, %v117, 0
    %v261 = vsel %vm160, %v118, 0
    %v264 = vsel %vm160, %v119, 0
    %v267 = vsel %vm160, %v120, 0
    %v270 = vsel %vm160, %v121, 0
    %v273 = vsel %vm160, %v122, 0
    %v276 = vsel %vm160, %v123, 0
    %v279 = vsel %vm160, %v124, 0
    %v282 = vsel %vm160, %v125, 0
    %v285 = vsel %vm160, %v126, 0
    %v288 = vsel %vm160, %v127, 0
    %v291 = vsel %vm160, %v128, 0
    %v294 = vsel %vm160, %v129, 0
    %v297 = vsel %vm160, %v130, 0
    %v300 = vsel %vm160, %v131, 0
    %v303 = vsel %vm160, %v132, 0
    %v306 = vsel %vm160, %v133, 0
    %v309 = vsel %vm160, %v134, 0
    %v312 = vsel %vm160, %v135, 0
    %v315 = vsel %vm160, %v136, 0
    %v318 = vsel %vm160, %v137, 0
    %v321 = vsel %vm160, %v138, 0
    %v324 = vsel %vm160, %v139, 0
    %v327 = vsel %vm160, %v140, 0
    %v330 = vsel %vm160, %v141, 0
    %v333 = vsel %vm160, %v142, 0
    %v336 = vsel %vm160, %v143, 0
    %v339 = vsel %vm160, %v144, 0
    %v342 = vsel %vm160, %v145, 0
    %v345 = vsel %vm160, %v146, 0
    %v348 = vsel %vm160, %v147, 0
    %v351 = vsel %vm160, %v148, 0
    %353 = vmatprep.subr.mxu0 0.0
    %354 = vmatpush1.msra.mxu0 %v149
    %355 = vmatprep.subr.mxu0 0.0
    %356 = vmatpush1.msra.mxu0 %v150
    %357 = vmatprep.subr.mxu0 0.0
    %358 = vmatpush1.msra.mxu0 %v151
    %359 = vmatprep.subr.mxu0 0.0
    %360 = vmatpush1.msra.mxu0 %v152
    %361 = vmatprep.subr.mxu0 0.0
    %362 = vmatpush1.msra.mxu0 0.0
    %363 = vmatprep.subr.mxu0 0.0
    %364 = vmatpush1.msra.mxu0 0.0
    %365 = vmatprep.subr.mxu0 0.0
    %366 = vmatpush1.msra.mxu0 0.0
    %367 = vmatprep.subr.mxu0 0.0
    %368 = vmatpush1.msra.mxu0 0.0
    %369 = vmatprep.subr.mxu0 0.0
    %370 = vmatpush1.msra.mxu0 0.0
    %371 = vmatprep.subr.mxu0 0.0
    %372 = vmatpush1.msra.mxu0 0.0
    %373 = vmatprep.subr.mxu0 0.0
    %374 = vmatpush1.msra.mxu0 0.0
    %375 = vmatprep.subr.mxu0 0.0
    %376 = vmatpush1.msra.mxu0 0.0
    %377 = vmatprep.subr.mxu0 0.0
    %378 = vmatpush1.msra.mxu0 0.0
    %379 = vmatprep.subr.mxu0 0.0
    %380 = vmatpush1.msra.mxu0 0.0
    %381 = vmatprep.subr.mxu0 0.0
    %382 = vmatpush1.msra.mxu0 0.0
    %383 = vmatprep.subr.mxu0 0.0
    %384 = vmatpush1.msra.mxu0 0.0
    %385 = vmatprep.subr.mxu0 0.0
    %386 = vmatpush1.msra.mxu0 0.0
    %387 = vmatprep.subr.mxu0 0.0
    %388 = vmatpush1.msra.mxu0 0.0
    %389 = vmatprep.subr.mxu0 0.0
    %390 = vmatpush1.msra.mxu0 0.0
    %391 = vmatprep.subr.mxu0 0.0
    %392 = vmatpush1.msra.mxu0 0.0
    %393 = vmatprep.subr.mxu0 0.0
    %394 = vmatpush1.msra.mxu0 0.0
    %395 = vmatprep.subr.mxu0 0.0
    %396 = vmatpush1.msra.mxu0 0.0
    %397 = vmatprep.subr.mxu0 0.0
    %398 = vmatpush1.msra.mxu0 0.0
    %399 = vmatprep.subr.mxu0 0.0
    %400 = vmatpush1.msra.mxu0 0.0
    %401 = vmatprep.subr.mxu0 0.0
    %402 = vmatpush1.msra.mxu0 0.0
    %403 = vmatprep.subr.mxu0 0.0
    %404 = vmatpush1.msra.mxu0 0.0
    %405 = vmatprep.subr.mxu0 0.0
    %406 = vmatpush1.msra.mxu0 0.0
    %407 = vmatprep.subr.mxu0 0.0
    %408 = vmatpush1.msra.mxu0 0.0
    %409 = vmatprep.subr.mxu0 0.0
    %410 = vmatpush1.msra.mxu0 0.0
    %411 = vmatprep.subr.mxu0 0.0
    %412 = vmatpush1.msra.mxu0 0.0
    %413 = vmatprep.subr.mxu0 0.0
    %414 = vmatpush1.msra.mxu0 0.0
    %415 = vmatprep.subr.mxu0 0.0
    %416 = vmatpush1.msra.mxu0 0.0
    %417 = vmatprep.mubr.f32.mxu0 0.0
    %418 = vmatmul.mubr.f32.gmra.mrb[0].mxu0 %v162
    %v419 = vpop.f32.mrb[0].mxu0
    %v420 = vadd.f32 %v158, %v419
    %v421 = vpop.f32.mrb[0].mxu0
    %422 = vmatprep.mubr.f32.mxu0 0.0
    %423 = vmatmul.mubr.f32.gmra.mrb[0].mxu0 %v165
    %v424 = vpop.f32.mrb[0].mxu0
    %v425 = vadd.f32 %v158, %v424
    %v426 = vpop.f32.mrb[0].mxu0
    %427 = vmatprep.mubr.f32.mxu0 0.0
    %428 = vmatmul.mubr.f32.gmra.mrb[0].mxu0 %v168
    %v429 = vpop.f32.mrb[0].mxu0
    %v430 = vadd.f32 %v158, %v429
    %v431 = vpop.f32.mrb[0].mxu0
    %432 = vmatprep.mubr.f32.mxu0 0.0
    %433 = vmatmul.mubr.f32.gmra.mrb[0].mxu0 %v171
    %v434 = vpop.f32.mrb[0].mxu0
    %v435 = vadd.f32 %v158, %v434
    %v436 = vpop.f32.mrb[0].mxu0
    %437 = vmatprep.mubr.f32.mxu0 0.0
    %438 = vmatmul.mubr.f32.gmra.mrb[0].mxu0 %v174
    %v439 = vpop.f32.mrb[0].mxu0
    %v440 = vadd.f32 %v158, %v439
    %v441 = vpop.f32.mrb[0].mxu0
    %442 = vmatprep.mubr.f32.mxu0 0.0
    %443 = vmatmul.mubr.f32.gmra.mrb[0].mxu0 %v177
    %v444 = vpop.f32.mrb[0].mxu0
    %v445 = vadd.f32 %v158, %v444
    %v446 = vpop.f32.mrb[0].mxu0
    %447 = vmatprep.mubr.f32.mxu0 0.0
    %448 = vmatmul.mubr.f32.gmra.mrb[0].mxu0 %v180
    %v449 = vpop.f32.mrb[0].mxu0
    %v450 = vadd.f32 %v158, %v449
    %v451 = vpop.f32.mrb[0].mxu0
    %452 = vmatprep.mubr.f32.mxu0 0.0
    %453 = vmatmul.mubr.f32.gmra.mrb[0].mxu0 %v183
    %v454 = vpop.f32.mrb[0].mxu0
    %v455 = vadd.f32 %v158, %v454
    %v456 = vpop.f32.mrb[0].mxu0
    %457 = vmatprep.mubr.f32.mxu0 0.0
    %458 = vmatmul.mubr.f32.gmra.mrb[0].mxu0 %v186
    %v459 = vpop.f32.mrb[0].mxu0
    %v460 = vadd.f32 %v158, %v459
    %v461 = vpop.f32.mrb[0].mxu0
    %462 = vmatprep.mubr.f32.mxu0 0.0
    %463 = vmatmul.mubr.f32.gmra.mrb[0].mxu0 %v189
    %v464 = vpop.f32.mrb[0].mxu0
    %v465 = vadd.f32 %v158, %v464
    %v466 = vpop.f32.mrb[0].mxu0
    %467 = vmatprep.mubr.f32.mxu0 0.0
    %468 = vmatmul.mubr.f32.gmra.mrb[0].mxu0 %v192
    %v469 = vpop.f32.mrb[0].mxu0
    %v470 = vadd.f32 %v158, %v469
    %v471 = vpop.f32.mrb[0].mxu0
    %472 = vmatprep.mubr.f32.mxu0 0.0
    %473 = vmatmul.mubr.f32.gmra.mrb[0].mxu0 %v195
    %v474 = vpop.f32.mrb[0].mxu0
    %v475 = vadd.f32 %v158, %v474
    %v476 = vpop.f32.mrb[0].mxu0
    %477 = vmatprep.mubr.f32.mxu0 0.0
    %478 = vmatmul.mubr.f32.gmra.mrb[0].mxu0 %v198
    %v479 = vpop.f32.mrb[0].mxu0
    %v480 = vadd.f32 %v158, %v479
    %v481 = vpop.f32.mrb[0].mxu0
    %482 = vmatprep.mubr.f32.mxu0 0.0
    %483 = vmatmul.mubr.f32.gmra.mrb[0].mxu0 %v201
    %v484 = vpop.f32.mrb[0].mxu0
    %v485 = vadd.f32 %v158, %v484
    %v486 = vpop.f32.mrb[0].mxu0
    %487 = vmatprep.mubr.f32.mxu0 0.0
    %488 = vmatmul.mubr.f32.gmra.mrb[0].mxu0 %v204
    %v489 = vpop.f32.mrb[0].mxu0
    %v490 = vadd.f32 %v158, %v489
    %v491 = vpop.f32.mrb[0].mxu0
    %492 = vmatprep.mubr.f32.mxu0 0.0
    %493 = vmatmul.mubr.f32.gmra.mrb[0].mxu0 %v207
    %v494 = vpop.f32.mrb[0].mxu0
    %v495 = vadd.f32 %v158, %v494
    %v496 = vpop.f32.mrb[0].mxu0
    %497 = vmatprep.mubr.f32.mxu0 0.0
    %498 = vmatmul.mubr.f32.gmra.mrb[0].mxu0 %v210
    %v499 = vpop.f32.mrb[0].mxu0
    %v500 = vadd.f32 %v158, %v499
    %v501 = vpop.f32.mrb[0].mxu0
    %502 = vmatprep.mubr.f32.mxu0 0.0
    %503 = vmatmul.mubr.f32.gmra.mrb[0].mxu0 %v213
    %v504 = vpop.f32.mrb[0].mxu0
    %v505 = vadd.f32 %v158, %v504
    %v506 = vpop.f32.mrb[0].mxu0
    %507 = vmatprep.mubr.f32.mxu0 0.0
    %508 = vmatmul.mubr.f32.gmra.mrb[0].mxu0 %v216
    %v509 = vpop.f32.mrb[0].mxu0
    %v510 = vadd.f32 %v158, %v509
    %v511 = vpop.f32.mrb[0].mxu0
    %512 = vmatprep.mubr.f32.mxu0 0.0
    %513 = vmatmul.mubr.f32.gmra.mrb[0].mxu0 %v219
    %v514 = vpop.f32.mrb[0].mxu0
    %v515 = vadd.f32 %v158, %v514
    %v516 = vpop.f32.mrb[0].mxu0
    %517 = vmatprep.mubr.f32.mxu0 0.0
    %518 = vmatmul.mubr.f32.gmra.mrb[0].mxu0 %v222
    %v519 = vpop.f32.mrb[0].mxu0
    %v520 = vadd.f32 %v158, %v519
    %v521 = vpop.f32.mrb[0].mxu0
    %522 = vmatprep.mubr.f32.mxu0 0.0
    %523 = vmatmul.mubr.f32.gmra.mrb[0].mxu0 %v225
    %v524 = vpop.f32.mrb[0].mxu0
    %v525 = vadd.f32 %v158, %v524
    %v526 = vpop.f32.mrb[0].mxu0
    %527 = vmatprep.mubr.f32.mxu0 0.0
    %528 = vmatmul.mubr.f32.gmra.mrb[0].mxu0 %v228
    %v529 = vpop.f32.mrb[0].mxu0
    %v530 = vadd.f32 %v158, %v529
    %v531 = vpop.f32.mrb[0].mxu0
    %532 = vmatprep.mubr.f32.mxu0 0.0
    %533 = vmatmul.mubr.f32.gmra.mrb[0].mxu0 %v231
    %v534 = vpop.f32.mrb[0].mxu0
    %v535 = vadd.f32 %v158, %v534
    %v536 = vpop.f32.mrb[0].mxu0
    %537 = vmatprep.mubr.f32.mxu0 0.0
    %538 = vmatmul.mubr.f32.gmra.mrb[0].mxu0 %v234
    %v539 = vpop.f32.mrb[0].mxu0
    %v540 = vadd.f32 %v158, %v539
    %v541 = vpop.f32.mrb[0].mxu0
    %542 = vmatprep.mubr.f32.mxu0 0.0
    %543 = vmatmul.mubr.f32.gmra.mrb[0].mxu0 %v237
    %v544 = vpop.f32.mrb[0].mxu0
    %v545 = vadd.f32 %v158, %v544
    %v546 = vpop.f32.mrb[0].mxu0
    %547 = vmatprep.mubr.f32.mxu0 0.0
    %548 = vmatmul.mubr.f32.gmra.mrb[0].mxu0 %v240
    %v549 = vpop.f32.mrb[0].mxu0
    %v550 = vadd.f32 %v158, %v549
    %v551 = vpop.f32.mrb[0].mxu0
    %552 = vmatprep.mubr.f32.mxu0 0.0
    %553 = vmatmul.mubr.f32.gmra.mrb[0].mxu0 %v243
    %v554 = vpop.f32.mrb[0].mxu0
    %v555 = vadd.f32 %v158, %v554
    %v556 = vpop.f32.mrb[0].mxu0
    %557 = vmatprep.mubr.f32.mxu0 0.0
    %558 = vmatmul.mubr.f32.gmra.mrb[0].mxu0 %v246
    %v559 = vpop.f32.mrb[0].mxu0
    %v560 = vadd.f32 %v158, %v559
    %v561 = vpop.f32.mrb[0].mxu0
    %562 = vmatprep.mubr.f32.mxu0 0.0
    %563 = vmatmul.mubr.f32.gmra.mrb[0].mxu0 %v249
    %v564 = vpop.f32.mrb[0].mxu0
    %v565 = vadd.f32 %v158, %v564
    %v566 = vpop.f32.mrb[0].mxu0
    %567 = vmatprep.mubr.f32.mxu0 0.0
    %568 = vmatmul.mubr.f32.gmra.mrb[0].mxu0 %v252
    %v569 = vpop.f32.mrb[0].mxu0
    %v570 = vadd.f32 %v158, %v569
    %v571 = vpop.f32.mrb[0].mxu0
    %572 = vmatprep.mubr.f32.mxu0 0.0
    %573 = vmatmul.mubr.f32.gmra.mrb[0].mxu0 %v255
    %v574 = vpop.f32.mrb[0].mxu0
    %v575 = vadd.f32 %v158, %v574
    %v576 = vpop.f32.mrb[0].mxu0
    %577 = vmatprep.mubr.f32.mxu0 0.0
    %578 = vmatmul.mubr.f32.gmra.mrb[0].mxu0 %v258
    %v579 = vpop.f32.mrb[0].mxu0
    %v580 = vadd.f32 %v158, %v579
    %v581 = vpop.f32.mrb[0].mxu0
    %582 = vmatprep.mubr.f32.mxu0 0.0
    %583 = vmatmul.mubr.f32.gmra.mrb[0].mxu0 %v261
    %v584 = vpop.f32.mrb[0].mxu0
    %v585 = vadd.f32 %v158, %v584
    %v586 = vpop.f32.mrb[0].mxu0
    %587 = vmatprep.mubr.f32.mxu0 0.0
    %588 = vmatmul.mubr.f32.gmra.mrb[0].mxu0 %v264
    %v589 = vpop.f32.mrb[0].mxu0
    %v590 = vadd.f32 %v158, %v589
    %v591 = vpop.f32.mrb[0].mxu0
    %592 = vmatprep.mubr.f32.mxu0 0.0
    %593 = vmatmul.mubr.f32.gmra.mrb[0].mxu0 %v267
    %v594 = vpop.f32.mrb[0].mxu0
    %v595 = vadd.f32 %v158, %v594
    %v596 = vpop.f32.mrb[0].mxu0
    %597 = vmatprep.mubr.f32.mxu0 0.0
    %598 = vmatmul.mubr.f32.gmra.mrb[0].mxu0 %v270
    %v599 = vpop.f32.mrb[0].mxu0
    %v600 = vadd.f32 %v158, %v599
    %v601 = vpop.f32.mrb[0].mxu0
    %602 = vmatprep.mubr.f32.mxu0 0.0
    %603 = vmatmul.mubr.f32.gmra.mrb[0].mxu0 %v273
    %v604 = vpop.f32.mrb[0].mxu0
    %v605 = vadd.f32 %v158, %v604
    %v606 = vpop.f32.mrb[0].mxu0
    %607 = vmatprep.mubr.f32.mxu0 0.0
    %608 = vmatmul.mubr.f32.gmra.mrb[0].mxu0 %v276
    %v609 = vpop.f32.mrb[0].mxu0
    %v610 = vadd.f32 %v158, %v609
    %v611 = vpop.f32.mrb[0].mxu0
    %612 = vmatprep.mubr.f32.mxu0 0.0
    %613 = vmatmul.mubr.f32.gmra.mrb[0].mxu0 %v279
    %v614 = vpop.f32.mrb[0].mxu0
    %v615 = vadd.f32 %v158, %v614
    %v616 = vpop.f32.mrb[0].mxu0
    %617 = vmatprep.mubr.f32.mxu0 0.0
    %618 = vmatmul.mubr.f32.gmra.mrb[0].mxu0 %v282
    %v619 = vpop.f32.mrb[0].mxu0
    %v620 = vadd.f32 %v158, %v619
    %v621 = vpop.f32.mrb[0].mxu0
    %622 = vmatprep.mubr.f32.mxu0 0.0
    %623 = vmatmul.mubr.f32.gmra.mrb[0].mxu0 %v285
    %v624 = vpop.f32.mrb[0].mxu0
    %v625 = vadd.f32 %v158, %v624
    %v626 = vpop.f32.mrb[0].mxu0
    %627 = vmatprep.mubr.f32.mxu0 0.0
    %628 = vmatmul.mubr.f32.gmra.mrb[0].mxu0 %v288
    %v629 = vpop.f32.mrb[0].mxu0
    %v630 = vadd.f32 %v158, %v629
    %v631 = vpop.f32.mrb[0].mxu0
    %632 = vmatprep.mubr.f32.mxu0 0.0
    %633 = vmatmul.mubr.f32.gmra.mrb[0].mxu0 %v291
    %v634 = vpop.f32.mrb[0].mxu0
    %v635 = vadd.f32 %v158, %v634
    %v636 = vpop.f32.mrb[0].mxu0
    %637 = vmatprep.mubr.f32.mxu0 0.0
    %638 = vmatmul.mubr.f32.gmra.mrb[0].mxu0 %v294
    %v639 = vpop.f32.mrb[0].mxu0
    %v640 = vadd.f32 %v158, %v639
    %v641 = vpop.f32.mrb[0].mxu0
    %642 = vmatprep.mubr.f32.mxu0 0.0
    %643 = vmatmul.mubr.f32.gmra.mrb[0].mxu0 %v297
    %v644 = vpop.f32.mrb[0].mxu0
    %v645 = vadd.f32 %v158, %v644
    %v646 = vpop.f32.mrb[0].mxu0
    %647 = vmatprep.mubr.f32.mxu0 0.0
    %648 = vmatmul.mubr.f32.gmra.mrb[0].mxu0 %v300
    %v649 = vpop.f32.mrb[0].mxu0
    %v650 = vadd.f32 %v158, %v649
    %v651 = vpop.f32.mrb[0].mxu0
    %652 = vmatprep.mubr.f32.mxu0 0.0
    %653 = vmatmul.mubr.f32.gmra.mrb[0].mxu0 %v303
    %v654 = vpop.f32.mrb[0].mxu0
    %v655 = vadd.f32 %v158, %v654
    %v656 = vpop.f32.mrb[0].mxu0
    %657 = vmatprep.mubr.f32.mxu0 0.0
    %658 = vmatmul.mubr.f32.gmra.mrb[0].mxu0 %v306
    %v659 = vpop.f32.mrb[0].mxu0
    %v660 = vadd.f32 %v158, %v659
    %v661 = vpop.f32.mrb[0].mxu0
    %662 = vmatprep.mubr.f32.mxu0 0.0
    %663 = vmatmul.mubr.f32.gmra.mrb[0].mxu0 %v309
    %v664 = vpop.f32.mrb[0].mxu0
    %v665 = vadd.f32 %v158, %v664
    %v666 = vpop.f32.mrb[0].mxu0
    %667 = vmatprep.mubr.f32.mxu0 0.0
    %668 = vmatmul.mubr.f32.gmra.mrb[0].mxu0 %v312
    %v669 = vpop.f32.mrb[0].mxu0
    %v670 = vadd.f32 %v158, %v669
    %v671 = vpop.f32.mrb[0].mxu0
    %672 = vmatprep.mubr.f32.mxu0 0.0
    %673 = vmatmul.mubr.f32.gmra.mrb[0].mxu0 %v315
    %v674 = vpop.f32.mrb[0].mxu0
    %v675 = vadd.f32 %v158, %v674
    %v676 = vpop.f32.mrb[0].mxu0
    %677 = vmatprep.mubr.f32.mxu0 0.0
    %678 = vmatmul.mubr.f32.gmra.mrb[0].mxu0 %v318
    %v679 = vpop.f32.mrb[0].mxu0
    %v680 = vadd.f32 %v158, %v679
    %v681 = vpop.f32.mrb[0].mxu0
    %682 = vmatprep.mubr.f32.mxu0 0.0
    %683 = vmatmul.mubr.f32.gmra.mrb[0].mxu0 %v321
    %v684 = vpop.f32.mrb[0].mxu0
    %v685 = vadd.f32 %v158, %v684
    %v686 = vpop.f32.mrb[0].mxu0
    %687 = vmatprep.mubr.f32.mxu0 0.0
    %688 = vmatmul.mubr.f32.gmra.mrb[0].mxu0 %v324
    %v689 = vpop.f32.mrb[0].mxu0
    %v690 = vadd.f32 %v158, %v689
    %v691 = vpop.f32.mrb[0].mxu0
    %692 = vmatprep.mubr.f32.mxu0 0.0
    %693 = vmatmul.mubr.f32.gmra.mrb[0].mxu0 %v327
    %v694 = vpop.f32.mrb[0].mxu0
    %v695 = vadd.f32 %v158, %v694
    %v696 = vpop.f32.mrb[0].mxu0
    %697 = vmatprep.mubr.f32.mxu0 0.0
    %698 = vmatmul.mubr.f32.gmra.mrb[0].mxu0 %v330
    %v699 = vpop.f32.mrb[0].mxu0
    %v700 = vadd.f32 %v158, %v699
    %v701 = vpop.f32.mrb[0].mxu0
    %702 = vmatprep.mubr.f32.mxu0 0.0
    %703 = vmatmul.mubr.f32.gmra.mrb[0].mxu0 %v333
    %v704 = vpop.f32.mrb[0].mxu0
    %v705 = vadd.f32 %v158, %v704
    %v706 = vpop.f32.mrb[0].mxu0
    %707 = vmatprep.mubr.f32.mxu0 0.0
    %708 = vmatmul.mubr.f32.gmra.mrb[0].mxu0 %v336
    %v709 = vpop.f32.mrb[0].mxu0
    %v710 = vadd.f32 %v158, %v709
    %v711 = vpop.f32.mrb[0].mxu0
    %712 = vmatprep.mubr.f32.mxu0 0.0
    %713 = vmatmul.mubr.f32.gmra.mrb[0].mxu0 %v339
    %v714 = vpop.f32.mrb[0].mxu0
    %v715 = vadd.f32 %v158, %v714
    %v716 = vpop.f32.mrb[0].mxu0
    %717 = vmatprep.mubr.f32.mxu0 0.0
    %718 = vmatmul.mubr.f32.gmra.mrb[0].mxu0 %v342
    %v719 = vpop.f32.mrb[0].mxu0
    %v720 = vadd.f32 %v158, %v719
    %v721 = vpop.f32.mrb[0].mxu0
    %722 = vmatprep.mubr.f32.mxu0 0.0
    %723 = vmatmul.mubr.f32.gmra.mrb[0].mxu0 %v345
    %v724 = vpop.f32.mrb[0].mxu0
    %v725 = vadd.f32 %v158, %v724
    %v726 = vpop.f32.mrb[0].mxu0
    %727 = vmatprep.mubr.f32.mxu0 0.0
    %728 = vmatmul.mubr.f32.gmra.mrb[0].mxu0 %v348
    %v729 = vpop.f32.mrb[0].mxu0
    %v730 = vadd.f32 %v158, %v729
    %v731 = vpop.f32.mrb[0].mxu0
    %732 = vmatprep.mubr.f32.mxu0 0.0
    %733 = vmatmul.mubr.f32.gmra.mrb[0].mxu0 %v351
    %v734 = vpop.f32.mrb[0].mxu0
    %v735 = vadd.f32 %v158, %v734
    %v736 = vpop.f32.mrb[0].mxu0
    %737 = vdwg.mxu0
    %v738 = vmul.f32 %v420, 0.5
    %v739 = vmul.f32 %v425, 0.5
    %v740 = vmul.f32 %v430, 0.5
    %v741 = vmul.f32 %v435, 0.5
    %v742 = vmul.f32 %v440, 0.5
    %v743 = vmul.f32 %v445, 0.5
    %v744 = vmul.f32 %v450, 0.5
    %v745 = vmul.f32 %v455, 0.5
    %v746 = vmul.f32 %v460, 0.5
    %v747 = vmul.f32 %v465, 0.5
    %v748 = vmul.f32 %v470, 0.5
    %v749 = vmul.f32 %v475, 0.5
    %v750 = vmul.f32 %v480, 0.5
    %v751 = vmul.f32 %v485, 0.5
    %v752 = vmul.f32 %v490, 0.5
    %v753 = vmul.f32 %v495, 0.5
    %v754 = vmul.f32 %v500, 0.5
    %v755 = vmul.f32 %v505, 0.5
    %v756 = vmul.f32 %v510, 0.5
    %v757 = vmul.f32 %v515, 0.5
    %v758 = vmul.f32 %v520, 0.5
    %v759 = vmul.f32 %v525, 0.5
    %v760 = vmul.f32 %v530, 0.5
    %v761 = vmul.f32 %v535, 0.5
    %v762 = vmul.f32 %v540, 0.5
    %v763 = vmul.f32 %v545, 0.5
    %v764 = vmul.f32 %v550, 0.5
    %v765 = vmul.f32 %v555, 0.5
    %v766 = vmul.f32 %v560, 0.5
    %v767 = vmul.f32 %v565, 0.5
    %v768 = vmul.f32 %v570, 0.5
    %v769 = vmul.f32 %v575, 0.5
    %v770 = vmul.f32 %v580, 0.5
    %v771 = vmul.f32 %v585, 0.5
    %v772 = vmul.f32 %v590, 0.5
    %v773 = vmul.f32 %v595, 0.5
    %v774 = vmul.f32 %v600, 0.5
    %v775 = vmul.f32 %v605, 0.5
    %v776 = vmul.f32 %v610, 0.5
    %v777 = vmul.f32 %v615, 0.5
    %v778 = vmul.f32 %v620, 0.5
    %v779 = vmul.f32 %v625, 0.5
    %v780 = vmul.f32 %v630, 0.5
    %v781 = vmul.f32 %v635, 0.5
    %v782 = vmul.f32 %v640, 0.5
    %v783 = vmul.f32 %v645, 0.5
    %v784 = vmul.f32 %v650, 0.5
    %v785 = vmul.f32 %v655, 0.5
    %v786 = vmul.f32 %v660, 0.5
    %v787 = vmul.f32 %v665, 0.5
    %v788 = vmul.f32 %v670, 0.5
    %v789 = vmul.f32 %v675, 0.5
    %v790 = vmul.f32 %v680, 0.5
    %v791 = vmul.f32 %v685, 0.5
    %v792 = vmul.f32 %v690, 0.5
    %v793 = vmul.f32 %v695, 0.5
    %v794 = vmul.f32 %v700, 0.5
    %v795 = vmul.f32 %v705, 0.5
    %v796 = vmul.f32 %v710, 0.5
    %v797 = vmul.f32 %v715, 0.5
    %v798 = vmul.f32 %v720, 0.5
    %v799 = vmul.f32 %v725, 0.5
    %v800 = vmul.f32 %v730, 0.5
    %v801 = vmul.f32 %v735, 0.5
    %v802 = vmul.f32 %v420, 0.70710677
    %v803 = vmul.f32 %v425, 0.70710677
    %v804 = vmul.f32 %v430, 0.70710677
    %v805 = vmul.f32 %v435, 0.70710677
    %v806 = vmul.f32 %v440, 0.70710677
    %v807 = vmul.f32 %v445, 0.70710677
    %v808 = vmul.f32 %v450, 0.70710677
    %v809 = vmul.f32 %v455, 0.70710677
    %v810 = vmul.f32 %v460, 0.70710677
    %v811 = vmul.f32 %v465, 0.70710677
    %v812 = vmul.f32 %v470, 0.70710677
    %v813 = vmul.f32 %v475, 0.70710677
    %v814 = vmul.f32 %v480, 0.70710677
    %v815 = vmul.f32 %v485, 0.70710677
    %v816 = vmul.f32 %v490, 0.70710677
    %v817 = vmul.f32 %v495, 0.70710677
    %v818 = vmul.f32 %v500, 0.70710677
    %v819 = vmul.f32 %v505, 0.70710677
    %v820 = vmul.f32 %v510, 0.70710677
    %v821 = vmul.f32 %v515, 0.70710677
    %v822 = vmul.f32 %v520, 0.70710677
    %v823 = vmul.f32 %v525, 0.70710677
    %v824 = vmul.f32 %v530, 0.70710677
    %v825 = vmul.f32 %v535, 0.70710677
    %v826 = vmul.f32 %v540, 0.70710677
    %v827 = vmul.f32 %v545, 0.70710677
    %v828 = vmul.f32 %v550, 0.70710677
    %v829 = vmul.f32 %v555, 0.70710677
    %v830 = vmul.f32 %v560, 0.70710677
    %v831 = vmul.f32 %v565, 0.70710677
    %v832 = vmul.f32 %v570, 0.70710677
    %v833 = vmul.f32 %v575, 0.70710677
    %v834 = vmul.f32 %v580, 0.70710677
    %v835 = vmul.f32 %v585, 0.70710677
    %v836 = vmul.f32 %v590, 0.70710677
    %v837 = vmul.f32 %v595, 0.70710677
    %v838 = vmul.f32 %v600, 0.70710677
    %v839 = vmul.f32 %v605, 0.70710677
    %v840 = vmul.f32 %v610, 0.70710677
    %v841 = vmul.f32 %v615, 0.70710677
    %v842 = vmul.f32 %v620, 0.70710677
    %v843 = vmul.f32 %v625, 0.70710677
    %v844 = vmul.f32 %v630, 0.70710677
    %v845 = vmul.f32 %v635, 0.70710677
    %v846 = vmul.f32 %v640, 0.70710677
    %v847 = vmul.f32 %v645, 0.70710677
    %v848 = vmul.f32 %v650, 0.70710677
    %v849 = vmul.f32 %v655, 0.70710677
    %v850 = vmul.f32 %v660, 0.70710677
    %v851 = vmul.f32 %v665, 0.70710677
    %v852 = vmul.f32 %v670, 0.70710677
    %v853 = vmul.f32 %v675, 0.70710677
    %v854 = vmul.f32 %v680, 0.70710677
    %v855 = vmul.f32 %v685, 0.70710677
    %v856 = vmul.f32 %v690, 0.70710677
    %v857 = vmul.f32 %v695, 0.70710677
    %v858 = vmul.f32 %v700, 0.70710677
    %v859 = vmul.f32 %v705, 0.70710677
    %v860 = vmul.f32 %v710, 0.70710677
    %v861 = vmul.f32 %v715, 0.70710677
    %v862 = vmul.f32 %v720, 0.70710677
    %v863 = vmul.f32 %v725, 0.70710677
    %v864 = vmul.f32 %v730, 0.70710677
    %v865 = vmul.f32 %v735, 0.70710677
    %vm866 = vcmp.ge.f32.partialorder %v802, 0.0
    %vm867 = vcmp.ge.f32.partialorder %v803, 0.0
    %vm868 = vcmp.ge.f32.partialorder %v804, 0.0
    %vm869 = vcmp.ge.f32.partialorder %v805, 0.0
    %vm870 = vcmp.ge.f32.partialorder %v806, 0.0
    %vm871 = vcmp.ge.f32.partialorder %v807, 0.0
    %vm872 = vcmp.ge.f32.partialorder %v808, 0.0
    %vm873 = vcmp.ge.f32.partialorder %v809, 0.0
    %vm874 = vcmp.ge.f32.partialorder %v810, 0.0
    %vm875 = vcmp.ge.f32.partialorder %v811, 0.0
    %vm876 = vcmp.ge.f32.partialorder %v812, 0.0
    %vm877 = vcmp.ge.f32.partialorder %v813, 0.0
    %vm878 = vcmp.ge.f32.partialorder %v814, 0.0
    %vm879 = vcmp.ge.f32.partialorder %v815, 0.0
    %vm880 = vcmp.ge.f32.partialorder %v816, 0.0
    %vm881 = vcmp.ge.f32.partialorder %v817, 0.0
    %vm882 = vcmp.ge.f32.partialorder %v818, 0.0
    %vm883 = vcmp.ge.f32.partialorder %v819, 0.0
    %vm884 = vcmp.ge.f32.partialorder %v820, 0.0
    %vm885 = vcmp.ge.f32.partialorder %v821, 0.0
    %vm886 = vcmp.ge.f32.partialorder %v822, 0.0
    %vm887 = vcmp.ge.f32.partialorder %v823, 0.0
    %vm888 = vcmp.ge.f32.partialorder %v824, 0.0
    %vm889 = vcmp.ge.f32.partialorder %v825, 0.0
    %vm890 = vcmp.ge.f32.partialorder %v826, 0.0
    %vm891 = vcmp.ge.f32.partialorder %v827, 0.0
    %vm892 = vcmp.ge.f32.partialorder %v828, 0.0
    %vm893 = vcmp.ge.f32.partialorder %v829, 0.0
    %vm894 = vcmp.ge.f32.partialorder %v830, 0.0
    %vm895 = vcmp.ge.f32.partialorder %v831, 0.0
    %vm896 = vcmp.ge.f32.partialorder %v832, 0.0
    %vm897 = vcmp.ge.f32.partialorder %v833, 0.0
    %vm898 = vcmp.ge.f32.partialorder %v834, 0.0
    %vm899 = vcmp.ge.f32.partialorder %v835, 0.0
    %vm900 = vcmp.ge.f32.partialorder %v836, 0.0
    %vm901 = vcmp.ge.f32.partialorder %v837, 0.0
    %vm902 = vcmp.ge.f32.partialorder %v838, 0.0
    %vm903 = vcmp.ge.f32.partialorder %v839, 0.0
    %vm904 = vcmp.ge.f32.partialorder %v840, 0.0
    %vm905 = vcmp.ge.f32.partialorder %v841, 0.0
    %vm906 = vcmp.ge.f32.partialorder %v842, 0.0
    %vm907 = vcmp.ge.f32.partialorder %v843, 0.0
    %vm908 = vcmp.ge.f32.partialorder %v844, 0.0
    %vm909 = vcmp.ge.f32.partialorder %v845, 0.0
    %vm910 = vcmp.ge.f32.partialorder %v846, 0.0
    %vm911 = vcmp.ge.f32.partialorder %v847, 0.0
    %vm912 = vcmp.ge.f32.partialorder %v848, 0.0
    %vm913 = vcmp.ge.f32.partialorder %v849, 0.0
    %vm914 = vcmp.ge.f32.partialorder %v850, 0.0
    %vm915 = vcmp.ge.f32.partialorder %v851, 0.0
    %vm916 = vcmp.ge.f32.partialorder %v852, 0.0
    %vm917 = vcmp.ge.f32.partialorder %v853, 0.0
    %vm918 = vcmp.ge.f32.partialorder %v854, 0.0
    %vm919 = vcmp.ge.f32.partialorder %v855, 0.0
    %vm920 = vcmp.ge.f32.partialorder %v856, 0.0
    %vm921 = vcmp.ge.f32.partialorder %v857, 0.0
    %vm922 = vcmp.ge.f32.partialorder %v858, 0.0
    %vm923 = vcmp.ge.f32.partialorder %v859, 0.0
    %vm924 = vcmp.ge.f32.partialorder %v860, 0.0
    %vm925 = vcmp.ge.f32.partialorder %v861, 0.0
    %vm926 = vcmp.ge.f32.partialorder %v862, 0.0
    %vm927 = vcmp.ge.f32.partialorder %v863, 0.0
    %vm928 = vcmp.ge.f32.partialorder %v864, 0.0
    %vm929 = vcmp.ge.f32.partialorder %v865, 0.0
    %v930 = vsel %vm866, 1.0, -1.0
    %v931 = vsel %vm867, 1.0, -1.0
    %v932 = vsel %vm868, 1.0, -1.0
    %v933 = vsel %vm869, 1.0, -1.0
    %v934 = vsel %vm870, 1.0, -1.0
    %v935 = vsel %vm871, 1.0, -1.0
    %v936 = vsel %vm872, 1.0, -1.0
    %v937 = vsel %vm873, 1.0, -1.0
    %v938 = vsel %vm874, 1.0, -1.0
    %v939 = vsel %vm875, 1.0, -1.0
    %v940 = vsel %vm876, 1.0, -1.0
    %v941 = vsel %vm877, 1.0, -1.0
    %v942 = vsel %vm878, 1.0, -1.0
    %v943 = vsel %vm879, 1.0, -1.0
    %v944 = vsel %vm880, 1.0, -1.0
    %v945 = vsel %vm881, 1.0, -1.0
    %v946 = vsel %vm882, 1.0, -1.0
    %v947 = vsel %vm883, 1.0, -1.0
    %v948 = vsel %vm884, 1.0, -1.0
    %v949 = vsel %vm885, 1.0, -1.0
    %v950 = vsel %vm886, 1.0, -1.0
    %v951 = vsel %vm887, 1.0, -1.0
    %v952 = vsel %vm888, 1.0, -1.0
    %v953 = vsel %vm889, 1.0, -1.0
    %v954 = vsel %vm890, 1.0, -1.0
    %v955 = vsel %vm891, 1.0, -1.0
    %v956 = vsel %vm892, 1.0, -1.0
    %v957 = vsel %vm893, 1.0, -1.0
    %v958 = vsel %vm894, 1.0, -1.0
    %v959 = vsel %vm895, 1.0, -1.0
    %v960 = vsel %vm896, 1.0, -1.0
    %v961 = vsel %vm897, 1.0, -1.0
    %v962 = vsel %vm898, 1.0, -1.0
    %v963 = vsel %vm899, 1.0, -1.0
    %v964 = vsel %vm900, 1.0, -1.0
    %v965 = vsel %vm901, 1.0, -1.0
    %v966 = vsel %vm902, 1.0, -1.0
    %v967 = vsel %vm903, 1.0, -1.0
    %v968 = vsel %vm904, 1.0, -1.0
    %v969 = vsel %vm905, 1.0, -1.0
    %v970 = vsel %vm906, 1.0, -1.0
    %v971 = vsel %vm907, 1.0, -1.0
    %v972 = vsel %vm908, 1.0, -1.0
    %v973 = vsel %vm909, 1.0, -1.0
    %v974 = vsel %vm910, 1.0, -1.0
    %v975 = vsel %vm911, 1.0, -1.0
    %v976 = vsel %vm912, 1.0, -1.0
    %v977 = vsel %vm913, 1.0, -1.0
    %v978 = vsel %vm914, 1.0, -1.0
    %v979 = vsel %vm915, 1.0, -1.0
    %v980 = vsel %vm916, 1.0, -1.0
    %v981 = vsel %vm917, 1.0, -1.0
    %v982 = vsel %vm918, 1.0, -1.0
    %v983 = vsel %vm919, 1.0, -1.0
    %v984 = vsel %vm920, 1.0, -1.0
    %v985 = vsel %vm921, 1.0, -1.0
    %v986 = vsel %vm922, 1.0, -1.0
    %v987 = vsel %vm923, 1.0, -1.0
    %v988 = vsel %vm924, 1.0, -1.0
    %v989 = vsel %vm925, 1.0, -1.0
    %v990 = vsel %vm926, 1.0, -1.0
    %v991 = vsel %vm927, 1.0, -1.0
    %v992 = vsel %vm928, 1.0, -1.0
    %v993 = vsel %vm929, 1.0, -1.0
    %v994 = vand.u32 2147483647, %v802
    %v995 = vand.u32 2147483647, %v803
    %v996 = vand.u32 2147483647, %v804
    %v997 = vand.u32 2147483647, %v805
    %v998 = vand.u32 2147483647, %v806
    %v999 = vand.u32 2147483647, %v807
    %v1000 = vand.u32 2147483647, %v808
    %v1001 = vand.u32 2147483647, %v809
    %v1002 = vand.u32 2147483647, %v810
    %v1003 = vand.u32 2147483647, %v811
    %v1004 = vand.u32 2147483647, %v812
    %v1005 = vand.u32 2147483647, %v813
    %v1006 = vand.u32 2147483647, %v814
    %v1007 = vand.u32 2147483647, %v815
    %v1008 = vand.u32 2147483647, %v816
    %v1009 = vand.u32 2147483647, %v817
    %v1010 = vand.u32 2147483647, %v818
    %v1011 = vand.u32 2147483647, %v819
    %v1012 = vand.u32 2147483647, %v820
    %v1013 = vand.u32 2147483647, %v821
    %v1014 = vand.u32 2147483647, %v822
    %v1015 = vand.u32 2147483647, %v823
    %v1016 = vand.u32 2147483647, %v824
    %v1017 = vand.u32 2147483647, %v825
    %v1018 = vand.u32 2147483647, %v826
    %v1019 = vand.u32 2147483647, %v827
    %v1020 = vand.u32 2147483647, %v828
    %v1021 = vand.u32 2147483647, %v829
    %v1022 = vand.u32 2147483647, %v830
    %v1023 = vand.u32 2147483647, %v831
    %v1024 = vand.u32 2147483647, %v832
    %v1025 = vand.u32 2147483647, %v833
    %v1026 = vand.u32 2147483647, %v834
    %v1027 = vand.u32 2147483647, %v835
    %v1028 = vand.u32 2147483647, %v836
    %v1029 = vand.u32 2147483647, %v837
    %v1030 = vand.u32 2147483647, %v838
    %v1031 = vand.u32 2147483647, %v839
    %v1032 = vand.u32 2147483647, %v840
    %v1033 = vand.u32 2147483647, %v841
    %v1034 = vand.u32 2147483647, %v842
    %v1035 = vand.u32 2147483647, %v843
    %v1036 = vand.u32 2147483647, %v844
    %v1037 = vand.u32 2147483647, %v845
    %v1038 = vand.u32 2147483647, %v846
    %v1039 = vand.u32 2147483647, %v847
    %v1040 = vand.u32 2147483647, %v848
    %v1041 = vand.u32 2147483647, %v849
    %v1042 = vand.u32 2147483647, %v850
    %v1043 = vand.u32 2147483647, %v851
    %v1044 = vand.u32 2147483647, %v852
    %v1045 = vand.u32 2147483647, %v853
    %v1046 = vand.u32 2147483647, %v854
    %v1047 = vand.u32 2147483647, %v855
    %v1048 = vand.u32 2147483647, %v856
    %v1049 = vand.u32 2147483647, %v857
    %v1050 = vand.u32 2147483647, %v858
    %v1051 = vand.u32 2147483647, %v859
    %v1052 = vand.u32 2147483647, %v860
    %v1053 = vand.u32 2147483647, %v861
    %v1054 = vand.u32 2147483647, %v862
    %v1055 = vand.u32 2147483647, %v863
    %v1056 = vand.u32 2147483647, %v864
    %v1057 = vand.u32 2147483647, %v865
    %v1058 = vmul.f32 %v994, 0.3275911
    %v1059 = vmul.f32 %v995, 0.3275911
    %v1060 = vmul.f32 %v996, 0.3275911
    %v1061 = vmul.f32 %v997, 0.3275911
    %v1062 = vmul.f32 %v998, 0.3275911
    %v1063 = vmul.f32 %v999, 0.3275911
    %v1064 = vmul.f32 %v1000, 0.3275911
    %v1065 = vmul.f32 %v1001, 0.3275911
    %v1066 = vmul.f32 %v1002, 0.3275911
    %v1067 = vmul.f32 %v1003, 0.3275911
    %v1068 = vmul.f32 %v1004, 0.3275911
    %v1069 = vmul.f32 %v1005, 0.3275911
    %v1070 = vmul.f32 %v1006, 0.3275911
    %v1071 = vmul.f32 %v1007, 0.3275911
    %v1072 = vmul.f32 %v1008, 0.3275911
    %v1073 = vmul.f32 %v1009, 0.3275911
    %v1074 = vmul.f32 %v1010, 0.3275911
    %v1075 = vmul.f32 %v1011, 0.3275911
    %v1076 = vmul.f32 %v1012, 0.3275911
    %v1077 = vmul.f32 %v1013, 0.3275911
    %v1078 = vmul.f32 %v1014, 0.3275911
    %v1079 = vmul.f32 %v1015, 0.3275911
    %v1080 = vmul.f32 %v1016, 0.3275911
    %v1081 = vmul.f32 %v1017, 0.3275911
    %v1082 = vmul.f32 %v1018, 0.3275911
    %v1083 = vmul.f32 %v1019, 0.3275911
    %v1084 = vmul.f32 %v1020, 0.3275911
    %v1085 = vmul.f32 %v1021, 0.3275911
    %v1086 = vmul.f32 %v1022, 0.3275911
    %v1087 = vmul.f32 %v1023, 0.3275911
    %v1088 = vmul.f32 %v1024, 0.3275911
    %v1089 = vmul.f32 %v1025, 0.3275911
    %v1090 = vmul.f32 %v1026, 0.3275911
    %v1091 = vmul.f32 %v1027, 0.3275911
    %v1092 = vmul.f32 %v1028, 0.3275911
    %v1093 = vmul.f32 %v1029, 0.3275911
    %v1094 = vmul.f32 %v1030, 0.3275911
    %v1095 = vmul.f32 %v1031, 0.3275911
    %v1096 = vmul.f32 %v1032, 0.3275911
    %v1097 = vmul.f32 %v1033, 0.3275911
    %v1098 = vmul.f32 %v1034, 0.3275911
    %v1099 = vmul.f32 %v1035, 0.3275911
    %v1100 = vmul.f32 %v1036, 0.3275911
    %v1101 = vmul.f32 %v1037, 0.3275911
    %v1102 = vmul.f32 %v1038, 0.3275911
    %v1103 = vmul.f32 %v1039, 0.3275911
    %v1104 = vmul.f32 %v1040, 0.3275911
    %v1105 = vmul.f32 %v1041, 0.3275911
    %v1106 = vmul.f32 %v1042, 0.3275911
    %v1107 = vmul.f32 %v1043, 0.3275911
    %v1108 = vmul.f32 %v1044, 0.3275911
    %v1109 = vmul.f32 %v1045, 0.3275911
    %v1110 = vmul.f32 %v1046, 0.3275911
    %v1111 = vmul.f32 %v1047, 0.3275911
    %v1112 = vmul.f32 %v1048, 0.3275911
    %v1113 = vmul.f32 %v1049, 0.3275911
    %v1114 = vmul.f32 %v1050, 0.3275911
    %v1115 = vmul.f32 %v1051, 0.3275911
    %v1116 = vmul.f32 %v1052, 0.3275911
    %v1117 = vmul.f32 %v1053, 0.3275911
    %v1118 = vmul.f32 %v1054, 0.3275911
    %v1119 = vmul.f32 %v1055, 0.3275911
    %v1120 = vmul.f32 %v1056, 0.3275911
    %v1121 = vmul.f32 %v1057, 0.3275911
    %v1122 = vadd.f32 %v1058, 1.0
    %v1123 = vadd.f32 %v1059, 1.0
    %v1124 = vadd.f32 %v1060, 1.0
    %v1125 = vadd.f32 %v1061, 1.0
    %v1126 = vadd.f32 %v1062, 1.0
    %v1127 = vadd.f32 %v1063, 1.0
    %v1128 = vadd.f32 %v1064, 1.0
    %v1129 = vadd.f32 %v1065, 1.0
    %v1130 = vadd.f32 %v1066, 1.0
    %v1131 = vadd.f32 %v1067, 1.0
    %v1132 = vadd.f32 %v1068, 1.0
    %v1133 = vadd.f32 %v1069, 1.0
    %v1134 = vadd.f32 %v1070, 1.0
    %v1135 = vadd.f32 %v1071, 1.0
    %v1136 = vadd.f32 %v1072, 1.0
    %v1137 = vadd.f32 %v1073, 1.0
    %v1138 = vadd.f32 %v1074, 1.0
    %v1139 = vadd.f32 %v1075, 1.0
    %v1140 = vadd.f32 %v1076, 1.0
    %v1141 = vadd.f32 %v1077, 1.0
    %v1142 = vadd.f32 %v1078, 1.0
    %v1143 = vadd.f32 %v1079, 1.0
    %v1144 = vadd.f32 %v1080, 1.0
    %v1145 = vadd.f32 %v1081, 1.0
    %v1146 = vadd.f32 %v1082, 1.0
    %v1147 = vadd.f32 %v1083, 1.0
    %v1148 = vadd.f32 %v1084, 1.0
    %v1149 = vadd.f32 %v1085, 1.0
    %v1150 = vadd.f32 %v1086, 1.0
    %v1151 = vadd.f32 %v1087, 1.0
    %v1152 = vadd.f32 %v1088, 1.0
    %v1153 = vadd.f32 %v1089, 1.0
    %v1154 = vadd.f32 %v1090, 1.0
    %v1155 = vadd.f32 %v1091, 1.0
    %v1156 = vadd.f32 %v1092, 1.0
    %v1157 = vadd.f32 %v1093, 1.0
    %v1158 = vadd.f32 %v1094, 1.0
    %v1159 = vadd.f32 %v1095, 1.0
    %v1160 = vadd.f32 %v1096, 1.0
    %v1161 = vadd.f32 %v1097, 1.0
    %v1162 = vadd.f32 %v1098, 1.0
    %v1163 = vadd.f32 %v1099, 1.0
    %v1164 = vadd.f32 %v1100, 1.0
    %v1165 = vadd.f32 %v1101, 1.0
    %v1166 = vadd.f32 %v1102, 1.0
    %v1167 = vadd.f32 %v1103, 1.0
    %v1168 = vadd.f32 %v1104, 1.0
    %v1169 = vadd.f32 %v1105, 1.0
    %v1170 = vadd.f32 %v1106, 1.0
    %v1171 = vadd.f32 %v1107, 1.0
    %v1172 = vadd.f32 %v1108, 1.0
    %v1173 = vadd.f32 %v1109, 1.0
    %v1174 = vadd.f32 %v1110, 1.0
    %v1175 = vadd.f32 %v1111, 1.0
    %v1176 = vadd.f32 %v1112, 1.0
    %v1177 = vadd.f32 %v1113, 1.0
    %v1178 = vadd.f32 %v1114, 1.0
    %v1179 = vadd.f32 %v1115, 1.0
    %v1180 = vadd.f32 %v1116, 1.0
    %v1181 = vadd.f32 %v1117, 1.0
    %v1182 = vadd.f32 %v1118, 1.0
    %v1183 = vadd.f32 %v1119, 1.0
    %v1184 = vadd.f32 %v1120, 1.0
    %v1185 = vadd.f32 %v1121, 1.0
    %v1186 = vrcp.pop %v1122
    %v1187 = vrcp.pop %v1123
    %v1188 = vrcp.pop %v1124
    %v1189 = vrcp.pop %v1125
    %v1190 = vrcp.pop %v1126
    %v1191 = vrcp.pop %v1127
    %v1192 = vrcp.pop %v1128
    %v1193 = vrcp.pop %v1129
    %v1194 = vrcp.pop %v1130
    %v1195 = vrcp.pop %v1131
    %v1196 = vrcp.pop %v1132
    %v1197 = vrcp.pop %v1133
    %v1198 = vrcp.pop %v1134
    %v1199 = vrcp.pop %v1135
    %v1200 = vrcp.pop %v1136
    %v1201 = vrcp.pop %v1137
    %v1202 = vrcp.pop %v1138
    %v1203 = vrcp.pop %v1139
    %v1204 = vrcp.pop %v1140
    %v1205 = vrcp.pop %v1141
    %v1206 = vrcp.pop %v1142
    %v1207 = vrcp.pop %v1143
    %v1208 = vrcp.pop %v1144
    %v1209 = vrcp.pop %v1145
    %v1210 = vrcp.pop %v1146
    %v1211 = vrcp.pop %v1147
    %v1212 = vrcp.pop %v1148
    %v1213 = vrcp.pop %v1149
    %v1214 = vrcp.pop %v1150
    %v1215 = vrcp.pop %v1151
    %v1216 = vrcp.pop %v1152
    %v1217 = vrcp.pop %v1153
    %v1218 = vrcp.pop %v1154
    %v1219 = vrcp.pop %v1155
    %v1220 = vrcp.pop %v1156
    %v1221 = vrcp.pop %v1157
    %v1222 = vrcp.pop %v1158
    %v1223 = vrcp.pop %v1159
    %v1224 = vrcp.pop %v1160
    %v1225 = vrcp.pop %v1161
    %v1226 = vrcp.pop %v1162
    %v1227 = vrcp.pop %v1163
    %v1228 = vrcp.pop %v1164
    %v1229 = vrcp.pop %v1165
    %v1230 = vrcp.pop %v1166
    %v1231 = vrcp.pop %v1167
    %v1232 = vrcp.pop %v1168
    %v1233 = vrcp.pop %v1169
    %v1234 = vrcp.pop %v1170
    %v1235 = vrcp.pop %v1171
    %v1236 = vrcp.pop %v1172
    %v1237 = vrcp.pop %v1173
    %v1238 = vrcp.pop %v1174
    %v1239 = vrcp.pop %v1175
    %v1240 = vrcp.pop %v1176
    %v1241 = vrcp.pop %v1177
    %v1242 = vrcp.pop %v1178
    %v1243 = vrcp.pop %v1179
    %v1244 = vrcp.pop %v1180
    %v1245 = vrcp.pop %v1181
    %v1246 = vrcp.pop %v1182
    %v1247 = vrcp.pop %v1183
    %v1248 = vrcp.pop %v1184
    %v1249 = vrcp.pop %v1185
    %v1250 = vmul.f32 %v1186, 1.0614054
    %v1251 = vmul.f32 %v1187, 1.0614054
    %v1252 = vmul.f32 %v1188, 1.0614054
    %v1253 = vmul.f32 %v1189, 1.0614054
    %v1254 = vmul.f32 %v1190, 1.0614054
    %v1255 = vmul.f32 %v1191, 1.0614054
    %v1256 = vmul.f32 %v1192, 1.0614054
    %v1257 = vmul.f32 %v1193, 1.0614054
    %v1258 = vmul.f32 %v1194, 1.0614054
    %v1259 = vmul.f32 %v1195, 1.0614054
    %v1260 = vmul.f32 %v1196, 1.0614054
    %v1261 = vmul.f32 %v1197, 1.0614054
    %v1262 = vmul.f32 %v1198, 1.0614054
    %v1263 = vmul.f32 %v1199, 1.0614054
    %v1264 = vmul.f32 %v1200, 1.0614054
    %v1265 = vmul.f32 %v1201, 1.0614054
    %v1266 = vmul.f32 %v1202, 1.0614054
    %v1267 = vmul.f32 %v1203, 1.0614054
    %v1268 = vmul.f32 %v1204, 1.0614054
    %v1269 = vmul.f32 %v1205, 1.0614054
    %v1270 = vmul.f32 %v1206, 1.0614054
    %v1271 = vmul.f32 %v1207, 1.0614054
    %v1272 = vmul.f32 %v1208, 1.0614054
    %v1273 = vmul.f32 %v1209, 1.0614054
    %v1274 = vmul.f32 %v1210, 1.0614054
    %v1275 = vmul.f32 %v1211, 1.0614054
    %v1276 = vmul.f32 %v1212, 1.0614054
    %v1277 = vmul.f32 %v1213, 1.0614054
    %v1278 = vmul.f32 %v1214, 1.0614054
    %v1279 = vmul.f32 %v1215, 1.0614054
    %v1280 = vmul.f32 %v1216, 1.0614054
    %v1281 = vmul.f32 %v1217, 1.0614054
    %v1282 = vmul.f32 %v1218, 1.0614054
    %v1283 = vmul.f32 %v1219, 1.0614054
    %v1284 = vmul.f32 %v1220, 1.0614054
    %v1285 = vmul.f32 %v1221, 1.0614054
    %v1286 = vmul.f32 %v1222, 1.0614054
    %v1287 = vmul.f32 %v1223, 1.0614054
    %v1288 = vmul.f32 %v1224, 1.0614054
    %v1289 = vmul.f32 %v1225, 1.0614054
    %v1290 = vmul.f32 %v1226, 1.0614054
    %v1291 = vmul.f32 %v1227, 1.0614054
    %v1292 = vmul.f32 %v1228, 1.0614054
    %v1293 = vmul.f32 %v1229, 1.0614054
    %v1294 = vmul.f32 %v1230, 1.0614054
    %v1295 = vmul.f32 %v1231, 1.0614054
    %v1296 = vmul.f32 %v1232, 1.0614054
    %v1297 = vmul.f32 %v1233, 1.0614054
    %v1298 = vmul.f32 %v1234, 1.0614054
    %v1299 = vmul.f32 %v1235, 1.0614054
    %v1300 = vmul.f32 %v1236, 1.0614054
    %v1301 = vmul.f32 %v1237, 1.0614054
    %v1302 = vmul.f32 %v1238, 1.0614054
    %v1303 = vmul.f32 %v1239, 1.0614054
    %v1304 = vmul.f32 %v1240, 1.0614054
    %v1305 = vmul.f32 %v1241, 1.0614054
    %v1306 = vmul.f32 %v1242, 1.0614054
    %v1307 = vmul.f32 %v1243, 1.0614054
    %v1308 = vmul.f32 %v1244, 1.0614054
    %v1309 = vmul.f32 %v1245, 1.0614054
    %v1310 = vmul.f32 %v1246, 1.0614054
    %v1311 = vmul.f32 %v1247, 1.0614054
    %v1312 = vmul.f32 %v1248, 1.0614054
    %v1313 = vmul.f32 %v1249, 1.0614054
    %v1314 = vadd.f32 %v1250, -1.4531521
    %v1315 = vadd.f32 %v1251, -1.4531521
    %v1316 = vadd.f32 %v1252, -1.4531521
    %v1317 = vadd.f32 %v1253, -1.4531521
    %v1318 = vadd.f32 %v1254, -1.4531521
    %v1319 = vadd.f32 %v1255, -1.4531521
    %v1320 = vadd.f32 %v1256, -1.4531521
    %v1321 = vadd.f32 %v1257, -1.4531521
    %v1322 = vadd.f32 %v1258, -1.4531521
    %v1323 = vadd.f32 %v1259, -1.4531521
    %v1324 = vadd.f32 %v1260, -1.4531521
    %v1325 = vadd.f32 %v1261, -1.4531521
    %v1326 = vadd.f32 %v1262, -1.4531521
    %v1327 = vadd.f32 %v1263, -1.4531521
    %v1328 = vadd.f32 %v1264, -1.4531521
    %v1329 = vadd.f32 %v1265, -1.4531521
    %v1330 = vadd.f32 %v1266, -1.4531521
    %v1331 = vadd.f32 %v1267, -1.4531521
    %v1332 = vadd.f32 %v1268, -1.4531521
    %v1333 = vadd.f32 %v1269, -1.4531521
    %v1334 = vadd.f32 %v1270, -1.4531521
    %v1335 = vadd.f32 %v1271, -1.4531521
    %v1336 = vadd.f32 %v1272, -1.4531521
    %v1337 = vadd.f32 %v1273, -1.4531521
    %v1338 = vadd.f32 %v1274, -1.4531521
    %v1339 = vadd.f32 %v1275, -1.4531521
    %v1340 = vadd.f32 %v1276, -1.4531521
    %v1341 = vadd.f32 %v1277, -1.4531521
    %v1342 = vadd.f32 %v1278, -1.4531521
    %v1343 = vadd.f32 %v1279, -1.4531521
    %v1344 = vadd.f32 %v1280, -1.4531521
    %v1345 = vadd.f32 %v1281, -1.4531521
    %v1346 = vadd.f32 %v1282, -1.4531521
    %v1347 = vadd.f32 %v1283, -1.4531521
    %v1348 = vadd.f32 %v1284, -1.4531521
    %v1349 = vadd.f32 %v1285, -1.4531521
    %v1350 = vadd.f32 %v1286, -1.4531521
    %v1351 = vadd.f32 %v1287, -1.4531521
    %v1352 = vadd.f32 %v1288, -1.4531521
    %v1353 = vadd.f32 %v1289, -1.4531521
    %v1354 = vadd.f32 %v1290, -1.4531521
    %v1355 = vadd.f32 %v1291, -1.4531521
    %v1356 = vadd.f32 %v1292, -1.4531521
    %v1357 = vadd.f32 %v1293, -1.4531521
    %v1358 = vadd.f32 %v1294, -1.4531521
    %v1359 = vadd.f32 %v1295, -1.4531521
    %v1360 = vadd.f32 %v1296, -1.4531521
    %v1361 = vadd.f32 %v1297, -1.4531521
    %v1362 = vadd.f32 %v1298, -1.4531521
    %v1363 = vadd.f32 %v1299, -1.4531521
    %v1364 = vadd.f32 %v1300, -1.4531521
    %v1365 = vadd.f32 %v1301, -1.4531521
    %v1366 = vadd.f32 %v1302, -1.4531521
    %v1367 = vadd.f32 %v1303, -1.4531521
    %v1368 = vadd.f32 %v1304, -1.4531521
    %v1369 = vadd.f32 %v1305, -1.4531521
    %v1370 = vadd.f32 %v1306, -1.4531521
    %v1371 = vadd.f32 %v1307, -1.4531521
    %v1372 = vadd.f32 %v1308, -1.4531521
    %v1373 = vadd.f32 %v1309, -1.4531521
    %v1374 = vadd.f32 %v1310, -1.4531521
    %v1375 = vadd.f32 %v1311, -1.4531521
    %v1376 = vadd.f32 %v1312, -1.4531521
    %v1377 = vadd.f32 %v1313, -1.4531521
    %v1378 = vmul.f32 %v1186, %v1314
    %v1379 = vmul.f32 %v1187, %v1315
    %v1380 = vmul.f32 %v1188, %v1316
    %v1381 = vmul.f32 %v1189, %v1317
    %v1382 = vmul.f32 %v1190, %v1318
    %v1383 = vmul.f32 %v1191, %v1319
    %v1384 = vmul.f32 %v1192, %v1320
    %v1385 = vmul.f32 %v1193, %v1321
    %v1386 = vmul.f32 %v1194, %v1322
    %v1387 = vmul.f32 %v1195, %v1323
    %v1388 = vmul.f32 %v1196, %v1324
    %v1389 = vmul.f32 %v1197, %v1325
    %v1390 = vmul.f32 %v1198, %v1326
    %v1391 = vmul.f32 %v1199, %v1327
    %v1392 = vmul.f32 %v1200, %v1328
    %v1393 = vmul.f32 %v1201, %v1329
    %v1394 = vmul.f32 %v1202, %v1330
    %v1395 = vmul.f32 %v1203, %v1331
    %v1396 = vmul.f32 %v1204, %v1332
    %v1397 = vmul.f32 %v1205, %v1333
    %v1398 = vmul.f32 %v1206, %v1334
    %v1399 = vmul.f32 %v1207, %v1335
    %v1400 = vmul.f32 %v1208, %v1336
    %v1401 = vmul.f32 %v1209, %v1337
    %v1402 = vmul.f32 %v1210, %v1338
    %v1403 = vmul.f32 %v1211, %v1339
    %v1404 = vmul.f32 %v1212, %v1340
    %v1405 = vmul.f32 %v1213, %v1341
    %v1406 = vmul.f32 %v1214, %v1342
    %v1407 = vmul.f32 %v1215, %v1343
    %v1408 = vmul.f32 %v1216, %v1344
    %v1409 = vmul.f32 %v1217, %v1345
    %v1410 = vmul.f32 %v1218, %v1346
    %v1411 = vmul.f32 %v1219, %v1347
    %v1412 = vmul.f32 %v1220, %v1348
    %v1413 = vmul.f32 %v1221, %v1349
    %v1414 = vmul.f32 %v1222, %v1350
    %v1415 = vmul.f32 %v1223, %v1351
    %v1416 = vmul.f32 %v1224, %v1352
    %v1417 = vmul.f32 %v1225, %v1353
    %v1418 = vmul.f32 %v1226, %v1354
    %v1419 = vmul.f32 %v1227, %v1355
    %v1420 = vmul.f32 %v1228, %v1356
    %v1421 = vmul.f32 %v1229, %v1357
    %v1422 = vmul.f32 %v1230, %v1358
    %v1423 = vmul.f32 %v1231, %v1359
    %v1424 = vmul.f32 %v1232, %v1360
    %v1425 = vmul.f32 %v1233, %v1361
    %v1426 = vmul.f32 %v1234, %v1362
    %v1427 = vmul.f32 %v1235, %v1363
    %v1428 = vmul.f32 %v1236, %v1364
    %v1429 = vmul.f32 %v1237, %v1365
    %v1430 = vmul.f32 %v1238, %v1366
    %v1431 = vmul.f32 %v1239, %v1367
    %v1432 = vmul.f32 %v1240, %v1368
    %v1433 = vmul.f32 %v1241, %v1369
    %v1434 = vmul.f32 %v1242, %v1370
    %v1435 = vmul.f32 %v1243, %v1371
    %v1436 = vmul.f32 %v1244, %v1372
    %v1437 = vmul.f32 %v1245, %v1373
    %v1438 = vmul.f32 %v1246, %v1374
    %v1439 = vmul.f32 %v1247, %v1375
    %v1440 = vmul.f32 %v1248, %v1376
    %v1441 = vmul.f32 %v1249, %v1377
    %v1442 = vadd.f32 %v1378, 1.4214138
    %v1443 = vadd.f32 %v1379, 1.4214138
    %v1444 = vadd.f32 %v1380, 1.4214138
    %v1445 = vadd.f32 %v1381, 1.4214138
    %v1446 = vadd.f32 %v1382, 1.4214138
    %v1447 = vadd.f32 %v1383, 1.4214138
    %v1448 = vadd.f32 %v1384, 1.4214138
    %v1449 = vadd.f32 %v1385, 1.4214138
    %v1450 = vadd.f32 %v1386, 1.4214138
    %v1451 = vadd.f32 %v1387, 1.4214138
    %v1452 = vadd.f32 %v1388, 1.4214138
    %v1453 = vadd.f32 %v1389, 1.4214138
    %v1454 = vadd.f32 %v1390, 1.4214138
    %v1455 = vadd.f32 %v1391, 1.4214138
    %v1456 = vadd.f32 %v1392, 1.4214138
    %v1457 = vadd.f32 %v1393, 1.4214138
    %v1458 = vadd.f32 %v1394, 1.4214138
    %v1459 = vadd.f32 %v1395, 1.4214138
    %v1460 = vadd.f32 %v1396, 1.4214138
    %v1461 = vadd.f32 %v1397, 1.4214138
    %v1462 = vadd.f32 %v1398, 1.4214138
    %v1463 = vadd.f32 %v1399, 1.4214138
    %v1464 = vadd.f32 %v1400, 1.4214138
    %v1465 = vadd.f32 %v1401, 1.4214138
    %v1466 = vadd.f32 %v1402, 1.4214138
    %v1467 = vadd.f32 %v1403, 1.4214138
    %v1468 = vadd.f32 %v1404, 1.4214138
    %v1469 = vadd.f32 %v1405, 1.4214138
    %v1470 = vadd.f32 %v1406, 1.4214138
    %v1471 = vadd.f32 %v1407, 1.4214138
    %v1472 = vadd.f32 %v1408, 1.4214138
    %v1473 = vadd.f32 %v1409, 1.4214138
    %v1474 = vadd.f32 %v1410, 1.4214138
    %v1475 = vadd.f32 %v1411, 1.4214138
    %v1476 = vadd.f32 %v1412, 1.4214138
    %v1477 = vadd.f32 %v1413, 1.4214138
    %v1478 = vadd.f32 %v1414, 1.4214138
    %v1479 = vadd.f32 %v1415, 1.4214138
    %v1480 = vadd.f32 %v1416, 1.4214138
    %v1481 = vadd.f32 %v1417, 1.4214138
    %v1482 = vadd.f32 %v1418, 1.4214138
    %v1483 = vadd.f32 %v1419, 1.4214138
    %v1484 = vadd.f32 %v1420, 1.4214138
    %v1485 = vadd.f32 %v1421, 1.4214138
    %v1486 = vadd.f32 %v1422, 1.4214138
    %v1487 = vadd.f32 %v1423, 1.4214138
    %v1488 = vadd.f32 %v1424, 1.4214138
    %v1489 = vadd.f32 %v1425, 1.4214138
    %v1490 = vadd.f32 %v1426, 1.4214138
    %v1491 = vadd.f32 %v1427, 1.4214138
    %v1492 = vadd.f32 %v1428, 1.4214138
    %v1493 = vadd.f32 %v1429, 1.4214138
    %v1494 = vadd.f32 %v1430, 1.4214138
    %v1495 = vadd.f32 %v1431, 1.4214138
    %v1496 = vadd.f32 %v1432, 1.4214138
    %v1497 = vadd.f32 %v1433, 1.4214138
    %v1498 = vadd.f32 %v1434, 1.4214138
    %v1499 = vadd.f32 %v1435, 1.4214138
    %v1500 = vadd.f32 %v1436, 1.4214138
    %v1501 = vadd.f32 %v1437, 1.4214138
    %v1502 = vadd.f32 %v1438, 1.4214138
    %v1503 = vadd.f32 %v1439, 1.4214138
    %v1504 = vadd.f32 %v1440, 1.4214138
    %v1505 = vadd.f32 %v1441, 1.4214138
    %v1506 = vmul.f32 %v1186, %v1442
    %v1507 = vmul.f32 %v1187, %v1443
    %v1508 = vmul.f32 %v1188, %v1444
    %v1509 = vmul.f32 %v1189, %v1445
    %v1510 = vmul.f32 %v1190, %v1446
    %v1511 = vmul.f32 %v1191, %v1447
    %v1512 = vmul.f32 %v1192, %v1448
    %v1513 = vmul.f32 %v1193, %v1449
    %v1514 = vmul.f32 %v1194, %v1450
    %v1515 = vmul.f32 %v1195, %v1451
    %v1516 = vmul.f32 %v1196, %v1452
    %v1517 = vmul.f32 %v1197, %v1453
    %v1518 = vmul.f32 %v1198, %v1454
    %v1519 = vmul.f32 %v1199, %v1455
    %v1520 = vmul.f32 %v1200, %v1456
    %v1521 = vmul.f32 %v1201, %v1457
    %v1522 = vmul.f32 %v1202, %v1458
    %v1523 = vmul.f32 %v1203, %v1459
    %v1524 = vmul.f32 %v1204, %v1460
    %v1525 = vmul.f32 %v1205, %v1461
    %v1526 = vmul.f32 %v1206, %v1462
    %v1527 = vmul.f32 %v1207, %v1463
    %v1528 = vmul.f32 %v1208, %v1464
    %v1529 = vmul.f32 %v1209, %v1465
    %v1530 = vmul.f32 %v1210, %v1466
    %v1531 = vmul.f32 %v1211, %v1467
    %v1532 = vmul.f32 %v1212, %v1468
    %v1533 = vmul.f32 %v1213, %v1469
    %v1534 = vmul.f32 %v1214, %v1470
    %v1535 = vmul.f32 %v1215, %v1471
    %v1536 = vmul.f32 %v1216, %v1472
    %v1537 = vmul.f32 %v1217, %v1473
    %v1538 = vmul.f32 %v1218, %v1474
    %v1539 = vmul.f32 %v1219, %v1475
    %v1540 = vmul.f32 %v1220, %v1476
    %v1541 = vmul.f32 %v1221, %v1477
    %v1542 = vmul.f32 %v1222, %v1478
    %v1543 = vmul.f32 %v1223, %v1479
    %v1544 = vmul.f32 %v1224, %v1480
    %v1545 = vmul.f32 %v1225, %v1481
    %v1546 = vmul.f32 %v1226, %v1482
    %v1547 = vmul.f32 %v1227, %v1483
    %v1548 = vmul.f32 %v1228, %v1484
    %v1549 = vmul.f32 %v1229, %v1485
    %v1550 = vmul.f32 %v1230, %v1486
    %v1551 = vmul.f32 %v1231, %v1487
    %v1552 = vmul.f32 %v1232, %v1488
    %v1553 = vmul.f32 %v1233, %v1489
    %v1554 = vmul.f32 %v1234, %v1490
    %v1555 = vmul.f32 %v1235, %v1491
    %v1556 = vmul.f32 %v1236, %v1492
    %v1557 = vmul.f32 %v1237, %v1493
    %v1558 = vmul.f32 %v1238, %v1494
    %v1559 = vmul.f32 %v1239, %v1495
    %v1560 = vmul.f32 %v1240, %v1496
    %v1561 = vmul.f32 %v1241, %v1497
    %v1562 = vmul.f32 %v1242, %v1498
    %v1563 = vmul.f32 %v1243, %v1499
    %v1564 = vmul.f32 %v1244, %v1500
    %v1565 = vmul.f32 %v1245, %v1501
    %v1566 = vmul.f32 %v1246, %v1502
    %v1567 = vmul.f32 %v1247, %v1503
    %v1568 = vmul.f32 %v1248, %v1504
    %v1569 = vmul.f32 %v1249, %v1505
    %v1570 = vadd.f32 %v1506, -0.28449672
    %v1571 = vadd.f32 %v1507, -0.28449672
    %v1572 = vadd.f32 %v1508, -0.28449672
    %v1573 = vadd.f32 %v1509, -0.28449672
    %v1574 = vadd.f32 %v1510, -0.28449672
    %v1575 = vadd.f32 %v1511, -0.28449672
    %v1576 = vadd.f32 %v1512, -0.28449672
    %v1577 = vadd.f32 %v1513, -0.28449672
    %v1578 = vadd.f32 %v1514, -0.28449672
    %v1579 = vadd.f32 %v1515, -0.28449672
    %v1580 = vadd.f32 %v1516, -0.28449672
    %v1581 = vadd.f32 %v1517, -0.28449672
    %v1582 = vadd.f32 %v1518, -0.28449672
    %v1583 = vadd.f32 %v1519, -0.28449672
    %v1584 = vadd.f32 %v1520, -0.28449672
    %v1585 = vadd.f32 %v1521, -0.28449672
    %v1586 = vadd.f32 %v1522, -0.28449672
    %v1587 = vadd.f32 %v1523, -0.28449672
    %v1588 = vadd.f32 %v1524, -0.28449672
    %v1589 = vadd.f32 %v1525, -0.28449672
    %v1590 = vadd.f32 %v1526, -0.28449672
    %v1591 = vadd.f32 %v1527, -0.28449672
    %v1592 = vadd.f32 %v1528, -0.28449672
    %v1593 = vadd.f32 %v1529, -0.28449672
    %v1594 = vadd.f32 %v1530, -0.28449672
    %v1595 = vadd.f32 %v1531, -0.28449672
    %v1596 = vadd.f32 %v1532, -0.28449672
    %v1597 = vadd.f32 %v1533, -0.28449672
    %v1598 = vadd.f32 %v1534, -0.28449672
    %v1599 = vadd.f32 %v1535, -0.28449672
    %v1600 = vadd.f32 %v1536, -0.28449672
    %v1601 = vadd.f32 %v1537, -0.28449672
    %v1602 = vadd.f32 %v1538, -0.28449672
    %v1603 = vadd.f32 %v1539, -0.28449672
    %v1604 = vadd.f32 %v1540, -0.28449672
    %v1605 = vadd.f32 %v1541, -0.28449672
    %v1606 = vadd.f32 %v1542, -0.28449672
    %v1607 = vadd.f32 %v1543, -0.28449672
    %v1608 = vadd.f32 %v1544, -0.28449672
    %v1609 = vadd.f32 %v1545, -0.28449672
    %v1610 = vadd.f32 %v1546, -0.28449672
    %v1611 = vadd.f32 %v1547, -0.28449672
    %v1612 = vadd.f32 %v1548, -0.28449672
    %v1613 = vadd.f32 %v1549, -0.28449672
    %v1614 = vadd.f32 %v1550, -0.28449672
    %v1615 = vadd.f32 %v1551, -0.28449672
    %v1616 = vadd.f32 %v1552, -0.28449672
    %v1617 = vadd.f32 %v1553, -0.28449672
    %v1618 = vadd.f32 %v1554, -0.28449672
    %v1619 = vadd.f32 %v1555, -0.28449672
    %v1620 = vadd.f32 %v1556, -0.28449672
    %v1621 = vadd.f32 %v1557, -0.28449672
    %v1622 = vadd.f32 %v1558, -0.28449672
    %v1623 = vadd.f32 %v1559, -0.28449672
    %v1624 = vadd.f32 %v1560, -0.28449672
    %v1625 = vadd.f32 %v1561, -0.28449672
    %v1626 = vadd.f32 %v1562, -0.28449672
    %v1627 = vadd.f32 %v1563, -0.28449672
    %v1628 = vadd.f32 %v1564, -0.28449672
    %v1629 = vadd.f32 %v1565, -0.28449672
    %v1630 = vadd.f32 %v1566, -0.28449672
    %v1631 = vadd.f32 %v1567, -0.28449672
    %v1632 = vadd.f32 %v1568, -0.28449672
    %v1633 = vadd.f32 %v1569, -0.28449672
    %v1634 = vmul.f32 %v1186, %v1570
    %v1635 = vmul.f32 %v1187, %v1571
    %v1636 = vmul.f32 %v1188, %v1572
    %v1637 = vmul.f32 %v1189, %v1573
    %v1638 = vmul.f32 %v1190, %v1574
    %v1639 = vmul.f32 %v1191, %v1575
    %v1640 = vmul.f32 %v1192, %v1576
    %v1641 = vmul.f32 %v1193, %v1577
    %v1642 = vmul.f32 %v1194, %v1578
    %v1643 = vmul.f32 %v1195, %v1579
    %v1644 = vmul.f32 %v1196, %v1580
    %v1645 = vmul.f32 %v1197, %v1581
    %v1646 = vmul.f32 %v1198, %v1582
    %v1647 = vmul.f32 %v1199, %v1583
    %v1648 = vmul.f32 %v1200, %v1584
    %v1649 = vmul.f32 %v1201, %v1585
    %v1650 = vmul.f32 %v1202, %v1586
    %v1651 = vmul.f32 %v1203, %v1587
    %v1652 = vmul.f32 %v1204, %v1588
    %v1653 = vmul.f32 %v1205, %v1589
    %v1654 = vmul.f32 %v1206, %v1590
    %v1655 = vmul.f32 %v1207, %v1591
    %v1656 = vmul.f32 %v1208, %v1592
    %v1657 = vmul.f32 %v1209, %v1593
    %v1658 = vmul.f32 %v1210, %v1594
    %v1659 = vmul.f32 %v1211, %v1595
    %v1660 = vmul.f32 %v1212, %v1596
    %v1661 = vmul.f32 %v1213, %v1597
    %v1662 = vmul.f32 %v1214, %v1598
    %v1663 = vmul.f32 %v1215, %v1599
    %v1664 = vmul.f32 %v1216, %v1600
    %v1665 = vmul.f32 %v1217, %v1601
    %v1666 = vmul.f32 %v1218, %v1602
    %v1667 = vmul.f32 %v1219, %v1603
    %v1668 = vmul.f32 %v1220, %v1604
    %v1669 = vmul.f32 %v1221, %v1605
    %v1670 = vmul.f32 %v1222, %v1606
    %v1671 = vmul.f32 %v1223, %v1607
    %v1672 = vmul.f32 %v1224, %v1608
    %v1673 = vmul.f32 %v1225, %v1609
    %v1674 = vmul.f32 %v1226, %v1610
    %v1675 = vmul.f32 %v1227, %v1611
    %v1676 = vmul.f32 %v1228, %v1612
    %v1677 = vmul.f32 %v1229, %v1613
    %v1678 = vmul.f32 %v1230, %v1614
    %v1679 = vmul.f32 %v1231, %v1615
    %v1680 = vmul.f32 %v1232, %v1616
    %v1681 = vmul.f32 %v1233, %v1617
    %v1682 = vmul.f32 %v1234, %v1618
    %v1683 = vmul.f32 %v1235, %v1619
    %v1684 = vmul.f32 %v1236, %v1620
    %v1685 = vmul.f32 %v1237, %v1621
    %v1686 = vmul.f32 %v1238, %v1622
    %v1687 = vmul.f32 %v1239, %v1623
    %v1688 = vmul.f32 %v1240, %v1624
    %v1689 = vmul.f32 %v1241, %v1625
    %v1690 = vmul.f32 %v1242, %v1626
    %v1691 = vmul.f32 %v1243, %v1627
    %v1692 = vmul.f32 %v1244, %v1628
    %v1693 = vmul.f32 %v1245, %v1629
    %v1694 = vmul.f32 %v1246, %v1630
    %v1695 = vmul.f32 %v1247, %v1631
    %v1696 = vmul.f32 %v1248, %v1632
    %v1697 = vmul.f32 %v1249, %v1633
    %v1698 = vadd.f32 %v1634, 0.2548296
    %v1699 = vadd.f32 %v1635, 0.2548296
    %v1700 = vadd.f32 %v1636, 0.2548296
    %v1701 = vadd.f32 %v1637, 0.2548296
    %v1702 = vadd.f32 %v1638, 0.2548296
    %v1703 = vadd.f32 %v1639, 0.2548296
    %v1704 = vadd.f32 %v1640, 0.2548296
    %v1705 = vadd.f32 %v1641, 0.2548296
    %v1706 = vadd.f32 %v1642, 0.2548296
    %v1707 = vadd.f32 %v1643, 0.2548296
    %v1708 = vadd.f32 %v1644, 0.2548296
    %v1709 = vadd.f32 %v1645, 0.2548296
    %v1710 = vadd.f32 %v1646, 0.2548296
    %v1711 = vadd.f32 %v1647, 0.2548296
    %v1712 = vadd.f32 %v1648, 0.2548296
    %v1713 = vadd.f32 %v1649, 0.2548296
    %v1714 = vadd.f32 %v1650, 0.2548296
    %v1715 = vadd.f32 %v1651, 0.2548296
    %v1716 = vadd.f32 %v1652, 0.2548296
    %v1717 = vadd.f32 %v1653, 0.2548296
    %v1718 = vadd.f32 %v1654, 0.2548296
    %v1719 = vadd.f32 %v1655, 0.2548296
    %v1720 = vadd.f32 %v1656, 0.2548296
    %v1721 = vadd.f32 %v1657, 0.2548296
    %v1722 = vadd.f32 %v1658, 0.2548296
    %v1723 = vadd.f32 %v1659, 0.2548296
    %v1724 = vadd.f32 %v1660, 0.2548296
    %v1725 = vadd.f32 %v1661, 0.2548296
    %v1726 = vadd.f32 %v1662, 0.2548296
    %v1727 = vadd.f32 %v1663, 0.2548296
    %v1728 = vadd.f32 %v1664, 0.2548296
    %v1729 = vadd.f32 %v1665, 0.2548296
    %v1730 = vadd.f32 %v1666, 0.2548296
    %v1731 = vadd.f32 %v1667, 0.2548296
    %v1732 = vadd.f32 %v1668, 0.2548296
    %v1733 = vadd.f32 %v1669, 0.2548296
    %v1734 = vadd.f32 %v1670, 0.2548296
    %v1735 = vadd.f32 %v1671, 0.2548296
    %v1736 = vadd.f32 %v1672, 0.2548296
    %v1737 = vadd.f32 %v1673, 0.2548296
    %v1738 = vadd.f32 %v1674, 0.2548296
    %v1739 = vadd.f32 %v1675, 0.2548296
    %v1740 = vadd.f32 %v1676, 0.2548296
    %v1741 = vadd.f32 %v1677, 0.2548296
    %v1742 = vadd.f32 %v1678, 0.2548296
    %v1743 = vadd.f32 %v1679, 0.2548296
    %v1744 = vadd.f32 %v1680, 0.2548296
    %v1745 = vadd.f32 %v1681, 0.2548296
    %v1746 = vadd.f32 %v1682, 0.2548296
    %v1747 = vadd.f32 %v1683, 0.2548296
    %v1748 = vadd.f32 %v1684, 0.2548296
    %v1749 = vadd.f32 %v1685, 0.2548296
    %v1750 = vadd.f32 %v1686, 0.2548296
    %v1751 = vadd.f32 %v1687, 0.2548296
    %v1752 = vadd.f32 %v1688, 0.2548296
    %v1753 = vadd.f32 %v1689, 0.2548296
    %v1754 = vadd.f32 %v1690, 0.2548296
    %v1755 = vadd.f32 %v1691, 0.2548296
    %v1756 = vadd.f32 %v1692, 0.2548296
    %v1757 = vadd.f32 %v1693, 0.2548296
    %v1758 = vadd.f32 %v1694, 0.2548296
    %v1759 = vadd.f32 %v1695, 0.2548296
    %v1760 = vadd.f32 %v1696, 0.2548296
    %v1761 = vadd.f32 %v1697, 0.2548296
    %v1762 = vmul.f32 %v1186, %v1698
    %v1763 = vmul.f32 %v1187, %v1699
    %v1764 = vmul.f32 %v1188, %v1700
    %v1765 = vmul.f32 %v1189, %v1701
    %v1766 = vmul.f32 %v1190, %v1702
    %v1767 = vmul.f32 %v1191, %v1703
    %v1768 = vmul.f32 %v1192, %v1704
    %v1769 = vmul.f32 %v1193, %v1705
    %v1770 = vmul.f32 %v1194, %v1706
    %v1771 = vmul.f32 %v1195, %v1707
    %v1772 = vmul.f32 %v1196, %v1708
    %v1773 = vmul.f32 %v1197, %v1709
    %v1774 = vmul.f32 %v1198, %v1710
    %v1775 = vmul.f32 %v1199, %v1711
    %v1776 = vmul.f32 %v1200, %v1712
    %v1777 = vmul.f32 %v1201, %v1713
    %v1778 = vmul.f32 %v1202, %v1714
    %v1779 = vmul.f32 %v1203, %v1715
    %v1780 = vmul.f32 %v1204, %v1716
    %v1781 = vmul.f32 %v1205, %v1717
    %v1782 = vmul.f32 %v1206, %v1718
    %v1783 = vmul.f32 %v1207, %v1719
    %v1784 = vmul.f32 %v1208, %v1720
    %v1785 = vmul.f32 %v1209, %v1721
    %v1786 = vmul.f32 %v1210, %v1722
    %v1787 = vmul.f32 %v1211, %v1723
    %v1788 = vmul.f32 %v1212, %v1724
    %v1789 = vmul.f32 %v1213, %v1725
    %v1790 = vmul.f32 %v1214, %v1726
    %v1791 = vmul.f32 %v1215, %v1727
    %v1792 = vmul.f32 %v1216, %v1728
    %v1793 = vmul.f32 %v1217, %v1729
    %v1794 = vmul.f32 %v1218, %v1730
    %v1795 = vmul.f32 %v1219, %v1731
    %v1796 = vmul.f32 %v1220, %v1732
    %v1797 = vmul.f32 %v1221, %v1733
    %v1798 = vmul.f32 %v1222, %v1734
    %v1799 = vmul.f32 %v1223, %v1735
    %v1800 = vmul.f32 %v1224, %v1736
    %v1801 = vmul.f32 %v1225, %v1737
    %v1802 = vmul.f32 %v1226, %v1738
    %v1803 = vmul.f32 %v1227, %v1739
    %v1804 = vmul.f32 %v1228, %v1740
    %v1805 = vmul.f32 %v1229, %v1741
    %v1806 = vmul.f32 %v1230, %v1742
    %v1807 = vmul.f32 %v1231, %v1743
    %v1808 = vmul.f32 %v1232, %v1744
    %v1809 = vmul.f32 %v1233, %v1745
    %v1810 = vmul.f32 %v1234, %v1746
    %v1811 = vmul.f32 %v1235, %v1747
    %v1812 = vmul.f32 %v1236, %v1748
    %v1813 = vmul.f32 %v1237, %v1749
    %v1814 = vmul.f32 %v1238, %v1750
    %v1815 = vmul.f32 %v1239, %v1751
    %v1816 = vmul.f32 %v1240, %v1752
    %v1817 = vmul.f32 %v1241, %v1753
    %v1818 = vmul.f32 %v1242, %v1754
    %v1819 = vmul.f32 %v1243, %v1755
    %v1820 = vmul.f32 %v1244, %v1756
    %v1821 = vmul.f32 %v1245, %v1757
    %v1822 = vmul.f32 %v1246, %v1758
    %v1823 = vmul.f32 %v1247, %v1759
    %v1824 = vmul.f32 %v1248, %v1760
    %v1825 = vmul.f32 %v1249, %v1761
    %v1826 = vsub.f32 0.0, %v994
    %v1827 = vsub.f32 0.0, %v995
    %v1828 = vsub.f32 0.0, %v996
    %v1829 = vsub.f32 0.0, %v997
    %v1830 = vsub.f32 0.0, %v998
    %v1831 = vsub.f32 0.0, %v999
    %v1832 = vsub.f32 0.0, %v1000
    %v1833 = vsub.f32 0.0, %v1001
    %v1834 = vsub.f32 0.0, %v1002
    %v1835 = vsub.f32 0.0, %v1003
    %v1836 = vsub.f32 0.0, %v1004
    %v1837 = vsub.f32 0.0, %v1005
    %v1838 = vsub.f32 0.0, %v1006
    %v1839 = vsub.f32 0.0, %v1007
    %v1840 = vsub.f32 0.0, %v1008
    %v1841 = vsub.f32 0.0, %v1009
    %v1842 = vsub.f32 0.0, %v1010
    %v1843 = vsub.f32 0.0, %v1011
    %v1844 = vsub.f32 0.0, %v1012
    %v1845 = vsub.f32 0.0, %v1013
    %v1846 = vsub.f32 0.0, %v1014
    %v1847 = vsub.f32 0.0, %v1015
    %v1848 = vsub.f32 0.0, %v1016
    %v1849 = vsub.f32 0.0, %v1017
    %v1850 = vsub.f32 0.0, %v1018
    %v1851 = vsub.f32 0.0, %v1019
    %v1852 = vsub.f32 0.0, %v1020
    %v1853 = vsub.f32 0.0, %v1021
    %v1854 = vsub.f32 0.0, %v1022
    %v1855 = vsub.f32 0.0, %v1023
    %v1856 = vsub.f32 0.0, %v1024
    %v1857 = vsub.f32 0.0, %v1025
    %v1858 = vsub.f32 0.0, %v1026
    %v1859 = vsub.f32 0.0, %v1027
    %v1860 = vsub.f32 0.0, %v1028
    %v1861 = vsub.f32 0.0, %v1029
    %v1862 = vsub.f32 0.0, %v1030
    %v1863 = vsub.f32 0.0, %v1031
    %v1864 = vsub.f32 0.0, %v1032
    %v1865 = vsub.f32 0.0, %v1033
    %v1866 = vsub.f32 0.0, %v1034
    %v1867 = vsub.f32 0.0, %v1035
    %v1868 = vsub.f32 0.0, %v1036
    %v1869 = vsub.f32 0.0, %v1037
    %v1870 = vsub.f32 0.0, %v1038
    %v1871 = vsub.f32 0.0, %v1039
    %v1872 = vsub.f32 0.0, %v1040
    %v1873 = vsub.f32 0.0, %v1041
    %v1874 = vsub.f32 0.0, %v1042
    %v1875 = vsub.f32 0.0, %v1043
    %v1876 = vsub.f32 0.0, %v1044
    %v1877 = vsub.f32 0.0, %v1045
    %v1878 = vsub.f32 0.0, %v1046
    %v1879 = vsub.f32 0.0, %v1047
    %v1880 = vsub.f32 0.0, %v1048
    %v1881 = vsub.f32 0.0, %v1049
    %v1882 = vsub.f32 0.0, %v1050
    %v1883 = vsub.f32 0.0, %v1051
    %v1884 = vsub.f32 0.0, %v1052
    %v1885 = vsub.f32 0.0, %v1053
    %v1886 = vsub.f32 0.0, %v1054
    %v1887 = vsub.f32 0.0, %v1055
    %v1888 = vsub.f32 0.0, %v1056
    %v1889 = vsub.f32 0.0, %v1057
    %v1890 = vmul.f32 %v1826, %v994
    %v1891 = vmul.f32 %v1827, %v995
    %v1892 = vmul.f32 %v1828, %v996
    %v1893 = vmul.f32 %v1829, %v997
    %v1894 = vmul.f32 %v1830, %v998
    %v1895 = vmul.f32 %v1831, %v999
    %v1896 = vmul.f32 %v1832, %v1000
    %v1897 = vmul.f32 %v1833, %v1001
    %v1898 = vmul.f32 %v1834, %v1002
    %v1899 = vmul.f32 %v1835, %v1003
    %v1900 = vmul.f32 %v1836, %v1004
    %v1901 = vmul.f32 %v1837, %v1005
    %v1902 = vmul.f32 %v1838, %v1006
    %v1903 = vmul.f32 %v1839, %v1007
    %v1904 = vmul.f32 %v1840, %v1008
    %v1905 = vmul.f32 %v1841, %v1009
    %v1906 = vmul.f32 %v1842, %v1010
    %v1907 = vmul.f32 %v1843, %v1011
    %v1908 = vmul.f32 %v1844, %v1012
    %v1909 = vmul.f32 %v1845, %v1013
    %v1910 = vmul.f32 %v1846, %v1014
    %v1911 = vmul.f32 %v1847, %v1015
    %v1912 = vmul.f32 %v1848, %v1016
    %v1913 = vmul.f32 %v1849, %v1017
    %v1914 = vmul.f32 %v1850, %v1018
    %v1915 = vmul.f32 %v1851, %v1019
    %v1916 = vmul.f32 %v1852, %v1020
    %v1917 = vmul.f32 %v1853, %v1021
    %v1918 = vmul.f32 %v1854, %v1022
    %v1919 = vmul.f32 %v1855, %v1023
    %v1920 = vmul.f32 %v1856, %v1024
    %v1921 = vmul.f32 %v1857, %v1025
    %v1922 = vmul.f32 %v1858, %v1026
    %v1923 = vmul.f32 %v1859, %v1027
    %v1924 = vmul.f32 %v1860, %v1028
    %v1925 = vmul.f32 %v1861, %v1029
    %v1926 = vmul.f32 %v1862, %v1030
    %v1927 = vmul.f32 %v1863, %v1031
    %v1928 = vmul.f32 %v1864, %v1032
    %v1929 = vmul.f32 %v1865, %v1033
    %v1930 = vmul.f32 %v1866, %v1034
    %v1931 = vmul.f32 %v1867, %v1035
    %v1932 = vmul.f32 %v1868, %v1036
    %v1933 = vmul.f32 %v1869, %v1037
    %v1934 = vmul.f32 %v1870, %v1038
    %v1935 = vmul.f32 %v1871, %v1039
    %v1936 = vmul.f32 %v1872, %v1040
    %v1937 = vmul.f32 %v1873, %v1041
    %v1938 = vmul.f32 %v1874, %v1042
    %v1939 = vmul.f32 %v1875, %v1043
    %v1940 = vmul.f32 %v1876, %v1044
    %v1941 = vmul.f32 %v1877, %v1045
    %v1942 = vmul.f32 %v1878, %v1046
    %v1943 = vmul.f32 %v1879, %v1047
    %v1944 = vmul.f32 %v1880, %v1048
    %v1945 = vmul.f32 %v1881, %v1049
    %v1946 = vmul.f32 %v1882, %v1050
    %v1947 = vmul.f32 %v1883, %v1051
    %v1948 = vmul.f32 %v1884, %v1052
    %v1949 = vmul.f32 %v1885, %v1053
    %v1950 = vmul.f32 %v1886, %v1054
    %v1951 = vmul.f32 %v1887, %v1055
    %v1952 = vmul.f32 %v1888, %v1056
    %v1953 = vmul.f32 %v1889, %v1057
    %v1954 = vmul.f32 %v1890, 1.442695
    %v1955 = vpow.pop %v1954
    %v1956 = vmul.f32 %v1891, 1.442695
    %v1957 = vpow.pop %v1956
    %v1958 = vmul.f32 %v1892, 1.442695
    %v1959 = vpow.pop %v1958
    %v1960 = vmul.f32 %v1893, 1.442695
    %v1961 = vpow.pop %v1960
    %v1962 = vmul.f32 %v1894, 1.442695
    %v1963 = vpow.pop %v1962
    %v1964 = vmul.f32 %v1895, 1.442695
    %v1965 = vpow.pop %v1964
    %v1966 = vmul.f32 %v1896, 1.442695
    %v1967 = vpow.pop %v1966
    %v1968 = vmul.f32 %v1897, 1.442695
    %v1969 = vpow.pop %v1968
    %v1970 = vmul.f32 %v1898, 1.442695
    %v1971 = vpow.pop %v1970
    %v1972 = vmul.f32 %v1899, 1.442695
    %v1973 = vpow.pop %v1972
    %v1974 = vmul.f32 %v1900, 1.442695
    %v1975 = vpow.pop %v1974
    %v1976 = vmul.f32 %v1901, 1.442695
    %v1977 = vpow.pop %v1976
    %v1978 = vmul.f32 %v1902, 1.442695
    %v1979 = vpow.pop %v1978
    %v1980 = vmul.f32 %v1903, 1.442695
    %v1981 = vpow.pop %v1980
    %v1982 = vmul.f32 %v1904, 1.442695
    %v1983 = vpow.pop %v1982
    %v1984 = vmul.f32 %v1905, 1.442695
    %v1985 = vpow.pop %v1984
    %v1986 = vmul.f32 %v1906, 1.442695
    %v1987 = vpow.pop %v1986
    %v1988 = vmul.f32 %v1907, 1.442695
    %v1989 = vpow.pop %v1988
    %v1990 = vmul.f32 %v1908, 1.442695
    %v1991 = vpow.pop %v1990
    %v1992 = vmul.f32 %v1909, 1.442695
    %v1993 = vpow.pop %v1992
    %v1994 = vmul.f32 %v1910, 1.442695
    %v1995 = vpow.pop %v1994
    %v1996 = vmul.f32 %v1911, 1.442695
    %v1997 = vpow.pop %v1996
    %v1998 = vmul.f32 %v1912, 1.442695
    %v1999 = vpow.pop %v1998
    %v2000 = vmul.f32 %v1913, 1.442695
    %v2001 = vpow.pop %v2000
    %v2002 = vmul.f32 %v1914, 1.442695
    %v2003 = vpow.pop %v2002
    %v2004 = vmul.f32 %v1915, 1.442695
    %v2005 = vpow.pop %v2004
    %v2006 = vmul.f32 %v1916, 1.442695
    %v2007 = vpow.pop %v2006
    %v2008 = vmul.f32 %v1917, 1.442695
    %v2009 = vpow.pop %v2008
    %v2010 = vmul.f32 %v1918, 1.442695
    %v2011 = vpow.pop %v2010
    %v2012 = vmul.f32 %v1919, 1.442695
    %v2013 = vpow.pop %v2012
    %v2014 = vmul.f32 %v1920, 1.442695
    %v2015 = vpow.pop %v2014
    %v2016 = vmul.f32 %v1921, 1.442695
    %v2017 = vpow.pop %v2016
    %v2018 = vmul.f32 %v1922, 1.442695
    %v2019 = vpow.pop %v2018
    %v2020 = vmul.f32 %v1923, 1.442695
    %v2021 = vpow.pop %v2020
    %v2022 = vmul.f32 %v1924, 1.442695
    %v2023 = vpow.pop %v2022
    %v2024 = vmul.f32 %v1925, 1.442695
    %v2025 = vpow.pop %v2024
    %v2026 = vmul.f32 %v1926, 1.442695
    %v2027 = vpow.pop %v2026
    %v2028 = vmul.f32 %v1927, 1.442695
    %v2029 = vpow.pop %v2028
    %v2030 = vmul.f32 %v1928, 1.442695
    %v2031 = vpow.pop %v2030
    %v2032 = vmul.f32 %v1929, 1.442695
    %v2033 = vpow.pop %v2032
    %v2034 = vmul.f32 %v1930, 1.442695
    %v2035 = vpow.pop %v2034
    %v2036 = vmul.f32 %v1931, 1.442695
    %v2037 = vpow.pop %v2036
    %v2038 = vmul.f32 %v1932, 1.442695
    %v2039 = vpow.pop %v2038
    %v2040 = vmul.f32 %v1933, 1.442695
    %v2041 = vpow.pop %v2040
    %v2042 = vmul.f32 %v1934, 1.442695
    %v2043 = vpow.pop %v2042
    %v2044 = vmul.f32 %v1935, 1.442695
    %v2045 = vpow.pop %v2044
    %v2046 = vmul.f32 %v1936, 1.442695
    %v2047 = vpow.pop %v2046
    %v2048 = vmul.f32 %v1937, 1.442695
    %v2049 = vpow.pop %v2048
    %v2050 = vmul.f32 %v1938, 1.442695
    %v2051 = vpow.pop %v2050
    %v2052 = vmul.f32 %v1939, 1.442695
    %v2053 = vpow.pop %v2052
    %v2054 = vmul.f32 %v1940, 1.442695
    %v2055 = vpow.pop %v2054
    %v2056 = vmul.f32 %v1941, 1.442695
    %v2057 = vpow.pop %v2056
    %v2058 = vmul.f32 %v1942, 1.442695
    %v2059 = vpow.pop %v2058
    %v2060 = vmul.f32 %v1943, 1.442695
    %v2061 = vpow.pop %v2060
    %v2062 = vmul.f32 %v1944, 1.442695
    %v2063 = vpow.pop %v2062
    %v2064 = vmul.f32 %v1945, 1.442695
    %v2065 = vpow.pop %v2064
    %v2066 = vmul.f32 %v1946, 1.442695
    %v2067 = vpow.pop %v2066
    %v2068 = vmul.f32 %v1947, 1.442695
    %v2069 = vpow.pop %v2068
    %v2070 = vmul.f32 %v1948, 1.442695
    %v2071 = vpow.pop %v2070
    %v2072 = vmul.f32 %v1949, 1.442695
    %v2073 = vpow.pop %v2072
    %v2074 = vmul.f32 %v1950, 1.442695
    %v2075 = vpow.pop %v2074
    %v2076 = vmul.f32 %v1951, 1.442695
    %v2077 = vpow.pop %v2076
    %v2078 = vmul.f32 %v1952, 1.442695
    %v2079 = vpow.pop %v2078
    %v2080 = vmul.f32 %v1953, 1.442695
    %v2081 = vpow.pop %v2080
    %v2082 = vmul.f32 %v1762, %v1955
    %v2083 = vmul.f32 %v1763, %v1957
    %v2084 = vmul.f32 %v1764, %v1959
    %v2085 = vmul.f32 %v1765, %v1961
    %v2086 = vmul.f32 %v1766, %v1963
    %v2087 = vmul.f32 %v1767, %v1965
    %v2088 = vmul.f32 %v1768, %v1967
    %v2089 = vmul.f32 %v1769, %v1969
    %v2090 = vmul.f32 %v1770, %v1971
    %v2091 = vmul.f32 %v1771, %v1973
    %v2092 = vmul.f32 %v1772, %v1975
    %v2093 = vmul.f32 %v1773, %v1977
    %v2094 = vmul.f32 %v1774, %v1979
    %v2095 = vmul.f32 %v1775, %v1981
    %v2096 = vmul.f32 %v1776, %v1983
    %v2097 = vmul.f32 %v1777, %v1985
    %v2098 = vmul.f32 %v1778, %v1987
    %v2099 = vmul.f32 %v1779, %v1989
    %v2100 = vmul.f32 %v1780, %v1991
    %v2101 = vmul.f32 %v1781, %v1993
    %v2102 = vmul.f32 %v1782, %v1995
    %v2103 = vmul.f32 %v1783, %v1997
    %v2104 = vmul.f32 %v1784, %v1999
    %v2105 = vmul.f32 %v1785, %v2001
    %v2106 = vmul.f32 %v1786, %v2003
    %v2107 = vmul.f32 %v1787, %v2005
    %v2108 = vmul.f32 %v1788, %v2007
    %v2109 = vmul.f32 %v1789, %v2009
    %v2110 = vmul.f32 %v1790, %v2011
    %v2111 = vmul.f32 %v1791, %v2013
    %v2112 = vmul.f32 %v1792, %v2015
    %v2113 = vmul.f32 %v1793, %v2017
    %v2114 = vmul.f32 %v1794, %v2019
    %v2115 = vmul.f32 %v1795, %v2021
    %v2116 = vmul.f32 %v1796, %v2023
    %v2117 = vmul.f32 %v1797, %v2025
    %v2118 = vmul.f32 %v1798, %v2027
    %v2119 = vmul.f32 %v1799, %v2029
    %v2120 = vmul.f32 %v1800, %v2031
    %v2121 = vmul.f32 %v1801, %v2033
    %v2122 = vmul.f32 %v1802, %v2035
    %v2123 = vmul.f32 %v1803, %v2037
    %v2124 = vmul.f32 %v1804, %v2039
    %v2125 = vmul.f32 %v1805, %v2041
    %v2126 = vmul.f32 %v1806, %v2043
    %v2127 = vmul.f32 %v1807, %v2045
    %v2128 = vmul.f32 %v1808, %v2047
    %v2129 = vmul.f32 %v1809, %v2049
    %v2130 = vmul.f32 %v1810, %v2051
    %v2131 = vmul.f32 %v1811, %v2053
    %v2132 = vmul.f32 %v1812, %v2055
    %v2133 = vmul.f32 %v1813, %v2057
    %v2134 = vmul.f32 %v1814, %v2059
    %v2135 = vmul.f32 %v1815, %v2061
    %v2136 = vmul.f32 %v1816, %v2063
    %v2137 = vmul.f32 %v1817, %v2065
    %v2138 = vmul.f32 %v1818, %v2067
    %v2139 = vmul.f32 %v1819, %v2069
    %v2140 = vmul.f32 %v1820, %v2071
    %v2141 = vmul.f32 %v1821, %v2073
    %v2142 = vmul.f32 %v1822, %v2075
    %v2143 = vmul.f32 %v1823, %v2077
    %v2144 = vmul.f32 %v1824, %v2079
    %v2145 = vmul.f32 %v1825, %v2081
    %v2146 = vsub.f32 1.0, %v2082
    %v2147 = vsub.f32 1.0, %v2083
    %v2148 = vsub.f32 1.0, %v2084
    %v2149 = vsub.f32 1.0, %v2085
    %v2150 = vsub.f32 1.0, %v2086
    %v2151 = vsub.f32 1.0, %v2087
    %v2152 = vsub.f32 1.0, %v2088
    %v2153 = vsub.f32 1.0, %v2089
    %v2154 = vsub.f32 1.0, %v2090
    %v2155 = vsub.f32 1.0, %v2091
    %v2156 = vsub.f32 1.0, %v2092
    %v2157 = vsub.f32 1.0, %v2093
    %v2158 = vsub.f32 1.0, %v2094
    %v2159 = vsub.f32 1.0, %v2095
    %v2160 = vsub.f32 1.0, %v2096
    %v2161 = vsub.f32 1.0, %v2097
    %v2162 = vsub.f32 1.0, %v2098
    %v2163 = vsub.f32 1.0, %v2099
    %v2164 = vsub.f32 1.0, %v2100
    %v2165 = vsub.f32 1.0, %v2101
    %v2166 = vsub.f32 1.0, %v2102
    %v2167 = vsub.f32 1.0, %v2103
    %v2168 = vsub.f32 1.0, %v2104
    %v2169 = vsub.f32 1.0, %v2105
    %v2170 = vsub.f32 1.0, %v2106
    %v2171 = vsub.f32 1.0, %v2107
    %v2172 = vsub.f32 1.0, %v2108
    %v2173 = vsub.f32 1.0, %v2109
    %v2174 = vsub.f32 1.0, %v2110
    %v2175 = vsub.f32 1.0, %v2111
    %v2176 = vsub.f32 1.0, %v2112
    %v2177 = vsub.f32 1.0, %v2113
    %v2178 = vsub.f32 1.0, %v2114
    %v2179 = vsub.f32 1.0, %v2115
    %v2180 = vsub.f32 1.0, %v2116
    %v2181 = vsub.f32 1.0, %v2117
    %v2182 = vsub.f32 1.0, %v2118
    %v2183 = vsub.f32 1.0, %v2119
    %v2184 = vsub.f32 1.0, %v2120
    %v2185 = vsub.f32 1.0, %v2121
    %v2186 = vsub.f32 1.0, %v2122
    %v2187 = vsub.f32 1.0, %v2123
    %v2188 = vsub.f32 1.0, %v2124
    %v2189 = vsub.f32 1.0, %v2125
    %v2190 = vsub.f32 1.0, %v2126
    %v2191 = vsub.f32 1.0, %v2127
    %v2192 = vsub.f32 1.0, %v2128
    %v2193 = vsub.f32 1.0, %v2129
    %v2194 = vsub.f32 1.0, %v2130
    %v2195 = vsub.f32 1.0, %v2131
    %v2196 = vsub.f32 1.0, %v2132
    %v2197 = vsub.f32 1.0, %v2133
    %v2198 = vsub.f32 1.0, %v2134
    %v2199 = vsub.f32 1.0, %v2135
    %v2200 = vsub.f32 1.0, %v2136
    %v2201 = vsub.f32 1.0, %v2137
    %v2202 = vsub.f32 1.0, %v2138
    %v2203 = vsub.f32 1.0, %v2139
    %v2204 = vsub.f32 1.0, %v2140
    %v2205 = vsub.f32 1.0, %v2141
    %v2206 = vsub.f32 1.0, %v2142
    %v2207 = vsub.f32 1.0, %v2143
    %v2208 = vsub.f32 1.0, %v2144
    %v2209 = vsub.f32 1.0, %v2145
    %v2210 = vmul.f32 %v930, %v2146
    %v2211 = vmul.f32 %v931, %v2147
    %v2212 = vmul.f32 %v932, %v2148
    %v2213 = vmul.f32 %v933, %v2149
    %v2214 = vmul.f32 %v934, %v2150
    %v2215 = vmul.f32 %v935, %v2151
    %v2216 = vmul.f32 %v936, %v2152
    %v2217 = vmul.f32 %v937, %v2153
    %v2218 = vmul.f32 %v938, %v2154
    %v2219 = vmul.f32 %v939, %v2155
    %v2220 = vmul.f32 %v940, %v2156
    %v2221 = vmul.f32 %v941, %v2157
    %v2222 = vmul.f32 %v942, %v2158
    %v2223 = vmul.f32 %v943, %v2159
    %v2224 = vmul.f32 %v944, %v2160
    %v2225 = vmul.f32 %v945, %v2161
    %v2226 = vmul.f32 %v946, %v2162
    %v2227 = vmul.f32 %v947, %v2163
    %v2228 = vmul.f32 %v948, %v2164
    %v2229 = vmul.f32 %v949, %v2165
    %v2230 = vmul.f32 %v950, %v2166
    %v2231 = vmul.f32 %v951, %v2167
    %v2232 = vmul.f32 %v952, %v2168
    %v2233 = vmul.f32 %v953, %v2169
    %v2234 = vmul.f32 %v954, %v2170
    %v2235 = vmul.f32 %v955, %v2171
    %v2236 = vmul.f32 %v956, %v2172
    %v2237 = vmul.f32 %v957, %v2173
    %v2238 = vmul.f32 %v958, %v2174
    %v2239 = vmul.f32 %v959, %v2175
    %v2240 = vmul.f32 %v960, %v2176
    %v2241 = vmul.f32 %v961, %v2177
    %v2242 = vmul.f32 %v962, %v2178
    %v2243 = vmul.f32 %v963, %v2179
    %v2244 = vmul.f32 %v964, %v2180
    %v2245 = vmul.f32 %v965, %v2181
    %v2246 = vmul.f32 %v966, %v2182
    %v2247 = vmul.f32 %v967, %v2183
    %v2248 = vmul.f32 %v968, %v2184
    %v2249 = vmul.f32 %v969, %v2185
    %v2250 = vmul.f32 %v970, %v2186
    %v2251 = vmul.f32 %v971, %v2187
    %v2252 = vmul.f32 %v972, %v2188
    %v2253 = vmul.f32 %v973, %v2189
    %v2254 = vmul.f32 %v974, %v2190
    %v2255 = vmul.f32 %v975, %v2191
    %v2256 = vmul.f32 %v976, %v2192
    %v2257 = vmul.f32 %v977, %v2193
    %v2258 = vmul.f32 %v978, %v2194
    %v2259 = vmul.f32 %v979, %v2195
    %v2260 = vmul.f32 %v980, %v2196
    %v2261 = vmul.f32 %v981, %v2197
    %v2262 = vmul.f32 %v982, %v2198
    %v2263 = vmul.f32 %v983, %v2199
    %v2264 = vmul.f32 %v984, %v2200
    %v2265 = vmul.f32 %v985, %v2201
    %v2266 = vmul.f32 %v986, %v2202
    %v2267 = vmul.f32 %v987, %v2203
    %v2268 = vmul.f32 %v988, %v2204
    %v2269 = vmul.f32 %v989, %v2205
    %v2270 = vmul.f32 %v990, %v2206
    %v2271 = vmul.f32 %v991, %v2207
    %v2272 = vmul.f32 %v992, %v2208
    %v2273 = vmul.f32 %v993, %v2209
    %v2274 = vadd.f32 %v2210, 1.0
    %v2275 = vadd.f32 %v2211, 1.0
    %v2276 = vadd.f32 %v2212, 1.0
    %v2277 = vadd.f32 %v2213, 1.0
    %v2278 = vadd.f32 %v2214, 1.0
    %v2279 = vadd.f32 %v2215, 1.0
    %v2280 = vadd.f32 %v2216, 1.0
    %v2281 = vadd.f32 %v2217, 1.0
    %v2282 = vadd.f32 %v2218, 1.0
    %v2283 = vadd.f32 %v2219, 1.0
    %v2284 = vadd.f32 %v2220, 1.0
    %v2285 = vadd.f32 %v2221, 1.0
    %v2286 = vadd.f32 %v2222, 1.0
    %v2287 = vadd.f32 %v2223, 1.0
    %v2288 = vadd.f32 %v2224, 1.0
    %v2289 = vadd.f32 %v2225, 1.0
    %v2290 = vadd.f32 %v2226, 1.0
    %v2291 = vadd.f32 %v2227, 1.0
    %v2292 = vadd.f32 %v2228, 1.0
    %v2293 = vadd.f32 %v2229, 1.0
    %v2294 = vadd.f32 %v2230, 1.0
    %v2295 = vadd.f32 %v2231, 1.0
    %v2296 = vadd.f32 %v2232, 1.0
    %v2297 = vadd.f32 %v2233, 1.0
    %v2298 = vadd.f32 %v2234, 1.0
    %v2299 = vadd.f32 %v2235, 1.0
    %v2300 = vadd.f32 %v2236, 1.0
    %v2301 = vadd.f32 %v2237, 1.0
    %v2302 = vadd.f32 %v2238, 1.0
    %v2303 = vadd.f32 %v2239, 1.0
    %v2304 = vadd.f32 %v2240, 1.0
    %v2305 = vadd.f32 %v2241, 1.0
    %v2306 = vadd.f32 %v2242, 1.0
    %v2307 = vadd.f32 %v2243, 1.0
    %v2308 = vadd.f32 %v2244, 1.0
    %v2309 = vadd.f32 %v2245, 1.0
    %v2310 = vadd.f32 %v2246, 1.0
    %v2311 = vadd.f32 %v2247, 1.0
    %v2312 = vadd.f32 %v2248, 1.0
    %v2313 = vadd.f32 %v2249, 1.0
    %v2314 = vadd.f32 %v2250, 1.0
    %v2315 = vadd.f32 %v2251, 1.0
    %v2316 = vadd.f32 %v2252, 1.0
    %v2317 = vadd.f32 %v2253, 1.0
    %v2318 = vadd.f32 %v2254, 1.0
    %v2319 = vadd.f32 %v2255, 1.0
    %v2320 = vadd.f32 %v2256, 1.0
    %v2321 = vadd.f32 %v2257, 1.0
    %v2322 = vadd.f32 %v2258, 1.0
    %v2323 = vadd.f32 %v2259, 1.0
    %v2324 = vadd.f32 %v2260, 1.0
    %v2325 = vadd.f32 %v2261, 1.0
    %v2326 = vadd.f32 %v2262, 1.0
    %v2327 = vadd.f32 %v2263, 1.0
    %v2328 = vadd.f32 %v2264, 1.0
    %v2329 = vadd.f32 %v2265, 1.0
    %v2330 = vadd.f32 %v2266, 1.0
    %v2331 = vadd.f32 %v2267, 1.0
    %v2332 = vadd.f32 %v2268, 1.0
    %v2333 = vadd.f32 %v2269, 1.0
    %v2334 = vadd.f32 %v2270, 1.0
    %v2335 = vadd.f32 %v2271, 1.0
    %v2336 = vadd.f32 %v2272, 1.0
    %v2337 = vadd.f32 %v2273, 1.0
    %v2338 = vmul.f32 %v738, %v2274
    %v2339 = vmul.f32 %v739, %v2275
    %v2340 = vmul.f32 %v740, %v2276
    %v2341 = vmul.f32 %v741, %v2277
    %v2342 = vmul.f32 %v742, %v2278
    %v2343 = vmul.f32 %v743, %v2279
    %v2344 = vmul.f32 %v744, %v2280
    %v2345 = vmul.f32 %v745, %v2281
    %v2346 = vmul.f32 %v746, %v2282
    %v2347 = vmul.f32 %v747, %v2283
    %v2348 = vmul.f32 %v748, %v2284
    %v2349 = vmul.f32 %v749, %v2285
    %v2350 = vmul.f32 %v750, %v2286
    %v2351 = vmul.f32 %v751, %v2287
    %v2352 = vmul.f32 %v752, %v2288
    %v2353 = vmul.f32 %v753, %v2289
    %v2354 = vmul.f32 %v754, %v2290
    %v2355 = vmul.f32 %v755, %v2291
    %v2356 = vmul.f32 %v756, %v2292
    %v2357 = vmul.f32 %v757, %v2293
    %v2358 = vmul.f32 %v758, %v2294
    %v2359 = vmul.f32 %v759, %v2295
    %v2360 = vmul.f32 %v760, %v2296
    %v2361 = vmul.f32 %v761, %v2297
    %v2362 = vmul.f32 %v762, %v2298
    %v2363 = vmul.f32 %v763, %v2299
    %v2364 = vmul.f32 %v764, %v2300
    %v2365 = vmul.f32 %v765, %v2301
    %v2366 = vmul.f32 %v766, %v2302
    %v2367 = vmul.f32 %v767, %v2303
    %v2368 = vmul.f32 %v768, %v2304
    %v2369 = vmul.f32 %v769, %v2305
    %v2370 = vmul.f32 %v770, %v2306
    %v2371 = vmul.f32 %v771, %v2307
    %v2372 = vmul.f32 %v772, %v2308
    %v2373 = vmul.f32 %v773, %v2309
    %v2374 = vmul.f32 %v774, %v2310
    %v2375 = vmul.f32 %v775, %v2311
    %v2376 = vmul.f32 %v776, %v2312
    %v2377 = vmul.f32 %v777, %v2313
    %v2378 = vmul.f32 %v778, %v2314
    %v2379 = vmul.f32 %v779, %v2315
    %v2380 = vmul.f32 %v780, %v2316
    %v2381 = vmul.f32 %v781, %v2317
    %v2382 = vmul.f32 %v782, %v2318
    %v2383 = vmul.f32 %v783, %v2319
    %v2384 = vmul.f32 %v784, %v2320
    %v2385 = vmul.f32 %v785, %v2321
    %v2386 = vmul.f32 %v786, %v2322
    %v2387 = vmul.f32 %v787, %v2323
    %v2388 = vmul.f32 %v788, %v2324
    %v2389 = vmul.f32 %v789, %v2325
    %v2390 = vmul.f32 %v790, %v2326
    %v2391 = vmul.f32 %v791, %v2327
    %v2392 = vmul.f32 %v792, %v2328
    %v2393 = vmul.f32 %v793, %v2329
    %v2394 = vmul.f32 %v794, %v2330
    %v2395 = vmul.f32 %v795, %v2331
    %v2396 = vmul.f32 %v796, %v2332
    %v2397 = vmul.f32 %v797, %v2333
    %v2398 = vmul.f32 %v798, %v2334
    %v2399 = vmul.f32 %v799, %v2335
    %v2400 = vmul.f32 %v800, %v2336
    %v2401 = vmul.f32 %v801, %v2337
    %v2402 = vld [vmem:[#allocation8] sm:$0xff]
    %v2403 = vld [vmem:[#allocation8 + $0x8] sm:$0xff]
    %v2404 = vld [vmem:[#allocation8 + $0x10] sm:$0xff]
    %v2405 = vld [vmem:[#allocation8 + $0x18] sm:$0xff]
    %v2406 = vld [vmem:[#allocation8 + $0x20] sm:$0xff]
    %v2407 = vld [vmem:[#allocation8 + $0x28] sm:$0xff]
    %v2408 = vld [vmem:[#allocation8 + $0x30] sm:$0xff]
    %v2409 = vld [vmem:[#allocation8 + $0x38] sm:$0xff]
    %v2410 = vld [vmem:[#allocation10] sm:$0x1]
    %v2412 = vlaneseq
    %v2413 = vshrl.u32 %v2412, 7
    %v2414 = vsub.s32 0, %v2413
    %v2415 = vrot.slane %v2410, %v2414
    %vm2417 = vcmask 523264
    %v2419 = vsel %vm2417, %v2338, 0
    %v2422 = vsel %vm2417, %v2339, 0
    %v2425 = vsel %vm2417, %v2340, 0
    %v2428 = vsel %vm2417, %v2341, 0
    %v2431 = vsel %vm2417, %v2342, 0
    %v2434 = vsel %vm2417, %v2343, 0
    %v2437 = vsel %vm2417, %v2344, 0
    %v2440 = vsel %vm2417, %v2345, 0
    %v2443 = vsel %vm2417, %v2346, 0
    %v2446 = vsel %vm2417, %v2347, 0
    %v2449 = vsel %vm2417, %v2348, 0
    %v2452 = vsel %vm2417, %v2349, 0
    %v2455 = vsel %vm2417, %v2350, 0
    %v2458 = vsel %vm2417, %v2351, 0
    %v2461 = vsel %vm2417, %v2352, 0
    %v2464 = vsel %vm2417, %v2353, 0
    %v2467 = vsel %vm2417, %v2354, 0
    %v2470 = vsel %vm2417, %v2355, 0
    %v2473 = vsel %vm2417, %v2356, 0
    %v2476 = vsel %vm2417, %v2357, 0
    %v2479 = vsel %vm2417, %v2358, 0
    %v2482 = vsel %vm2417, %v2359, 0
    %v2485 = vsel %vm2417, %v2360, 0
    %v2488 = vsel %vm2417, %v2361, 0
    %v2491 = vsel %vm2417, %v2362, 0
    %v2494 = vsel %vm2417, %v2363, 0
    %v2497 = vsel %vm2417, %v2364, 0
    %v2500 = vsel %vm2417, %v2365, 0
    %v2503 = vsel %vm2417, %v2366, 0
    %v2506 = vsel %vm2417, %v2367, 0
    %v2509 = vsel %vm2417, %v2368, 0
    %v2512 = vsel %vm2417, %v2369, 0
    %v2515 = vsel %vm2417, %v2370, 0
    %v2518 = vsel %vm2417, %v2371, 0
    %v2521 = vsel %vm2417, %v2372, 0
    %v2524 = vsel %vm2417, %v2373, 0
    %v2527 = vsel %vm2417, %v2374, 0
    %v2530 = vsel %vm2417, %v2375, 0
    %v2533 = vsel %vm2417, %v2376, 0
    %v2536 = vsel %vm2417, %v2377, 0
    %v2539 = vsel %vm2417, %v2378, 0
    %v2542 = vsel %vm2417, %v2379, 0
    %v2545 = vsel %vm2417, %v2380, 0
    %v2548 = vsel %vm2417, %v2381, 0
    %v2551 = vsel %vm2417, %v2382, 0
    %v2554 = vsel %vm2417, %v2383, 0
    %v2557 = vsel %vm2417, %v2384, 0
    %v2560 = vsel %vm2417, %v2385, 0
    %v2563 = vsel %vm2417, %v2386, 0
    %v2566 = vsel %vm2417, %v2387, 0
    %v2569 = vsel %vm2417, %v2388, 0
    %v2572 = vsel %vm2417, %v2389, 0
    %v2575 = vsel %vm2417, %v2390, 0
    %v2578 = vsel %vm2417, %v2391, 0
    %v2581 = vsel %vm2417, %v2392, 0
    %v2584 = vsel %vm2417, %v2393, 0
    %v2587 = vsel %vm2417, %v2394, 0
    %v2590 = vsel %vm2417, %v2395, 0
    %v2593 = vsel %vm2417, %v2396, 0
    %v2596 = vsel %vm2417, %v2397, 0
    %v2599 = vsel %vm2417, %v2398, 0
    %v2602 = vsel %vm2417, %v2399, 0
    %v2605 = vsel %vm2417, %v2400, 0
    %v2608 = vsel %vm2417, %v2401, 0
    %2610 = vmatprep.subr.mxu0 0.0
    %2611 = vmatpush1.msra.mxu0 %v2402
    %2612 = vmatprep.subr.mxu0 0.0
    %2613 = vmatpush1.msra.mxu0 %v2403
    %2614 = vmatprep.subr.mxu0 0.0
    %2615 = vmatpush1.msra.mxu0 %v2404
    %2616 = vmatprep.subr.mxu0 0.0
    %2617 = vmatpush1.msra.mxu0 %v2405
    %2618 = vmatprep.subr.mxu0 0.0
    %2619 = vmatpush1.msra.mxu0 %v2406
    %2620 = vmatprep.subr.mxu0 0.0
    %2621 = vmatpush1.msra.mxu0 %v2407
    %2622 = vmatprep.subr.mxu0 0.0
    %2623 = vmatpush1.msra.mxu0 %v2408
    %2624 = vmatprep.subr.mxu0 0.0
    %2625 = vmatpush1.msra.mxu0 %v2409
    %2626 = vmatprep.subr.mxu0 0.0
    %2627 = vmatpush1.msra.mxu0 0.0
    %2628 = vmatprep.subr.mxu0 0.0
    %2629 = vmatpush1.msra.mxu0 0.0
    %2630 = vmatprep.subr.mxu0 0.0
    %2631 = vmatpush1.msra.mxu0 0.0
    %2632 = vmatprep.subr.mxu0 0.0
    %2633 = vmatpush1.msra.mxu0 0.0
    %2634 = vmatprep.subr.mxu0 0.0
    %2635 = vmatpush1.msra.mxu0 0.0
    %2636 = vmatprep.subr.mxu0 0.0
    %2637 = vmatpush1.msra.mxu0 0.0
    %2638 = vmatprep.subr.mxu0 0.0
    %2639 = vmatpush1.msra.mxu0 0.0
    %2640 = vmatprep.subr.mxu0 0.0
    %2641 = vmatpush1.msra.mxu0 0.0
    %2642 = vmatprep.subr.mxu0 0.0
    %2643 = vmatpush1.msra.mxu0 0.0
    %2644 = vmatprep.subr.mxu0 0.0
    %2645 = vmatpush1.msra.mxu0 0.0
    %2646 = vmatprep.subr.mxu0 0.0
    %2647 = vmatpush1.msra.mxu0 0.0
    %2648 = vmatprep.subr.mxu0 0.0
    %2649 = vmatpush1.msra.mxu0 0.0
    %2650 = vmatprep.subr.mxu0 0.0
    %2651 = vmatpush1.msra.mxu0 0.0
    %2652 = vmatprep.subr.mxu0 0.0
    %2653 = vmatpush1.msra.mxu0 0.0
    %2654 = vmatprep.subr.mxu0 0.0
    %2655 = vmatpush1.msra.mxu0 0.0
    %2656 = vmatprep.subr.mxu0 0.0
    %2657 = vmatpush1.msra.mxu0 0.0
    %2658 = vmatprep.subr.mxu0 0.0
    %2659 = vmatpush1.msra.mxu0 0.0
    %2660 = vmatprep.subr.mxu0 0.0
    %2661 = vmatpush1.msra.mxu0 0.0
    %2662 = vmatprep.subr.mxu0 0.0
    %2663 = vmatpush1.msra.mxu0 0.0
    %2664 = vmatprep.subr.mxu0 0.0
    %2665 = vmatpush1.msra.mxu0 0.0
    %2666 = vmatprep.subr.mxu0 0.0
    %2667 = vmatpush1.msra.mxu0 0.0
    %2668 = vmatprep.subr.mxu0 0.0
    %2669 = vmatpush1.msra.mxu0 0.0
    %2670 = vmatprep.subr.mxu0 0.0
    %2671 = vmatpush1.msra.mxu0 0.0
    %2672 = vmatprep.subr.mxu0 0.0
    %2673 = vmatpush1.msra.mxu0 0.0
    %2674 = vmatprep.mubr.f32.mxu0 0.0
    %2675 = vmatmul.mubr.f32.gmra.mrb[0].mxu0 %v2419
    %v2676 = vpop.f32.mrb[0].mxu0
    %v2677 = vadd.f32 %v2415, %v2676
    %v2678 = vpop.f32.mrb[0].mxu0
    %2679 = vmatprep.mubr.f32.mxu0 0.0
    %2680 = vmatmul.mubr.f32.gmra.mrb[0].mxu0 %v2422
    %v2681 = vpop.f32.mrb[0].mxu0
    %v2682 = vadd.f32 %v2415, %v2681
    %v2683 = vpop.f32.mrb[0].mxu0
    %2684 = vmatprep.mubr.f32.mxu0 0.0
    %2685 = vmatmul.mubr.f32.gmra.mrb[0].mxu0 %v2425
    %v2686 = vpop.f32.mrb[0].mxu0
    %v2687 = vadd.f32 %v2415, %v2686
    %v2688 = vpop.f32.mrb[0].mxu0
    %2689 = vmatprep.mubr.f32.mxu0 0.0
    %2690 = vmatmul.mubr.f32.gmra.mrb[0].mxu0 %v2428
    %v2691 = vpop.f32.mrb[0].mxu0
    %v2692 = vadd.f32 %v2415, %v2691
    %v2693 = vpop.f32.mrb[0].mxu0
    %2694 = vmatprep.mubr.f32.mxu0 0.0
    %2695 = vmatmul.mubr.f32.gmra.mrb[0].mxu0 %v2431
    %v2696 = vpop.f32.mrb[0].mxu0
    %v2697 = vadd.f32 %v2415, %v2696
    %v2698 = vpop.f32.mrb[0].mxu0
    %2699 = vmatprep.mubr.f32.mxu0 0.0
    %2700 = vmatmul.mubr.f32.gmra.mrb[0].mxu0 %v2434
    %v2701 = vpop.f32.mrb[0].mxu0
    %v2702 = vadd.f32 %v2415, %v2701
    %v2703 = vpop.f32.mrb[0].mxu0
    %2704 = vmatprep.mubr.f32.mxu0 0.0
    %2705 = vmatmul.mubr.f32.gmra.mrb[0].mxu0 %v2437
    %v2706 = vpop.f32.mrb[0].mxu0
    %v2707 = vadd.f32 %v2415, %v2706
    %v2708 = vpop.f32.mrb[0].mxu0
    %2709 = vmatprep.mubr.f32.mxu0 0.0
    %2710 = vmatmul.mubr.f32.gmra.mrb[0].mxu0 %v2440
    %v2711 = vpop.f32.mrb[0].mxu0
    %v2712 = vadd.f32 %v2415, %v2711
    %v2713 = vpop.f32.mrb[0].mxu0
    %2714 = vmatprep.mubr.f32.mxu0 0.0
    %2715 = vmatmul.mubr.f32.gmra.mrb[0].mxu0 %v2443
    %v2716 = vpop.f32.mrb[0].mxu0
    %v2717 = vadd.f32 %v2415, %v2716
    %v2718 = vpop.f32.mrb[0].mxu0
    %2719 = vmatprep.mubr.f32.mxu0 0.0
    %2720 = vmatmul.mubr.f32.gmra.mrb[0].mxu0 %v2446
    %v2721 = vpop.f32.mrb[0].mxu0
    %v2722 = vadd.f32 %v2415, %v2721
    %v2723 = vpop.f32.mrb[0].mxu0
    %2724 = vmatprep.mubr.f32.mxu0 0.0
    %2725 = vmatmul.mubr.f32.gmra.mrb[0].mxu0 %v2449
    %v2726 = vpop.f32.mrb[0].mxu0
    %v2727 = vadd.f32 %v2415, %v2726
    %v2728 = vpop.f32.mrb[0].mxu0
    %2729 = vmatprep.mubr.f32.mxu0 0.0
    %2730 = vmatmul.mubr.f32.gmra.mrb[0].mxu0 %v2452
    %v2731 = vpop.f32.mrb[0].mxu0
    %v2732 = vadd.f32 %v2415, %v2731
    %v2733 = vpop.f32.mrb[0].mxu0
    %2734 = vmatprep.mubr.f32.mxu0 0.0
    %2735 = vmatmul.mubr.f32.gmra.mrb[0].mxu0 %v2455
    %v2736 = vpop.f32.mrb[0].mxu0
    %v2737 = vadd.f32 %v2415, %v2736
    %v2738 = vpop.f32.mrb[0].mxu0
    %2739 = vmatprep.mubr.f32.mxu0 0.0
    %2740 = vmatmul.mubr.f32.gmra.mrb[0].mxu0 %v2458
    %v2741 = vpop.f32.mrb[0].mxu0
    %v2742 = vadd.f32 %v2415, %v2741
    %v2743 = vpop.f32.mrb[0].mxu0
    %2744 = vmatprep.mubr.f32.mxu0 0.0
    %2745 = vmatmul.mubr.f32.gmra.mrb[0].mxu0 %v2461
    %v2746 = vpop.f32.mrb[0].mxu0
    %v2747 = vadd.f32 %v2415, %v2746
    %v2748 = vpop.f32.mrb[0].mxu0
    %2749 = vmatprep.mubr.f32.mxu0 0.0
    %2750 = vmatmul.mubr.f32.gmra.mrb[0].mxu0 %v2464
    %v2751 = vpop.f32.mrb[0].mxu0
    %v2752 = vadd.f32 %v2415, %v2751
    %v2753 = vpop.f32.mrb[0].mxu0
    %2754 = vmatprep.mubr.f32.mxu0 0.0
    %2755 = vmatmul.mubr.f32.gmra.mrb[0].mxu0 %v2467
    %v2756 = vpop.f32.mrb[0].mxu0
    %v2757 = vadd.f32 %v2415, %v2756
    %v2758 = vpop.f32.mrb[0].mxu0
    %2759 = vmatprep.mubr.f32.mxu0 0.0
    %2760 = vmatmul.mubr.f32.gmra.mrb[0].mxu0 %v2470
    %v2761 = vpop.f32.mrb[0].mxu0
    %v2762 = vadd.f32 %v2415, %v2761
    %v2763 = vpop.f32.mrb[0].mxu0
    %2764 = vmatprep.mubr.f32.mxu0 0.0
    %2765 = vmatmul.mubr.f32.gmra.mrb[0].mxu0 %v2473
    %v2766 = vpop.f32.mrb[0].mxu0
    %v2767 = vadd.f32 %v2415, %v2766
    %v2768 = vpop.f32.mrb[0].mxu0
    %2769 = vmatprep.mubr.f32.mxu0 0.0
    %2770 = vmatmul.mubr.f32.gmra.mrb[0].mxu0 %v2476
    %v2771 = vpop.f32.mrb[0].mxu0
    %v2772 = vadd.f32 %v2415, %v2771
    %v2773 = vpop.f32.mrb[0].mxu0
    %2774 = vmatprep.mubr.f32.mxu0 0.0
    %2775 = vmatmul.mubr.f32.gmra.mrb[0].mxu0 %v2479
    %v2776 = vpop.f32.mrb[0].mxu0
    %v2777 = vadd.f32 %v2415, %v2776
    %v2778 = vpop.f32.mrb[0].mxu0
    %2779 = vmatprep.mubr.f32.mxu0 0.0
    %2780 = vmatmul.mubr.f32.gmra.mrb[0].mxu0 %v2482
    %v2781 = vpop.f32.mrb[0].mxu0
    %v2782 = vadd.f32 %v2415, %v2781
    %v2783 = vpop.f32.mrb[0].mxu0
    %2784 = vmatprep.mubr.f32.mxu0 0.0
    %2785 = vmatmul.mubr.f32.gmra.mrb[0].mxu0 %v2485
    %v2786 = vpop.f32.mrb[0].mxu0
    %v2787 = vadd.f32 %v2415, %v2786
    %v2788 = vpop.f32.mrb[0].mxu0
    %2789 = vmatprep.mubr.f32.mxu0 0.0
    %2790 = vmatmul.mubr.f32.gmra.mrb[0].mxu0 %v2488
    %v2791 = vpop.f32.mrb[0].mxu0
    %v2792 = vadd.f32 %v2415, %v2791
    %v2793 = vpop.f32.mrb[0].mxu0
    %2794 = vmatprep.mubr.f32.mxu0 0.0
    %2795 = vmatmul.mubr.f32.gmra.mrb[0].mxu0 %v2491
    %v2796 = vpop.f32.mrb[0].mxu0
    %v2797 = vadd.f32 %v2415, %v2796
    %v2798 = vpop.f32.mrb[0].mxu0
    %2799 = vmatprep.mubr.f32.mxu0 0.0
    %2800 = vmatmul.mubr.f32.gmra.mrb[0].mxu0 %v2494
    %v2801 = vpop.f32.mrb[0].mxu0
    %v2802 = vadd.f32 %v2415, %v2801
    %v2803 = vpop.f32.mrb[0].mxu0
    %2804 = vmatprep.mubr.f32.mxu0 0.0
    %2805 = vmatmul.mubr.f32.gmra.mrb[0].mxu0 %v2497
    %v2806 = vpop.f32.mrb[0].mxu0
    %v2807 = vadd.f32 %v2415, %v2806
    %v2808 = vpop.f32.mrb[0].mxu0
    %2809 = vmatprep.mubr.f32.mxu0 0.0
    %2810 = vmatmul.mubr.f32.gmra.mrb[0].mxu0 %v2500
    %v2811 = vpop.f32.mrb[0].mxu0
    %v2812 = vadd.f32 %v2415, %v2811
    %v2813 = vpop.f32.mrb[0].mxu0
    %2814 = vmatprep.mubr.f32.mxu0 0.0
    %2815 = vmatmul.mubr.f32.gmra.mrb[0].mxu0 %v2503
    %v2816 = vpop.f32.mrb[0].mxu0
    %v2817 = vadd.f32 %v2415, %v2816
    %v2818 = vpop.f32.mrb[0].mxu0
    %2819 = vmatprep.mubr.f32.mxu0 0.0
    %2820 = vmatmul.mubr.f32.gmra.mrb[0].mxu0 %v2506
    %v2821 = vpop.f32.mrb[0].mxu0
    %v2822 = vadd.f32 %v2415, %v2821
    %v2823 = vpop.f32.mrb[0].mxu0
    %2824 = vmatprep.mubr.f32.mxu0 0.0
    %2825 = vmatmul.mubr.f32.gmra.mrb[0].mxu0 %v2509
    %v2826 = vpop.f32.mrb[0].mxu0
    %v2827 = vadd.f32 %v2415, %v2826
    %v2828 = vpop.f32.mrb[0].mxu0
    %2829 = vmatprep.mubr.f32.mxu0 0.0
    %2830 = vmatmul.mubr.f32.gmra.mrb[0].mxu0 %v2512
    %v2831 = vpop.f32.mrb[0].mxu0
    %v2832 = vadd.f32 %v2415, %v2831
    %v2833 = vpop.f32.mrb[0].mxu0
    %2834 = vmatprep.mubr.f32.mxu0 0.0
    %2835 = vmatmul.mubr.f32.gmra.mrb[0].mxu0 %v2515
    %v2836 = vpop.f32.mrb[0].mxu0
    %v2837 = vadd.f32 %v2415, %v2836
    %v2838 = vpop.f32.mrb[0].mxu0
    %2839 = vmatprep.mubr.f32.mxu0 0.0
    %2840 = vmatmul.mubr.f32.gmra.mrb[0].mxu0 %v2518
    %v2841 = vpop.f32.mrb[0].mxu0
    %v2842 = vadd.f32 %v2415, %v2841
    %v2843 = vpop.f32.mrb[0].mxu0
    %2844 = vmatprep.mubr.f32.mxu0 0.0
    %2845 = vmatmul.mubr.f32.gmra.mrb[0].mxu0 %v2521
    %v2846 = vpop.f32.mrb[0].mxu0
    %v2847 = vadd.f32 %v2415, %v2846
    %v2848 = vpop.f32.mrb[0].mxu0
    %2849 = vmatprep.mubr.f32.mxu0 0.0
    %2850 = vmatmul.mubr.f32.gmra.mrb[0].mxu0 %v2524
    %v2851 = vpop.f32.mrb[0].mxu0
    %v2852 = vadd.f32 %v2415, %v2851
    %v2853 = vpop.f32.mrb[0].mxu0
    %2854 = vmatprep.mubr.f32.mxu0 0.0
    %2855 = vmatmul.mubr.f32.gmra.mrb[0].mxu0 %v2527
    %v2856 = vpop.f32.mrb[0].mxu0
    %v2857 = vadd.f32 %v2415, %v2856
    %v2858 = vpop.f32.mrb[0].mxu0
    %2859 = vmatprep.mubr.f32.mxu0 0.0
    %2860 = vmatmul.mubr.f32.gmra.mrb[0].mxu0 %v2530
    %v2861 = vpop.f32.mrb[0].mxu0
    %v2862 = vadd.f32 %v2415, %v2861
    %v2863 = vpop.f32.mrb[0].mxu0
    %2864 = vmatprep.mubr.f32.mxu0 0.0
    %2865 = vmatmul.mubr.f32.gmra.mrb[0].mxu0 %v2533
    %v2866 = vpop.f32.mrb[0].mxu0
    %v2867 = vadd.f32 %v2415, %v2866
    %v2868 = vpop.f32.mrb[0].mxu0
    %2869 = vmatprep.mubr.f32.mxu0 0.0
    %2870 = vmatmul.mubr.f32.gmra.mrb[0].mxu0 %v2536
    %v2871 = vpop.f32.mrb[0].mxu0
    %v2872 = vadd.f32 %v2415, %v2871
    %v2873 = vpop.f32.mrb[0].mxu0
    %2874 = vmatprep.mubr.f32.mxu0 0.0
    %2875 = vmatmul.mubr.f32.gmra.mrb[0].mxu0 %v2539
    %v2876 = vpop.f32.mrb[0].mxu0
    %v2877 = vadd.f32 %v2415, %v2876
    %v2878 = vpop.f32.mrb[0].mxu0
    %2879 = vmatprep.mubr.f32.mxu0 0.0
    %2880 = vmatmul.mubr.f32.gmra.mrb[0].mxu0 %v2542
    %v2881 = vpop.f32.mrb[0].mxu0
    %v2882 = vadd.f32 %v2415, %v2881
    %v2883 = vpop.f32.mrb[0].mxu0
    %2884 = vmatprep.mubr.f32.mxu0 0.0
    %2885 = vmatmul.mubr.f32.gmra.mrb[0].mxu0 %v2545
    %v2886 = vpop.f32.mrb[0].mxu0
    %v2887 = vadd.f32 %v2415, %v2886
    %v2888 = vpop.f32.mrb[0].mxu0
    %2889 = vmatprep.mubr.f32.mxu0 0.0
    %2890 = vmatmul.mubr.f32.gmra.mrb[0].mxu0 %v2548
    %v2891 = vpop.f32.mrb[0].mxu0
    %v2892 = vadd.f32 %v2415, %v2891
    %v2893 = vpop.f32.mrb[0].mxu0
    %2894 = vmatprep.mubr.f32.mxu0 0.0
    %2895 = vmatmul.mubr.f32.gmra.mrb[0].mxu0 %v2551
    %v2896 = vpop.f32.mrb[0].mxu0
    %v2897 = vadd.f32 %v2415, %v2896
    %v2898 = vpop.f32.mrb[0].mxu0
    %2899 = vmatprep.mubr.f32.mxu0 0.0
    %2900 = vmatmul.mubr.f32.gmra.mrb[0].mxu0 %v2554
    %v2901 = vpop.f32.mrb[0].mxu0
    %v2902 = vadd.f32 %v2415, %v2901
    %v2903 = vpop.f32.mrb[0].mxu0
    %2904 = vmatprep.mubr.f32.mxu0 0.0
    %2905 = vmatmul.mubr.f32.gmra.mrb[0].mxu0 %v2557
    %v2906 = vpop.f32.mrb[0].mxu0
    %v2907 = vadd.f32 %v2415, %v2906
    %v2908 = vpop.f32.mrb[0].mxu0
    %2909 = vmatprep.mubr.f32.mxu0 0.0
    %2910 = vmatmul.mubr.f32.gmra.mrb[0].mxu0 %v2560
    %v2911 = vpop.f32.mrb[0].mxu0
    %v2912 = vadd.f32 %v2415, %v2911
    %v2913 = vpop.f32.mrb[0].mxu0
    %2914 = vmatprep.mubr.f32.mxu0 0.0
    %2915 = vmatmul.mubr.f32.gmra.mrb[0].mxu0 %v2563
    %v2916 = vpop.f32.mrb[0].mxu0
    %v2917 = vadd.f32 %v2415, %v2916
    %v2918 = vpop.f32.mrb[0].mxu0
    %2919 = vmatprep.mubr.f32.mxu0 0.0
    %2920 = vmatmul.mubr.f32.gmra.mrb[0].mxu0 %v2566
    %v2921 = vpop.f32.mrb[0].mxu0
    %v2922 = vadd.f32 %v2415, %v2921
    %v2923 = vpop.f32.mrb[0].mxu0
    %2924 = vmatprep.mubr.f32.mxu0 0.0
    %2925 = vmatmul.mubr.f32.gmra.mrb[0].mxu0 %v2569
    %v2926 = vpop.f32.mrb[0].mxu0
    %v2927 = vadd.f32 %v2415, %v2926
    %v2928 = vpop.f32.mrb[0].mxu0
    %2929 = vmatprep.mubr.f32.mxu0 0.0
    %2930 = vmatmul.mubr.f32.gmra.mrb[0].mxu0 %v2572
    %v2931 = vpop.f32.mrb[0].mxu0
    %v2932 = vadd.f32 %v2415, %v2931
    %v2933 = vpop.f32.mrb[0].mxu0
    %2934 = vmatprep.mubr.f32.mxu0 0.0
    %2935 = vmatmul.mubr.f32.gmra.mrb[0].mxu0 %v2575
    %v2936 = vpop.f32.mrb[0].mxu0
    %v2937 = vadd.f32 %v2415, %v2936
    %v2938 = vpop.f32.mrb[0].mxu0
    %2939 = vmatprep.mubr.f32.mxu0 0.0
    %2940 = vmatmul.mubr.f32.gmra.mrb[0].mxu0 %v2578
    %v2941 = vpop.f32.mrb[0].mxu0
    %v2942 = vadd.f32 %v2415, %v2941
    %v2943 = vpop.f32.mrb[0].mxu0
    %2944 = vmatprep.mubr.f32.mxu0 0.0
    %2945 = vmatmul.mubr.f32.gmra.mrb[0].mxu0 %v2581
    %v2946 = vpop.f32.mrb[0].mxu0
    %v2947 = vadd.f32 %v2415, %v2946
    %v2948 = vpop.f32.mrb[0].mxu0
    %2949 = vmatprep.mubr.f32.mxu0 0.0
    %2950 = vmatmul.mubr.f32.gmra.mrb[0].mxu0 %v2584
    %v2951 = vpop.f32.mrb[0].mxu0
    %v2952 = vadd.f32 %v2415, %v2951
    %v2953 = vpop.f32.mrb[0].mxu0
    %2954 = vmatprep.mubr.f32.mxu0 0.0
    %2955 = vmatmul.mubr.f32.gmra.mrb[0].mxu0 %v2587
    %v2956 = vpop.f32.mrb[0].mxu0
    %v2957 = vadd.f32 %v2415, %v2956
    %v2958 = vpop.f32.mrb[0].mxu0
    %2959 = vmatprep.mubr.f32.mxu0 0.0
    %2960 = vmatmul.mubr.f32.gmra.mrb[0].mxu0 %v2590
    %v2961 = vpop.f32.mrb[0].mxu0
    %v2962 = vadd.f32 %v2415, %v2961
    %v2963 = vpop.f32.mrb[0].mxu0
    %2964 = vmatprep.mubr.f32.mxu0 0.0
    %2965 = vmatmul.mubr.f32.gmra.mrb[0].mxu0 %v2593
    %v2966 = vpop.f32.mrb[0].mxu0
    %v2967 = vadd.f32 %v2415, %v2966
    %v2968 = vpop.f32.mrb[0].mxu0
    %2969 = vmatprep.mubr.f32.mxu0 0.0
    %2970 = vmatmul.mubr.f32.gmra.mrb[0].mxu0 %v2596
    %v2971 = vpop.f32.mrb[0].mxu0
    %v2972 = vadd.f32 %v2415, %v2971
    %v2973 = vpop.f32.mrb[0].mxu0
    %2974 = vmatprep.mubr.f32.mxu0 0.0
    %2975 = vmatmul.mubr.f32.gmra.mrb[0].mxu0 %v2599
    %v2976 = vpop.f32.mrb[0].mxu0
    %v2977 = vadd.f32 %v2415, %v2976
    %v2978 = vpop.f32.mrb[0].mxu0
    %2979 = vmatprep.mubr.f32.mxu0 0.0
    %2980 = vmatmul.mubr.f32.gmra.mrb[0].mxu0 %v2602
    %v2981 = vpop.f32.mrb[0].mxu0
    %v2982 = vadd.f32 %v2415, %v2981
    %v2983 = vpop.f32.mrb[0].mxu0
    %2984 = vmatprep.mubr.f32.mxu0 0.0
    %2985 = vmatmul.mubr.f32.gmra.mrb[0].mxu0 %v2605
    %v2986 = vpop.f32.mrb[0].mxu0
    %v2987 = vadd.f32 %v2415, %v2986
    %v2988 = vpop.f32.mrb[0].mxu0
    %2989 = vmatprep.mubr.f32.mxu0 0.0
    %2990 = vmatmul.mubr.f32.gmra.mrb[0].mxu0 %v2608
    %v2991 = vpop.f32.mrb[0].mxu0
    %v2992 = vadd.f32 %v2415, %v2991
    %v2993 = vpop.f32.mrb[0].mxu0
    %2994 = vdwg.mxu0
    %vm2995 = vcmask 23552
    %2996 = vst.msk [vmem:[#allocation11] sm:$0xff] %vm2995, %v2677
    %2997 = vst.msk [vmem:[#allocation11 + $0x8] sm:$0xff] %vm2995, %v2682
    %2998 = vst.msk [vmem:[#allocation11 + $0x10] sm:$0xff] %vm2995, %v2687
    %2999 = vst.msk [vmem:[#allocation11 + $0x18] sm:$0xff] %vm2995, %v2692
    %3000 = vst.msk [vmem:[#allocation11 + $0x20] sm:$0xff] %vm2995, %v2697
    %3001 = vst.msk [vmem:[#allocation11 + $0x28] sm:$0xff] %vm2995, %v2702
    %3002 = vst.msk [vmem:[#allocation11 + $0x30] sm:$0xff] %vm2995, %v2707
    %3003 = vst.msk [vmem:[#allocation11 + $0x38] sm:$0xff] %vm2995, %v2712
    %3004 = vst.msk [vmem:[#allocation11 + $0x40] sm:$0xff] %vm2995, %v2717
    %3005 = vst.msk [vmem:[#allocation11 + $0x48] sm:$0xff] %vm2995, %v2722
    %3006 = vst.msk [vmem:[#allocation11 + $0x50] sm:$0xff] %vm2995, %v2727
    %3007 = vst.msk [vmem:[#allocation11 + $0x58] sm:$0xff] %vm2995, %v2732
    %3008 = vst.msk [vmem:[#allocation11 + $0x60] sm:$0xff] %vm2995, %v2737
    %3009 = vst.msk [vmem:[#allocation11 + $0x68] sm:$0xff] %vm2995, %v2742
    %3010 = vst.msk [vmem:[#allocation11 + $0x70] sm:$0xff] %vm2995, %v2747
    %3011 = vst.msk [vmem:[#allocation11 + $0x78] sm:$0xff] %vm2995, %v2752
    %3012 = vst.msk [vmem:[#allocation11 + $0x80] sm:$0xff] %vm2995, %v2757
    %3013 = vst.msk [vmem:[#allocation11 + $0x88] sm:$0xff] %vm2995, %v2762
    %3014 = vst.msk [vmem:[#allocation11 + $0x90] sm:$0xff] %vm2995, %v2767
    %3015 = vst.msk [vmem:[#allocation11 + $0x98] sm:$0xff] %vm2995, %v2772
    %3016 = vst.msk [vmem:[#allocation11 + $0xa0] sm:$0xff] %vm2995, %v2777
    %3017 = vst.msk [vmem:[#allocation11 + $0xa8] sm:$0xff] %vm2995, %v2782
    %3018 = vst.msk [vmem:[#allocation11 + $0xb0] sm:$0xff] %vm2995, %v2787
    %3019 = vst.msk [vmem:[#allocation11 + $0xb8] sm:$0xff] %vm2995, %v2792
    %3020 = vst.msk [vmem:[#allocation11 + $0xc0] sm:$0xff] %vm2995, %v2797
    %3021 = vst.msk [vmem:[#allocation11 + $0xc8] sm:$0xff] %vm2995, %v2802
    %3022 = vst.msk [vmem:[#allocation11 + $0xd0] sm:$0xff] %vm2995, %v2807
    %3023 = vst.msk [vmem:[#allocation11 + $0xd8] sm:$0xff] %vm2995, %v2812
    %3024 = vst.msk [vmem:[#allocation11 + $0xe0] sm:$0xff] %vm2995, %v2817
    %3025 = vst.msk [vmem:[#allocation11 + $0xe8] sm:$0xff] %vm2995, %v2822
    %3026 = vst.msk [vmem:[#allocation11 + $0xf0] sm:$0xff] %vm2995, %v2827
    %3027 = vst.msk [vmem:[#allocation11 + $0xf8] sm:$0xff] %vm2995, %v2832
    %3028 = vst.msk [vmem:[#allocation11 + $0x100] sm:$0xff] %vm2995, %v2837
    %3029 = vst.msk [vmem:[#allocation11 + $0x108] sm:$0xff] %vm2995, %v2842
    %3030 = vst.msk [vmem:[#allocation11 + $0x110] sm:$0xff] %vm2995, %v2847
    %3031 = vst.msk [vmem:[#allocation11 + $0x118] sm:$0xff] %vm2995, %v2852
    %3032 = vst.msk [vmem:[#allocation11 + $0x120] sm:$0xff] %vm2995, %v2857
    %3033 = vst.msk [vmem:[#allocation11 + $0x128] sm:$0xff] %vm2995, %v2862
    %3034 = vst.msk [vmem:[#allocation11 + $0x130] sm:$0xff] %vm2995, %v2867
    %3035 = vst.msk [vmem:[#allocation11 + $0x138] sm:$0xff] %vm2995, %v2872
    %3036 = vst.msk [vmem:[#allocation11 + $0x140] sm:$0xff] %vm2995, %v2877
    %3037 = vst.msk [vmem:[#allocation11 + $0x148] sm:$0xff] %vm2995, %v2882
    %3038 = vst.msk [vmem:[#allocation11 + $0x150] sm:$0xff] %vm2995, %v2887
    %3039 = vst.msk [vmem:[#allocation11 + $0x158] sm:$0xff] %vm2995, %v2892
    %3040 = vst.msk [vmem:[#allocation11 + $0x160] sm:$0xff] %vm2995, %v2897
    %3041 = vst.msk [vmem:[#allocation11 + $0x168] sm:$0xff] %vm2995, %v2902
    %3042 = vst.msk [vmem:[#allocation11 + $0x170] sm:$0xff] %vm2995, %v2907
    %3043 = vst.msk [vmem:[#allocation11 + $0x178] sm:$0xff] %vm2995, %v2912
    %3044 = vst.msk [vmem:[#allocation11 + $0x180] sm:$0xff] %vm2995, %v2917
    %3045 = vst.msk [vmem:[#allocation11 + $0x188] sm:$0xff] %vm2995, %v2922
    %3046 = vst.msk [vmem:[#allocation11 + $0x190] sm:$0xff] %vm2995, %v2927
    %3047 = vst.msk [vmem:[#allocation11 + $0x198] sm:$0xff] %vm2995, %v2932
    %3048 = vst.msk [vmem:[#allocation11 + $0x1a0] sm:$0xff] %vm2995, %v2937
    %3049 = vst.msk [vmem:[#allocation11 + $0x1a8] sm:$0xff] %vm2995, %v2942
    %3050 = vst.msk [vmem:[#allocation11 + $0x1b0] sm:$0xff] %vm2995, %v2947
    %3051 = vst.msk [vmem:[#allocation11 + $0x1b8] sm:$0xff] %vm2995, %v2952
    %3052 = vst.msk [vmem:[#allocation11 + $0x1c0] sm:$0xff] %vm2995, %v2957
    %3053 = vst.msk [vmem:[#allocation11 + $0x1c8] sm:$0xff] %vm2995, %v2962
    %3054 = vst.msk [vmem:[#allocation11 + $0x1d0] sm:$0xff] %vm2995, %v2967
    %3055 = vst.msk [vmem:[#allocation11 + $0x1d8] sm:$0xff] %vm2995, %v2972
    %3056 = vst.msk [vmem:[#allocation11 + $0x1e0] sm:$0xff] %vm2995, %v2977
    %3057 = vst.msk [vmem:[#allocation11 + $0x1e8] sm:$0xff] %vm2995, %v2982
    %3058 = vst.msk [vmem:[#allocation11 + $0x1f0] sm:$0xff] %vm2995, %v2987
    %3059 = vst.msk [vmem:[#allocation11 + $0x1f8] sm:$0xff] %vm2995, %v2992
    // Predicated region
    $region42: #{fno2d_forward.15} parent=1 // pred_check
      _
    $region43: #{fno2d_forward.15} parent=1 // pred_check_branch
      %3061 = sbr.rel (0) target = $region45
    $region44: #{fno2d_forward.15} parent=1 // pred_region
      %s3063 = ssub.s32 8192, 8192
      %3064 = vsyncadd [#allocation4], %s3063
      %s3065 = sshll.u32 [#allocation11], 4
      %s3066 = int_to_ptr.vmem [resolvable:$true] %s3065
      %3071 = dma.vmem_to_hbm [thread:$0]  %s3066, 8192, %s5, [#allocation4], 128, 128, 8
    $region45: #{fno2d_forward.15} parent=1 // pred_fallthru
      _
    // Predicated region
    $region46: #{fno2d_forward.15} parent=1 // pred_check
      _
    $region47: #{fno2d_forward.15} parent=1 // pred_check_branch
      %3073 = sbr.rel (0) target = $region49
    $region48: #{fno2d_forward.15} parent=1 // pred_region
      %3074 = dma.done [#allocation4], 8192
    $region49: #{fno2d_forward.15} parent=1 // pred_fallthru
      _
    %3075 = vsyncpa [#allocation3], 1
    %3076 = vsyncpa [#allocation6], 1
    %3077 = vsyncpa [#allocation9], 1
    %3078 = vsyncpa [#allocation4], 1

// kernel: fno2d_forward.10
$region0: #{fno2d_forward.10}
  #allocation0 [shape = 'u32[]', space=smem, size = 0x4, offset = 0x4, fixed_abs, tag = 'smem constant byte address 0x4 - core index']
  #allocation1 [shape = 'u32[144,128]{1,0:T(1,128)}', space=vmem, size = 0x12000, scoped, tag = 'internal scratch']
  %s0 = inlined_call_operand.hbm [shape: f32[512,32], index: 0, kind: input, shape index: {}]
  %s1 = inlined_call_operand.hbm [shape: f32[512,32], index: 1, kind: input, shape index: {}]
  %s2 = inlined_call_operand.hbm [shape: f32[32,32], index: 2, kind: input, shape index: {}]
  %s3 = inlined_call_operand.hbm [shape: f32[1,32], index: 3, kind: input, shape index: {}]
  %s4 = inlined_call_operand.hbm [shape: f32[1,32], index: 4, kind: input, shape index: {}]
  %s5 = inlined_call_operand.hbm [shape: f32[1,32], index: 5, kind: input, shape index: {}]
  %s6 = inlined_call_operand.hbm [shape: f32[512,32], index: 6, kind: output, shape index: {}]
  %s7 = sld [smem:[#allocation0]]
  $region62: #{fno2d_forward.10} parent=0
    _
  %s9 = ssub.s32 1, %s7
  %s10 = scalar_select 0, %s9, %s7
  $region1: #{fno2d_forward.10} parent=0
    #allocation2 [shape = 'u8[262144]{0}', space=vmem, size = 0x40000, scoped, tag = 'input window, operand 0, single buffered']
    #allocation3 [shape = 's32[1]{0}', space=sflag, size = 0x4, scoped, tag = 'scoped memory for fno2d_forward.10']
    #allocation4 [shape = 's32[1]{0}', space=sflag, size = 0x4, scoped, tag = 'scoped memory for fno2d_forward.10']
    #allocation5 [shape = 'u8[262144]{0}', space=vmem, size = 0x40000, scoped, tag = 'input window, operand 1, single buffered']
    #allocation6 [shape = 's32[1]{0}', space=sflag, size = 0x4, scoped, tag = 'scoped memory for fno2d_forward.10']
    #allocation7 [shape = 'u8[16384]{0}', space=vmem, size = 0x4000, scoped, tag = 'input window, operand 2, single buffered']
    #allocation8 [shape = 'u8[512]{0}', space=vmem, size = 0x400, scoped, tag = 'input window, operand 3, single buffered']
    #allocation9 [shape = 's32[1]{0}', space=sflag, size = 0x4, scoped, tag = 'scoped memory for fno2d_forward.10']
    #allocation10 [shape = 'u8[512]{0}', space=vmem, size = 0x400, scoped, tag = 'input window, operand 4, single buffered']
    #allocation11 [shape = 'u8[512]{0}', space=vmem, size = 0x400, scoped, tag = 'input window, operand 5, single buffered']
    #allocation12 [shape = 's32[1]{0}', space=sflag, size = 0x4, scoped, tag = 'scoped memory for fno2d_forward.10']
    #allocation13 [shape = 'u8[262144]{0}', space=vmem, size = 0x40000, scoped, tag = 'output window, operand 0, single buffered']
    %11 = vsyncpa [#allocation3], 0
    %12 = vsyncpa [#allocation6], 0
    %13 = vsyncpa [#allocation9], 0
    %14 = vsyncpa [#allocation12], 0
    %15 = vsyncpa [#allocation4], 0
    // Predicated region
    $region2: #{fno2d_forward.10} parent=1 // pred_check
      _
    $region3: #{fno2d_forward.10} parent=1 // pred_check_branch
      %17 = sbr.rel (0) target = $region5
    $region4: #{fno2d_forward.10} parent=1 // pred_region
      %s19 = ssub.s32 8192, 8192
      %20 = vsyncadd [#allocation3], %s19
      %s21 = sshll.u32 [#allocation2], 4
      %s22 = int_to_ptr.vmem [resolvable:$true] %s21
      %27 = dma.hbm_to_vmem [thread:$0]  %s0, 8192, %s22, [#allocation3], 128, 128, 8
    $region5: #{fno2d_forward.10} parent=1 // pred_fallthru
      _
    // Predicated region
    $region6: #{fno2d_forward.10} parent=1 // pred_check
      _
    $region7: #{fno2d_forward.10} parent=1 // pred_check_branch
      %29 = sbr.rel (0) target = $region9
    $region8: #{fno2d_forward.10} parent=1 // pred_region
      %s31 = ssub.s32 8192, 8192
      %32 = vsyncadd [#allocation6], %s31
      %s33 = sshll.u32 [#allocation5], 4
      %s34 = int_to_ptr.vmem [resolvable:$true] %s33
      %39 = dma.hbm_to_vmem [thread:$0]  %s1, 8192, %s34, [#allocation6], 128, 128, 8
    $region9: #{fno2d_forward.10} parent=1 // pred_fallthru
      _
    // Predicated region
    $region10: #{fno2d_forward.10} parent=1 // pred_check
      _
    $region11: #{fno2d_forward.10} parent=1 // pred_check_branch
      %41 = sbr.rel (0) target = $region13
    $region12: #{fno2d_forward.10} parent=1 // pred_region
      %s43 = ssub.s32 512, 512
      %44 = vsyncadd [#allocation6], %s43
      %s45 = sshll.u32 [#allocation7], 4
      %s46 = int_to_ptr.vmem [resolvable:$true] %s45
      %51 = dma.hbm_to_vmem [thread:$0]  %s2, 512, %s46, [#allocation6], 128, 128, 8
    $region13: #{fno2d_forward.10} parent=1 // pred_fallthru
      _
    // Predicated region
    $region14: #{fno2d_forward.10} parent=1 // pred_check
      _
    $region15: #{fno2d_forward.10} parent=1 // pred_check_branch
      %53 = sbr.rel (0) target = $region17
    $region16: #{fno2d_forward.10} parent=1 // pred_region
      %s55 = ssub.s32 16, 16
      %56 = vsyncadd [#allocation9], %s55
      %s58 = sshll.u32 [#allocation8], 4
      %s59 = int_to_ptr.vmem [resolvable:$true] %s58
      %61 = dma.hbm_to_vmem [thread:$0]  %s3, 16, %s59, [#allocation9]
    $region17: #{fno2d_forward.10} parent=1 // pred_fallthru
      _
    // Predicated region
    $region18: #{fno2d_forward.10} parent=1 // pred_check
      _
    $region19: #{fno2d_forward.10} parent=1 // pred_check_branch
      %63 = sbr.rel (0) target = $region21
    $region20: #{fno2d_forward.10} parent=1 // pred_region
      %s65 = ssub.s32 16, 16
      %66 = vsyncadd [#allocation9], %s65
      %s68 = sshll.u32 [#allocation10], 4
      %s69 = int_to_ptr.vmem [resolvable:$true] %s68
      %71 = dma.hbm_to_vmem [thread:$0]  %s4, 16, %s69, [#allocation9]
    $region21: #{fno2d_forward.10} parent=1 // pred_fallthru
      _
    // Predicated region
    $region22: #{fno2d_forward.10} parent=1 // pred_check
      _
    $region23: #{fno2d_forward.10} parent=1 // pred_check_branch
      %73 = sbr.rel (0) target = $region25
    $region24: #{fno2d_forward.10} parent=1 // pred_region
      %s75 = ssub.s32 16, 16
      %76 = vsyncadd [#allocation12], %s75
      %s78 = sshll.u32 [#allocation11], 4
      %s79 = int_to_ptr.vmem [resolvable:$true] %s78
      %81 = dma.hbm_to_vmem [thread:$0]  %s5, 16, %s79, [#allocation12]
    $region25: #{fno2d_forward.10} parent=1 // pred_fallthru
      _
    // Predicated region
    $region26: #{fno2d_forward.10} parent=1 // pred_check
      _
    $region27: #{fno2d_forward.10} parent=1 // pred_check_branch
      %83 = sbr.rel (0) target = $region29
    $region28: #{fno2d_forward.10} parent=1 // pred_region
      %84 = dma.done [#allocation3], 8192
    $region29: #{fno2d_forward.10} parent=1 // pred_fallthru
      _
    // Predicated region
    $region30: #{fno2d_forward.10} parent=1 // pred_check
      _
    $region31: #{fno2d_forward.10} parent=1 // pred_check_branch
      %86 = sbr.rel (0) target = $region33
    $region32: #{fno2d_forward.10} parent=1 // pred_region
      %87 = dma.done [#allocation6], 8192
    $region33: #{fno2d_forward.10} parent=1 // pred_fallthru
      _
    // Predicated region
    $region34: #{fno2d_forward.10} parent=1 // pred_check
      _
    $region35: #{fno2d_forward.10} parent=1 // pred_check_branch
      %89 = sbr.rel (0) target = $region37
    $region36: #{fno2d_forward.10} parent=1 // pred_region
      %90 = dma.done [#allocation6], 512
    $region37: #{fno2d_forward.10} parent=1 // pred_fallthru
      _
    // Predicated region
    $region38: #{fno2d_forward.10} parent=1 // pred_check
      _
    $region39: #{fno2d_forward.10} parent=1 // pred_check_branch
      %92 = sbr.rel (0) target = $region41
    $region40: #{fno2d_forward.10} parent=1 // pred_region
      %93 = dma.done [#allocation9], 16
    $region41: #{fno2d_forward.10} parent=1 // pred_fallthru
      _
    // Predicated region
    $region42: #{fno2d_forward.10} parent=1 // pred_check
      _
    $region43: #{fno2d_forward.10} parent=1 // pred_check_branch
      %95 = sbr.rel (0) target = $region45
    $region44: #{fno2d_forward.10} parent=1 // pred_region
      %96 = dma.done [#allocation9], 16
    $region45: #{fno2d_forward.10} parent=1 // pred_fallthru
      _
    // Predicated region
    $region46: #{fno2d_forward.10} parent=1 // pred_check
      _
    $region47: #{fno2d_forward.10} parent=1 // pred_check_branch
      %98 = sbr.rel (0) target = $region49
    $region48: #{fno2d_forward.10} parent=1 // pred_region
      %99 = dma.done [#allocation12], 16
    $region49: #{fno2d_forward.10} parent=1 // pred_fallthru
      _
    %v100 = vld [vmem:[#allocation5] sm:$0xff]
    %v101 = vld [vmem:[#allocation5 + $0x8] sm:$0xff]
    %v102 = vld [vmem:[#allocation5 + $0x10] sm:$0xff]
    %v103 = vld [vmem:[#allocation5 + $0x18] sm:$0xff]
    %v104 = vld [vmem:[#allocation5 + $0x20] sm:$0xff]
    %v105 = vld [vmem:[#allocation5 + $0x28] sm:$0xff]
    %v106 = vld [vmem:[#allocation5 + $0x30] sm:$0xff]
    %v107 = vld [vmem:[#allocation5 + $0x38] sm:$0xff]
    %v108 = vld [vmem:[#allocation5 + $0x40] sm:$0xff]
    %v109 = vld [vmem:[#allocation5 + $0x48] sm:$0xff]
    %v110 = vld [vmem:[#allocation5 + $0x50] sm:$0xff]
    %v111 = vld [vmem:[#allocation5 + $0x58] sm:$0xff]
    %v112 = vld [vmem:[#allocation5 + $0x60] sm:$0xff]
    %v113 = vld [vmem:[#allocation5 + $0x68] sm:$0xff]
    %v114 = vld [vmem:[#allocation5 + $0x70] sm:$0xff]
    %v115 = vld [vmem:[#allocation5 + $0x78] sm:$0xff]
    %v116 = vld [vmem:[#allocation5 + $0x80] sm:$0xff]
    %v117 = vld [vmem:[#allocation5 + $0x88] sm:$0xff]
    %v118 = vld [vmem:[#allocation5 + $0x90] sm:$0xff]
    %v119 = vld [vmem:[#allocation5 + $0x98] sm:$0xff]
    %v120 = vld [vmem:[#allocation5 + $0xa0] sm:$0xff]
    %v121 = vld [vmem:[#allocation5 + $0xa8] sm:$0xff]
    %v122 = vld [vmem:[#allocation5 + $0xb0] sm:$0xff]
    %v123 = vld [vmem:[#allocation5 + $0xb8] sm:$0xff]
    %v124 = vld [vmem:[#allocation5 + $0xc0] sm:$0xff]
    %v125 = vld [vmem:[#allocation5 + $0xc8] sm:$0xff]
    %v126 = vld [vmem:[#allocation5 + $0xd0] sm:$0xff]
    %v127 = vld [vmem:[#allocation5 + $0xd8] sm:$0xff]
    %v128 = vld [vmem:[#allocation5 + $0xe0] sm:$0xff]
    %v129 = vld [vmem:[#allocation5 + $0xe8] sm:$0xff]
    %v130 = vld [vmem:[#allocation5 + $0xf0] sm:$0xff]
    %v131 = vld [vmem:[#allocation5 + $0xf8] sm:$0xff]
    %v132 = vld [vmem:[#allocation5 + $0x100] sm:$0xff]
    %v133 = vld [vmem:[#allocation5 + $0x108] sm:$0xff]
    %v134 = vld [vmem:[#allocation5 + $0x110] sm:$0xff]
    %v135 = vld [vmem:[#allocation5 + $0x118] sm:$0xff]
    %v136 = vld [vmem:[#allocation5 + $0x120] sm:$0xff]
    %v137 = vld [vmem:[#allocation5 + $0x128] sm:$0xff]
    %v138 = vld [vmem:[#allocation5 + $0x130] sm:$0xff]
    %v139 = vld [vmem:[#allocation5 + $0x138] sm:$0xff]
    %v140 = vld [vmem:[#allocation5 + $0x140] sm:$0xff]
    %v141 = vld [vmem:[#allocation5 + $0x148] sm:$0xff]
    %v142 = vld [vmem:[#allocation5 + $0x150] sm:$0xff]
    %v143 = vld [vmem:[#allocation5 + $0x158] sm:$0xff]
    %v144 = vld [vmem:[#allocation5 + $0x160] sm:$0xff]
    %v145 = vld [vmem:[#allocation5 + $0x168] sm:$0xff]
    %v146 = vld [vmem:[#allocation5 + $0x170] sm:$0xff]
    %v147 = vld [vmem:[#allocation5 + $0x178] sm:$0xff]
    %v148 = vld [vmem:[#allocation5 + $0x180] sm:$0xff]
    %v149 = vld [vmem:[#allocation5 + $0x188] sm:$0xff]
    %v150 = vld [vmem:[#allocation5 + $0x190] sm:$0xff]
    %v151 = vld [vmem:[#allocation5 + $0x198] sm:$0xff]
    %v152 = vld [vmem:[#allocation5 + $0x1a0] sm:$0xff]
    %v153 = vld [vmem:[#allocation5 + $0x1a8] sm:$0xff]
    %v154 = vld [vmem:[#allocation5 + $0x1b0] sm:$0xff]
    %v155 = vld [vmem:[#allocation5 + $0x1b8] sm:$0xff]
    %v156 = vld [vmem:[#allocation5 + $0x1c0] sm:$0xff]
    %v157 = vld [vmem:[#allocation5 + $0x1c8] sm:$0xff]
    %v158 = vld [vmem:[#allocation5 + $0x1d0] sm:$0xff]
    %v159 = vld [vmem:[#allocation5 + $0x1d8] sm:$0xff]
    %v160 = vld [vmem:[#allocation5 + $0x1e0] sm:$0xff]
    %v161 = vld [vmem:[#allocation5 + $0x1e8] sm:$0xff]
    %v162 = vld [vmem:[#allocation5 + $0x1f0] sm:$0xff]
    %v163 = vld [vmem:[#allocation5 + $0x1f8] sm:$0xff]
    %v164 = vld [vmem:[#allocation7] sm:$0xff]
    %v165 = vld [vmem:[#allocation7 + $0x8] sm:$0xff]
    %v166 = vld [vmem:[#allocation7 + $0x10] sm:$0xff]
    %v167 = vld [vmem:[#allocation7 + $0x18] sm:$0xff]
    %v168 = vld [vmem:[#allocation8] sm:$0x1]
    %v170 = vlaneseq
    %v171 = vshrl.u32 %v170, 7
    %v172 = vsub.s32 0, %v171
    %v173 = vrot.slane %v168, %v172
    %vm175 = vcmask 261120
    %v177 = vsel %vm175, %v100, 0
    %v180 = vsel %vm175, %v101, 0
    %v183 = vsel %vm175, %v102, 0
    %v186 = vsel %vm175, %v103, 0
    %v189 = vsel %vm175, %v104, 0
    %v192 = vsel %vm175, %v105, 0
    %v195 = vsel %vm175, %v106, 0
    %v198 = vsel %vm175, %v107, 0
    %v201 = vsel %vm175, %v108, 0
    %v204 = vsel %vm175, %v109, 0
    %v207 = vsel %vm175, %v110, 0
    %v210 = vsel %vm175, %v111, 0
    %v213 = vsel %vm175, %v112, 0
    %v216 = vsel %vm175, %v113, 0
    %v219 = vsel %vm175, %v114, 0
    %v222 = vsel %vm175, %v115, 0
    %v225 = vsel %vm175, %v116, 0
    %v228 = vsel %vm175, %v117, 0
    %v231 = vsel %vm175, %v118, 0
    %v234 = vsel %vm175, %v119, 0
    %v237 = vsel %vm175, %v120, 0
    %v240 = vsel %vm175, %v121, 0
    %v243 = vsel %vm175, %v122, 0
    %v246 = vsel %vm175, %v123, 0
    %v249 = vsel %vm175, %v124, 0
    %v252 = vsel %vm175, %v125, 0
    %v255 = vsel %vm175, %v126, 0
    %v258 = vsel %vm175, %v127, 0
    %v261 = vsel %vm175, %v128, 0
    %v264 = vsel %vm175, %v129, 0
    %v267 = vsel %vm175, %v130, 0
    %v270 = vsel %vm175, %v131, 0
    %v273 = vsel %vm175, %v132, 0
    %v276 = vsel %vm175, %v133, 0
    %v279 = vsel %vm175, %v134, 0
    %v282 = vsel %vm175, %v135, 0
    %v285 = vsel %vm175, %v136, 0
    %v288 = vsel %vm175, %v137, 0
    %v291 = vsel %vm175, %v138, 0
    %v294 = vsel %vm175, %v139, 0
    %v297 = vsel %vm175, %v140, 0
    %v300 = vsel %vm175, %v141, 0
    %v303 = vsel %vm175, %v142, 0
    %v306 = vsel %vm175, %v143, 0
    %v309 = vsel %vm175, %v144, 0
    %v312 = vsel %vm175, %v145, 0
    %v315 = vsel %vm175, %v146, 0
    %v318 = vsel %vm175, %v147, 0
    %v321 = vsel %vm175, %v148, 0
    %v324 = vsel %vm175, %v149, 0
    %v327 = vsel %vm175, %v150, 0
    %v330 = vsel %vm175, %v151, 0
    %v333 = vsel %vm175, %v152, 0
    %v336 = vsel %vm175, %v153, 0
    %v339 = vsel %vm175, %v154, 0
    %v342 = vsel %vm175, %v155, 0
    %v345 = vsel %vm175, %v156, 0
    %v348 = vsel %vm175, %v157, 0
    %v351 = vsel %vm175, %v158, 0
    %v354 = vsel %vm175, %v159, 0
    %v357 = vsel %vm175, %v160, 0
    %v360 = vsel %vm175, %v161, 0
    %v363 = vsel %vm175, %v162, 0
    %v366 = vsel %vm175, %v163, 0
    %368 = vmatprep.subr.mxu0 0.0
    %369 = vmatpush1.msra.mxu0 %v164
    %370 = vmatprep.subr.mxu0 0.0
    %371 = vmatpush1.msra.mxu0 %v165
    %372 = vmatprep.subr.mxu0 0.0
    %373 = vmatpush1.msra.mxu0 %v166
    %374 = vmatprep.subr.mxu0 0.0
    %375 = vmatpush1.msra.mxu0 %v167
    %376 = vmatprep.subr.mxu0 0.0
    %377 = vmatpush1.msra.mxu0 0.0
    %378 = vmatprep.subr.mxu0 0.0
    %379 = vmatpush1.msra.mxu0 0.0
    %380 = vmatprep.subr.mxu0 0.0
    %381 = vmatpush1.msra.mxu0 0.0
    %382 = vmatprep.subr.mxu0 0.0
    %383 = vmatpush1.msra.mxu0 0.0
    %384 = vmatprep.subr.mxu0 0.0
    %385 = vmatpush1.msra.mxu0 0.0
    %386 = vmatprep.subr.mxu0 0.0
    %387 = vmatpush1.msra.mxu0 0.0
    %388 = vmatprep.subr.mxu0 0.0
    %389 = vmatpush1.msra.mxu0 0.0
    %390 = vmatprep.subr.mxu0 0.0
    %391 = vmatpush1.msra.mxu0 0.0
    %392 = vmatprep.subr.mxu0 0.0
    %393 = vmatpush1.msra.mxu0 0.0
    %394 = vmatprep.subr.mxu0 0.0
    %395 = vmatpush1.msra.mxu0 0.0
    %396 = vmatprep.subr.mxu0 0.0
    %397 = vmatpush1.msra.mxu0 0.0
    %398 = vmatprep.subr.mxu0 0.0
    %399 = vmatpush1.msra.mxu0 0.0
    %400 = vmatprep.subr.mxu0 0.0
    %401 = vmatpush1.msra.mxu0 0.0
    %402 = vmatprep.subr.mxu0 0.0
    %403 = vmatpush1.msra.mxu0 0.0
    %404 = vmatprep.subr.mxu0 0.0
    %405 = vmatpush1.msra.mxu0 0.0
    %406 = vmatprep.subr.mxu0 0.0
    %407 = vmatpush1.msra.mxu0 0.0
    %408 = vmatprep.subr.mxu0 0.0
    %409 = vmatpush1.msra.mxu0 0.0
    %410 = vmatprep.subr.mxu0 0.0
    %411 = vmatpush1.msra.mxu0 0.0
    %412 = vmatprep.subr.mxu0 0.0
    %413 = vmatpush1.msra.mxu0 0.0
    %414 = vmatprep.subr.mxu0 0.0
    %415 = vmatpush1.msra.mxu0 0.0
    %416 = vmatprep.subr.mxu0 0.0
    %417 = vmatpush1.msra.mxu0 0.0
    %418 = vmatprep.subr.mxu0 0.0
    %419 = vmatpush1.msra.mxu0 0.0
    %420 = vmatprep.subr.mxu0 0.0
    %421 = vmatpush1.msra.mxu0 0.0
    %422 = vmatprep.subr.mxu0 0.0
    %423 = vmatpush1.msra.mxu0 0.0
    %424 = vmatprep.subr.mxu0 0.0
    %425 = vmatpush1.msra.mxu0 0.0
    %426 = vmatprep.subr.mxu0 0.0
    %427 = vmatpush1.msra.mxu0 0.0
    %428 = vmatprep.subr.mxu0 0.0
    %429 = vmatpush1.msra.mxu0 0.0
    %430 = vmatprep.subr.mxu0 0.0
    %431 = vmatpush1.msra.mxu0 0.0
    %432 = vmatprep.mubr.f32.mxu0 0.0
    %433 = vmatmul.mubr.f32.gmra.mrb[0].mxu0 %v177
    %v434 = vpop.f32.mrb[0].mxu0
    %v435 = vadd.f32 %v173, %v434
    %v436 = vpop.f32.mrb[0].mxu0
    %437 = vmatprep.mubr.f32.mxu0 0.0
    %438 = vmatmul.mubr.f32.gmra.mrb[0].mxu0 %v180
    %v439 = vpop.f32.mrb[0].mxu0
    %v440 = vadd.f32 %v173, %v439
    %v441 = vpop.f32.mrb[0].mxu0
    %442 = vmatprep.mubr.f32.mxu0 0.0
    %443 = vmatmul.mubr.f32.gmra.mrb[0].mxu0 %v183
    %v444 = vpop.f32.mrb[0].mxu0
    %v445 = vadd.f32 %v173, %v444
    %v446 = vpop.f32.mrb[0].mxu0
    %447 = vmatprep.mubr.f32.mxu0 0.0
    %448 = vmatmul.mubr.f32.gmra.mrb[0].mxu0 %v186
    %v449 = vpop.f32.mrb[0].mxu0
    %v450 = vadd.f32 %v173, %v449
    %v451 = vpop.f32.mrb[0].mxu0
    %452 = vmatprep.mubr.f32.mxu0 0.0
    %453 = vmatmul.mubr.f32.gmra.mrb[0].mxu0 %v189
    %v454 = vpop.f32.mrb[0].mxu0
    %v455 = vadd.f32 %v173, %v454
    %v456 = vpop.f32.mrb[0].mxu0
    %457 = vmatprep.mubr.f32.mxu0 0.0
    %458 = vmatmul.mubr.f32.gmra.mrb[0].mxu0 %v192
    %v459 = vpop.f32.mrb[0].mxu0
    %v460 = vadd.f32 %v173, %v459
    %v461 = vpop.f32.mrb[0].mxu0
    %462 = vmatprep.mubr.f32.mxu0 0.0
    %463 = vmatmul.mubr.f32.gmra.mrb[0].mxu0 %v195
    %v464 = vpop.f32.mrb[0].mxu0
    %v465 = vadd.f32 %v173, %v464
    %v466 = vpop.f32.mrb[0].mxu0
    %467 = vmatprep.mubr.f32.mxu0 0.0
    %468 = vmatmul.mubr.f32.gmra.mrb[0].mxu0 %v198
    %v469 = vpop.f32.mrb[0].mxu0
    %v470 = vadd.f32 %v173, %v469
    %v471 = vpop.f32.mrb[0].mxu0
    %472 = vmatprep.mubr.f32.mxu0 0.0
    %473 = vmatmul.mubr.f32.gmra.mrb[0].mxu0 %v201
    %v474 = vpop.f32.mrb[0].mxu0
    %v475 = vadd.f32 %v173, %v474
    %v476 = vpop.f32.mrb[0].mxu0
    %477 = vmatprep.mubr.f32.mxu0 0.0
    %478 = vmatmul.mubr.f32.gmra.mrb[0].mxu0 %v204
    %v479 = vpop.f32.mrb[0].mxu0
    %v480 = vadd.f32 %v173, %v479
    %v481 = vpop.f32.mrb[0].mxu0
    %482 = vmatprep.mubr.f32.mxu0 0.0
    %483 = vmatmul.mubr.f32.gmra.mrb[0].mxu0 %v207
    %v484 = vpop.f32.mrb[0].mxu0
    %v485 = vadd.f32 %v173, %v484
    %v486 = vpop.f32.mrb[0].mxu0
    %487 = vmatprep.mubr.f32.mxu0 0.0
    %488 = vmatmul.mubr.f32.gmra.mrb[0].mxu0 %v210
    %v489 = vpop.f32.mrb[0].mxu0
    %v490 = vadd.f32 %v173, %v489
    %v491 = vpop.f32.mrb[0].mxu0
    %492 = vmatprep.mubr.f32.mxu0 0.0
    %493 = vmatmul.mubr.f32.gmra.mrb[0].mxu0 %v213
    %v494 = vpop.f32.mrb[0].mxu0
    %v495 = vadd.f32 %v173, %v494
    %v496 = vpop.f32.mrb[0].mxu0
    %497 = vmatprep.mubr.f32.mxu0 0.0
    %498 = vmatmul.mubr.f32.gmra.mrb[0].mxu0 %v216
    %v499 = vpop.f32.mrb[0].mxu0
    %v500 = vadd.f32 %v173, %v499
    %v501 = vpop.f32.mrb[0].mxu0
    %502 = vmatprep.mubr.f32.mxu0 0.0
    %503 = vmatmul.mubr.f32.gmra.mrb[0].mxu0 %v219
    %v504 = vpop.f32.mrb[0].mxu0
    %v505 = vadd.f32 %v173, %v504
    %v506 = vpop.f32.mrb[0].mxu0
    %507 = vmatprep.mubr.f32.mxu0 0.0
    %508 = vmatmul.mubr.f32.gmra.mrb[0].mxu0 %v222
    %v509 = vpop.f32.mrb[0].mxu0
    %v510 = vadd.f32 %v173, %v509
    %v511 = vpop.f32.mrb[0].mxu0
    %512 = vmatprep.mubr.f32.mxu0 0.0
    %513 = vmatmul.mubr.f32.gmra.mrb[0].mxu0 %v225
    %v514 = vpop.f32.mrb[0].mxu0
    %v515 = vadd.f32 %v173, %v514
    %v516 = vpop.f32.mrb[0].mxu0
    %517 = vmatprep.mubr.f32.mxu0 0.0
    %518 = vmatmul.mubr.f32.gmra.mrb[0].mxu0 %v228
    %v519 = vpop.f32.mrb[0].mxu0
    %v520 = vadd.f32 %v173, %v519
    %v521 = vpop.f32.mrb[0].mxu0
    %522 = vmatprep.mubr.f32.mxu0 0.0
    %523 = vmatmul.mubr.f32.gmra.mrb[0].mxu0 %v231
    %v524 = vpop.f32.mrb[0].mxu0
    %v525 = vadd.f32 %v173, %v524
    %v526 = vpop.f32.mrb[0].mxu0
    %527 = vmatprep.mubr.f32.mxu0 0.0
    %528 = vmatmul.mubr.f32.gmra.mrb[0].mxu0 %v234
    %v529 = vpop.f32.mrb[0].mxu0
    %v530 = vadd.f32 %v173, %v529
    %v531 = vpop.f32.mrb[0].mxu0
    %532 = vmatprep.mubr.f32.mxu0 0.0
    %533 = vmatmul.mubr.f32.gmra.mrb[0].mxu0 %v237
    %v534 = vpop.f32.mrb[0].mxu0
    %v535 = vadd.f32 %v173, %v534
    %v536 = vpop.f32.mrb[0].mxu0
    %537 = vmatprep.mubr.f32.mxu0 0.0
    %538 = vmatmul.mubr.f32.gmra.mrb[0].mxu0 %v240
    %v539 = vpop.f32.mrb[0].mxu0
    %v540 = vadd.f32 %v173, %v539
    %v541 = vpop.f32.mrb[0].mxu0
    %542 = vmatprep.mubr.f32.mxu0 0.0
    %543 = vmatmul.mubr.f32.gmra.mrb[0].mxu0 %v243
    %v544 = vpop.f32.mrb[0].mxu0
    %v545 = vadd.f32 %v173, %v544
    %v546 = vpop.f32.mrb[0].mxu0
    %547 = vmatprep.mubr.f32.mxu0 0.0
    %548 = vmatmul.mubr.f32.gmra.mrb[0].mxu0 %v246
    %v549 = vpop.f32.mrb[0].mxu0
    %v550 = vadd.f32 %v173, %v549
    %v551 = vpop.f32.mrb[0].mxu0
    %552 = vmatprep.mubr.f32.mxu0 0.0
    %553 = vmatmul.mubr.f32.gmra.mrb[0].mxu0 %v249
    %v554 = vpop.f32.mrb[0].mxu0
    %v555 = vadd.f32 %v173, %v554
    %v556 = vpop.f32.mrb[0].mxu0
    %557 = vmatprep.mubr.f32.mxu0 0.0
    %558 = vmatmul.mubr.f32.gmra.mrb[0].mxu0 %v252
    %v559 = vpop.f32.mrb[0].mxu0
    %v560 = vadd.f32 %v173, %v559
    %v561 = vpop.f32.mrb[0].mxu0
    %562 = vmatprep.mubr.f32.mxu0 0.0
    %563 = vmatmul.mubr.f32.gmra.mrb[0].mxu0 %v255
    %v564 = vpop.f32.mrb[0].mxu0
    %v565 = vadd.f32 %v173, %v564
    %v566 = vpop.f32.mrb[0].mxu0
    %567 = vmatprep.mubr.f32.mxu0 0.0
    %568 = vmatmul.mubr.f32.gmra.mrb[0].mxu0 %v258
    %v569 = vpop.f32.mrb[0].mxu0
    %v570 = vadd.f32 %v173, %v569
    %v571 = vpop.f32.mrb[0].mxu0
    %572 = vmatprep.mubr.f32.mxu0 0.0
    %573 = vmatmul.mubr.f32.gmra.mrb[0].mxu0 %v261
    %v574 = vpop.f32.mrb[0].mxu0
    %v575 = vadd.f32 %v173, %v574
    %v576 = vpop.f32.mrb[0].mxu0
    %577 = vmatprep.mubr.f32.mxu0 0.0
    %578 = vmatmul.mubr.f32.gmra.mrb[0].mxu0 %v264
    %v579 = vpop.f32.mrb[0].mxu0
    %v580 = vadd.f32 %v173, %v579
    %v581 = vpop.f32.mrb[0].mxu0
    %582 = vmatprep.mubr.f32.mxu0 0.0
    %583 = vmatmul.mubr.f32.gmra.mrb[0].mxu0 %v267
    %v584 = vpop.f32.mrb[0].mxu0
    %v585 = vadd.f32 %v173, %v584
    %v586 = vpop.f32.mrb[0].mxu0
    %587 = vmatprep.mubr.f32.mxu0 0.0
    %588 = vmatmul.mubr.f32.gmra.mrb[0].mxu0 %v270
    %v589 = vpop.f32.mrb[0].mxu0
    %v590 = vadd.f32 %v173, %v589
    %v591 = vpop.f32.mrb[0].mxu0
    %592 = vmatprep.mubr.f32.mxu0 0.0
    %593 = vmatmul.mubr.f32.gmra.mrb[0].mxu0 %v273
    %v594 = vpop.f32.mrb[0].mxu0
    %v595 = vadd.f32 %v173, %v594
    %v596 = vpop.f32.mrb[0].mxu0
    %597 = vmatprep.mubr.f32.mxu0 0.0
    %598 = vmatmul.mubr.f32.gmra.mrb[0].mxu0 %v276
    %v599 = vpop.f32.mrb[0].mxu0
    %v600 = vadd.f32 %v173, %v599
    %v601 = vpop.f32.mrb[0].mxu0
    %602 = vmatprep.mubr.f32.mxu0 0.0
    %603 = vmatmul.mubr.f32.gmra.mrb[0].mxu0 %v279
    %v604 = vpop.f32.mrb[0].mxu0
    %v605 = vadd.f32 %v173, %v604
    %v606 = vpop.f32.mrb[0].mxu0
    %607 = vmatprep.mubr.f32.mxu0 0.0
    %608 = vmatmul.mubr.f32.gmra.mrb[0].mxu0 %v282
    %v609 = vpop.f32.mrb[0].mxu0
    %v610 = vadd.f32 %v173, %v609
    %v611 = vpop.f32.mrb[0].mxu0
    %612 = vmatprep.mubr.f32.mxu0 0.0
    %613 = vmatmul.mubr.f32.gmra.mrb[0].mxu0 %v285
    %v614 = vpop.f32.mrb[0].mxu0
    %v615 = vadd.f32 %v173, %v614
    %v616 = vpop.f32.mrb[0].mxu0
    %617 = vmatprep.mubr.f32.mxu0 0.0
    %618 = vmatmul.mubr.f32.gmra.mrb[0].mxu0 %v288
    %v619 = vpop.f32.mrb[0].mxu0
    %v620 = vadd.f32 %v173, %v619
    %v621 = vpop.f32.mrb[0].mxu0
    %622 = vmatprep.mubr.f32.mxu0 0.0
    %623 = vmatmul.mubr.f32.gmra.mrb[0].mxu0 %v291
    %v624 = vpop.f32.mrb[0].mxu0
    %v625 = vadd.f32 %v173, %v624
    %v626 = vpop.f32.mrb[0].mxu0
    %627 = vmatprep.mubr.f32.mxu0 0.0
    %628 = vmatmul.mubr.f32.gmra.mrb[0].mxu0 %v294
    %v629 = vpop.f32.mrb[0].mxu0
    %v630 = vadd.f32 %v173, %v629
    %v631 = vpop.f32.mrb[0].mxu0
    %632 = vmatprep.mubr.f32.mxu0 0.0
    %633 = vmatmul.mubr.f32.gmra.mrb[0].mxu0 %v297
    %v634 = vpop.f32.mrb[0].mxu0
    %v635 = vadd.f32 %v173, %v634
    %v636 = vpop.f32.mrb[0].mxu0
    %637 = vmatprep.mubr.f32.mxu0 0.0
    %638 = vmatmul.mubr.f32.gmra.mrb[0].mxu0 %v300
    %v639 = vpop.f32.mrb[0].mxu0
    %v640 = vadd.f32 %v173, %v639
    %v641 = vpop.f32.mrb[0].mxu0
    %642 = vmatprep.mubr.f32.mxu0 0.0
    %643 = vmatmul.mubr.f32.gmra.mrb[0].mxu0 %v303
    %v644 = vpop.f32.mrb[0].mxu0
    %v645 = vadd.f32 %v173, %v644
    %v646 = vpop.f32.mrb[0].mxu0
    %647 = vmatprep.mubr.f32.mxu0 0.0
    %648 = vmatmul.mubr.f32.gmra.mrb[0].mxu0 %v306
    %v649 = vpop.f32.mrb[0].mxu0
    %v650 = vadd.f32 %v173, %v649
    %v651 = vpop.f32.mrb[0].mxu0
    %652 = vmatprep.mubr.f32.mxu0 0.0
    %653 = vmatmul.mubr.f32.gmra.mrb[0].mxu0 %v309
    %v654 = vpop.f32.mrb[0].mxu0
    %v655 = vadd.f32 %v173, %v654
    %v656 = vpop.f32.mrb[0].mxu0
    %657 = vmatprep.mubr.f32.mxu0 0.0
    %658 = vmatmul.mubr.f32.gmra.mrb[0].mxu0 %v312
    %v659 = vpop.f32.mrb[0].mxu0
    %v660 = vadd.f32 %v173, %v659
    %v661 = vpop.f32.mrb[0].mxu0
    %662 = vmatprep.mubr.f32.mxu0 0.0
    %663 = vmatmul.mubr.f32.gmra.mrb[0].mxu0 %v315
    %v664 = vpop.f32.mrb[0].mxu0
    %v665 = vadd.f32 %v173, %v664
    %v666 = vpop.f32.mrb[0].mxu0
    %667 = vmatprep.mubr.f32.mxu0 0.0
    %668 = vmatmul.mubr.f32.gmra.mrb[0].mxu0 %v318
    %v669 = vpop.f32.mrb[0].mxu0
    %v670 = vadd.f32 %v173, %v669
    %v671 = vpop.f32.mrb[0].mxu0
    %672 = vmatprep.mubr.f32.mxu0 0.0
    %673 = vmatmul.mubr.f32.gmra.mrb[0].mxu0 %v321
    %v674 = vpop.f32.mrb[0].mxu0
    %v675 = vadd.f32 %v173, %v674
    %v676 = vpop.f32.mrb[0].mxu0
    %677 = vmatprep.mubr.f32.mxu0 0.0
    %678 = vmatmul.mubr.f32.gmra.mrb[0].mxu0 %v324
    %v679 = vpop.f32.mrb[0].mxu0
    %v680 = vadd.f32 %v173, %v679
    %v681 = vpop.f32.mrb[0].mxu0
    %682 = vmatprep.mubr.f32.mxu0 0.0
    %683 = vmatmul.mubr.f32.gmra.mrb[0].mxu0 %v327
    %v684 = vpop.f32.mrb[0].mxu0
    %v685 = vadd.f32 %v173, %v684
    %v686 = vpop.f32.mrb[0].mxu0
    %687 = vmatprep.mubr.f32.mxu0 0.0
    %688 = vmatmul.mubr.f32.gmra.mrb[0].mxu0 %v330
    %v689 = vpop.f32.mrb[0].mxu0
    %v690 = vadd.f32 %v173, %v689
    %v691 = vpop.f32.mrb[0].mxu0
    %692 = vmatprep.mubr.f32.mxu0 0.0
    %693 = vmatmul.mubr.f32.gmra.mrb[0].mxu0 %v333
    %v694 = vpop.f32.mrb[0].mxu0
    %v695 = vadd.f32 %v173, %v694
    %v696 = vpop.f32.mrb[0].mxu0
    %697 = vmatprep.mubr.f32.mxu0 0.0
    %698 = vmatmul.mubr.f32.gmra.mrb[0].mxu0 %v336
    %v699 = vpop.f32.mrb[0].mxu0
    %v700 = vadd.f32 %v173, %v699
    %v701 = vpop.f32.mrb[0].mxu0
    %702 = vmatprep.mubr.f32.mxu0 0.0
    %703 = vmatmul.mubr.f32.gmra.mrb[0].mxu0 %v339
    %v704 = vpop.f32.mrb[0].mxu0
    %v705 = vadd.f32 %v173, %v704
    %v706 = vpop.f32.mrb[0].mxu0
    %707 = vmatprep.mubr.f32.mxu0 0.0
    %708 = vmatmul.mubr.f32.gmra.mrb[0].mxu0 %v342
    %v709 = vpop.f32.mrb[0].mxu0
    %v710 = vadd.f32 %v173, %v709
    %v711 = vpop.f32.mrb[0].mxu0
    %712 = vmatprep.mubr.f32.mxu0 0.0
    %713 = vmatmul.mubr.f32.gmra.mrb[0].mxu0 %v345
    %v714 = vpop.f32.mrb[0].mxu0
    %v715 = vadd.f32 %v173, %v714
    %v716 = vpop.f32.mrb[0].mxu0
    %717 = vmatprep.mubr.f32.mxu0 0.0
    %718 = vmatmul.mubr.f32.gmra.mrb[0].mxu0 %v348
    %v719 = vpop.f32.mrb[0].mxu0
    %v720 = vadd.f32 %v173, %v719
    %v721 = vpop.f32.mrb[0].mxu0
    %722 = vmatprep.mubr.f32.mxu0 0.0
    %723 = vmatmul.mubr.f32.gmra.mrb[0].mxu0 %v351
    %v724 = vpop.f32.mrb[0].mxu0
    %v725 = vadd.f32 %v173, %v724
    %v726 = vpop.f32.mrb[0].mxu0
    %727 = vmatprep.mubr.f32.mxu0 0.0
    %728 = vmatmul.mubr.f32.gmra.mrb[0].mxu0 %v354
    %v729 = vpop.f32.mrb[0].mxu0
    %v730 = vadd.f32 %v173, %v729
    %v731 = vpop.f32.mrb[0].mxu0
    %732 = vmatprep.mubr.f32.mxu0 0.0
    %733 = vmatmul.mubr.f32.gmra.mrb[0].mxu0 %v357
    %v734 = vpop.f32.mrb[0].mxu0
    %v735 = vadd.f32 %v173, %v734
    %v736 = vpop.f32.mrb[0].mxu0
    %737 = vmatprep.mubr.f32.mxu0 0.0
    %738 = vmatmul.mubr.f32.gmra.mrb[0].mxu0 %v360
    %v739 = vpop.f32.mrb[0].mxu0
    %v740 = vadd.f32 %v173, %v739
    %v741 = vpop.f32.mrb[0].mxu0
    %742 = vmatprep.mubr.f32.mxu0 0.0
    %743 = vmatmul.mubr.f32.gmra.mrb[0].mxu0 %v363
    %v744 = vpop.f32.mrb[0].mxu0
    %v745 = vadd.f32 %v173, %v744
    %v746 = vpop.f32.mrb[0].mxu0
    %747 = vmatprep.mubr.f32.mxu0 0.0
    %748 = vmatmul.mubr.f32.gmra.mrb[0].mxu0 %v366
    %v749 = vpop.f32.mrb[0].mxu0
    %v750 = vadd.f32 %v173, %v749
    %v751 = vpop.f32.mrb[0].mxu0
    %752 = vdwg.mxu0
    %v753 = vld [vmem:[#allocation2] sm:$0xff]
    %v754 = vld [vmem:[#allocation2 + $0x8] sm:$0xff]
    %v755 = vld [vmem:[#allocation2 + $0x10] sm:$0xff]
    %v756 = vld [vmem:[#allocation2 + $0x18] sm:$0xff]
    %v757 = vld [vmem:[#allocation2 + $0x20] sm:$0xff]
    %v758 = vld [vmem:[#allocation2 + $0x28] sm:$0xff]
    %v759 = vld [vmem:[#allocation2 + $0x30] sm:$0xff]
    %v760 = vld [vmem:[#allocation2 + $0x38] sm:$0xff]
    %v761 = vld [vmem:[#allocation2 + $0x40] sm:$0xff]
    %v762 = vld [vmem:[#allocation2 + $0x48] sm:$0xff]
    %v763 = vld [vmem:[#allocation2 + $0x50] sm:$0xff]
    %v764 = vld [vmem:[#allocation2 + $0x58] sm:$0xff]
    %v765 = vld [vmem:[#allocation2 + $0x60] sm:$0xff]
    %v766 = vld [vmem:[#allocation2 + $0x68] sm:$0xff]
    %v767 = vld [vmem:[#allocation2 + $0x70] sm:$0xff]
    %v768 = vld [vmem:[#allocation2 + $0x78] sm:$0xff]
    %v769 = vld [vmem:[#allocation2 + $0x80] sm:$0xff]
    %v770 = vld [vmem:[#allocation2 + $0x88] sm:$0xff]
    %v771 = vld [vmem:[#allocation2 + $0x90] sm:$0xff]
    %v772 = vld [vmem:[#allocation2 + $0x98] sm:$0xff]
    %v773 = vld [vmem:[#allocation2 + $0xa0] sm:$0xff]
    %v774 = vld [vmem:[#allocation2 + $0xa8] sm:$0xff]
    %v775 = vld [vmem:[#allocation2 + $0xb0] sm:$0xff]
    %v776 = vld [vmem:[#allocation2 + $0xb8] sm:$0xff]
    %v777 = vld [vmem:[#allocation2 + $0xc0] sm:$0xff]
    %v778 = vld [vmem:[#allocation2 + $0xc8] sm:$0xff]
    %v779 = vld [vmem:[#allocation2 + $0xd0] sm:$0xff]
    %v780 = vld [vmem:[#allocation2 + $0xd8] sm:$0xff]
    %v781 = vld [vmem:[#allocation2 + $0xe0] sm:$0xff]
    %v782 = vld [vmem:[#allocation2 + $0xe8] sm:$0xff]
    %v783 = vld [vmem:[#allocation2 + $0xf0] sm:$0xff]
    %v784 = vld [vmem:[#allocation2 + $0xf8] sm:$0xff]
    %v785 = vld [vmem:[#allocation2 + $0x100] sm:$0xff]
    %v786 = vld [vmem:[#allocation2 + $0x108] sm:$0xff]
    %v787 = vld [vmem:[#allocation2 + $0x110] sm:$0xff]
    %v788 = vld [vmem:[#allocation2 + $0x118] sm:$0xff]
    %v789 = vld [vmem:[#allocation2 + $0x120] sm:$0xff]
    %v790 = vld [vmem:[#allocation2 + $0x128] sm:$0xff]
    %v791 = vld [vmem:[#allocation2 + $0x130] sm:$0xff]
    %v792 = vld [vmem:[#allocation2 + $0x138] sm:$0xff]
    %v793 = vld [vmem:[#allocation2 + $0x140] sm:$0xff]
    %v794 = vld [vmem:[#allocation2 + $0x148] sm:$0xff]
    %v795 = vld [vmem:[#allocation2 + $0x150] sm:$0xff]
    %v796 = vld [vmem:[#allocation2 + $0x158] sm:$0xff]
    %v797 = vld [vmem:[#allocation2 + $0x160] sm:$0xff]
    %v798 = vld [vmem:[#allocation2 + $0x168] sm:$0xff]
    %v799 = vld [vmem:[#allocation2 + $0x170] sm:$0xff]
    %v800 = vld [vmem:[#allocation2 + $0x178] sm:$0xff]
    %v801 = vld [vmem:[#allocation2 + $0x180] sm:$0xff]
    %v802 = vld [vmem:[#allocation2 + $0x188] sm:$0xff]
    %v803 = vld [vmem:[#allocation2 + $0x190] sm:$0xff]
    %v804 = vld [vmem:[#allocation2 + $0x198] sm:$0xff]
    %v805 = vld [vmem:[#allocation2 + $0x1a0] sm:$0xff]
    %v806 = vld [vmem:[#allocation2 + $0x1a8] sm:$0xff]
    %v807 = vld [vmem:[#allocation2 + $0x1b0] sm:$0xff]
    %v808 = vld [vmem:[#allocation2 + $0x1b8] sm:$0xff]
    %v809 = vld [vmem:[#allocation2 + $0x1c0] sm:$0xff]
    %v810 = vld [vmem:[#allocation2 + $0x1c8] sm:$0xff]
    %v811 = vld [vmem:[#allocation2 + $0x1d0] sm:$0xff]
    %v812 = vld [vmem:[#allocation2 + $0x1d8] sm:$0xff]
    %v813 = vld [vmem:[#allocation2 + $0x1e0] sm:$0xff]
    %v814 = vld [vmem:[#allocation2 + $0x1e8] sm:$0xff]
    %v815 = vld [vmem:[#allocation2 + $0x1f0] sm:$0xff]
    %v816 = vld [vmem:[#allocation2 + $0x1f8] sm:$0xff]
    %v817 = vadd.f32 %v753, %v435
    %v818 = vadd.f32 %v754, %v440
    %v819 = vadd.f32 %v755, %v445
    %v820 = vadd.f32 %v756, %v450
    %v821 = vadd.f32 %v757, %v455
    %v822 = vadd.f32 %v758, %v460
    %v823 = vadd.f32 %v759, %v465
    %v824 = vadd.f32 %v760, %v470
    %v825 = vadd.f32 %v761, %v475
    %v826 = vadd.f32 %v762, %v480
    %v827 = vadd.f32 %v763, %v485
    %v828 = vadd.f32 %v764, %v490
    %v829 = vadd.f32 %v765, %v495
    %v830 = vadd.f32 %v766, %v500
    %v831 = vadd.f32 %v767, %v505
    %v832 = vadd.f32 %v768, %v510
    %v833 = vadd.f32 %v769, %v515
    %v834 = vadd.f32 %v770, %v520
    %v835 = vadd.f32 %v771, %v525
    %v836 = vadd.f32 %v772, %v530
    %v837 = vadd.f32 %v773, %v535
    %v838 = vadd.f32 %v774, %v540
    %v839 = vadd.f32 %v775, %v545
    %v840 = vadd.f32 %v776, %v550
    %v841 = vadd.f32 %v777, %v555
    %v842 = vadd.f32 %v778, %v560
    %v843 = vadd.f32 %v779, %v565
    %v844 = vadd.f32 %v780, %v570
    %v845 = vadd.f32 %v781, %v575
    %v846 = vadd.f32 %v782, %v580
    %v847 = vadd.f32 %v783, %v585
    %v848 = vadd.f32 %v784, %v590
    %v849 = vadd.f32 %v785, %v595
    %v850 = vadd.f32 %v786, %v600
    %v851 = vadd.f32 %v787, %v605
    %v852 = vadd.f32 %v788, %v610
    %v853 = vadd.f32 %v789, %v615
    %v854 = vadd.f32 %v790, %v620
    %v855 = vadd.f32 %v791, %v625
    %v856 = vadd.f32 %v792, %v630
    %v857 = vadd.f32 %v793, %v635
    %v858 = vadd.f32 %v794, %v640
    %v859 = vadd.f32 %v795, %v645
    %v860 = vadd.f32 %v796, %v650
    %v861 = vadd.f32 %v797, %v655
    %v862 = vadd.f32 %v798, %v660
    %v863 = vadd.f32 %v799, %v665
    %v864 = vadd.f32 %v800, %v670
    %v865 = vadd.f32 %v801, %v675
    %v866 = vadd.f32 %v802, %v680
    %v867 = vadd.f32 %v803, %v685
    %v868 = vadd.f32 %v804, %v690
    %v869 = vadd.f32 %v805, %v695
    %v870 = vadd.f32 %v806, %v700
    %v871 = vadd.f32 %v807, %v705
    %v872 = vadd.f32 %v808, %v710
    %v873 = vadd.f32 %v809, %v715
    %v874 = vadd.f32 %v810, %v720
    %v875 = vadd.f32 %v811, %v725
    %v876 = vadd.f32 %v812, %v730
    %v877 = vadd.f32 %v813, %v735
    %v878 = vadd.f32 %v814, %v740
    %v879 = vadd.f32 %v815, %v745
    %v880 = vadd.f32 %v816, %v750
    %s881 = smul.u32 0, 512
    %s882 = scalar_lea.vmem [#allocation13], %s881
    %883 = vst.msk [vmem:[%s882] sm:$0xff] %vm175, %v817
    %884 = vst.msk [vmem:[%s882 + $0x8] sm:$0xff] %vm175, %v818
    %885 = vst.msk [vmem:[%s882 + $0x10] sm:$0xff] %vm175, %v819
    %886 = vst.msk [vmem:[%s882 + $0x18] sm:$0xff] %vm175, %v820
    %887 = vst.msk [vmem:[%s882 + $0x20] sm:$0xff] %vm175, %v821
    %888 = vst.msk [vmem:[%s882 + $0x28] sm:$0xff] %vm175, %v822
    %889 = vst.msk [vmem:[%s882 + $0x30] sm:$0xff] %vm175, %v823
    %890 = vst.msk [vmem:[%s882 + $0x38] sm:$0xff] %vm175, %v824
    %891 = vst.msk [vmem:[%s882 + $0x40] sm:$0xff] %vm175, %v825
    %892 = vst.msk [vmem:[%s882 + $0x48] sm:$0xff] %vm175, %v826
    %893 = vst.msk [vmem:[%s882 + $0x50] sm:$0xff] %vm175, %v827
    %894 = vst.msk [vmem:[%s882 + $0x58] sm:$0xff] %vm175, %v828
    %895 = vst.msk [vmem:[%s882 + $0x60] sm:$0xff] %vm175, %v829
    %896 = vst.msk [vmem:[%s882 + $0x68] sm:$0xff] %vm175, %v830
    %897 = vst.msk [vmem:[%s882 + $0x70] sm:$0xff] %vm175, %v831
    %898 = vst.msk [vmem:[%s882 + $0x78] sm:$0xff] %vm175, %v832
    %899 = vst.msk [vmem:[%s882 + $0x80] sm:$0xff] %vm175, %v833
    %900 = vst.msk [vmem:[%s882 + $0x88] sm:$0xff] %vm175, %v834
    %901 = vst.msk [vmem:[%s882 + $0x90] sm:$0xff] %vm175, %v835
    %902 = vst.msk [vmem:[%s882 + $0x98] sm:$0xff] %vm175, %v836
    %903 = vst.msk [vmem:[%s882 + $0xa0] sm:$0xff] %vm175, %v837
    %904 = vst.msk [vmem:[%s882 + $0xa8] sm:$0xff] %vm175, %v838
    %905 = vst.msk [vmem:[%s882 + $0xb0] sm:$0xff] %vm175, %v839
    %906 = vst.msk [vmem:[%s882 + $0xb8] sm:$0xff] %vm175, %v840
    %907 = vst.msk [vmem:[%s882 + $0xc0] sm:$0xff] %vm175, %v841
    %908 = vst.msk [vmem:[%s882 + $0xc8] sm:$0xff] %vm175, %v842
    %909 = vst.msk [vmem:[%s882 + $0xd0] sm:$0xff] %vm175, %v843
    %910 = vst.msk [vmem:[%s882 + $0xd8] sm:$0xff] %vm175, %v844
    %911 = vst.msk [vmem:[%s882 + $0xe0] sm:$0xff] %vm175, %v845
    %912 = vst.msk [vmem:[%s882 + $0xe8] sm:$0xff] %vm175, %v846
    %913 = vst.msk [vmem:[%s882 + $0xf0] sm:$0xff] %vm175, %v847
    %914 = vst.msk [vmem:[%s882 + $0xf8] sm:$0xff] %vm175, %v848
    %915 = vst.msk [vmem:[%s882 + $0x100] sm:$0xff] %vm175, %v849
    %916 = vst.msk [vmem:[%s882 + $0x108] sm:$0xff] %vm175, %v850
    %917 = vst.msk [vmem:[%s882 + $0x110] sm:$0xff] %vm175, %v851
    %918 = vst.msk [vmem:[%s882 + $0x118] sm:$0xff] %vm175, %v852
    %919 = vst.msk [vmem:[%s882 + $0x120] sm:$0xff] %vm175, %v853
    %920 = vst.msk [vmem:[%s882 + $0x128] sm:$0xff] %vm175, %v854
    %921 = vst.msk [vmem:[%s882 + $0x130] sm:$0xff] %vm175, %v855
    %922 = vst.msk [vmem:[%s882 + $0x138] sm:$0xff] %vm175, %v856
    %923 = vst.msk [vmem:[%s882 + $0x140] sm:$0xff] %vm175, %v857
    %924 = vst.msk [vmem:[%s882 + $0x148] sm:$0xff] %vm175, %v858
    %925 = vst.msk [vmem:[%s882 + $0x150] sm:$0xff] %vm175, %v859
    %926 = vst.msk [vmem:[%s882 + $0x158] sm:$0xff] %vm175, %v860
    %927 = vst.msk [vmem:[%s882 + $0x160] sm:$0xff] %vm175, %v861
    %928 = vst.msk [vmem:[%s882 + $0x168] sm:$0xff] %vm175, %v862
    %929 = vst.msk [vmem:[%s882 + $0x170] sm:$0xff] %vm175, %v863
    %930 = vst.msk [vmem:[%s882 + $0x178] sm:$0xff] %vm175, %v864
    %931 = vst.msk [vmem:[%s882 + $0x180] sm:$0xff] %vm175, %v865
    %932 = vst.msk [vmem:[%s882 + $0x188] sm:$0xff] %vm175, %v866
    %933 = vst.msk [vmem:[%s882 + $0x190] sm:$0xff] %vm175, %v867
    %934 = vst.msk [vmem:[%s882 + $0x198] sm:$0xff] %vm175, %v868
    %935 = vst.msk [vmem:[%s882 + $0x1a0] sm:$0xff] %vm175, %v869
    %936 = vst.msk [vmem:[%s882 + $0x1a8] sm:$0xff] %vm175, %v870
    %937 = vst.msk [vmem:[%s882 + $0x1b0] sm:$0xff] %vm175, %v871
    %938 = vst.msk [vmem:[%s882 + $0x1b8] sm:$0xff] %vm175, %v872
    %939 = vst.msk [vmem:[%s882 + $0x1c0] sm:$0xff] %vm175, %v873
    %940 = vst.msk [vmem:[%s882 + $0x1c8] sm:$0xff] %vm175, %v874
    %941 = vst.msk [vmem:[%s882 + $0x1d0] sm:$0xff] %vm175, %v875
    %942 = vst.msk [vmem:[%s882 + $0x1d8] sm:$0xff] %vm175, %v876
    %943 = vst.msk [vmem:[%s882 + $0x1e0] sm:$0xff] %vm175, %v877
    %944 = vst.msk [vmem:[%s882 + $0x1e8] sm:$0xff] %vm175, %v878
    %945 = vst.msk [vmem:[%s882 + $0x1f0] sm:$0xff] %vm175, %v879
    %946 = vst.msk [vmem:[%s882 + $0x1f8] sm:$0xff] %vm175, %v880
    %p947 = scmp.eq.s32.totalorder 0, 0
    // Predicated region
    $region50: #{fno2d_forward.10} parent=1 // pred_check
      %p948 = pneg %p947
    $region51: #{fno2d_forward.10} parent=1 // pred_check_branch
      %950 = sbr.rel (%p948) target = $region53
    $region52: #{fno2d_forward.10} parent=1 // pred_region
      %v951 = vld [vmem:[#allocation13] sm:$0xff]
      %v952 = vld [vmem:[#allocation13 + $0x8] sm:$0xff]
      %v953 = vld [vmem:[#allocation13 + $0x10] sm:$0xff]
      %v954 = vld [vmem:[#allocation13 + $0x18] sm:$0xff]
      %v955 = vld [vmem:[#allocation13 + $0x20] sm:$0xff]
      %v956 = vld [vmem:[#allocation13 + $0x28] sm:$0xff]
      %v957 = vld [vmem:[#allocation13 + $0x30] sm:$0xff]
      %v958 = vld [vmem:[#allocation13 + $0x38] sm:$0xff]
      %v959 = vld [vmem:[#allocation13 + $0x40] sm:$0xff]
      %v960 = vld [vmem:[#allocation13 + $0x48] sm:$0xff]
      %v961 = vld [vmem:[#allocation13 + $0x50] sm:$0xff]
      %v962 = vld [vmem:[#allocation13 + $0x58] sm:$0xff]
      %v963 = vld [vmem:[#allocation13 + $0x60] sm:$0xff]
      %v964 = vld [vmem:[#allocation13 + $0x68] sm:$0xff]
      %v965 = vld [vmem:[#allocation13 + $0x70] sm:$0xff]
      %v966 = vld [vmem:[#allocation13 + $0x78] sm:$0xff]
      %v967 = vld [vmem:[#allocation13 + $0x80] sm:$0xff]
      %v968 = vld [vmem:[#allocation13 + $0x88] sm:$0xff]
      %v969 = vld [vmem:[#allocation13 + $0x90] sm:$0xff]
      %v970 = vld [vmem:[#allocation13 + $0x98] sm:$0xff]
      %v971 = vld [vmem:[#allocation13 + $0xa0] sm:$0xff]
      %v972 = vld [vmem:[#allocation13 + $0xa8] sm:$0xff]
      %v973 = vld [vmem:[#allocation13 + $0xb0] sm:$0xff]
      %v974 = vld [vmem:[#allocation13 + $0xb8] sm:$0xff]
      %v975 = vld [vmem:[#allocation13 + $0xc0] sm:$0xff]
      %v976 = vld [vmem:[#allocation13 + $0xc8] sm:$0xff]
      %v977 = vld [vmem:[#allocation13 + $0xd0] sm:$0xff]
      %v978 = vld [vmem:[#allocation13 + $0xd8] sm:$0xff]
      %v979 = vld [vmem:[#allocation13 + $0xe0] sm:$0xff]
      %v980 = vld [vmem:[#allocation13 + $0xe8] sm:$0xff]
      %v981 = vld [vmem:[#allocation13 + $0xf0] sm:$0xff]
      %v982 = vld [vmem:[#allocation13 + $0xf8] sm:$0xff]
      %v983 = vld [vmem:[#allocation13 + $0x100] sm:$0xff]
      %v984 = vld [vmem:[#allocation13 + $0x108] sm:$0xff]
      %v985 = vld [vmem:[#allocation13 + $0x110] sm:$0xff]
      %v986 = vld [vmem:[#allocation13 + $0x118] sm:$0xff]
      %v987 = vld [vmem:[#allocation13 + $0x120] sm:$0xff]
      %v988 = vld [vmem:[#allocation13 + $0x128] sm:$0xff]
      %v989 = vld [vmem:[#allocation13 + $0x130] sm:$0xff]
      %v990 = vld [vmem:[#allocation13 + $0x138] sm:$0xff]
      %v991 = vld [vmem:[#allocation13 + $0x140] sm:$0xff]
      %v992 = vld [vmem:[#allocation13 + $0x148] sm:$0xff]
      %v993 = vld [vmem:[#allocation13 + $0x150] sm:$0xff]
      %v994 = vld [vmem:[#allocation13 + $0x158] sm:$0xff]
      %v995 = vld [vmem:[#allocation13 + $0x160] sm:$0xff]
      %v996 = vld [vmem:[#allocation13 + $0x168] sm:$0xff]
      %v997 = vld [vmem:[#allocation13 + $0x170] sm:$0xff]
      %v998 = vld [vmem:[#allocation13 + $0x178] sm:$0xff]
      %v999 = vld [vmem:[#allocation13 + $0x180] sm:$0xff]
      %v1000 = vld [vmem:[#allocation13 + $0x188] sm:$0xff]
      %v1001 = vld [vmem:[#allocation13 + $0x190] sm:$0xff]
      %v1002 = vld [vmem:[#allocation13 + $0x198] sm:$0xff]
      %v1003 = vld [vmem:[#allocation13 + $0x1a0] sm:$0xff]
      %v1004 = vld [vmem:[#allocation13 + $0x1a8] sm:$0xff]
      %v1005 = vld [vmem:[#allocation13 + $0x1b0] sm:$0xff]
      %v1006 = vld [vmem:[#allocation13 + $0x1b8] sm:$0xff]
      %v1007 = vld [vmem:[#allocation13 + $0x1c0] sm:$0xff]
      %v1008 = vld [vmem:[#allocation13 + $0x1c8] sm:$0xff]
      %v1009 = vld [vmem:[#allocation13 + $0x1d0] sm:$0xff]
      %v1010 = vld [vmem:[#allocation13 + $0x1d8] sm:$0xff]
      %v1011 = vld [vmem:[#allocation13 + $0x1e0] sm:$0xff]
      %v1012 = vld [vmem:[#allocation13 + $0x1e8] sm:$0xff]
      %v1013 = vld [vmem:[#allocation13 + $0x1f0] sm:$0xff]
      %v1014 = vld [vmem:[#allocation13 + $0x1f8] sm:$0xff]
      %v1015 = vsel %vm175, %v951, 0.0
      %v1016 = vsel %vm175, %v952, 0.0
      %v1017 = vadd.f32 %v1015, %v1016
      %v1018 = vsel %vm175, %v953, 0.0
      %v1019 = vadd.f32 %v1017, %v1018
      %v1020 = vsel %vm175, %v954, 0.0
      %v1021 = vadd.f32 %v1019, %v1020
      %v1022 = vsel %vm175, %v955, 0.0
      %v1023 = vadd.f32 %v1021, %v1022
      %v1024 = vsel %vm175, %v956, 0.0
      %v1025 = vadd.f32 %v1023, %v1024
      %v1026 = vsel %vm175, %v957, 0.0
      %v1027 = vadd.f32 %v1025, %v1026
      %v1028 = vsel %vm175, %v958, 0.0
      %v1029 = vadd.f32 %v1027, %v1028
      %v1030 = vsel %vm175, %v959, 0.0
      %v1031 = vadd.f32 %v1029, %v1030
      %v1032 = vsel %vm175, %v960, 0.0
      %v1033 = vadd.f32 %v1031, %v1032
      %v1034 = vsel %vm175, %v961, 0.0
      %v1035 = vadd.f32 %v1033, %v1034
      %v1036 = vsel %vm175, %v962, 0.0
      %v1037 = vadd.f32 %v1035, %v1036
      %v1038 = vsel %vm175, %v963, 0.0
      %v1039 = vadd.f32 %v1037, %v1038
      %v1040 = vsel %vm175, %v964, 0.0
      %v1041 = vadd.f32 %v1039, %v1040
      %v1042 = vsel %vm175, %v965, 0.0
      %v1043 = vadd.f32 %v1041, %v1042
      %v1044 = vsel %vm175, %v966, 0.0
      %v1045 = vadd.f32 %v1043, %v1044
      %v1046 = vsel %vm175, %v967, 0.0
      %v1047 = vadd.f32 %v1045, %v1046
      %v1048 = vsel %vm175, %v968, 0.0
      %v1049 = vadd.f32 %v1047, %v1048
      %v1050 = vsel %vm175, %v969, 0.0
      %v1051 = vadd.f32 %v1049, %v1050
      %v1052 = vsel %vm175, %v970, 0.0
      %v1053 = vadd.f32 %v1051, %v1052
      %v1054 = vsel %vm175, %v971, 0.0
      %v1055 = vadd.f32 %v1053, %v1054
      %v1056 = vsel %vm175, %v972, 0.0
      %v1057 = vadd.f32 %v1055, %v1056
      %v1058 = vsel %vm175, %v973, 0.0
      %v1059 = vadd.f32 %v1057, %v1058
      %v1060 = vsel %vm175, %v974, 0.0
      %v1061 = vadd.f32 %v1059, %v1060
      %v1062 = vsel %vm175, %v975, 0.0
      %v1063 = vadd.f32 %v1061, %v1062
      %v1064 = vsel %vm175, %v976, 0.0
      %v1065 = vadd.f32 %v1063, %v1064
      %v1066 = vsel %vm175, %v977, 0.0
      %v1067 = vadd.f32 %v1065, %v1066
      %v1068 = vsel %vm175, %v978, 0.0
      %v1069 = vadd.f32 %v1067, %v1068
      %v1070 = vsel %vm175, %v979, 0.0
      %v1071 = vadd.f32 %v1069, %v1070
      %v1072 = vsel %vm175, %v980, 0.0
      %v1073 = vadd.f32 %v1071, %v1072
      %v1074 = vsel %vm175, %v981, 0.0
      %v1075 = vadd.f32 %v1073, %v1074
      %v1076 = vsel %vm175, %v982, 0.0
      %v1077 = vadd.f32 %v1075, %v1076
      %v1078 = vsel %vm175, %v983, 0.0
      %v1079 = vadd.f32 %v1077, %v1078
      %v1080 = vsel %vm175, %v984, 0.0
      %v1081 = vadd.f32 %v1079, %v1080
      %v1082 = vsel %vm175, %v985, 0.0
      %v1083 = vadd.f32 %v1081, %v1082
      %v1084 = vsel %vm175, %v986, 0.0
      %v1085 = vadd.f32 %v1083, %v1084
      %v1086 = vsel %vm175, %v987, 0.0
      %v1087 = vadd.f32 %v1085, %v1086
      %v1088 = vsel %vm175, %v988, 0.0
      %v1089 = vadd.f32 %v1087, %v1088
      %v1090 = vsel %vm175, %v989, 0.0
      %v1091 = vadd.f32 %v1089, %v1090
      %v1092 = vsel %vm175, %v990, 0.0
      %v1093 = vadd.f32 %v1091, %v1092
      %v1094 = vsel %vm175, %v991, 0.0
      %v1095 = vadd.f32 %v1093, %v1094
      %v1096 = vsel %vm175, %v992, 0.0
      %v1097 = vadd.f32 %v1095, %v1096
      %v1098 = vsel %vm175, %v993, 0.0
      %v1099 = vadd.f32 %v1097, %v1098
      %v1100 = vsel %vm175, %v994, 0.0
      %v1101 = vadd.f32 %v1099, %v1100
      %v1102 = vsel %vm175, %v995, 0.0
      %v1103 = vadd.f32 %v1101, %v1102
      %v1104 = vsel %vm175, %v996, 0.0
      %v1105 = vadd.f32 %v1103, %v1104
      %v1106 = vsel %vm175, %v997, 0.0
      %v1107 = vadd.f32 %v1105, %v1106
      %v1108 = vsel %vm175, %v998, 0.0
      %v1109 = vadd.f32 %v1107, %v1108
      %v1110 = vsel %vm175, %v999, 0.0
      %v1111 = vadd.f32 %v1109, %v1110
      %v1112 = vsel %vm175, %v1000, 0.0
      %v1113 = vadd.f32 %v1111, %v1112
      %v1114 = vsel %vm175, %v1001, 0.0
      %v1115 = vadd.f32 %v1113, %v1114
      %v1116 = vsel %vm175, %v1002, 0.0
      %v1117 = vadd.f32 %v1115, %v1116
      %v1118 = vsel %vm175, %v1003, 0.0
      %v1119 = vadd.f32 %v1117, %v1118
      %v1120 = vsel %vm175, %v1004, 0.0
      %v1121 = vadd.f32 %v1119, %v1120
      %v1122 = vsel %vm175, %v1005, 0.0
      %v1123 = vadd.f32 %v1121, %v1122
      %v1124 = vsel %vm175, %v1006, 0.0
      %v1125 = vadd.f32 %v1123, %v1124
      %v1126 = vsel %vm175, %v1007, 0.0
      %v1127 = vadd.f32 %v1125, %v1126
      %v1128 = vsel %vm175, %v1008, 0.0
      %v1129 = vadd.f32 %v1127, %v1128
      %v1130 = vsel %vm175, %v1009, 0.0
      %v1131 = vadd.f32 %v1129, %v1130
      %v1132 = vsel %vm175, %v1010, 0.0
      %v1133 = vadd.f32 %v1131, %v1132
      %v1134 = vsel %vm175, %v1011, 0.0
      %v1135 = vadd.f32 %v1133, %v1134
      %v1136 = vsel %vm175, %v1012, 0.0
      %v1137 = vadd.f32 %v1135, %v1136
      %v1138 = vsel %vm175, %v1013, 0.0
      %v1139 = vadd.f32 %v1137, %v1138
      %v1140 = vsel %vm175, %v1014, 0.0
      %v1141 = vadd.f32 %v1139, %v1140
      %v1142 = vrot.slane %v1141, 4
      %v1143 = vadd.f32 %v1141, %v1142
      %v1144 = vrot.slane %v1143, 2
      %v1145 = vadd.f32 %v1143, %v1144
      %v1146 = vrot.slane %v1145, 1
      %v1147 = vadd.f32 %v1145, %v1146
      %v1148 = vrcp.pop 512.0
      %v1149 = vmul.f32 %v1147, %v1148
      %v1150 = vsub.f32 %v951, %v1149
      %v1151 = vsub.f32 %v952, %v1149
      %v1152 = vsub.f32 %v953, %v1149
      %v1153 = vsub.f32 %v954, %v1149
      %v1154 = vsub.f32 %v955, %v1149
      %v1155 = vsub.f32 %v956, %v1149
      %v1156 = vsub.f32 %v957, %v1149
      %v1157 = vsub.f32 %v958, %v1149
      %v1158 = vsub.f32 %v959, %v1149
      %v1159 = vsub.f32 %v960, %v1149
      %v1160 = vsub.f32 %v961, %v1149
      %v1161 = vsub.f32 %v962, %v1149
      %v1162 = vsub.f32 %v963, %v1149
      %v1163 = vsub.f32 %v964, %v1149
      %v1164 = vsub.f32 %v965, %v1149
      %v1165 = vsub.f32 %v966, %v1149
      %v1166 = vsub.f32 %v967, %v1149
      %v1167 = vsub.f32 %v968, %v1149
      %v1168 = vsub.f32 %v969, %v1149
      %v1169 = vsub.f32 %v970, %v1149
      %v1170 = vsub.f32 %v971, %v1149
      %v1171 = vsub.f32 %v972, %v1149
      %v1172 = vsub.f32 %v973, %v1149
      %v1173 = vsub.f32 %v974, %v1149
      %v1174 = vsub.f32 %v975, %v1149
      %v1175 = vsub.f32 %v976, %v1149
      %v1176 = vsub.f32 %v977, %v1149
      %v1177 = vsub.f32 %v978, %v1149
      %v1178 = vsub.f32 %v979, %v1149
      %v1179 = vsub.f32 %v980, %v1149
      %v1180 = vsub.f32 %v981, %v1149
      %v1181 = vsub.f32 %v982, %v1149
      %v1182 = vsub.f32 %v983, %v1149
      %v1183 = vsub.f32 %v984, %v1149
      %v1184 = vsub.f32 %v985, %v1149
      %v1185 = vsub.f32 %v986, %v1149
      %v1186 = vsub.f32 %v987, %v1149
      %v1187 = vsub.f32 %v988, %v1149
      %v1188 = vsub.f32 %v989, %v1149
      %v1189 = vsub.f32 %v990, %v1149
      %v1190 = vsub.f32 %v991, %v1149
      %v1191 = vsub.f32 %v992, %v1149
      %v1192 = vsub.f32 %v993, %v1149
      %v1193 = vsub.f32 %v994, %v1149
      %v1194 = vsub.f32 %v995, %v1149
      %v1195 = vsub.f32 %v996, %v1149
      %v1196 = vsub.f32 %v997, %v1149
      %v1197 = vsub.f32 %v998, %v1149
      %v1198 = vsub.f32 %v999, %v1149
      %v1199 = vsub.f32 %v1000, %v1149
      %v1200 = vsub.f32 %v1001, %v1149
      %v1201 = vsub.f32 %v1002, %v1149
      %v1202 = vsub.f32 %v1003, %v1149
      %v1203 = vsub.f32 %v1004, %v1149
      %v1204 = vsub.f32 %v1005, %v1149
      %v1205 = vsub.f32 %v1006, %v1149
      %v1206 = vsub.f32 %v1007, %v1149
      %v1207 = vsub.f32 %v1008, %v1149
      %v1208 = vsub.f32 %v1009, %v1149
      %v1209 = vsub.f32 %v1010, %v1149
      %v1210 = vsub.f32 %v1011, %v1149
      %v1211 = vsub.f32 %v1012, %v1149
      %v1212 = vsub.f32 %v1013, %v1149
      %v1213 = vsub.f32 %v1014, %v1149
      %v1214 = vmul.f32 %v1150, %v1150
      %v1215 = vmul.f32 %v1151, %v1151
      %v1216 = vmul.f32 %v1152, %v1152
      %v1217 = vmul.f32 %v1153, %v1153
      %v1218 = vmul.f32 %v1154, %v1154
      %v1219 = vmul.f32 %v1155, %v1155
      %v1220 = vmul.f32 %v1156, %v1156
      %v1221 = vmul.f32 %v1157, %v1157
      %v1222 = vmul.f32 %v1158, %v1158
      %v1223 = vmul.f32 %v1159, %v1159
      %v1224 = vmul.f32 %v1160, %v1160
      %v1225 = vmul.f32 %v1161, %v1161
      %v1226 = vmul.f32 %v1162, %v1162
      %v1227 = vmul.f32 %v1163, %v1163
      %v1228 = vmul.f32 %v1164, %v1164
      %v1229 = vmul.f32 %v1165, %v1165
      %v1230 = vmul.f32 %v1166, %v1166
      %v1231 = vmul.f32 %v1167, %v1167
      %v1232 = vmul.f32 %v1168, %v1168
      %v1233 = vmul.f32 %v1169, %v1169
      %v1234 = vmul.f32 %v1170, %v1170
      %v1235 = vmul.f32 %v1171, %v1171
      %v1236 = vmul.f32 %v1172, %v1172
      %v1237 = vmul.f32 %v1173, %v1173
      %v1238 = vmul.f32 %v1174, %v1174
      %v1239 = vmul.f32 %v1175, %v1175
      %v1240 = vmul.f32 %v1176, %v1176
      %v1241 = vmul.f32 %v1177, %v1177
      %v1242 = vmul.f32 %v1178, %v1178
      %v1243 = vmul.f32 %v1179, %v1179
      %v1244 = vmul.f32 %v1180, %v1180
      %v1245 = vmul.f32 %v1181, %v1181
      %v1246 = vmul.f32 %v1182, %v1182
      %v1247 = vmul.f32 %v1183, %v1183
      %v1248 = vmul.f32 %v1184, %v1184
      %v1249 = vmul.f32 %v1185, %v1185
      %v1250 = vmul.f32 %v1186, %v1186
      %v1251 = vmul.f32 %v1187, %v1187
      %v1252 = vmul.f32 %v1188, %v1188
      %v1253 = vmul.f32 %v1189, %v1189
      %v1254 = vmul.f32 %v1190, %v1190
      %v1255 = vmul.f32 %v1191, %v1191
      %v1256 = vmul.f32 %v1192, %v1192
      %v1257 = vmul.f32 %v1193, %v1193
      %v1258 = vmul.f32 %v1194, %v1194
      %v1259 = vmul.f32 %v1195, %v1195
      %v1260 = vmul.f32 %v1196, %v1196
      %v1261 = vmul.f32 %v1197, %v1197
      %v1262 = vmul.f32 %v1198, %v1198
      %v1263 = vmul.f32 %v1199, %v1199
      %v1264 = vmul.f32 %v1200, %v1200
      %v1265 = vmul.f32 %v1201, %v1201
      %v1266 = vmul.f32 %v1202, %v1202
      %v1267 = vmul.f32 %v1203, %v1203
      %v1268 = vmul.f32 %v1204, %v1204
      %v1269 = vmul.f32 %v1205, %v1205
      %v1270 = vmul.f32 %v1206, %v1206
      %v1271 = vmul.f32 %v1207, %v1207
      %v1272 = vmul.f32 %v1208, %v1208
      %v1273 = vmul.f32 %v1209, %v1209
      %v1274 = vmul.f32 %v1210, %v1210
      %v1275 = vmul.f32 %v1211, %v1211
      %v1276 = vmul.f32 %v1212, %v1212
      %v1277 = vmul.f32 %v1213, %v1213
      %v1278 = vsel %vm175, %v1214, 0.0
      %v1279 = vsel %vm175, %v1215, 0.0
      %v1280 = vadd.f32 %v1278, %v1279
      %v1281 = vsel %vm175, %v1216, 0.0
      %v1282 = vadd.f32 %v1280, %v1281
      %v1283 = vsel %vm175, %v1217, 0.0
      %v1284 = vadd.f32 %v1282, %v1283
      %v1285 = vsel %vm175, %v1218, 0.0
      %v1286 = vadd.f32 %v1284, %v1285
      %v1287 = vsel %vm175, %v1219, 0.0
      %v1288 = vadd.f32 %v1286, %v1287
      %v1289 = vsel %vm175, %v1220, 0.0
      %v1290 = vadd.f32 %v1288, %v1289
      %v1291 = vsel %vm175, %v1221, 0.0
      %v1292 = vadd.f32 %v1290, %v1291
      %v1293 = vsel %vm175, %v1222, 0.0
      %v1294 = vadd.f32 %v1292, %v1293
      %v1295 = vsel %vm175, %v1223, 0.0
      %v1296 = vadd.f32 %v1294, %v1295
      %v1297 = vsel %vm175, %v1224, 0.0
      %v1298 = vadd.f32 %v1296, %v1297
      %v1299 = vsel %vm175, %v1225, 0.0
      %v1300 = vadd.f32 %v1298, %v1299
      %v1301 = vsel %vm175, %v1226, 0.0
      %v1302 = vadd.f32 %v1300, %v1301
      %v1303 = vsel %vm175, %v1227, 0.0
      %v1304 = vadd.f32 %v1302, %v1303
      %v1305 = vsel %vm175, %v1228, 0.0
      %v1306 = vadd.f32 %v1304, %v1305
      %v1307 = vsel %vm175, %v1229, 0.0
      %v1308 = vadd.f32 %v1306, %v1307
      %v1309 = vsel %vm175, %v1230, 0.0
      %v1310 = vadd.f32 %v1308, %v1309
      %v1311 = vsel %vm175, %v1231, 0.0
      %v1312 = vadd.f32 %v1310, %v1311
      %v1313 = vsel %vm175, %v1232, 0.0
      %v1314 = vadd.f32 %v1312, %v1313
      %v1315 = vsel %vm175, %v1233, 0.0
      %v1316 = vadd.f32 %v1314, %v1315
      %v1317 = vsel %vm175, %v1234, 0.0
      %v1318 = vadd.f32 %v1316, %v1317
      %v1319 = vsel %vm175, %v1235, 0.0
      %v1320 = vadd.f32 %v1318, %v1319
      %v1321 = vsel %vm175, %v1236, 0.0
      %v1322 = vadd.f32 %v1320, %v1321
      %v1323 = vsel %vm175, %v1237, 0.0
      %v1324 = vadd.f32 %v1322, %v1323
      %v1325 = vsel %vm175, %v1238, 0.0
      %v1326 = vadd.f32 %v1324, %v1325
      %v1327 = vsel %vm175, %v1239, 0.0
      %v1328 = vadd.f32 %v1326, %v1327
      %v1329 = vsel %vm175, %v1240, 0.0
      %v1330 = vadd.f32 %v1328, %v1329
      %v1331 = vsel %vm175, %v1241, 0.0
      %v1332 = vadd.f32 %v1330, %v1331
      %v1333 = vsel %vm175, %v1242, 0.0
      %v1334 = vadd.f32 %v1332, %v1333
      %v1335 = vsel %vm175, %v1243, 0.0
      %v1336 = vadd.f32 %v1334, %v1335
      %v1337 = vsel %vm175, %v1244, 0.0
      %v1338 = vadd.f32 %v1336, %v1337
      %v1339 = vsel %vm175, %v1245, 0.0
      %v1340 = vadd.f32 %v1338, %v1339
      %v1341 = vsel %vm175, %v1246, 0.0
      %v1342 = vadd.f32 %v1340, %v1341
      %v1343 = vsel %vm175, %v1247, 0.0
      %v1344 = vadd.f32 %v1342, %v1343
      %v1345 = vsel %vm175, %v1248, 0.0
      %v1346 = vadd.f32 %v1344, %v1345
      %v1347 = vsel %vm175, %v1249, 0.0
      %v1348 = vadd.f32 %v1346, %v1347
      %v1349 = vsel %vm175, %v1250, 0.0
      %v1350 = vadd.f32 %v1348, %v1349
      %v1351 = vsel %vm175, %v1251, 0.0
      %v1352 = vadd.f32 %v1350, %v1351
      %v1353 = vsel %vm175, %v1252, 0.0
      %v1354 = vadd.f32 %v1352, %v1353
      %v1355 = vsel %vm175, %v1253, 0.0
      %v1356 = vadd.f32 %v1354, %v1355
      %v1357 = vsel %vm175, %v1254, 0.0
      %v1358 = vadd.f32 %v1356, %v1357
      %v1359 = vsel %vm175, %v1255, 0.0
      %v1360 = vadd.f32 %v1358, %v1359
      %v1361 = vsel %vm175, %v1256, 0.0
      %v1362 = vadd.f32 %v1360, %v1361
      %v1363 = vsel %vm175, %v1257, 0.0
      %v1364 = vadd.f32 %v1362, %v1363
      %v1365 = vsel %vm175, %v1258, 0.0
      %v1366 = vadd.f32 %v1364, %v1365
      %v1367 = vsel %vm175, %v1259, 0.0
      %v1368 = vadd.f32 %v1366, %v1367
      %v1369 = vsel %vm175, %v1260, 0.0
      %v1370 = vadd.f32 %v1368, %v1369
      %v1371 = vsel %vm175, %v1261, 0.0
      %v1372 = vadd.f32 %v1370, %v1371
      %v1373 = vsel %vm175, %v1262, 0.0
      %v1374 = vadd.f32 %v1372, %v1373
      %v1375 = vsel %vm175, %v1263, 0.0
      %v1376 = vadd.f32 %v1374, %v1375
      %v1377 = vsel %vm175, %v1264, 0.0
      %v1378 = vadd.f32 %v1376, %v1377
      %v1379 = vsel %vm175, %v1265, 0.0
      %v1380 = vadd.f32 %v1378, %v1379
      %v1381 = vsel %vm175, %v1266, 0.0
      %v1382 = vadd.f32 %v1380, %v1381
      %v1383 = vsel %vm175, %v1267, 0.0
      %v1384 = vadd.f32 %v1382, %v1383
      %v1385 = vsel %vm175, %v1268, 0.0
      %v1386 = vadd.f32 %v1384, %v1385
      %v1387 = vsel %vm175, %v1269, 0.0
      %v1388 = vadd.f32 %v1386, %v1387
      %v1389 = vsel %vm175, %v1270, 0.0
      %v1390 = vadd.f32 %v1388, %v1389
      %v1391 = vsel %vm175, %v1271, 0.0
      %v1392 = vadd.f32 %v1390, %v1391
      %v1393 = vsel %vm175, %v1272, 0.0
      %v1394 = vadd.f32 %v1392, %v1393
      %v1395 = vsel %vm175, %v1273, 0.0
      %v1396 = vadd.f32 %v1394, %v1395
      %v1397 = vsel %vm175, %v1274, 0.0
      %v1398 = vadd.f32 %v1396, %v1397
      %v1399 = vsel %vm175, %v1275, 0.0
      %v1400 = vadd.f32 %v1398, %v1399
      %v1401 = vsel %vm175, %v1276, 0.0
      %v1402 = vadd.f32 %v1400, %v1401
      %v1403 = vsel %vm175, %v1277, 0.0
      %v1404 = vadd.f32 %v1402, %v1403
      %v1405 = vrot.slane %v1404, 4
      %v1406 = vadd.f32 %v1404, %v1405
      %v1407 = vrot.slane %v1406, 2
      %v1408 = vadd.f32 %v1406, %v1407
      %v1409 = vrot.slane %v1408, 1
      %v1410 = vadd.f32 %v1408, %v1409
      %v1411 = vmul.f32 %v1410, %v1148
      %v1412 = vadd.f32 %v1411, 1e-05
      %v1413 = vrsqrt.pop %v1412
      %v1414 = vmul.f32 %v1150, %v1413
      %v1415 = vmul.f32 %v1151, %v1413
      %v1416 = vmul.f32 %v1152, %v1413
      %v1417 = vmul.f32 %v1153, %v1413
      %v1418 = vmul.f32 %v1154, %v1413
      %v1419 = vmul.f32 %v1155, %v1413
      %v1420 = vmul.f32 %v1156, %v1413
      %v1421 = vmul.f32 %v1157, %v1413
      %v1422 = vmul.f32 %v1158, %v1413
      %v1423 = vmul.f32 %v1159, %v1413
      %v1424 = vmul.f32 %v1160, %v1413
      %v1425 = vmul.f32 %v1161, %v1413
      %v1426 = vmul.f32 %v1162, %v1413
      %v1427 = vmul.f32 %v1163, %v1413
      %v1428 = vmul.f32 %v1164, %v1413
      %v1429 = vmul.f32 %v1165, %v1413
      %v1430 = vmul.f32 %v1166, %v1413
      %v1431 = vmul.f32 %v1167, %v1413
      %v1432 = vmul.f32 %v1168, %v1413
      %v1433 = vmul.f32 %v1169, %v1413
      %v1434 = vmul.f32 %v1170, %v1413
      %v1435 = vmul.f32 %v1171, %v1413
      %v1436 = vmul.f32 %v1172, %v1413
      %v1437 = vmul.f32 %v1173, %v1413
      %v1438 = vmul.f32 %v1174, %v1413
      %v1439 = vmul.f32 %v1175, %v1413
      %v1440 = vmul.f32 %v1176, %v1413
      %v1441 = vmul.f32 %v1177, %v1413
      %v1442 = vmul.f32 %v1178, %v1413
      %v1443 = vmul.f32 %v1179, %v1413
      %v1444 = vmul.f32 %v1180, %v1413
      %v1445 = vmul.f32 %v1181, %v1413
      %v1446 = vmul.f32 %v1182, %v1413
      %v1447 = vmul.f32 %v1183, %v1413
      %v1448 = vmul.f32 %v1184, %v1413
      %v1449 = vmul.f32 %v1185, %v1413
      %v1450 = vmul.f32 %v1186, %v1413
      %v1451 = vmul.f32 %v1187, %v1413
      %v1452 = vmul.f32 %v1188, %v1413
      %v1453 = vmul.f32 %v1189, %v1413
      %v1454 = vmul.f32 %v1190, %v1413
      %v1455 = vmul.f32 %v1191, %v1413
      %v1456 = vmul.f32 %v1192, %v1413
      %v1457 = vmul.f32 %v1193, %v1413
      %v1458 = vmul.f32 %v1194, %v1413
      %v1459 = vmul.f32 %v1195, %v1413
      %v1460 = vmul.f32 %v1196, %v1413
      %v1461 = vmul.f32 %v1197, %v1413
      %v1462 = vmul.f32 %v1198, %v1413
      %v1463 = vmul.f32 %v1199, %v1413
      %v1464 = vmul.f32 %v1200, %v1413
      %v1465 = vmul.f32 %v1201, %v1413
      %v1466 = vmul.f32 %v1202, %v1413
      %v1467 = vmul.f32 %v1203, %v1413
      %v1468 = vmul.f32 %v1204, %v1413
      %v1469 = vmul.f32 %v1205, %v1413
      %v1470 = vmul.f32 %v1206, %v1413
      %v1471 = vmul.f32 %v1207, %v1413
      %v1472 = vmul.f32 %v1208, %v1413
      %v1473 = vmul.f32 %v1209, %v1413
      %v1474 = vmul.f32 %v1210, %v1413
      %v1475 = vmul.f32 %v1211, %v1413
      %v1476 = vmul.f32 %v1212, %v1413
      %v1477 = vmul.f32 %v1213, %v1413
      %v1478 = vld [vmem:[#allocation10] sm:$0x1]
      %v1480 = vlaneseq
      %v1481 = vshrl.u32 %v1480, 7
      %v1482 = vsub.s32 0, %v1481
      %v1483 = vrot.slane %v1478, %v1482
      %v1485 = vmul.f32 %v1414, %v1483
      %v1486 = vmul.f32 %v1415, %v1483
      %v1487 = vmul.f32 %v1416, %v1483
      %v1488 = vmul.f32 %v1417, %v1483
      %v1489 = vmul.f32 %v1418, %v1483
      %v1490 = vmul.f32 %v1419, %v1483
      %v1491 = vmul.f32 %v1420, %v1483
      %v1492 = vmul.f32 %v1421, %v1483
      %v1493 = vmul.f32 %v1422, %v1483
      %v1494 = vmul.f32 %v1423, %v1483
      %v1495 = vmul.f32 %v1424, %v1483
      %v1496 = vmul.f32 %v1425, %v1483
      %v1497 = vmul.f32 %v1426, %v1483
      %v1498 = vmul.f32 %v1427, %v1483
      %v1499 = vmul.f32 %v1428, %v1483
      %v1500 = vmul.f32 %v1429, %v1483
      %v1501 = vmul.f32 %v1430, %v1483
      %v1502 = vmul.f32 %v1431, %v1483
      %v1503 = vmul.f32 %v1432, %v1483
      %v1504 = vmul.f32 %v1433, %v1483
      %v1505 = vmul.f32 %v1434, %v1483
      %v1506 = vmul.f32 %v1435, %v1483
      %v1507 = vmul.f32 %v1436, %v1483
      %v1508 = vmul.f32 %v1437, %v1483
      %v1509 = vmul.f32 %v1438, %v1483
      %v1510 = vmul.f32 %v1439, %v1483
      %v1511 = vmul.f32 %v1440, %v1483
      %v1512 = vmul.f32 %v1441, %v1483
      %v1513 = vmul.f32 %v1442, %v1483
      %v1514 = vmul.f32 %v1443, %v1483
      %v1515 = vmul.f32 %v1444, %v1483
      %v1516 = vmul.f32 %v1445, %v1483
      %v1517 = vmul.f32 %v1446, %v1483
      %v1518 = vmul.f32 %v1447, %v1483
      %v1519 = vmul.f32 %v1448, %v1483
      %v1520 = vmul.f32 %v1449, %v1483
      %v1521 = vmul.f32 %v1450, %v1483
      %v1522 = vmul.f32 %v1451, %v1483
      %v1523 = vmul.f32 %v1452, %v1483
      %v1524 = vmul.f32 %v1453, %v1483
      %v1525 = vmul.f32 %v1454, %v1483
      %v1526 = vmul.f32 %v1455, %v1483
      %v1527 = vmul.f32 %v1456, %v1483
      %v1528 = vmul.f32 %v1457, %v1483
      %v1529 = vmul.f32 %v1458, %v1483
      %v1530 = vmul.f32 %v1459, %v1483
      %v1531 = vmul.f32 %v1460, %v1483
      %v1532 = vmul.f32 %v1461, %v1483
      %v1533 = vmul.f32 %v1462, %v1483
      %v1534 = vmul.f32 %v1463, %v1483
      %v1535 = vmul.f32 %v1464, %v1483
      %v1536 = vmul.f32 %v1465, %v1483
      %v1537 = vmul.f32 %v1466, %v1483
      %v1538 = vmul.f32 %v1467, %v1483
      %v1539 = vmul.f32 %v1468, %v1483
      %v1540 = vmul.f32 %v1469, %v1483
      %v1541 = vmul.f32 %v1470, %v1483
      %v1542 = vmul.f32 %v1471, %v1483
      %v1543 = vmul.f32 %v1472, %v1483
      %v1544 = vmul.f32 %v1473, %v1483
      %v1545 = vmul.f32 %v1474, %v1483
      %v1546 = vmul.f32 %v1475, %v1483
      %v1547 = vmul.f32 %v1476, %v1483
      %v1548 = vmul.f32 %v1477, %v1483
      %v1549 = vld [vmem:[#allocation11] sm:$0x1]
      %v1551 = vlaneseq
      %v1552 = vshrl.u32 %v1551, 7
      %v1553 = vsub.s32 0, %v1552
      %v1554 = vrot.slane %v1549, %v1553
      %v1556 = vadd.f32 %v1485, %v1554
      %v1557 = vadd.f32 %v1486, %v1554
      %v1558 = vadd.f32 %v1487, %v1554
      %v1559 = vadd.f32 %v1488, %v1554
      %v1560 = vadd.f32 %v1489, %v1554
      %v1561 = vadd.f32 %v1490, %v1554
      %v1562 = vadd.f32 %v1491, %v1554
      %v1563 = vadd.f32 %v1492, %v1554
      %v1564 = vadd.f32 %v1493, %v1554
      %v1565 = vadd.f32 %v1494, %v1554
      %v1566 = vadd.f32 %v1495, %v1554
      %v1567 = vadd.f32 %v1496, %v1554
      %v1568 = vadd.f32 %v1497, %v1554
      %v1569 = vadd.f32 %v1498, %v1554
      %v1570 = vadd.f32 %v1499, %v1554
      %v1571 = vadd.f32 %v1500, %v1554
      %v1572 = vadd.f32 %v1501, %v1554
      %v1573 = vadd.f32 %v1502, %v1554
      %v1574 = vadd.f32 %v1503, %v1554
      %v1575 = vadd.f32 %v1504, %v1554
      %v1576 = vadd.f32 %v1505, %v1554
      %v1577 = vadd.f32 %v1506, %v1554
      %v1578 = vadd.f32 %v1507, %v1554
      %v1579 = vadd.f32 %v1508, %v1554
      %v1580 = vadd.f32 %v1509, %v1554
      %v1581 = vadd.f32 %v1510, %v1554
      %v1582 = vadd.f32 %v1511, %v1554
      %v1583 = vadd.f32 %v1512, %v1554
      %v1584 = vadd.f32 %v1513, %v1554
      %v1585 = vadd.f32 %v1514, %v1554
      %v1586 = vadd.f32 %v1515, %v1554
      %v1587 = vadd.f32 %v1516, %v1554
      %v1588 = vadd.f32 %v1517, %v1554
      %v1589 = vadd.f32 %v1518, %v1554
      %v1590 = vadd.f32 %v1519, %v1554
      %v1591 = vadd.f32 %v1520, %v1554
      %v1592 = vadd.f32 %v1521, %v1554
      %v1593 = vadd.f32 %v1522, %v1554
      %v1594 = vadd.f32 %v1523, %v1554
      %v1595 = vadd.f32 %v1524, %v1554
      %v1596 = vadd.f32 %v1525, %v1554
      %v1597 = vadd.f32 %v1526, %v1554
      %v1598 = vadd.f32 %v1527, %v1554
      %v1599 = vadd.f32 %v1528, %v1554
      %v1600 = vadd.f32 %v1529, %v1554
      %v1601 = vadd.f32 %v1530, %v1554
      %v1602 = vadd.f32 %v1531, %v1554
      %v1603 = vadd.f32 %v1532, %v1554
      %v1604 = vadd.f32 %v1533, %v1554
      %v1605 = vadd.f32 %v1534, %v1554
      %v1606 = vadd.f32 %v1535, %v1554
      %v1607 = vadd.f32 %v1536, %v1554
      %v1608 = vadd.f32 %v1537, %v1554
      %v1609 = vadd.f32 %v1538, %v1554
      %v1610 = vadd.f32 %v1539, %v1554
      %v1611 = vadd.f32 %v1540, %v1554
      %v1612 = vadd.f32 %v1541, %v1554
      %v1613 = vadd.f32 %v1542, %v1554
      %v1614 = vadd.f32 %v1543, %v1554
      %v1615 = vadd.f32 %v1544, %v1554
      %v1616 = vadd.f32 %v1545, %v1554
      %v1617 = vadd.f32 %v1546, %v1554
      %v1618 = vadd.f32 %v1547, %v1554
      %v1619 = vadd.f32 %v1548, %v1554
      %v1620 = vmul.f32 %v1556, 0.5
      %v1621 = vmul.f32 %v1557, 0.5
      %v1622 = vmul.f32 %v1558, 0.5
      %v1623 = vmul.f32 %v1559, 0.5
      %v1624 = vmul.f32 %v1560, 0.5
      %v1625 = vmul.f32 %v1561, 0.5
      %v1626 = vmul.f32 %v1562, 0.5
      %v1627 = vmul.f32 %v1563, 0.5
      %v1628 = vmul.f32 %v1564, 0.5
      %v1629 = vmul.f32 %v1565, 0.5
      %v1630 = vmul.f32 %v1566, 0.5
      %v1631 = vmul.f32 %v1567, 0.5
      %v1632 = vmul.f32 %v1568, 0.5
      %v1633 = vmul.f32 %v1569, 0.5
      %v1634 = vmul.f32 %v1570, 0.5
      %v1635 = vmul.f32 %v1571, 0.5
      %v1636 = vmul.f32 %v1572, 0.5
      %v1637 = vmul.f32 %v1573, 0.5
      %v1638 = vmul.f32 %v1574, 0.5
      %v1639 = vmul.f32 %v1575, 0.5
      %v1640 = vmul.f32 %v1576, 0.5
      %v1641 = vmul.f32 %v1577, 0.5
      %v1642 = vmul.f32 %v1578, 0.5
      %v1643 = vmul.f32 %v1579, 0.5
      %v1644 = vmul.f32 %v1580, 0.5
      %v1645 = vmul.f32 %v1581, 0.5
      %v1646 = vmul.f32 %v1582, 0.5
      %v1647 = vmul.f32 %v1583, 0.5
      %v1648 = vmul.f32 %v1584, 0.5
      %v1649 = vmul.f32 %v1585, 0.5
      %v1650 = vmul.f32 %v1586, 0.5
      %v1651 = vmul.f32 %v1587, 0.5
      %v1652 = vmul.f32 %v1588, 0.5
      %v1653 = vmul.f32 %v1589, 0.5
      %v1654 = vmul.f32 %v1590, 0.5
      %v1655 = vmul.f32 %v1591, 0.5
      %v1656 = vmul.f32 %v1592, 0.5
      %v1657 = vmul.f32 %v1593, 0.5
      %v1658 = vmul.f32 %v1594, 0.5
      %v1659 = vmul.f32 %v1595, 0.5
      %v1660 = vmul.f32 %v1596, 0.5
      %v1661 = vmul.f32 %v1597, 0.5
      %v1662 = vmul.f32 %v1598, 0.5
      %v1663 = vmul.f32 %v1599, 0.5
      %v1664 = vmul.f32 %v1600, 0.5
      %v1665 = vmul.f32 %v1601, 0.5
      %v1666 = vmul.f32 %v1602, 0.5
      %v1667 = vmul.f32 %v1603, 0.5
      %v1668 = vmul.f32 %v1604, 0.5
      %v1669 = vmul.f32 %v1605, 0.5
      %v1670 = vmul.f32 %v1606, 0.5
      %v1671 = vmul.f32 %v1607, 0.5
      %v1672 = vmul.f32 %v1608, 0.5
      %v1673 = vmul.f32 %v1609, 0.5
      %v1674 = vmul.f32 %v1610, 0.5
      %v1675 = vmul.f32 %v1611, 0.5
      %v1676 = vmul.f32 %v1612, 0.5
      %v1677 = vmul.f32 %v1613, 0.5
      %v1678 = vmul.f32 %v1614, 0.5
      %v1679 = vmul.f32 %v1615, 0.5
      %v1680 = vmul.f32 %v1616, 0.5
      %v1681 = vmul.f32 %v1617, 0.5
      %v1682 = vmul.f32 %v1618, 0.5
      %v1683 = vmul.f32 %v1619, 0.5
      %v1684 = vmul.f32 %v1556, 0.70710677
      %v1685 = vmul.f32 %v1557, 0.70710677
      %v1686 = vmul.f32 %v1558, 0.70710677
      %v1687 = vmul.f32 %v1559, 0.70710677
      %v1688 = vmul.f32 %v1560, 0.70710677
      %v1689 = vmul.f32 %v1561, 0.70710677
      %v1690 = vmul.f32 %v1562, 0.70710677
      %v1691 = vmul.f32 %v1563, 0.70710677
      %v1692 = vmul.f32 %v1564, 0.70710677
      %v1693 = vmul.f32 %v1565, 0.70710677
      %v1694 = vmul.f32 %v1566, 0.70710677
      %v1695 = vmul.f32 %v1567, 0.70710677
      %v1696 = vmul.f32 %v1568, 0.70710677
      %v1697 = vmul.f32 %v1569, 0.70710677
      %v1698 = vmul.f32 %v1570, 0.70710677
      %v1699 = vmul.f32 %v1571, 0.70710677
      %v1700 = vmul.f32 %v1572, 0.70710677
      %v1701 = vmul.f32 %v1573, 0.70710677
      %v1702 = vmul.f32 %v1574, 0.70710677
      %v1703 = vmul.f32 %v1575, 0.70710677
      %v1704 = vmul.f32 %v1576, 0.70710677
      %v1705 = vmul.f32 %v1577, 0.70710677
      %v1706 = vmul.f32 %v1578, 0.70710677
      %v1707 = vmul.f32 %v1579, 0.70710677
      %v1708 = vmul.f32 %v1580, 0.70710677
      %v1709 = vmul.f32 %v1581, 0.70710677
      %v1710 = vmul.f32 %v1582, 0.70710677
      %v1711 = vmul.f32 %v1583, 0.70710677
      %v1712 = vmul.f32 %v1584, 0.70710677
      %v1713 = vmul.f32 %v1585, 0.70710677
      %v1714 = vmul.f32 %v1586, 0.70710677
      %v1715 = vmul.f32 %v1587, 0.70710677
      %v1716 = vmul.f32 %v1588, 0.70710677
      %v1717 = vmul.f32 %v1589, 0.70710677
      %v1718 = vmul.f32 %v1590, 0.70710677
      %v1719 = vmul.f32 %v1591, 0.70710677
      %v1720 = vmul.f32 %v1592, 0.70710677
      %v1721 = vmul.f32 %v1593, 0.70710677
      %v1722 = vmul.f32 %v1594, 0.70710677
      %v1723 = vmul.f32 %v1595, 0.70710677
      %v1724 = vmul.f32 %v1596, 0.70710677
      %v1725 = vmul.f32 %v1597, 0.70710677
      %v1726 = vmul.f32 %v1598, 0.70710677
      %v1727 = vmul.f32 %v1599, 0.70710677
      %v1728 = vmul.f32 %v1600, 0.70710677
      %v1729 = vmul.f32 %v1601, 0.70710677
      %v1730 = vmul.f32 %v1602, 0.70710677
      %v1731 = vmul.f32 %v1603, 0.70710677
      %v1732 = vmul.f32 %v1604, 0.70710677
      %v1733 = vmul.f32 %v1605, 0.70710677
      %v1734 = vmul.f32 %v1606, 0.70710677
      %v1735 = vmul.f32 %v1607, 0.70710677
      %v1736 = vmul.f32 %v1608, 0.70710677
      %v1737 = vmul.f32 %v1609, 0.70710677
      %v1738 = vmul.f32 %v1610, 0.70710677
      %v1739 = vmul.f32 %v1611, 0.70710677
      %v1740 = vmul.f32 %v1612, 0.70710677
      %v1741 = vmul.f32 %v1613, 0.70710677
      %v1742 = vmul.f32 %v1614, 0.70710677
      %v1743 = vmul.f32 %v1615, 0.70710677
      %v1744 = vmul.f32 %v1616, 0.70710677
      %v1745 = vmul.f32 %v1617, 0.70710677
      %v1746 = vmul.f32 %v1618, 0.70710677
      %v1747 = vmul.f32 %v1619, 0.70710677
      %vm1748 = vcmp.ge.f32.partialorder %v1684, 0.0
      %vm1749 = vcmp.ge.f32.partialorder %v1685, 0.0
      %vm1750 = vcmp.ge.f32.partialorder %v1686, 0.0
      %vm1751 = vcmp.ge.f32.partialorder %v1687, 0.0
      %vm1752 = vcmp.ge.f32.partialorder %v1688, 0.0
      %vm1753 = vcmp.ge.f32.partialorder %v1689, 0.0
      %vm1754 = vcmp.ge.f32.partialorder %v1690, 0.0
      %vm1755 = vcmp.ge.f32.partialorder %v1691, 0.0
      %vm1756 = vcmp.ge.f32.partialorder %v1692, 0.0
      %vm1757 = vcmp.ge.f32.partialorder %v1693, 0.0
      %vm1758 = vcmp.ge.f32.partialorder %v1694, 0.0
      %vm1759 = vcmp.ge.f32.partialorder %v1695, 0.0
      %vm1760 = vcmp.ge.f32.partialorder %v1696, 0.0
      %vm1761 = vcmp.ge.f32.partialorder %v1697, 0.0
      %vm1762 = vcmp.ge.f32.partialorder %v1698, 0.0
      %vm1763 = vcmp.ge.f32.partialorder %v1699, 0.0
      %vm1764 = vcmp.ge.f32.partialorder %v1700, 0.0
      %vm1765 = vcmp.ge.f32.partialorder %v1701, 0.0
      %vm1766 = vcmp.ge.f32.partialorder %v1702, 0.0
      %vm1767 = vcmp.ge.f32.partialorder %v1703, 0.0
      %vm1768 = vcmp.ge.f32.partialorder %v1704, 0.0
      %vm1769 = vcmp.ge.f32.partialorder %v1705, 0.0
      %vm1770 = vcmp.ge.f32.partialorder %v1706, 0.0
      %vm1771 = vcmp.ge.f32.partialorder %v1707, 0.0
      %vm1772 = vcmp.ge.f32.partialorder %v1708, 0.0
      %vm1773 = vcmp.ge.f32.partialorder %v1709, 0.0
      %vm1774 = vcmp.ge.f32.partialorder %v1710, 0.0
      %vm1775 = vcmp.ge.f32.partialorder %v1711, 0.0
      %vm1776 = vcmp.ge.f32.partialorder %v1712, 0.0
      %vm1777 = vcmp.ge.f32.partialorder %v1713, 0.0
      %vm1778 = vcmp.ge.f32.partialorder %v1714, 0.0
      %vm1779 = vcmp.ge.f32.partialorder %v1715, 0.0
      %vm1780 = vcmp.ge.f32.partialorder %v1716, 0.0
      %vm1781 = vcmp.ge.f32.partialorder %v1717, 0.0
      %vm1782 = vcmp.ge.f32.partialorder %v1718, 0.0
      %vm1783 = vcmp.ge.f32.partialorder %v1719, 0.0
      %vm1784 = vcmp.ge.f32.partialorder %v1720, 0.0
      %vm1785 = vcmp.ge.f32.partialorder %v1721, 0.0
      %vm1786 = vcmp.ge.f32.partialorder %v1722, 0.0
      %vm1787 = vcmp.ge.f32.partialorder %v1723, 0.0
      %vm1788 = vcmp.ge.f32.partialorder %v1724, 0.0
      %vm1789 = vcmp.ge.f32.partialorder %v1725, 0.0
      %vm1790 = vcmp.ge.f32.partialorder %v1726, 0.0
      %vm1791 = vcmp.ge.f32.partialorder %v1727, 0.0
      %vm1792 = vcmp.ge.f32.partialorder %v1728, 0.0
      %vm1793 = vcmp.ge.f32.partialorder %v1729, 0.0
      %vm1794 = vcmp.ge.f32.partialorder %v1730, 0.0
      %vm1795 = vcmp.ge.f32.partialorder %v1731, 0.0
      %vm1796 = vcmp.ge.f32.partialorder %v1732, 0.0
      %vm1797 = vcmp.ge.f32.partialorder %v1733, 0.0
      %vm1798 = vcmp.ge.f32.partialorder %v1734, 0.0
      %vm1799 = vcmp.ge.f32.partialorder %v1735, 0.0
      %vm1800 = vcmp.ge.f32.partialorder %v1736, 0.0
      %vm1801 = vcmp.ge.f32.partialorder %v1737, 0.0
      %vm1802 = vcmp.ge.f32.partialorder %v1738, 0.0
      %vm1803 = vcmp.ge.f32.partialorder %v1739, 0.0
      %vm1804 = vcmp.ge.f32.partialorder %v1740, 0.0
      %vm1805 = vcmp.ge.f32.partialorder %v1741, 0.0
      %vm1806 = vcmp.ge.f32.partialorder %v1742, 0.0
      %vm1807 = vcmp.ge.f32.partialorder %v1743, 0.0
      %vm1808 = vcmp.ge.f32.partialorder %v1744, 0.0
      %vm1809 = vcmp.ge.f32.partialorder %v1745, 0.0
      %vm1810 = vcmp.ge.f32.partialorder %v1746, 0.0
      %vm1811 = vcmp.ge.f32.partialorder %v1747, 0.0
      %v1812 = vsel %vm1748, 1.0, -1.0
      %v1813 = vsel %vm1749, 1.0, -1.0
      %v1814 = vsel %vm1750, 1.0, -1.0
      %v1815 = vsel %vm1751, 1.0, -1.0
      %v1816 = vsel %vm1752, 1.0, -1.0
      %v1817 = vsel %vm1753, 1.0, -1.0
      %v1818 = vsel %vm1754, 1.0, -1.0
      %v1819 = vsel %vm1755, 1.0, -1.0
      %v1820 = vsel %vm1756, 1.0, -1.0
      %v1821 = vsel %vm1757, 1.0, -1.0
      %v1822 = vsel %vm1758, 1.0, -1.0
      %v1823 = vsel %vm1759, 1.0, -1.0
      %v1824 = vsel %vm1760, 1.0, -1.0
      %v1825 = vsel %vm1761, 1.0, -1.0
      %v1826 = vsel %vm1762, 1.0, -1.0
      %v1827 = vsel %vm1763, 1.0, -1.0
      %v1828 = vsel %vm1764, 1.0, -1.0
      %v1829 = vsel %vm1765, 1.0, -1.0
      %v1830 = vsel %vm1766, 1.0, -1.0
      %v1831 = vsel %vm1767, 1.0, -1.0
      %v1832 = vsel %vm1768, 1.0, -1.0
      %v1833 = vsel %vm1769, 1.0, -1.0
      %v1834 = vsel %vm1770, 1.0, -1.0
      %v1835 = vsel %vm1771, 1.0, -1.0
      %v1836 = vsel %vm1772, 1.0, -1.0
      %v1837 = vsel %vm1773, 1.0, -1.0
      %v1838 = vsel %vm1774, 1.0, -1.0
      %v1839 = vsel %vm1775, 1.0, -1.0
      %v1840 = vsel %vm1776, 1.0, -1.0
      %v1841 = vsel %vm1777, 1.0, -1.0
      %v1842 = vsel %vm1778, 1.0, -1.0
      %v1843 = vsel %vm1779, 1.0, -1.0
      %v1844 = vsel %vm1780, 1.0, -1.0
      %v1845 = vsel %vm1781, 1.0, -1.0
      %v1846 = vsel %vm1782, 1.0, -1.0
      %v1847 = vsel %vm1783, 1.0, -1.0
      %v1848 = vsel %vm1784, 1.0, -1.0
      %v1849 = vsel %vm1785, 1.0, -1.0
      %v1850 = vsel %vm1786, 1.0, -1.0
      %v1851 = vsel %vm1787, 1.0, -1.0
      %v1852 = vsel %vm1788, 1.0, -1.0
      %v1853 = vsel %vm1789, 1.0, -1.0
      %v1854 = vsel %vm1790, 1.0, -1.0
      %v1855 = vsel %vm1791, 1.0, -1.0
      %v1856 = vsel %vm1792, 1.0, -1.0
      %v1857 = vsel %vm1793, 1.0, -1.0
      %v1858 = vsel %vm1794, 1.0, -1.0
      %v1859 = vsel %vm1795, 1.0, -1.0
      %v1860 = vsel %vm1796, 1.0, -1.0
      %v1861 = vsel %vm1797, 1.0, -1.0
      %v1862 = vsel %vm1798, 1.0, -1.0
      %v1863 = vsel %vm1799, 1.0, -1.0
      %v1864 = vsel %vm1800, 1.0, -1.0
      %v1865 = vsel %vm1801, 1.0, -1.0
      %v1866 = vsel %vm1802, 1.0, -1.0
      %v1867 = vsel %vm1803, 1.0, -1.0
      %v1868 = vsel %vm1804, 1.0, -1.0
      %v1869 = vsel %vm1805, 1.0, -1.0
      %v1870 = vsel %vm1806, 1.0, -1.0
      %v1871 = vsel %vm1807, 1.0, -1.0
      %v1872 = vsel %vm1808, 1.0, -1.0
      %v1873 = vsel %vm1809, 1.0, -1.0
      %v1874 = vsel %vm1810, 1.0, -1.0
      %v1875 = vsel %vm1811, 1.0, -1.0
      %v1876 = vand.u32 2147483647, %v1684
      %v1877 = vand.u32 2147483647, %v1685
      %v1878 = vand.u32 2147483647, %v1686
      %v1879 = vand.u32 2147483647, %v1687
      %v1880 = vand.u32 2147483647, %v1688
      %v1881 = vand.u32 2147483647, %v1689
      %v1882 = vand.u32 2147483647, %v1690
      %v1883 = vand.u32 2147483647, %v1691
      %v1884 = vand.u32 2147483647, %v1692
      %v1885 = vand.u32 2147483647, %v1693
      %v1886 = vand.u32 2147483647, %v1694
      %v1887 = vand.u32 2147483647, %v1695
      %v1888 = vand.u32 2147483647, %v1696
      %v1889 = vand.u32 2147483647, %v1697
      %v1890 = vand.u32 2147483647, %v1698
      %v1891 = vand.u32 2147483647, %v1699
      %v1892 = vand.u32 2147483647, %v1700
      %v1893 = vand.u32 2147483647, %v1701
      %v1894 = vand.u32 2147483647, %v1702
      %v1895 = vand.u32 2147483647, %v1703
      %v1896 = vand.u32 2147483647, %v1704
      %v1897 = vand.u32 2147483647, %v1705
      %v1898 = vand.u32 2147483647, %v1706
      %v1899 = vand.u32 2147483647, %v1707
      %v1900 = vand.u32 2147483647, %v1708
      %v1901 = vand.u32 2147483647, %v1709
      %v1902 = vand.u32 2147483647, %v1710
      %v1903 = vand.u32 2147483647, %v1711
      %v1904 = vand.u32 2147483647, %v1712
      %v1905 = vand.u32 2147483647, %v1713
      %v1906 = vand.u32 2147483647, %v1714
      %v1907 = vand.u32 2147483647, %v1715
      %v1908 = vand.u32 2147483647, %v1716
      %v1909 = vand.u32 2147483647, %v1717
      %v1910 = vand.u32 2147483647, %v1718
      %v1911 = vand.u32 2147483647, %v1719
      %v1912 = vand.u32 2147483647, %v1720
      %v1913 = vand.u32 2147483647, %v1721
      %v1914 = vand.u32 2147483647, %v1722
      %v1915 = vand.u32 2147483647, %v1723
      %v1916 = vand.u32 2147483647, %v1724
      %v1917 = vand.u32 2147483647, %v1725
      %v1918 = vand.u32 2147483647, %v1726
      %v1919 = vand.u32 2147483647, %v1727
      %v1920 = vand.u32 2147483647, %v1728
      %v1921 = vand.u32 2147483647, %v1729
      %v1922 = vand.u32 2147483647, %v1730
      %v1923 = vand.u32 2147483647, %v1731
      %v1924 = vand.u32 2147483647, %v1732
      %v1925 = vand.u32 2147483647, %v1733
      %v1926 = vand.u32 2147483647, %v1734
      %v1927 = vand.u32 2147483647, %v1735
      %v1928 = vand.u32 2147483647, %v1736
      %v1929 = vand.u32 2147483647, %v1737
      %v1930 = vand.u32 2147483647, %v1738
      %v1931 = vand.u32 2147483647, %v1739
      %v1932 = vand.u32 2147483647, %v1740
      %v1933 = vand.u32 2147483647, %v1741
      %v1934 = vand.u32 2147483647, %v1742
      %v1935 = vand.u32 2147483647, %v1743
      %v1936 = vand.u32 2147483647, %v1744
      %v1937 = vand.u32 2147483647, %v1745
      %v1938 = vand.u32 2147483647, %v1746
      %v1939 = vand.u32 2147483647, %v1747
      %v1940 = vmul.f32 %v1876, 0.3275911
      %v1941 = vmul.f32 %v1877, 0.3275911
      %v1942 = vmul.f32 %v1878, 0.3275911
      %v1943 = vmul.f32 %v1879, 0.3275911
      %v1944 = vmul.f32 %v1880, 0.3275911
      %v1945 = vmul.f32 %v1881, 0.3275911
      %v1946 = vmul.f32 %v1882, 0.3275911
      %v1947 = vmul.f32 %v1883, 0.3275911
      %v1948 = vmul.f32 %v1884, 0.3275911
      %v1949 = vmul.f32 %v1885, 0.3275911
      %v1950 = vmul.f32 %v1886, 0.3275911
      %v1951 = vmul.f32 %v1887, 0.3275911
      %v1952 = vmul.f32 %v1888, 0.3275911
      %v1953 = vmul.f32 %v1889, 0.3275911
      %v1954 = vmul.f32 %v1890, 0.3275911
      %v1955 = vmul.f32 %v1891, 0.3275911
      %v1956 = vmul.f32 %v1892, 0.3275911
      %v1957 = vmul.f32 %v1893, 0.3275911
      %v1958 = vmul.f32 %v1894, 0.3275911
      %v1959 = vmul.f32 %v1895, 0.3275911
      %v1960 = vmul.f32 %v1896, 0.3275911
      %v1961 = vmul.f32 %v1897, 0.3275911
      %v1962 = vmul.f32 %v1898, 0.3275911
      %v1963 = vmul.f32 %v1899, 0.3275911
      %v1964 = vmul.f32 %v1900, 0.3275911
      %v1965 = vmul.f32 %v1901, 0.3275911
      %v1966 = vmul.f32 %v1902, 0.3275911
      %v1967 = vmul.f32 %v1903, 0.3275911
      %v1968 = vmul.f32 %v1904, 0.3275911
      %v1969 = vmul.f32 %v1905, 0.3275911
      %v1970 = vmul.f32 %v1906, 0.3275911
      %v1971 = vmul.f32 %v1907, 0.3275911
      %v1972 = vmul.f32 %v1908, 0.3275911
      %v1973 = vmul.f32 %v1909, 0.3275911
      %v1974 = vmul.f32 %v1910, 0.3275911
      %v1975 = vmul.f32 %v1911, 0.3275911
      %v1976 = vmul.f32 %v1912, 0.3275911
      %v1977 = vmul.f32 %v1913, 0.3275911
      %v1978 = vmul.f32 %v1914, 0.3275911
      %v1979 = vmul.f32 %v1915, 0.3275911
      %v1980 = vmul.f32 %v1916, 0.3275911
      %v1981 = vmul.f32 %v1917, 0.3275911
      %v1982 = vmul.f32 %v1918, 0.3275911
      %v1983 = vmul.f32 %v1919, 0.3275911
      %v1984 = vmul.f32 %v1920, 0.3275911
      %v1985 = vmul.f32 %v1921, 0.3275911
      %v1986 = vmul.f32 %v1922, 0.3275911
      %v1987 = vmul.f32 %v1923, 0.3275911
      %v1988 = vmul.f32 %v1924, 0.3275911
      %v1989 = vmul.f32 %v1925, 0.3275911
      %v1990 = vmul.f32 %v1926, 0.3275911
      %v1991 = vmul.f32 %v1927, 0.3275911
      %v1992 = vmul.f32 %v1928, 0.3275911
      %v1993 = vmul.f32 %v1929, 0.3275911
      %v1994 = vmul.f32 %v1930, 0.3275911
      %v1995 = vmul.f32 %v1931, 0.3275911
      %v1996 = vmul.f32 %v1932, 0.3275911
      %v1997 = vmul.f32 %v1933, 0.3275911
      %v1998 = vmul.f32 %v1934, 0.3275911
      %v1999 = vmul.f32 %v1935, 0.3275911
      %v2000 = vmul.f32 %v1936, 0.3275911
      %v2001 = vmul.f32 %v1937, 0.3275911
      %v2002 = vmul.f32 %v1938, 0.3275911
      %v2003 = vmul.f32 %v1939, 0.3275911
      %v2004 = vadd.f32 %v1940, 1.0
      %v2005 = vadd.f32 %v1941, 1.0
      %v2006 = vadd.f32 %v1942, 1.0
      %v2007 = vadd.f32 %v1943, 1.0
      %v2008 = vadd.f32 %v1944, 1.0
      %v2009 = vadd.f32 %v1945, 1.0
      %v2010 = vadd.f32 %v1946, 1.0
      %v2011 = vadd.f32 %v1947, 1.0
      %v2012 = vadd.f32 %v1948, 1.0
      %v2013 = vadd.f32 %v1949, 1.0
      %v2014 = vadd.f32 %v1950, 1.0
      %v2015 = vadd.f32 %v1951, 1.0
      %v2016 = vadd.f32 %v1952, 1.0
      %v2017 = vadd.f32 %v1953, 1.0
      %v2018 = vadd.f32 %v1954, 1.0
      %v2019 = vadd.f32 %v1955, 1.0
      %v2020 = vadd.f32 %v1956, 1.0
      %v2021 = vadd.f32 %v1957, 1.0
      %v2022 = vadd.f32 %v1958, 1.0
      %v2023 = vadd.f32 %v1959, 1.0
      %v2024 = vadd.f32 %v1960, 1.0
      %v2025 = vadd.f32 %v1961, 1.0
      %v2026 = vadd.f32 %v1962, 1.0
      %v2027 = vadd.f32 %v1963, 1.0
      %v2028 = vadd.f32 %v1964, 1.0
      %v2029 = vadd.f32 %v1965, 1.0
      %v2030 = vadd.f32 %v1966, 1.0
      %v2031 = vadd.f32 %v1967, 1.0
      %v2032 = vadd.f32 %v1968, 1.0
      %v2033 = vadd.f32 %v1969, 1.0
      %v2034 = vadd.f32 %v1970, 1.0
      %v2035 = vadd.f32 %v1971, 1.0
      %v2036 = vadd.f32 %v1972, 1.0
      %v2037 = vadd.f32 %v1973, 1.0
      %v2038 = vadd.f32 %v1974, 1.0
      %v2039 = vadd.f32 %v1975, 1.0
      %v2040 = vadd.f32 %v1976, 1.0
      %v2041 = vadd.f32 %v1977, 1.0
      %v2042 = vadd.f32 %v1978, 1.0
      %v2043 = vadd.f32 %v1979, 1.0
      %v2044 = vadd.f32 %v1980, 1.0
      %v2045 = vadd.f32 %v1981, 1.0
      %v2046 = vadd.f32 %v1982, 1.0
      %v2047 = vadd.f32 %v1983, 1.0
      %v2048 = vadd.f32 %v1984, 1.0
      %v2049 = vadd.f32 %v1985, 1.0
      %v2050 = vadd.f32 %v1986, 1.0
      %v2051 = vadd.f32 %v1987, 1.0
      %v2052 = vadd.f32 %v1988, 1.0
      %v2053 = vadd.f32 %v1989, 1.0
      %v2054 = vadd.f32 %v1990, 1.0
      %v2055 = vadd.f32 %v1991, 1.0
      %v2056 = vadd.f32 %v1992, 1.0
      %v2057 = vadd.f32 %v1993, 1.0
      %v2058 = vadd.f32 %v1994, 1.0
      %v2059 = vadd.f32 %v1995, 1.0
      %v2060 = vadd.f32 %v1996, 1.0
      %v2061 = vadd.f32 %v1997, 1.0
      %v2062 = vadd.f32 %v1998, 1.0
      %v2063 = vadd.f32 %v1999, 1.0
      %v2064 = vadd.f32 %v2000, 1.0
      %v2065 = vadd.f32 %v2001, 1.0
      %v2066 = vadd.f32 %v2002, 1.0
      %v2067 = vadd.f32 %v2003, 1.0
      %v2068 = vrcp.pop %v2004
      %v2069 = vrcp.pop %v2005
      %v2070 = vrcp.pop %v2006
      %v2071 = vrcp.pop %v2007
      %v2072 = vrcp.pop %v2008
      %v2073 = vrcp.pop %v2009
      %v2074 = vrcp.pop %v2010
      %v2075 = vrcp.pop %v2011
      %v2076 = vrcp.pop %v2012
      %v2077 = vrcp.pop %v2013
      %v2078 = vrcp.pop %v2014
      %v2079 = vrcp.pop %v2015
      %v2080 = vrcp.pop %v2016
      %v2081 = vrcp.pop %v2017
      %v2082 = vrcp.pop %v2018
      %v2083 = vrcp.pop %v2019
      %v2084 = vrcp.pop %v2020
      %v2085 = vrcp.pop %v2021
      %v2086 = vrcp.pop %v2022
      %v2087 = vrcp.pop %v2023
      %v2088 = vrcp.pop %v2024
      %v2089 = vrcp.pop %v2025
      %v2090 = vrcp.pop %v2026
      %v2091 = vrcp.pop %v2027
      %v2092 = vrcp.pop %v2028
      %v2093 = vrcp.pop %v2029
      %v2094 = vrcp.pop %v2030
      %v2095 = vrcp.pop %v2031
      %v2096 = vrcp.pop %v2032
      %v2097 = vrcp.pop %v2033
      %v2098 = vrcp.pop %v2034
      %v2099 = vrcp.pop %v2035
      %v2100 = vrcp.pop %v2036
      %v2101 = vrcp.pop %v2037
      %v2102 = vrcp.pop %v2038
      %v2103 = vrcp.pop %v2039
      %v2104 = vrcp.pop %v2040
      %v2105 = vrcp.pop %v2041
      %v2106 = vrcp.pop %v2042
      %v2107 = vrcp.pop %v2043
      %v2108 = vrcp.pop %v2044
      %v2109 = vrcp.pop %v2045
      %v2110 = vrcp.pop %v2046
      %v2111 = vrcp.pop %v2047
      %v2112 = vrcp.pop %v2048
      %v2113 = vrcp.pop %v2049
      %v2114 = vrcp.pop %v2050
      %v2115 = vrcp.pop %v2051
      %v2116 = vrcp.pop %v2052
      %v2117 = vrcp.pop %v2053
      %v2118 = vrcp.pop %v2054
      %v2119 = vrcp.pop %v2055
      %v2120 = vrcp.pop %v2056
      %v2121 = vrcp.pop %v2057
      %v2122 = vrcp.pop %v2058
      %v2123 = vrcp.pop %v2059
      %v2124 = vrcp.pop %v2060
      %v2125 = vrcp.pop %v2061
      %v2126 = vrcp.pop %v2062
      %v2127 = vrcp.pop %v2063
      %v2128 = vrcp.pop %v2064
      %v2129 = vrcp.pop %v2065
      %v2130 = vrcp.pop %v2066
      %v2131 = vrcp.pop %v2067
      %v2132 = vmul.f32 %v2068, 1.0614054
      %v2133 = vmul.f32 %v2069, 1.0614054
      %v2134 = vmul.f32 %v2070, 1.0614054
      %v2135 = vmul.f32 %v2071, 1.0614054
      %v2136 = vmul.f32 %v2072, 1.0614054
      %v2137 = vmul.f32 %v2073, 1.0614054
      %v2138 = vmul.f32 %v2074, 1.0614054
      %v2139 = vmul.f32 %v2075, 1.0614054
      %v2140 = vmul.f32 %v2076, 1.0614054
      %v2141 = vmul.f32 %v2077, 1.0614054
      %v2142 = vmul.f32 %v2078, 1.0614054
      %v2143 = vmul.f32 %v2079, 1.0614054
      %v2144 = vmul.f32 %v2080, 1.0614054
      %v2145 = vmul.f32 %v2081, 1.0614054
      %v2146 = vmul.f32 %v2082, 1.0614054
      %v2147 = vmul.f32 %v2083, 1.0614054
      %v2148 = vmul.f32 %v2084, 1.0614054
      %v2149 = vmul.f32 %v2085, 1.0614054
      %v2150 = vmul.f32 %v2086, 1.0614054
      %v2151 = vmul.f32 %v2087, 1.0614054
      %v2152 = vmul.f32 %v2088, 1.0614054
      %v2153 = vmul.f32 %v2089, 1.0614054
      %v2154 = vmul.f32 %v2090, 1.0614054
      %v2155 = vmul.f32 %v2091, 1.0614054
      %v2156 = vmul.f32 %v2092, 1.0614054
      %v2157 = vmul.f32 %v2093, 1.0614054
      %v2158 = vmul.f32 %v2094, 1.0614054
      %v2159 = vmul.f32 %v2095, 1.0614054
      %v2160 = vmul.f32 %v2096, 1.0614054
      %v2161 = vmul.f32 %v2097, 1.0614054
      %v2162 = vmul.f32 %v2098, 1.0614054
      %v2163 = vmul.f32 %v2099, 1.0614054
      %v2164 = vmul.f32 %v2100, 1.0614054
      %v2165 = vmul.f32 %v2101, 1.0614054
      %v2166 = vmul.f32 %v2102, 1.0614054
      %v2167 = vmul.f32 %v2103, 1.0614054
      %v2168 = vmul.f32 %v2104, 1.0614054
      %v2169 = vmul.f32 %v2105, 1.0614054
      %v2170 = vmul.f32 %v2106, 1.0614054
      %v2171 = vmul.f32 %v2107, 1.0614054
      %v2172 = vmul.f32 %v2108, 1.0614054
      %v2173 = vmul.f32 %v2109, 1.0614054
      %v2174 = vmul.f32 %v2110, 1.0614054
      %v2175 = vmul.f32 %v2111, 1.0614054
      %v2176 = vmul.f32 %v2112, 1.0614054
      %v2177 = vmul.f32 %v2113, 1.0614054
      %v2178 = vmul.f32 %v2114, 1.0614054
      %v2179 = vmul.f32 %v2115, 1.0614054
      %v2180 = vmul.f32 %v2116, 1.0614054
      %v2181 = vmul.f32 %v2117, 1.0614054
      %v2182 = vmul.f32 %v2118, 1.0614054
      %v2183 = vmul.f32 %v2119, 1.0614054
      %v2184 = vmul.f32 %v2120, 1.0614054
      %v2185 = vmul.f32 %v2121, 1.0614054
      %v2186 = vmul.f32 %v2122, 1.0614054
      %v2187 = vmul.f32 %v2123, 1.0614054
      %v2188 = vmul.f32 %v2124, 1.0614054
      %v2189 = vmul.f32 %v2125, 1.0614054
      %v2190 = vmul.f32 %v2126, 1.0614054
      %v2191 = vmul.f32 %v2127, 1.0614054
      %v2192 = vmul.f32 %v2128, 1.0614054
      %v2193 = vmul.f32 %v2129, 1.0614054
      %v2194 = vmul.f32 %v2130, 1.0614054
      %v2195 = vmul.f32 %v2131, 1.0614054
      %v2196 = vadd.f32 %v2132, -1.4531521
      %v2197 = vadd.f32 %v2133, -1.4531521
      %v2198 = vadd.f32 %v2134, -1.4531521
      %v2199 = vadd.f32 %v2135, -1.4531521
      %v2200 = vadd.f32 %v2136, -1.4531521
      %v2201 = vadd.f32 %v2137, -1.4531521
      %v2202 = vadd.f32 %v2138, -1.4531521
      %v2203 = vadd.f32 %v2139, -1.4531521
      %v2204 = vadd.f32 %v2140, -1.4531521
      %v2205 = vadd.f32 %v2141, -1.4531521
      %v2206 = vadd.f32 %v2142, -1.4531521
      %v2207 = vadd.f32 %v2143, -1.4531521
      %v2208 = vadd.f32 %v2144, -1.4531521
      %v2209 = vadd.f32 %v2145, -1.4531521
      %v2210 = vadd.f32 %v2146, -1.4531521
      %v2211 = vadd.f32 %v2147, -1.4531521
      %v2212 = vadd.f32 %v2148, -1.4531521
      %v2213 = vadd.f32 %v2149, -1.4531521
      %v2214 = vadd.f32 %v2150, -1.4531521
      %v2215 = vadd.f32 %v2151, -1.4531521
      %v2216 = vadd.f32 %v2152, -1.4531521
      %v2217 = vadd.f32 %v2153, -1.4531521
      %v2218 = vadd.f32 %v2154, -1.4531521
      %v2219 = vadd.f32 %v2155, -1.4531521
      %v2220 = vadd.f32 %v2156, -1.4531521
      %v2221 = vadd.f32 %v2157, -1.4531521
      %v2222 = vadd.f32 %v2158, -1.4531521
      %v2223 = vadd.f32 %v2159, -1.4531521
      %v2224 = vadd.f32 %v2160, -1.4531521
      %v2225 = vadd.f32 %v2161, -1.4531521
      %v2226 = vadd.f32 %v2162, -1.4531521
      %v2227 = vadd.f32 %v2163, -1.4531521
      %v2228 = vadd.f32 %v2164, -1.4531521
      %v2229 = vadd.f32 %v2165, -1.4531521
      %v2230 = vadd.f32 %v2166, -1.4531521
      %v2231 = vadd.f32 %v2167, -1.4531521
      %v2232 = vadd.f32 %v2168, -1.4531521
      %v2233 = vadd.f32 %v2169, -1.4531521
      %v2234 = vadd.f32 %v2170, -1.4531521
      %v2235 = vadd.f32 %v2171, -1.4531521
      %v2236 = vadd.f32 %v2172, -1.4531521
      %v2237 = vadd.f32 %v2173, -1.4531521
      %v2238 = vadd.f32 %v2174, -1.4531521
      %v2239 = vadd.f32 %v2175, -1.4531521
      %v2240 = vadd.f32 %v2176, -1.4531521
      %v2241 = vadd.f32 %v2177, -1.4531521
      %v2242 = vadd.f32 %v2178, -1.4531521
      %v2243 = vadd.f32 %v2179, -1.4531521
      %v2244 = vadd.f32 %v2180, -1.4531521
      %v2245 = vadd.f32 %v2181, -1.4531521
      %v2246 = vadd.f32 %v2182, -1.4531521
      %v2247 = vadd.f32 %v2183, -1.4531521
      %v2248 = vadd.f32 %v2184, -1.4531521
      %v2249 = vadd.f32 %v2185, -1.4531521
      %v2250 = vadd.f32 %v2186, -1.4531521
      %v2251 = vadd.f32 %v2187, -1.4531521
      %v2252 = vadd.f32 %v2188, -1.4531521
      %v2253 = vadd.f32 %v2189, -1.4531521
      %v2254 = vadd.f32 %v2190, -1.4531521
      %v2255 = vadd.f32 %v2191, -1.4531521
      %v2256 = vadd.f32 %v2192, -1.4531521
      %v2257 = vadd.f32 %v2193, -1.4531521
      %v2258 = vadd.f32 %v2194, -1.4531521
      %v2259 = vadd.f32 %v2195, -1.4531521
      %v2260 = vmul.f32 %v2068, %v2196
      %v2261 = vmul.f32 %v2069, %v2197
      %v2262 = vmul.f32 %v2070, %v2198
      %v2263 = vmul.f32 %v2071, %v2199
      %v2264 = vmul.f32 %v2072, %v2200
      %v2265 = vmul.f32 %v2073, %v2201
      %v2266 = vmul.f32 %v2074, %v2202
      %v2267 = vmul.f32 %v2075, %v2203
      %v2268 = vmul.f32 %v2076, %v2204
      %v2269 = vmul.f32 %v2077, %v2205
      %v2270 = vmul.f32 %v2078, %v2206
      %v2271 = vmul.f32 %v2079, %v2207
      %v2272 = vmul.f32 %v2080, %v2208
      %v2273 = vmul.f32 %v2081, %v2209
      %v2274 = vmul.f32 %v2082, %v2210
      %v2275 = vmul.f32 %v2083, %v2211
      %v2276 = vmul.f32 %v2084, %v2212
      %v2277 = vmul.f32 %v2085, %v2213
      %v2278 = vmul.f32 %v2086, %v2214
      %v2279 = vmul.f32 %v2087, %v2215
      %v2280 = vmul.f32 %v2088, %v2216
      %v2281 = vmul.f32 %v2089, %v2217
      %v2282 = vmul.f32 %v2090, %v2218
      %v2283 = vmul.f32 %v2091, %v2219
      %v2284 = vmul.f32 %v2092, %v2220
      %v2285 = vmul.f32 %v2093, %v2221
      %v2286 = vmul.f32 %v2094, %v2222
      %v2287 = vmul.f32 %v2095, %v2223
      %v2288 = vmul.f32 %v2096, %v2224
      %v2289 = vmul.f32 %v2097, %v2225
      %v2290 = vmul.f32 %v2098, %v2226
      %v2291 = vmul.f32 %v2099, %v2227
      %v2292 = vmul.f32 %v2100, %v2228
      %v2293 = vmul.f32 %v2101, %v2229
      %v2294 = vmul.f32 %v2102, %v2230
      %v2295 = vmul.f32 %v2103, %v2231
      %v2296 = vmul.f32 %v2104, %v2232
      %v2297 = vmul.f32 %v2105, %v2233
      %v2298 = vmul.f32 %v2106, %v2234
      %v2299 = vmul.f32 %v2107, %v2235
      %v2300 = vmul.f32 %v2108, %v2236
      %v2301 = vmul.f32 %v2109, %v2237
      %v2302 = vmul.f32 %v2110, %v2238
      %v2303 = vmul.f32 %v2111, %v2239
      %v2304 = vmul.f32 %v2112, %v2240
      %v2305 = vmul.f32 %v2113, %v2241
      %v2306 = vmul.f32 %v2114, %v2242
      %v2307 = vmul.f32 %v2115, %v2243
      %v2308 = vmul.f32 %v2116, %v2244
      %v2309 = vmul.f32 %v2117, %v2245
      %v2310 = vmul.f32 %v2118, %v2246
      %v2311 = vmul.f32 %v2119, %v2247
      %v2312 = vmul.f32 %v2120, %v2248
      %v2313 = vmul.f32 %v2121, %v2249
      %v2314 = vmul.f32 %v2122, %v2250
      %v2315 = vmul.f32 %v2123, %v2251
      %v2316 = vmul.f32 %v2124, %v2252
      %v2317 = vmul.f32 %v2125, %v2253
      %v2318 = vmul.f32 %v2126, %v2254
      %v2319 = vmul.f32 %v2127, %v2255
      %v2320 = vmul.f32 %v2128, %v2256
      %v2321 = vmul.f32 %v2129, %v2257
      %v2322 = vmul.f32 %v2130, %v2258
      %v2323 = vmul.f32 %v2131, %v2259
      %v2324 = vadd.f32 %v2260, 1.4214138
      %v2325 = vadd.f32 %v2261, 1.4214138
      %v2326 = vadd.f32 %v2262, 1.4214138
      %v2327 = vadd.f32 %v2263, 1.4214138
      %v2328 = vadd.f32 %v2264, 1.4214138
      %v2329 = vadd.f32 %v2265, 1.4214138
      %v2330 = vadd.f32 %v2266, 1.4214138
      %v2331 = vadd.f32 %v2267, 1.4214138
      %v2332 = vadd.f32 %v2268, 1.4214138
      %v2333 = vadd.f32 %v2269, 1.4214138
      %v2334 = vadd.f32 %v2270, 1.4214138
      %v2335 = vadd.f32 %v2271, 1.4214138
      %v2336 = vadd.f32 %v2272, 1.4214138
      %v2337 = vadd.f32 %v2273, 1.4214138
      %v2338 = vadd.f32 %v2274, 1.4214138
      %v2339 = vadd.f32 %v2275, 1.4214138
      %v2340 = vadd.f32 %v2276, 1.4214138
      %v2341 = vadd.f32 %v2277, 1.4214138
      %v2342 = vadd.f32 %v2278, 1.4214138
      %v2343 = vadd.f32 %v2279, 1.4214138
      %v2344 = vadd.f32 %v2280, 1.4214138
      %v2345 = vadd.f32 %v2281, 1.4214138
      %v2346 = vadd.f32 %v2282, 1.4214138
      %v2347 = vadd.f32 %v2283, 1.4214138
      %v2348 = vadd.f32 %v2284, 1.4214138
      %v2349 = vadd.f32 %v2285, 1.4214138
      %v2350 = vadd.f32 %v2286, 1.4214138
      %v2351 = vadd.f32 %v2287, 1.4214138
      %v2352 = vadd.f32 %v2288, 1.4214138
      %v2353 = vadd.f32 %v2289, 1.4214138
      %v2354 = vadd.f32 %v2290, 1.4214138
      %v2355 = vadd.f32 %v2291, 1.4214138
      %v2356 = vadd.f32 %v2292, 1.4214138
      %v2357 = vadd.f32 %v2293, 1.4214138
      %v2358 = vadd.f32 %v2294, 1.4214138
      %v2359 = vadd.f32 %v2295, 1.4214138
      %v2360 = vadd.f32 %v2296, 1.4214138
      %v2361 = vadd.f32 %v2297, 1.4214138
      %v2362 = vadd.f32 %v2298, 1.4214138
      %v2363 = vadd.f32 %v2299, 1.4214138
      %v2364 = vadd.f32 %v2300, 1.4214138
      %v2365 = vadd.f32 %v2301, 1.4214138
      %v2366 = vadd.f32 %v2302, 1.4214138
      %v2367 = vadd.f32 %v2303, 1.4214138
      %v2368 = vadd.f32 %v2304, 1.4214138
      %v2369 = vadd.f32 %v2305, 1.4214138
      %v2370 = vadd.f32 %v2306, 1.4214138
      %v2371 = vadd.f32 %v2307, 1.4214138
      %v2372 = vadd.f32 %v2308, 1.4214138
      %v2373 = vadd.f32 %v2309, 1.4214138
      %v2374 = vadd.f32 %v2310, 1.4214138
      %v2375 = vadd.f32 %v2311, 1.4214138
      %v2376 = vadd.f32 %v2312, 1.4214138
      %v2377 = vadd.f32 %v2313, 1.4214138
      %v2378 = vadd.f32 %v2314, 1.4214138
      %v2379 = vadd.f32 %v2315, 1.4214138
      %v2380 = vadd.f32 %v2316, 1.4214138
      %v2381 = vadd.f32 %v2317, 1.4214138
      %v2382 = vadd.f32 %v2318, 1.4214138
      %v2383 = vadd.f32 %v2319, 1.4214138
      %v2384 = vadd.f32 %v2320, 1.4214138
      %v2385 = vadd.f32 %v2321, 1.4214138
      %v2386 = vadd.f32 %v2322, 1.4214138
      %v2387 = vadd.f32 %v2323, 1.4214138
      %v2388 = vmul.f32 %v2068, %v2324
      %v2389 = vmul.f32 %v2069, %v2325
      %v2390 = vmul.f32 %v2070, %v2326
      %v2391 = vmul.f32 %v2071, %v2327
      %v2392 = vmul.f32 %v2072, %v2328
      %v2393 = vmul.f32 %v2073, %v2329
      %v2394 = vmul.f32 %v2074, %v2330
      %v2395 = vmul.f32 %v2075, %v2331
      %v2396 = vmul.f32 %v2076, %v2332
      %v2397 = vmul.f32 %v2077, %v2333
      %v2398 = vmul.f32 %v2078, %v2334
      %v2399 = vmul.f32 %v2079, %v2335
      %v2400 = vmul.f32 %v2080, %v2336
      %v2401 = vmul.f32 %v2081, %v2337
      %v2402 = vmul.f32 %v2082, %v2338
      %v2403 = vmul.f32 %v2083, %v2339
      %v2404 = vmul.f32 %v2084, %v2340
      %v2405 = vmul.f32 %v2085, %v2341
      %v2406 = vmul.f32 %v2086, %v2342
      %v2407 = vmul.f32 %v2087, %v2343
      %v2408 = vmul.f32 %v2088, %v2344
      %v2409 = vmul.f32 %v2089, %v2345
      %v2410 = vmul.f32 %v2090, %v2346
      %v2411 = vmul.f32 %v2091, %v2347
      %v2412 = vmul.f32 %v2092, %v2348
      %v2413 = vmul.f32 %v2093, %v2349
      %v2414 = vmul.f32 %v2094, %v2350
      %v2415 = vmul.f32 %v2095, %v2351
      %v2416 = vmul.f32 %v2096, %v2352
      %v2417 = vmul.f32 %v2097, %v2353
      %v2418 = vmul.f32 %v2098, %v2354
      %v2419 = vmul.f32 %v2099, %v2355
      %v2420 = vmul.f32 %v2100, %v2356
      %v2421 = vmul.f32 %v2101, %v2357
      %v2422 = vmul.f32 %v2102, %v2358
      %v2423 = vmul.f32 %v2103, %v2359
      %v2424 = vmul.f32 %v2104, %v2360
      %v2425 = vmul.f32 %v2105, %v2361
      %v2426 = vmul.f32 %v2106, %v2362
      %v2427 = vmul.f32 %v2107, %v2363
      %v2428 = vmul.f32 %v2108, %v2364
      %v2429 = vmul.f32 %v2109, %v2365
      %v2430 = vmul.f32 %v2110, %v2366
      %v2431 = vmul.f32 %v2111, %v2367
      %v2432 = vmul.f32 %v2112, %v2368
      %v2433 = vmul.f32 %v2113, %v2369
      %v2434 = vmul.f32 %v2114, %v2370
      %v2435 = vmul.f32 %v2115, %v2371
      %v2436 = vmul.f32 %v2116, %v2372
      %v2437 = vmul.f32 %v2117, %v2373
      %v2438 = vmul.f32 %v2118, %v2374
      %v2439 = vmul.f32 %v2119, %v2375
      %v2440 = vmul.f32 %v2120, %v2376
      %v2441 = vmul.f32 %v2121, %v2377
      %v2442 = vmul.f32 %v2122, %v2378
      %v2443 = vmul.f32 %v2123, %v2379
      %v2444 = vmul.f32 %v2124, %v2380
      %v2445 = vmul.f32 %v2125, %v2381
      %v2446 = vmul.f32 %v2126, %v2382
      %v2447 = vmul.f32 %v2127, %v2383
      %v2448 = vmul.f32 %v2128, %v2384
      %v2449 = vmul.f32 %v2129, %v2385
      %v2450 = vmul.f32 %v2130, %v2386
      %v2451 = vmul.f32 %v2131, %v2387
      %v2452 = vadd.f32 %v2388, -0.28449672
      %v2453 = vadd.f32 %v2389, -0.28449672
      %v2454 = vadd.f32 %v2390, -0.28449672
      %v2455 = vadd.f32 %v2391, -0.28449672
      %v2456 = vadd.f32 %v2392, -0.28449672
      %v2457 = vadd.f32 %v2393, -0.28449672
      %v2458 = vadd.f32 %v2394, -0.28449672
      %v2459 = vadd.f32 %v2395, -0.28449672
      %v2460 = vadd.f32 %v2396, -0.28449672
      %v2461 = vadd.f32 %v2397, -0.28449672
      %v2462 = vadd.f32 %v2398, -0.28449672
      %v2463 = vadd.f32 %v2399, -0.28449672
      %v2464 = vadd.f32 %v2400, -0.28449672
      %v2465 = vadd.f32 %v2401, -0.28449672
      %v2466 = vadd.f32 %v2402, -0.28449672
      %v2467 = vadd.f32 %v2403, -0.28449672
      %v2468 = vadd.f32 %v2404, -0.28449672
      %v2469 = vadd.f32 %v2405, -0.28449672
      %v2470 = vadd.f32 %v2406, -0.28449672
      %v2471 = vadd.f32 %v2407, -0.28449672
      %v2472 = vadd.f32 %v2408, -0.28449672
      %v2473 = vadd.f32 %v2409, -0.28449672
      %v2474 = vadd.f32 %v2410, -0.28449672
      %v2475 = vadd.f32 %v2411, -0.28449672
      %v2476 = vadd.f32 %v2412, -0.28449672
      %v2477 = vadd.f32 %v2413, -0.28449672
      %v2478 = vadd.f32 %v2414, -0.28449672
      %v2479 = vadd.f32 %v2415, -0.28449672
      %v2480 = vadd.f32 %v2416, -0.28449672
      %v2481 = vadd.f32 %v2417, -0.28449672
      %v2482 = vadd.f32 %v2418, -0.28449672
      %v2483 = vadd.f32 %v2419, -0.28449672
      %v2484 = vadd.f32 %v2420, -0.28449672
      %v2485 = vadd.f32 %v2421, -0.28449672
      %v2486 = vadd.f32 %v2422, -0.28449672
      %v2487 = vadd.f32 %v2423, -0.28449672
      %v2488 = vadd.f32 %v2424, -0.28449672
      %v2489 = vadd.f32 %v2425, -0.28449672
      %v2490 = vadd.f32 %v2426, -0.28449672
      %v2491 = vadd.f32 %v2427, -0.28449672
      %v2492 = vadd.f32 %v2428, -0.28449672
      %v2493 = vadd.f32 %v2429, -0.28449672
      %v2494 = vadd.f32 %v2430, -0.28449672
      %v2495 = vadd.f32 %v2431, -0.28449672
      %v2496 = vadd.f32 %v2432, -0.28449672
      %v2497 = vadd.f32 %v2433, -0.28449672
      %v2498 = vadd.f32 %v2434, -0.28449672
      %v2499 = vadd.f32 %v2435, -0.28449672
      %v2500 = vadd.f32 %v2436, -0.28449672
      %v2501 = vadd.f32 %v2437, -0.28449672
      %v2502 = vadd.f32 %v2438, -0.28449672
      %v2503 = vadd.f32 %v2439, -0.28449672
      %v2504 = vadd.f32 %v2440, -0.28449672
      %v2505 = vadd.f32 %v2441, -0.28449672
      %v2506 = vadd.f32 %v2442, -0.28449672
      %v2507 = vadd.f32 %v2443, -0.28449672
      %v2508 = vadd.f32 %v2444, -0.28449672
      %v2509 = vadd.f32 %v2445, -0.28449672
      %v2510 = vadd.f32 %v2446, -0.28449672
      %v2511 = vadd.f32 %v2447, -0.28449672
      %v2512 = vadd.f32 %v2448, -0.28449672
      %v2513 = vadd.f32 %v2449, -0.28449672
      %v2514 = vadd.f32 %v2450, -0.28449672
      %v2515 = vadd.f32 %v2451, -0.28449672
      %v2516 = vmul.f32 %v2068, %v2452
      %v2517 = vmul.f32 %v2069, %v2453
      %v2518 = vmul.f32 %v2070, %v2454
      %v2519 = vmul.f32 %v2071, %v2455
      %v2520 = vmul.f32 %v2072, %v2456
      %v2521 = vmul.f32 %v2073, %v2457
      %v2522 = vmul.f32 %v2074, %v2458
      %v2523 = vmul.f32 %v2075, %v2459
      %v2524 = vmul.f32 %v2076, %v2460
      %v2525 = vmul.f32 %v2077, %v2461
      %v2526 = vmul.f32 %v2078, %v2462
      %v2527 = vmul.f32 %v2079, %v2463
      %v2528 = vmul.f32 %v2080, %v2464
      %v2529 = vmul.f32 %v2081, %v2465
      %v2530 = vmul.f32 %v2082, %v2466
      %v2531 = vmul.f32 %v2083, %v2467
      %v2532 = vmul.f32 %v2084, %v2468
      %v2533 = vmul.f32 %v2085, %v2469
      %v2534 = vmul.f32 %v2086, %v2470
      %v2535 = vmul.f32 %v2087, %v2471
      %v2536 = vmul.f32 %v2088, %v2472
      %v2537 = vmul.f32 %v2089, %v2473
      %v2538 = vmul.f32 %v2090, %v2474
      %v2539 = vmul.f32 %v2091, %v2475
      %v2540 = vmul.f32 %v2092, %v2476
      %v2541 = vmul.f32 %v2093, %v2477
      %v2542 = vmul.f32 %v2094, %v2478
      %v2543 = vmul.f32 %v2095, %v2479
      %v2544 = vmul.f32 %v2096, %v2480
      %v2545 = vmul.f32 %v2097, %v2481
      %v2546 = vmul.f32 %v2098, %v2482
      %v2547 = vmul.f32 %v2099, %v2483
      %v2548 = vmul.f32 %v2100, %v2484
      %v2549 = vmul.f32 %v2101, %v2485
      %v2550 = vmul.f32 %v2102, %v2486
      %v2551 = vmul.f32 %v2103, %v2487
      %v2552 = vmul.f32 %v2104, %v2488
      %v2553 = vmul.f32 %v2105, %v2489
      %v2554 = vmul.f32 %v2106, %v2490
      %v2555 = vmul.f32 %v2107, %v2491
      %v2556 = vmul.f32 %v2108, %v2492
      %v2557 = vmul.f32 %v2109, %v2493
      %v2558 = vmul.f32 %v2110, %v2494
      %v2559 = vmul.f32 %v2111, %v2495
      %v2560 = vmul.f32 %v2112, %v2496
      %v2561 = vmul.f32 %v2113, %v2497
      %v2562 = vmul.f32 %v2114, %v2498
      %v2563 = vmul.f32 %v2115, %v2499
      %v2564 = vmul.f32 %v2116, %v2500
      %v2565 = vmul.f32 %v2117, %v2501
      %v2566 = vmul.f32 %v2118, %v2502
      %v2567 = vmul.f32 %v2119, %v2503
      %v2568 = vmul.f32 %v2120, %v2504
      %v2569 = vmul.f32 %v2121, %v2505
      %v2570 = vmul.f32 %v2122, %v2506
      %v2571 = vmul.f32 %v2123, %v2507
      %v2572 = vmul.f32 %v2124, %v2508
      %v2573 = vmul.f32 %v2125, %v2509
      %v2574 = vmul.f32 %v2126, %v2510
      %v2575 = vmul.f32 %v2127, %v2511
      %v2576 = vmul.f32 %v2128, %v2512
      %v2577 = vmul.f32 %v2129, %v2513
      %v2578 = vmul.f32 %v2130, %v2514
      %v2579 = vmul.f32 %v2131, %v2515
      %v2580 = vadd.f32 %v2516, 0.2548296
      %v2581 = vadd.f32 %v2517, 0.2548296
      %v2582 = vadd.f32 %v2518, 0.2548296
      %v2583 = vadd.f32 %v2519, 0.2548296
      %v2584 = vadd.f32 %v2520, 0.2548296
      %v2585 = vadd.f32 %v2521, 0.2548296
      %v2586 = vadd.f32 %v2522, 0.2548296
      %v2587 = vadd.f32 %v2523, 0.2548296
      %v2588 = vadd.f32 %v2524, 0.2548296
      %v2589 = vadd.f32 %v2525, 0.2548296
      %v2590 = vadd.f32 %v2526, 0.2548296
      %v2591 = vadd.f32 %v2527, 0.2548296
      %v2592 = vadd.f32 %v2528, 0.2548296
      %v2593 = vadd.f32 %v2529, 0.2548296
      %v2594 = vadd.f32 %v2530, 0.2548296
      %v2595 = vadd.f32 %v2531, 0.2548296
      %v2596 = vadd.f32 %v2532, 0.2548296
      %v2597 = vadd.f32 %v2533, 0.2548296
      %v2598 = vadd.f32 %v2534, 0.2548296
      %v2599 = vadd.f32 %v2535, 0.2548296
      %v2600 = vadd.f32 %v2536, 0.2548296
      %v2601 = vadd.f32 %v2537, 0.2548296
      %v2602 = vadd.f32 %v2538, 0.2548296
      %v2603 = vadd.f32 %v2539, 0.2548296
      %v2604 = vadd.f32 %v2540, 0.2548296
      %v2605 = vadd.f32 %v2541, 0.2548296
      %v2606 = vadd.f32 %v2542, 0.2548296
      %v2607 = vadd.f32 %v2543, 0.2548296
      %v2608 = vadd.f32 %v2544, 0.2548296
      %v2609 = vadd.f32 %v2545, 0.2548296
      %v2610 = vadd.f32 %v2546, 0.2548296
      %v2611 = vadd.f32 %v2547, 0.2548296
      %v2612 = vadd.f32 %v2548, 0.2548296
      %v2613 = vadd.f32 %v2549, 0.2548296
      %v2614 = vadd.f32 %v2550, 0.2548296
      %v2615 = vadd.f32 %v2551, 0.2548296
      %v2616 = vadd.f32 %v2552, 0.2548296
      %v2617 = vadd.f32 %v2553, 0.2548296
      %v2618 = vadd.f32 %v2554, 0.2548296
      %v2619 = vadd.f32 %v2555, 0.2548296
      %v2620 = vadd.f32 %v2556, 0.2548296
      %v2621 = vadd.f32 %v2557, 0.2548296
      %v2622 = vadd.f32 %v2558, 0.2548296
      %v2623 = vadd.f32 %v2559, 0.2548296
      %v2624 = vadd.f32 %v2560, 0.2548296
      %v2625 = vadd.f32 %v2561, 0.2548296
      %v2626 = vadd.f32 %v2562, 0.2548296
      %v2627 = vadd.f32 %v2563, 0.2548296
      %v2628 = vadd.f32 %v2564, 0.2548296
      %v2629 = vadd.f32 %v2565, 0.2548296
      %v2630 = vadd.f32 %v2566, 0.2548296
      %v2631 = vadd.f32 %v2567, 0.2548296
      %v2632 = vadd.f32 %v2568, 0.2548296
      %v2633 = vadd.f32 %v2569, 0.2548296
      %v2634 = vadd.f32 %v2570, 0.2548296
      %v2635 = vadd.f32 %v2571, 0.2548296
      %v2636 = vadd.f32 %v2572, 0.2548296
      %v2637 = vadd.f32 %v2573, 0.2548296
      %v2638 = vadd.f32 %v2574, 0.2548296
      %v2639 = vadd.f32 %v2575, 0.2548296
      %v2640 = vadd.f32 %v2576, 0.2548296
      %v2641 = vadd.f32 %v2577, 0.2548296
      %v2642 = vadd.f32 %v2578, 0.2548296
      %v2643 = vadd.f32 %v2579, 0.2548296
      %v2644 = vmul.f32 %v2068, %v2580
      %v2645 = vmul.f32 %v2069, %v2581
      %v2646 = vmul.f32 %v2070, %v2582
      %v2647 = vmul.f32 %v2071, %v2583
      %v2648 = vmul.f32 %v2072, %v2584
      %v2649 = vmul.f32 %v2073, %v2585
      %v2650 = vmul.f32 %v2074, %v2586
      %v2651 = vmul.f32 %v2075, %v2587
      %v2652 = vmul.f32 %v2076, %v2588
      %v2653 = vmul.f32 %v2077, %v2589
      %v2654 = vmul.f32 %v2078, %v2590
      %v2655 = vmul.f32 %v2079, %v2591
      %v2656 = vmul.f32 %v2080, %v2592
      %v2657 = vmul.f32 %v2081, %v2593
      %v2658 = vmul.f32 %v2082, %v2594
      %v2659 = vmul.f32 %v2083, %v2595
      %v2660 = vmul.f32 %v2084, %v2596
      %v2661 = vmul.f32 %v2085, %v2597
      %v2662 = vmul.f32 %v2086, %v2598
      %v2663 = vmul.f32 %v2087, %v2599
      %v2664 = vmul.f32 %v2088, %v2600
      %v2665 = vmul.f32 %v2089, %v2601
      %v2666 = vmul.f32 %v2090, %v2602
      %v2667 = vmul.f32 %v2091, %v2603
      %v2668 = vmul.f32 %v2092, %v2604
      %v2669 = vmul.f32 %v2093, %v2605
      %v2670 = vmul.f32 %v2094, %v2606
      %v2671 = vmul.f32 %v2095, %v2607
      %v2672 = vmul.f32 %v2096, %v2608
      %v2673 = vmul.f32 %v2097, %v2609
      %v2674 = vmul.f32 %v2098, %v2610
      %v2675 = vmul.f32 %v2099, %v2611
      %v2676 = vmul.f32 %v2100, %v2612
      %v2677 = vmul.f32 %v2101, %v2613
      %v2678 = vmul.f32 %v2102, %v2614
      %v2679 = vmul.f32 %v2103, %v2615
      %v2680 = vmul.f32 %v2104, %v2616
      %v2681 = vmul.f32 %v2105, %v2617
      %v2682 = vmul.f32 %v2106, %v2618
      %v2683 = vmul.f32 %v2107, %v2619
      %v2684 = vmul.f32 %v2108, %v2620
      %v2685 = vmul.f32 %v2109, %v2621
      %v2686 = vmul.f32 %v2110, %v2622
      %v2687 = vmul.f32 %v2111, %v2623
      %v2688 = vmul.f32 %v2112, %v2624
      %v2689 = vmul.f32 %v2113, %v2625
      %v2690 = vmul.f32 %v2114, %v2626
      %v2691 = vmul.f32 %v2115, %v2627
      %v2692 = vmul.f32 %v2116, %v2628
      %v2693 = vmul.f32 %v2117, %v2629
      %v2694 = vmul.f32 %v2118, %v2630
      %v2695 = vmul.f32 %v2119, %v2631
      %v2696 = vmul.f32 %v2120, %v2632
      %v2697 = vmul.f32 %v2121, %v2633
      %v2698 = vmul.f32 %v2122, %v2634
      %v2699 = vmul.f32 %v2123, %v2635
      %v2700 = vmul.f32 %v2124, %v2636
      %v2701 = vmul.f32 %v2125, %v2637
      %v2702 = vmul.f32 %v2126, %v2638
      %v2703 = vmul.f32 %v2127, %v2639
      %v2704 = vmul.f32 %v2128, %v2640
      %v2705 = vmul.f32 %v2129, %v2641
      %v2706 = vmul.f32 %v2130, %v2642
      %v2707 = vmul.f32 %v2131, %v2643
      %v2708 = vsub.f32 0.0, %v1876
      %v2709 = vsub.f32 0.0, %v1877
      %v2710 = vsub.f32 0.0, %v1878
      %v2711 = vsub.f32 0.0, %v1879
      %v2712 = vsub.f32 0.0, %v1880
      %v2713 = vsub.f32 0.0, %v1881
      %v2714 = vsub.f32 0.0, %v1882
      %v2715 = vsub.f32 0.0, %v1883
      %v2716 = vsub.f32 0.0, %v1884
      %v2717 = vsub.f32 0.0, %v1885
      %v2718 = vsub.f32 0.0, %v1886
      %v2719 = vsub.f32 0.0, %v1887
      %v2720 = vsub.f32 0.0, %v1888
      %v2721 = vsub.f32 0.0, %v1889
      %v2722 = vsub.f32 0.0, %v1890
      %v2723 = vsub.f32 0.0, %v1891
      %v2724 = vsub.f32 0.0, %v1892
      %v2725 = vsub.f32 0.0, %v1893
      %v2726 = vsub.f32 0.0, %v1894
      %v2727 = vsub.f32 0.0, %v1895
      %v2728 = vsub.f32 0.0, %v1896
      %v2729 = vsub.f32 0.0, %v1897
      %v2730 = vsub.f32 0.0, %v1898
      %v2731 = vsub.f32 0.0, %v1899
      %v2732 = vsub.f32 0.0, %v1900
      %v2733 = vsub.f32 0.0, %v1901
      %v2734 = vsub.f32 0.0, %v1902
      %v2735 = vsub.f32 0.0, %v1903
      %v2736 = vsub.f32 0.0, %v1904
      %v2737 = vsub.f32 0.0, %v1905
      %v2738 = vsub.f32 0.0, %v1906
      %v2739 = vsub.f32 0.0, %v1907
      %v2740 = vsub.f32 0.0, %v1908
      %v2741 = vsub.f32 0.0, %v1909
      %v2742 = vsub.f32 0.0, %v1910
      %v2743 = vsub.f32 0.0, %v1911
      %v2744 = vsub.f32 0.0, %v1912
      %v2745 = vsub.f32 0.0, %v1913
      %v2746 = vsub.f32 0.0, %v1914
      %v2747 = vsub.f32 0.0, %v1915
      %v2748 = vsub.f32 0.0, %v1916
      %v2749 = vsub.f32 0.0, %v1917
      %v2750 = vsub.f32 0.0, %v1918
      %v2751 = vsub.f32 0.0, %v1919
      %v2752 = vsub.f32 0.0, %v1920
      %v2753 = vsub.f32 0.0, %v1921
      %v2754 = vsub.f32 0.0, %v1922
      %v2755 = vsub.f32 0.0, %v1923
      %v2756 = vsub.f32 0.0, %v1924
      %v2757 = vsub.f32 0.0, %v1925
      %v2758 = vsub.f32 0.0, %v1926
      %v2759 = vsub.f32 0.0, %v1927
      %v2760 = vsub.f32 0.0, %v1928
      %v2761 = vsub.f32 0.0, %v1929
      %v2762 = vsub.f32 0.0, %v1930
      %v2763 = vsub.f32 0.0, %v1931
      %v2764 = vsub.f32 0.0, %v1932
      %v2765 = vsub.f32 0.0, %v1933
      %v2766 = vsub.f32 0.0, %v1934
      %v2767 = vsub.f32 0.0, %v1935
      %v2768 = vsub.f32 0.0, %v1936
      %v2769 = vsub.f32 0.0, %v1937
      %v2770 = vsub.f32 0.0, %v1938
      %v2771 = vsub.f32 0.0, %v1939
      %v2772 = vmul.f32 %v2708, %v1876
      %v2773 = vmul.f32 %v2709, %v1877
      %v2774 = vmul.f32 %v2710, %v1878
      %v2775 = vmul.f32 %v2711, %v1879
      %v2776 = vmul.f32 %v2712, %v1880
      %v2777 = vmul.f32 %v2713, %v1881
      %v2778 = vmul.f32 %v2714, %v1882
      %v2779 = vmul.f32 %v2715, %v1883
      %v2780 = vmul.f32 %v2716, %v1884
      %v2781 = vmul.f32 %v2717, %v1885
      %v2782 = vmul.f32 %v2718, %v1886
      %v2783 = vmul.f32 %v2719, %v1887
      %v2784 = vmul.f32 %v2720, %v1888
      %v2785 = vmul.f32 %v2721, %v1889
      %v2786 = vmul.f32 %v2722, %v1890
      %v2787 = vmul.f32 %v2723, %v1891
      %v2788 = vmul.f32 %v2724, %v1892
      %v2789 = vmul.f32 %v2725, %v1893
      %v2790 = vmul.f32 %v2726, %v1894
      %v2791 = vmul.f32 %v2727, %v1895
      %v2792 = vmul.f32 %v2728, %v1896
      %v2793 = vmul.f32 %v2729, %v1897
      %v2794 = vmul.f32 %v2730, %v1898
      %v2795 = vmul.f32 %v2731, %v1899
      %v2796 = vmul.f32 %v2732, %v1900
      %v2797 = vmul.f32 %v2733, %v1901
      %v2798 = vmul.f32 %v2734, %v1902
      %v2799 = vmul.f32 %v2735, %v1903
      %v2800 = vmul.f32 %v2736, %v1904
      %v2801 = vmul.f32 %v2737, %v1905
      %v2802 = vmul.f32 %v2738, %v1906
      %v2803 = vmul.f32 %v2739, %v1907
      %v2804 = vmul.f32 %v2740, %v1908
      %v2805 = vmul.f32 %v2741, %v1909
      %v2806 = vmul.f32 %v2742, %v1910
      %v2807 = vmul.f32 %v2743, %v1911
      %v2808 = vmul.f32 %v2744, %v1912
      %v2809 = vmul.f32 %v2745, %v1913
      %v2810 = vmul.f32 %v2746, %v1914
      %v2811 = vmul.f32 %v2747, %v1915
      %v2812 = vmul.f32 %v2748, %v1916
      %v2813 = vmul.f32 %v2749, %v1917
      %v2814 = vmul.f32 %v2750, %v1918
      %v2815 = vmul.f32 %v2751, %v1919
      %v2816 = vmul.f32 %v2752, %v1920
      %v2817 = vmul.f32 %v2753, %v1921
      %v2818 = vmul.f32 %v2754, %v1922
      %v2819 = vmul.f32 %v2755, %v1923
      %v2820 = vmul.f32 %v2756, %v1924
      %v2821 = vmul.f32 %v2757, %v1925
      %v2822 = vmul.f32 %v2758, %v1926
      %v2823 = vmul.f32 %v2759, %v1927
      %v2824 = vmul.f32 %v2760, %v1928
      %v2825 = vmul.f32 %v2761, %v1929
      %v2826 = vmul.f32 %v2762, %v1930
      %v2827 = vmul.f32 %v2763, %v1931
      %v2828 = vmul.f32 %v2764, %v1932
      %v2829 = vmul.f32 %v2765, %v1933
      %v2830 = vmul.f32 %v2766, %v1934
      %v2831 = vmul.f32 %v2767, %v1935
      %v2832 = vmul.f32 %v2768, %v1936
      %v2833 = vmul.f32 %v2769, %v1937
      %v2834 = vmul.f32 %v2770, %v1938
      %v2835 = vmul.f32 %v2771, %v1939
      %v2836 = vmul.f32 %v2772, 1.442695
      %v2837 = vpow.pop %v2836
      %v2838 = vmul.f32 %v2773, 1.442695
      %v2839 = vpow.pop %v2838
      %v2840 = vmul.f32 %v2774, 1.442695
      %v2841 = vpow.pop %v2840
      %v2842 = vmul.f32 %v2775, 1.442695
      %v2843 = vpow.pop %v2842
      %v2844 = vmul.f32 %v2776, 1.442695
      %v2845 = vpow.pop %v2844
      %v2846 = vmul.f32 %v2777, 1.442695
      %v2847 = vpow.pop %v2846
      %v2848 = vmul.f32 %v2778, 1.442695
      %v2849 = vpow.pop %v2848
      %v2850 = vmul.f32 %v2779, 1.442695
      %v2851 = vpow.pop %v2850
      %v2852 = vmul.f32 %v2780, 1.442695
      %v2853 = vpow.pop %v2852
      %v2854 = vmul.f32 %v2781, 1.442695
      %v2855 = vpow.pop %v2854
      %v2856 = vmul.f32 %v2782, 1.442695
      %v2857 = vpow.pop %v2856
      %v2858 = vmul.f32 %v2783, 1.442695
      %v2859 = vpow.pop %v2858
      %v2860 = vmul.f32 %v2784, 1.442695
      %v2861 = vpow.pop %v2860
      %v2862 = vmul.f32 %v2785, 1.442695
      %v2863 = vpow.pop %v2862
      %v2864 = vmul.f32 %v2786, 1.442695
      %v2865 = vpow.pop %v2864
      %v2866 = vmul.f32 %v2787, 1.442695
      %v2867 = vpow.pop %v2866
      %v2868 = vmul.f32 %v2788, 1.442695
      %v2869 = vpow.pop %v2868
      %v2870 = vmul.f32 %v2789, 1.442695
      %v2871 = vpow.pop %v2870
      %v2872 = vmul.f32 %v2790, 1.442695
      %v2873 = vpow.pop %v2872
      %v2874 = vmul.f32 %v2791, 1.442695
      %v2875 = vpow.pop %v2874
      %v2876 = vmul.f32 %v2792, 1.442695
      %v2877 = vpow.pop %v2876
      %v2878 = vmul.f32 %v2793, 1.442695
      %v2879 = vpow.pop %v2878
      %v2880 = vmul.f32 %v2794, 1.442695
      %v2881 = vpow.pop %v2880
      %v2882 = vmul.f32 %v2795, 1.442695
      %v2883 = vpow.pop %v2882
      %v2884 = vmul.f32 %v2796, 1.442695
      %v2885 = vpow.pop %v2884
      %v2886 = vmul.f32 %v2797, 1.442695
      %v2887 = vpow.pop %v2886
      %v2888 = vmul.f32 %v2798, 1.442695
      %v2889 = vpow.pop %v2888
      %v2890 = vmul.f32 %v2799, 1.442695
      %v2891 = vpow.pop %v2890
      %v2892 = vmul.f32 %v2800, 1.442695
      %v2893 = vpow.pop %v2892
      %v2894 = vmul.f32 %v2801, 1.442695
      %v2895 = vpow.pop %v2894
      %v2896 = vmul.f32 %v2802, 1.442695
      %v2897 = vpow.pop %v2896
      %v2898 = vmul.f32 %v2803, 1.442695
      %v2899 = vpow.pop %v2898
      %v2900 = vmul.f32 %v2804, 1.442695
      %v2901 = vpow.pop %v2900
      %v2902 = vmul.f32 %v2805, 1.442695
      %v2903 = vpow.pop %v2902
      %v2904 = vmul.f32 %v2806, 1.442695
      %v2905 = vpow.pop %v2904
      %v2906 = vmul.f32 %v2807, 1.442695
      %v2907 = vpow.pop %v2906
      %v2908 = vmul.f32 %v2808, 1.442695
      %v2909 = vpow.pop %v2908
      %v2910 = vmul.f32 %v2809, 1.442695
      %v2911 = vpow.pop %v2910
      %v2912 = vmul.f32 %v2810, 1.442695
      %v2913 = vpow.pop %v2912
      %v2914 = vmul.f32 %v2811, 1.442695
      %v2915 = vpow.pop %v2914
      %v2916 = vmul.f32 %v2812, 1.442695
      %v2917 = vpow.pop %v2916
      %v2918 = vmul.f32 %v2813, 1.442695
      %v2919 = vpow.pop %v2918
      %v2920 = vmul.f32 %v2814, 1.442695
      %v2921 = vpow.pop %v2920
      %v2922 = vmul.f32 %v2815, 1.442695
      %v2923 = vpow.pop %v2922
      %v2924 = vmul.f32 %v2816, 1.442695
      %v2925 = vpow.pop %v2924
      %v2926 = vmul.f32 %v2817, 1.442695
      %v2927 = vpow.pop %v2926
      %v2928 = vmul.f32 %v2818, 1.442695
      %v2929 = vpow.pop %v2928
      %v2930 = vmul.f32 %v2819, 1.442695
      %v2931 = vpow.pop %v2930
      %v2932 = vmul.f32 %v2820, 1.442695
      %v2933 = vpow.pop %v2932
      %v2934 = vmul.f32 %v2821, 1.442695
      %v2935 = vpow.pop %v2934
      %v2936 = vmul.f32 %v2822, 1.442695
      %v2937 = vpow.pop %v2936
      %v2938 = vmul.f32 %v2823, 1.442695
      %v2939 = vpow.pop %v2938
      %v2940 = vmul.f32 %v2824, 1.442695
      %v2941 = vpow.pop %v2940
      %v2942 = vmul.f32 %v2825, 1.442695
      %v2943 = vpow.pop %v2942
      %v2944 = vmul.f32 %v2826, 1.442695
      %v2945 = vpow.pop %v2944
      %v2946 = vmul.f32 %v2827, 1.442695
      %v2947 = vpow.pop %v2946
      %v2948 = vmul.f32 %v2828, 1.442695
      %v2949 = vpow.pop %v2948
      %v2950 = vmul.f32 %v2829, 1.442695
      %v2951 = vpow.pop %v2950
      %v2952 = vmul.f32 %v2830, 1.442695
      %v2953 = vpow.pop %v2952
      %v2954 = vmul.f32 %v2831, 1.442695
      %v2955 = vpow.pop %v2954
      %v2956 = vmul.f32 %v2832, 1.442695
      %v2957 = vpow.pop %v2956
      %v2958 = vmul.f32 %v2833, 1.442695
      %v2959 = vpow.pop %v2958
      %v2960 = vmul.f32 %v2834, 1.442695
      %v2961 = vpow.pop %v2960
      %v2962 = vmul.f32 %v2835, 1.442695
      %v2963 = vpow.pop %v2962
      %v2964 = vmul.f32 %v2644, %v2837
      %v2965 = vmul.f32 %v2645, %v2839
      %v2966 = vmul.f32 %v2646, %v2841
      %v2967 = vmul.f32 %v2647, %v2843
      %v2968 = vmul.f32 %v2648, %v2845
      %v2969 = vmul.f32 %v2649, %v2847
      %v2970 = vmul.f32 %v2650, %v2849
      %v2971 = vmul.f32 %v2651, %v2851
      %v2972 = vmul.f32 %v2652, %v2853
      %v2973 = vmul.f32 %v2653, %v2855
      %v2974 = vmul.f32 %v2654, %v2857
      %v2975 = vmul.f32 %v2655, %v2859
      %v2976 = vmul.f32 %v2656, %v2861
      %v2977 = vmul.f32 %v2657, %v2863
      %v2978 = vmul.f32 %v2658, %v2865
      %v2979 = vmul.f32 %v2659, %v2867
      %v2980 = vmul.f32 %v2660, %v2869
      %v2981 = vmul.f32 %v2661, %v2871
      %v2982 = vmul.f32 %v2662, %v2873
      %v2983 = vmul.f32 %v2663, %v2875
      %v2984 = vmul.f32 %v2664, %v2877
      %v2985 = vmul.f32 %v2665, %v2879
      %v2986 = vmul.f32 %v2666, %v2881
      %v2987 = vmul.f32 %v2667, %v2883
      %v2988 = vmul.f32 %v2668, %v2885
      %v2989 = vmul.f32 %v2669, %v2887
      %v2990 = vmul.f32 %v2670, %v2889
      %v2991 = vmul.f32 %v2671, %v2891
      %v2992 = vmul.f32 %v2672, %v2893
      %v2993 = vmul.f32 %v2673, %v2895
      %v2994 = vmul.f32 %v2674, %v2897
      %v2995 = vmul.f32 %v2675, %v2899
      %v2996 = vmul.f32 %v2676, %v2901
      %v2997 = vmul.f32 %v2677, %v2903
      %v2998 = vmul.f32 %v2678, %v2905
      %v2999 = vmul.f32 %v2679, %v2907
      %v3000 = vmul.f32 %v2680, %v2909
      %v3001 = vmul.f32 %v2681, %v2911
      %v3002 = vmul.f32 %v2682, %v2913
      %v3003 = vmul.f32 %v2683, %v2915
      %v3004 = vmul.f32 %v2684, %v2917
      %v3005 = vmul.f32 %v2685, %v2919
      %v3006 = vmul.f32 %v2686, %v2921
      %v3007 = vmul.f32 %v2687, %v2923
      %v3008 = vmul.f32 %v2688, %v2925
      %v3009 = vmul.f32 %v2689, %v2927
      %v3010 = vmul.f32 %v2690, %v2929
      %v3011 = vmul.f32 %v2691, %v2931
      %v3012 = vmul.f32 %v2692, %v2933
      %v3013 = vmul.f32 %v2693, %v2935
      %v3014 = vmul.f32 %v2694, %v2937
      %v3015 = vmul.f32 %v2695, %v2939
      %v3016 = vmul.f32 %v2696, %v2941
      %v3017 = vmul.f32 %v2697, %v2943
      %v3018 = vmul.f32 %v2698, %v2945
      %v3019 = vmul.f32 %v2699, %v2947
      %v3020 = vmul.f32 %v2700, %v2949
      %v3021 = vmul.f32 %v2701, %v2951
      %v3022 = vmul.f32 %v2702, %v2953
      %v3023 = vmul.f32 %v2703, %v2955
      %v3024 = vmul.f32 %v2704, %v2957
      %v3025 = vmul.f32 %v2705, %v2959
      %v3026 = vmul.f32 %v2706, %v2961
      %v3027 = vmul.f32 %v2707, %v2963
      %v3028 = vsub.f32 1.0, %v2964
      %v3029 = vsub.f32 1.0, %v2965
      %v3030 = vsub.f32 1.0, %v2966
      %v3031 = vsub.f32 1.0, %v2967
      %v3032 = vsub.f32 1.0, %v2968
      %v3033 = vsub.f32 1.0, %v2969
      %v3034 = vsub.f32 1.0, %v2970
      %v3035 = vsub.f32 1.0, %v2971
      %v3036 = vsub.f32 1.0, %v2972
      %v3037 = vsub.f32 1.0, %v2973
      %v3038 = vsub.f32 1.0, %v2974
      %v3039 = vsub.f32 1.0, %v2975
      %v3040 = vsub.f32 1.0, %v2976
      %v3041 = vsub.f32 1.0, %v2977
      %v3042 = vsub.f32 1.0, %v2978
      %v3043 = vsub.f32 1.0, %v2979
      %v3044 = vsub.f32 1.0, %v2980
      %v3045 = vsub.f32 1.0, %v2981
      %v3046 = vsub.f32 1.0, %v2982
      %v3047 = vsub.f32 1.0, %v2983
      %v3048 = vsub.f32 1.0, %v2984
      %v3049 = vsub.f32 1.0, %v2985
      %v3050 = vsub.f32 1.0, %v2986
      %v3051 = vsub.f32 1.0, %v2987
      %v3052 = vsub.f32 1.0, %v2988
      %v3053 = vsub.f32 1.0, %v2989
      %v3054 = vsub.f32 1.0, %v2990
      %v3055 = vsub.f32 1.0, %v2991
      %v3056 = vsub.f32 1.0, %v2992
      %v3057 = vsub.f32 1.0, %v2993
      %v3058 = vsub.f32 1.0, %v2994
      %v3059 = vsub.f32 1.0, %v2995
      %v3060 = vsub.f32 1.0, %v2996
      %v3061 = vsub.f32 1.0, %v2997
      %v3062 = vsub.f32 1.0, %v2998
      %v3063 = vsub.f32 1.0, %v2999
      %v3064 = vsub.f32 1.0, %v3000
      %v3065 = vsub.f32 1.0, %v3001
      %v3066 = vsub.f32 1.0, %v3002
      %v3067 = vsub.f32 1.0, %v3003
      %v3068 = vsub.f32 1.0, %v3004
      %v3069 = vsub.f32 1.0, %v3005
      %v3070 = vsub.f32 1.0, %v3006
      %v3071 = vsub.f32 1.0, %v3007
      %v3072 = vsub.f32 1.0, %v3008
      %v3073 = vsub.f32 1.0, %v3009
      %v3074 = vsub.f32 1.0, %v3010
      %v3075 = vsub.f32 1.0, %v3011
      %v3076 = vsub.f32 1.0, %v3012
      %v3077 = vsub.f32 1.0, %v3013
      %v3078 = vsub.f32 1.0, %v3014
      %v3079 = vsub.f32 1.0, %v3015
      %v3080 = vsub.f32 1.0, %v3016
      %v3081 = vsub.f32 1.0, %v3017
      %v3082 = vsub.f32 1.0, %v3018
      %v3083 = vsub.f32 1.0, %v3019
      %v3084 = vsub.f32 1.0, %v3020
      %v3085 = vsub.f32 1.0, %v3021
      %v3086 = vsub.f32 1.0, %v3022
      %v3087 = vsub.f32 1.0, %v3023
      %v3088 = vsub.f32 1.0, %v3024
      %v3089 = vsub.f32 1.0, %v3025
      %v3090 = vsub.f32 1.0, %v3026
      %v3091 = vsub.f32 1.0, %v3027
      %v3092 = vmul.f32 %v1812, %v3028
      %v3093 = vmul.f32 %v1813, %v3029
      %v3094 = vmul.f32 %v1814, %v3030
      %v3095 = vmul.f32 %v1815, %v3031
      %v3096 = vmul.f32 %v1816, %v3032
      %v3097 = vmul.f32 %v1817, %v3033
      %v3098 = vmul.f32 %v1818, %v3034
      %v3099 = vmul.f32 %v1819, %v3035
      %v3100 = vmul.f32 %v1820, %v3036
      %v3101 = vmul.f32 %v1821, %v3037
      %v3102 = vmul.f32 %v1822, %v3038
      %v3103 = vmul.f32 %v1823, %v3039
      %v3104 = vmul.f32 %v1824, %v3040
      %v3105 = vmul.f32 %v1825, %v3041
      %v3106 = vmul.f32 %v1826, %v3042
      %v3107 = vmul.f32 %v1827, %v3043
      %v3108 = vmul.f32 %v1828, %v3044
      %v3109 = vmul.f32 %v1829, %v3045
      %v3110 = vmul.f32 %v1830, %v3046
      %v3111 = vmul.f32 %v1831, %v3047
      %v3112 = vmul.f32 %v1832, %v3048
      %v3113 = vmul.f32 %v1833, %v3049
      %v3114 = vmul.f32 %v1834, %v3050
      %v3115 = vmul.f32 %v1835, %v3051
      %v3116 = vmul.f32 %v1836, %v3052
      %v3117 = vmul.f32 %v1837, %v3053
      %v3118 = vmul.f32 %v1838, %v3054
      %v3119 = vmul.f32 %v1839, %v3055
      %v3120 = vmul.f32 %v1840, %v3056
      %v3121 = vmul.f32 %v1841, %v3057
      %v3122 = vmul.f32 %v1842, %v3058
      %v3123 = vmul.f32 %v1843, %v3059
      %v3124 = vmul.f32 %v1844, %v3060
      %v3125 = vmul.f32 %v1845, %v3061
      %v3126 = vmul.f32 %v1846, %v3062
      %v3127 = vmul.f32 %v1847, %v3063
      %v3128 = vmul.f32 %v1848, %v3064
      %v3129 = vmul.f32 %v1849, %v3065
      %v3130 = vmul.f32 %v1850, %v3066
      %v3131 = vmul.f32 %v1851, %v3067
      %v3132 = vmul.f32 %v1852, %v3068
      %v3133 = vmul.f32 %v1853, %v3069
      %v3134 = vmul.f32 %v1854, %v3070
      %v3135 = vmul.f32 %v1855, %v3071
      %v3136 = vmul.f32 %v1856, %v3072
      %v3137 = vmul.f32 %v1857, %v3073
      %v3138 = vmul.f32 %v1858, %v3074
      %v3139 = vmul.f32 %v1859, %v3075
      %v3140 = vmul.f32 %v1860, %v3076
      %v3141 = vmul.f32 %v1861, %v3077
      %v3142 = vmul.f32 %v1862, %v3078
      %v3143 = vmul.f32 %v1863, %v3079
      %v3144 = vmul.f32 %v1864, %v3080
      %v3145 = vmul.f32 %v1865, %v3081
      %v3146 = vmul.f32 %v1866, %v3082
      %v3147 = vmul.f32 %v1867, %v3083
      %v3148 = vmul.f32 %v1868, %v3084
      %v3149 = vmul.f32 %v1869, %v3085
      %v3150 = vmul.f32 %v1870, %v3086
      %v3151 = vmul.f32 %v1871, %v3087
      %v3152 = vmul.f32 %v1872, %v3088
      %v3153 = vmul.f32 %v1873, %v3089
      %v3154 = vmul.f32 %v1874, %v3090
      %v3155 = vmul.f32 %v1875, %v3091
      %v3156 = vadd.f32 %v3092, 1.0
      %v3157 = vadd.f32 %v3093, 1.0
      %v3158 = vadd.f32 %v3094, 1.0
      %v3159 = vadd.f32 %v3095, 1.0
      %v3160 = vadd.f32 %v3096, 1.0
      %v3161 = vadd.f32 %v3097, 1.0
      %v3162 = vadd.f32 %v3098, 1.0
      %v3163 = vadd.f32 %v3099, 1.0
      %v3164 = vadd.f32 %v3100, 1.0
      %v3165 = vadd.f32 %v3101, 1.0
      %v3166 = vadd.f32 %v3102, 1.0
      %v3167 = vadd.f32 %v3103, 1.0
      %v3168 = vadd.f32 %v3104, 1.0
      %v3169 = vadd.f32 %v3105, 1.0
      %v3170 = vadd.f32 %v3106, 1.0
      %v3171 = vadd.f32 %v3107, 1.0
      %v3172 = vadd.f32 %v3108, 1.0
      %v3173 = vadd.f32 %v3109, 1.0
      %v3174 = vadd.f32 %v3110, 1.0
      %v3175 = vadd.f32 %v3111, 1.0
      %v3176 = vadd.f32 %v3112, 1.0
      %v3177 = vadd.f32 %v3113, 1.0
      %v3178 = vadd.f32 %v3114, 1.0
      %v3179 = vadd.f32 %v3115, 1.0
      %v3180 = vadd.f32 %v3116, 1.0
      %v3181 = vadd.f32 %v3117, 1.0
      %v3182 = vadd.f32 %v3118, 1.0
      %v3183 = vadd.f32 %v3119, 1.0
      %v3184 = vadd.f32 %v3120, 1.0
      %v3185 = vadd.f32 %v3121, 1.0
      %v3186 = vadd.f32 %v3122, 1.0
      %v3187 = vadd.f32 %v3123, 1.0
      %v3188 = vadd.f32 %v3124, 1.0
      %v3189 = vadd.f32 %v3125, 1.0
      %v3190 = vadd.f32 %v3126, 1.0
      %v3191 = vadd.f32 %v3127, 1.0
      %v3192 = vadd.f32 %v3128, 1.0
      %v3193 = vadd.f32 %v3129, 1.0
      %v3194 = vadd.f32 %v3130, 1.0
      %v3195 = vadd.f32 %v3131, 1.0
      %v3196 = vadd.f32 %v3132, 1.0
      %v3197 = vadd.f32 %v3133, 1.0
      %v3198 = vadd.f32 %v3134, 1.0
      %v3199 = vadd.f32 %v3135, 1.0
      %v3200 = vadd.f32 %v3136, 1.0
      %v3201 = vadd.f32 %v3137, 1.0
      %v3202 = vadd.f32 %v3138, 1.0
      %v3203 = vadd.f32 %v3139, 1.0
      %v3204 = vadd.f32 %v3140, 1.0
      %v3205 = vadd.f32 %v3141, 1.0
      %v3206 = vadd.f32 %v3142, 1.0
      %v3207 = vadd.f32 %v3143, 1.0
      %v3208 = vadd.f32 %v3144, 1.0
      %v3209 = vadd.f32 %v3145, 1.0
      %v3210 = vadd.f32 %v3146, 1.0
      %v3211 = vadd.f32 %v3147, 1.0
      %v3212 = vadd.f32 %v3148, 1.0
      %v3213 = vadd.f32 %v3149, 1.0
      %v3214 = vadd.f32 %v3150, 1.0
      %v3215 = vadd.f32 %v3151, 1.0
      %v3216 = vadd.f32 %v3152, 1.0
      %v3217 = vadd.f32 %v3153, 1.0
      %v3218 = vadd.f32 %v3154, 1.0
      %v3219 = vadd.f32 %v3155, 1.0
      %v3220 = vmul.f32 %v1620, %v3156
      %v3221 = vmul.f32 %v1621, %v3157
      %v3222 = vmul.f32 %v1622, %v3158
      %v3223 = vmul.f32 %v1623, %v3159
      %v3224 = vmul.f32 %v1624, %v3160
      %v3225 = vmul.f32 %v1625, %v3161
      %v3226 = vmul.f32 %v1626, %v3162
      %v3227 = vmul.f32 %v1627, %v3163
      %v3228 = vmul.f32 %v1628, %v3164
      %v3229 = vmul.f32 %v1629, %v3165
      %v3230 = vmul.f32 %v1630, %v3166
      %v3231 = vmul.f32 %v1631, %v3167
      %v3232 = vmul.f32 %v1632, %v3168
      %v3233 = vmul.f32 %v1633, %v3169
      %v3234 = vmul.f32 %v1634, %v3170
      %v3235 = vmul.f32 %v1635, %v3171
      %v3236 = vmul.f32 %v1636, %v3172
      %v3237 = vmul.f32 %v1637, %v3173
      %v3238 = vmul.f32 %v1638, %v3174
      %v3239 = vmul.f32 %v1639, %v3175
      %v3240 = vmul.f32 %v1640, %v3176
      %v3241 = vmul.f32 %v1641, %v3177
      %v3242 = vmul.f32 %v1642, %v3178
      %v3243 = vmul.f32 %v1643, %v3179
      %v3244 = vmul.f32 %v1644, %v3180
      %v3245 = vmul.f32 %v1645, %v3181
      %v3246 = vmul.f32 %v1646, %v3182
      %v3247 = vmul.f32 %v1647, %v3183
      %v3248 = vmul.f32 %v1648, %v3184
      %v3249 = vmul.f32 %v1649, %v3185
      %v3250 = vmul.f32 %v1650, %v3186
      %v3251 = vmul.f32 %v1651, %v3187
      %v3252 = vmul.f32 %v1652, %v3188
      %v3253 = vmul.f32 %v1653, %v3189
      %v3254 = vmul.f32 %v1654, %v3190
      %v3255 = vmul.f32 %v1655, %v3191
      %v3256 = vmul.f32 %v1656, %v3192
      %v3257 = vmul.f32 %v1657, %v3193
      %v3258 = vmul.f32 %v1658, %v3194
      %v3259 = vmul.f32 %v1659, %v3195
      %v3260 = vmul.f32 %v1660, %v3196
      %v3261 = vmul.f32 %v1661, %v3197
      %v3262 = vmul.f32 %v1662, %v3198
      %v3263 = vmul.f32 %v1663, %v3199
      %v3264 = vmul.f32 %v1664, %v3200
      %v3265 = vmul.f32 %v1665, %v3201
      %v3266 = vmul.f32 %v1666, %v3202
      %v3267 = vmul.f32 %v1667, %v3203
      %v3268 = vmul.f32 %v1668, %v3204
      %v3269 = vmul.f32 %v1669, %v3205
      %v3270 = vmul.f32 %v1670, %v3206
      %v3271 = vmul.f32 %v1671, %v3207
      %v3272 = vmul.f32 %v1672, %v3208
      %v3273 = vmul.f32 %v1673, %v3209
      %v3274 = vmul.f32 %v1674, %v3210
      %v3275 = vmul.f32 %v1675, %v3211
      %v3276 = vmul.f32 %v1676, %v3212
      %v3277 = vmul.f32 %v1677, %v3213
      %v3278 = vmul.f32 %v1678, %v3214
      %v3279 = vmul.f32 %v1679, %v3215
      %v3280 = vmul.f32 %v1680, %v3216
      %v3281 = vmul.f32 %v1681, %v3217
      %v3282 = vmul.f32 %v1682, %v3218
      %v3283 = vmul.f32 %v1683, %v3219
      %3284 = vst.msk [vmem:[#allocation13] sm:$0xff] %vm175, %v3220
      %3285 = vst.msk [vmem:[#allocation13 + $0x8] sm:$0xff] %vm175, %v3221
      %3286 = vst.msk [vmem:[#allocation13 + $0x10] sm:$0xff] %vm175, %v3222
      %3287 = vst.msk [vmem:[#allocation13 + $0x18] sm:$0xff] %vm175, %v3223
      %3288 = vst.msk [vmem:[#allocation13 + $0x20] sm:$0xff] %vm175, %v3224
      %3289 = vst.msk [vmem:[#allocation13 + $0x28] sm:$0xff] %vm175, %v3225
      %3290 = vst.msk [vmem:[#allocation13 + $0x30] sm:$0xff] %vm175, %v3226
      %3291 = vst.msk [vmem:[#allocation13 + $0x38] sm:$0xff] %vm175, %v3227
      %3292 = vst.msk [vmem:[#allocation13 + $0x40] sm:$0xff] %vm175, %v3228
      %3293 = vst.msk [vmem:[#allocation13 + $0x48] sm:$0xff] %vm175, %v3229
      %3294 = vst.msk [vmem:[#allocation13 + $0x50] sm:$0xff] %vm175, %v3230
      %3295 = vst.msk [vmem:[#allocation13 + $0x58] sm:$0xff] %vm175, %v3231
      %3296 = vst.msk [vmem:[#allocation13 + $0x60] sm:$0xff] %vm175, %v3232
      %3297 = vst.msk [vmem:[#allocation13 + $0x68] sm:$0xff] %vm175, %v3233
      %3298 = vst.msk [vmem:[#allocation13 + $0x70] sm:$0xff] %vm175, %v3234
      %3299 = vst.msk [vmem:[#allocation13 + $0x78] sm:$0xff] %vm175, %v3235
      %3300 = vst.msk [vmem:[#allocation13 + $0x80] sm:$0xff] %vm175, %v3236
      %3301 = vst.msk [vmem:[#allocation13 + $0x88] sm:$0xff] %vm175, %v3237
      %3302 = vst.msk [vmem:[#allocation13 + $0x90] sm:$0xff] %vm175, %v3238
      %3303 = vst.msk [vmem:[#allocation13 + $0x98] sm:$0xff] %vm175, %v3239
      %3304 = vst.msk [vmem:[#allocation13 + $0xa0] sm:$0xff] %vm175, %v3240
      %3305 = vst.msk [vmem:[#allocation13 + $0xa8] sm:$0xff] %vm175, %v3241
      %3306 = vst.msk [vmem:[#allocation13 + $0xb0] sm:$0xff] %vm175, %v3242
      %3307 = vst.msk [vmem:[#allocation13 + $0xb8] sm:$0xff] %vm175, %v3243
      %3308 = vst.msk [vmem:[#allocation13 + $0xc0] sm:$0xff] %vm175, %v3244
      %3309 = vst.msk [vmem:[#allocation13 + $0xc8] sm:$0xff] %vm175, %v3245
      %3310 = vst.msk [vmem:[#allocation13 + $0xd0] sm:$0xff] %vm175, %v3246
      %3311 = vst.msk [vmem:[#allocation13 + $0xd8] sm:$0xff] %vm175, %v3247
      %3312 = vst.msk [vmem:[#allocation13 + $0xe0] sm:$0xff] %vm175, %v3248
      %3313 = vst.msk [vmem:[#allocation13 + $0xe8] sm:$0xff] %vm175, %v3249
      %3314 = vst.msk [vmem:[#allocation13 + $0xf0] sm:$0xff] %vm175, %v3250
      %3315 = vst.msk [vmem:[#allocation13 + $0xf8] sm:$0xff] %vm175, %v3251
      %3316 = vst.msk [vmem:[#allocation13 + $0x100] sm:$0xff] %vm175, %v3252
      %3317 = vst.msk [vmem:[#allocation13 + $0x108] sm:$0xff] %vm175, %v3253
      %3318 = vst.msk [vmem:[#allocation13 + $0x110] sm:$0xff] %vm175, %v3254
      %3319 = vst.msk [vmem:[#allocation13 + $0x118] sm:$0xff] %vm175, %v3255
      %3320 = vst.msk [vmem:[#allocation13 + $0x120] sm:$0xff] %vm175, %v3256
      %3321 = vst.msk [vmem:[#allocation13 + $0x128] sm:$0xff] %vm175, %v3257
      %3322 = vst.msk [vmem:[#allocation13 + $0x130] sm:$0xff] %vm175, %v3258
      %3323 = vst.msk [vmem:[#allocation13 + $0x138] sm:$0xff] %vm175, %v3259
      %3324 = vst.msk [vmem:[#allocation13 + $0x140] sm:$0xff] %vm175, %v3260
      %3325 = vst.msk [vmem:[#allocation13 + $0x148] sm:$0xff] %vm175, %v3261
      %3326 = vst.msk [vmem:[#allocation13 + $0x150] sm:$0xff] %vm175, %v3262
      %3327 = vst.msk [vmem:[#allocation13 + $0x158] sm:$0xff] %vm175, %v3263
      %3328 = vst.msk [vmem:[#allocation13 + $0x160] sm:$0xff] %vm175, %v3264
      %3329 = vst.msk [vmem:[#allocation13 + $0x168] sm:$0xff] %vm175, %v3265
      %3330 = vst.msk [vmem:[#allocation13 + $0x170] sm:$0xff] %vm175, %v3266
      %3331 = vst.msk [vmem:[#allocation13 + $0x178] sm:$0xff] %vm175, %v3267
      %3332 = vst.msk [vmem:[#allocation13 + $0x180] sm:$0xff] %vm175, %v3268
      %3333 = vst.msk [vmem:[#allocation13 + $0x188] sm:$0xff] %vm175, %v3269
      %3334 = vst.msk [vmem:[#allocation13 + $0x190] sm:$0xff] %vm175, %v3270
      %3335 = vst.msk [vmem:[#allocation13 + $0x198] sm:$0xff] %vm175, %v3271
      %3336 = vst.msk [vmem:[#allocation13 + $0x1a0] sm:$0xff] %vm175, %v3272
      %3337 = vst.msk [vmem:[#allocation13 + $0x1a8] sm:$0xff] %vm175, %v3273
      %3338 = vst.msk [vmem:[#allocation13 + $0x1b0] sm:$0xff] %vm175, %v3274
      %3339 = vst.msk [vmem:[#allocation13 + $0x1b8] sm:$0xff] %vm175, %v3275
      %3340 = vst.msk [vmem:[#allocation13 + $0x1c0] sm:$0xff] %vm175, %v3276
      %3341 = vst.msk [vmem:[#allocation13 + $0x1c8] sm:$0xff] %vm175, %v3277
      %3342 = vst.msk [vmem:[#allocation13 + $0x1d0] sm:$0xff] %vm175, %v3278
      %3343 = vst.msk [vmem:[#allocation13 + $0x1d8] sm:$0xff] %vm175, %v3279
      %3344 = vst.msk [vmem:[#allocation13 + $0x1e0] sm:$0xff] %vm175, %v3280
      %3345 = vst.msk [vmem:[#allocation13 + $0x1e8] sm:$0xff] %vm175, %v3281
      %3346 = vst.msk [vmem:[#allocation13 + $0x1f0] sm:$0xff] %vm175, %v3282
      %3347 = vst.msk [vmem:[#allocation13 + $0x1f8] sm:$0xff] %vm175, %v3283
    $region53: #{fno2d_forward.10} parent=1 // pred_fallthru
      _
    // Predicated region
    $region54: #{fno2d_forward.10} parent=1 // pred_check
      _
    $region55: #{fno2d_forward.10} parent=1 // pred_check_branch
      %3349 = sbr.rel (0) target = $region57
    $region56: #{fno2d_forward.10} parent=1 // pred_region
      %s3351 = ssub.s32 8192, 8192
      %3352 = vsyncadd [#allocation4], %s3351
      %s3353 = sshll.u32 [#allocation13], 4
      %s3354 = int_to_ptr.vmem [resolvable:$true] %s3353
      %3359 = dma.vmem_to_hbm [thread:$0]  %s3354, 8192, %s6, [#allocation4], 128, 128, 8
    $region57: #{fno2d_forward.10} parent=1 // pred_fallthru
      _
    // Predicated region
    $region58: #{fno2d_forward.10} parent=1 // pred_check
      _
    $region59: #{fno2d_forward.10} parent=1 // pred_check_branch
      %3361 = sbr.rel (0) target = $region61
    $region60: #{fno2d_forward.10} parent=1 // pred_region
      %3362 = dma.done [#allocation4], 8192
    $region61: #{fno2d_forward.10} parent=1 // pred_fallthru
      _
    %3363 = vsyncpa [#allocation3], 1
    %3364 = vsyncpa [#allocation6], 1
    %3365 = vsyncpa [#allocation9], 1
    %3366 = vsyncpa [#allocation12], 1
    %3367 = vsyncpa [#allocation4], 1

</llo_original>
